<compile_context>
chip_gen: v5e
topology: v5e:2x2
jax: 0.10.0
libtpu: 0.0.40
codegen_flags: <defaults>
</compile_context>

<pallas_src>
import functools

import jax
import jax.numpy as jnp
from jax.experimental import pallas as pl
from jax.experimental.pallas import tpu as pltpu


# ----------------------------------------------------------------------------
# Fused Pallas kernel: the entire MFF forward for one batch element.
# ----------------------------------------------------------------------------
def _mff_fused_kernel(xcol_ref, wA_ref, wB_ref, wC_ref, bias_ref, o_ref,
                      xc1pad_ref, mpad_ref, *, H, W):
    f32 = jnp.float32
    HW = H * W
    C = wA_ref.shape[1] // 2          # concat width: 4 branches x 16 = 64
    Cf = wC_ref.shape[2]              # final conv output channels (64)

    # --- stage 1: conv1 & conv2 of all four up-projections as ONE
    #     block-diagonal deep-K matmul (BN scale already folded into wA).
    y = jnp.dot(xcol_ref[0], wA_ref[...], preferred_element_type=f32)  # (HW, 2C)
    x_conv1 = jnp.maximum(y[:, :C] + bias_ref[0], 0.0)   # relu(bn1(conv1(x)))
    bran2 = y[:, C:] + bias_ref[1]                        # bn2(conv2(x))

    # --- stage 2: 3x3 conv1_2 (block-diagonal across branches) on the
    #     VMEM-resident x_conv1, + bran2 residual, ReLU -> 64-ch branch concat.
    xc1pad_ref[...] = jnp.zeros_like(xc1pad_ref)
    xc1pad_ref[1:1 + H, 1:1 + W, :] = (
        x_conv1.reshape(H, W, C).astype(xc1pad_ref.dtype))
    accB = bran2
    for dy in range(3):                                   # per-dy-row im2col, K = 3*C
        row = xc1pad_ref[dy:dy + H, :, :]                 # (H, W+2, C)
        patch = jnp.concatenate(
            [row[:, dx:dx + W, :] for dx in range(3)], axis=-1)
        accB = accB + jnp.dot(patch.reshape(HW, 3 * C), wB_ref[dy],
                              preferred_element_type=f32)
    m = jnp.maximum(accB + bias_ref[2], 0.0)              # relu(bran1 + bran2)

    # --- stage 3: final 5x5 conv + bn + relu on the VMEM-resident concat.
    mpad_ref[...] = jnp.zeros_like(mpad_ref)
    mpad_ref[2:2 + H, 2:2 + W, :] = m.reshape(H, W, C).astype(mpad_ref.dtype)
    accC = jnp.zeros((HW, Cf), f32)
    for dy in range(5):                                   # per-dy-row im2col, K = 5*C
        row = mpad_ref[dy:dy + H, :, :]                   # (H, W+4, C)
        patch = jnp.concatenate(
            [row[:, dx:dx + W, :] for dx in range(5)], axis=-1)
        accC = accC + jnp.dot(patch.reshape(HW, 5 * C), wC_ref[dy],
                              preferred_element_type=f32)
    o_ref[0, :, :] = jnp.maximum(accC + bias_ref[3], 0.0)


def _mff_fused_pallas(xcol, wA, wB, wC, biases, *, H, W):
    N, HW, K = xcol.shape
    c_cat = wA.shape[1] // 2
    c_out = wC.shape[2]
    kernel = functools.partial(_mff_fused_kernel, H=H, W=W)
    return pl.pallas_call(
        kernel,
        out_shape=jax.ShapeDtypeStruct((N, HW, c_out), jnp.float32),
        grid=(N,),
        in_specs=[
            pl.BlockSpec((1, HW, K), lambda n: (n, 0, 0)),
            pl.BlockSpec(wA.shape, lambda n: (0, 0)),
            pl.BlockSpec(wB.shape, lambda n: (0, 0, 0)),
            pl.BlockSpec(wC.shape, lambda n: (0, 0, 0)),
            pl.BlockSpec(biases.shape, lambda n: (0, 0, 0)),
        ],
        out_specs=pl.BlockSpec((1, HW, c_out), lambda n: (n, 0, 0)),
        scratch_shapes=[
            pltpu.VMEM((H + 2, W + 2, c_cat), jnp.bfloat16),   # padded x_conv1
            pltpu.VMEM((H + 4, W + 4, c_cat), jnp.bfloat16),   # padded concat
        ],
        compiler_params=pltpu.CompilerParams(
            dimension_semantics=("parallel",)),
    )(xcol, wA, wB, wC, biases)


# ----------------------------------------------------------------------------
# Parameter construction (deterministic, synthetic) + BN folding
# ----------------------------------------------------------------------------
_BN_EPS = 1e-5


def _fold_bn(gamma, beta, mean, var):
    scale = gamma / jnp.sqrt(var + _BN_EPS)
    bias = beta - mean * scale
    return scale, bias


def _make_conv_bn_params(key, kh, kw, cin, cout):
    k_w, k_g, k_b, k_m, k_v = jax.random.split(key, 5)
    w = 0.1 * jax.random.normal(k_w, (kh, kw, cin, cout), jnp.float32)  # HWIO
    gamma = 1.0 + 0.1 * jax.random.normal(k_g, (cout,), jnp.float32)
    beta = 0.1 * jax.random.normal(k_b, (cout,), jnp.float32)
    mean = 0.1 * jax.random.normal(k_m, (cout,), jnp.float32)
    var = 0.5 + jnp.abs(jax.random.normal(k_v, (cout,), jnp.float32))
    scale, bias = _fold_bn(gamma, beta, mean, var)
    return {"w": w, "scale": scale, "bias": bias}


def make_up_projection_params(key, cin, cout=16):
    k1, k2, k3 = jax.random.split(key, 3)
    return {
        "conv1": _make_conv_bn_params(k1, 5, 5, cin, cout),     # + bn1
        "conv1_2": _make_conv_bn_params(k2, 3, 3, cout, cout),  # + bn1_2
        "conv2": _make_conv_bn_params(k3, 5, 5, cin, cout),     # + bn2
    }


def make_mff_params(key, block_channel, num_features=64):
    ks = jax.random.split(key, 5)
    return {
        "up1": make_up_projection_params(ks[0], block_channel[0]),
        "up2": make_up_projection_params(ks[1], block_channel[1]),
        "up3": make_up_projection_params(ks[2], block_channel[2]),
        "up4": make_up_projection_params(ks[3], block_channel[3]),
        "conv": _make_conv_bn_params(ks[4], 5, 5, num_features, num_features),
    }


def build_fused_weights(params, block_channel, num_features=64,
                        mxu_dtype=jnp.bfloat16):
    """Fold BN scales into the conv weights and pack them for the fused kernel.

    wA: block-diagonal (K_pad, 2*64) matrix; branch b's 5x5 conv1/conv2
        (im2col'd, (dy,dx,cin)-major) occupy rows offs[b]:offs[b+1] and columns
        [b*16:(b+1)*16] (-> x_conv1) and [64+b*16:64+(b+1)*16] (-> bran2).
    wB: (3, 3*64, 64) per-dy-row block-diagonal 3x3 conv1_2 weights.
    wC: (5, 5*64, 64) per-dy-row final 5x5 conv weights.
    biases: (4, 1, 64) rows = [bn1, bn2, bn1_2, bn_final] biases.
    """
    nb = len(block_channel)
    cb = 16                                   # per-branch output channels
    c_cat = nb * cb
    assert num_features == c_cat, "fused packing assumes num_features == 4*16"

    offs = [0]
    for c in block_channel:
        offs.append(offs[-1] + 25 * c)
    k_tot = offs[-1]
    k_pad = ((k_tot + 127) // 128) * 128      # round K up to a lane multiple

    wA = jnp.zeros((k_pad, 2 * c_cat), jnp.float32)
    wB = jnp.zeros((3, 3 * c_cat, c_cat), jnp.float32)
    b1 = jnp.zeros((c_cat,), jnp.float32)
    b2 = jnp.zeros((c_cat,), jnp.float32)
    b12 = jnp.zeros((c_cat,), jnp.float32)
    for b in range(nb):
        up = params[f"up{b + 1}"]
        cin = block_channel[b]
        w1 = (up["conv1"]["w"] * up["conv1"]["scale"]).reshape(25 * cin, cb)
        w2 = (up["conv2"]["w"] * up["conv2"]["scale"]).reshape(25 * cin, cb)
        w12 = up["conv1_2"]["w"] * up["conv1_2"]["scale"]        # (3,3,16,16)
        r0, r1 = offs[b], offs[b + 1]
        c0, c1 = b * cb, (b + 1) * cb
        wA = wA.at[r0:r1, c0:c1].set(w1)
        wA = wA.at[r0:r1, c_cat + c0:c_cat + c1].set(w2)
        for dx in range(3):
            wB = wB.at[:, dx * c_cat + c0:dx * c_cat + c1, c0:c1].set(w12[:, dx])
        b1 = b1.at[c0:c1].set(up["conv1"]["bias"])
        b2 = b2.at[c0:c1].set(up["conv2"]["bias"])
        b12 = b12.at[c0:c1].set(up["conv1_2"]["bias"])

    wC = (params["conv"]["w"] * params["conv"]["scale"]).reshape(
        5, 5 * num_features, num_features)
    bC = params["conv"]["bias"]
    biases = jnp.stack([b1, b2, b12, bC]).reshape(4, 1, c_cat)
    return {"wA": wA.astype(mxu_dtype), "wB": wB.astype(mxu_dtype),
            "wC": wC.astype(mxu_dtype), "biases": biases}


# ----------------------------------------------------------------------------
# Forward pass (NCHW in / NCHW out, matching the PyTorch module)
# ----------------------------------------------------------------------------
def _im2col_5x5(x_nhwc):
    """(N,H,W,C) -> (N, H*W, 25*C), 'same' padding, (dy,dx,cin)-major columns."""
    N, H, W, C = x_nhwc.shape
    xp = jnp.pad(x_nhwc, ((0, 0), (2, 2), (2, 2), (0, 0)))
    cols = [xp[:, dy:dy + H, dx:dx + W, :]
            for dy in range(5) for dx in range(5)]
    return jnp.concatenate(cols, axis=-1).reshape(N, H * W, 25 * C)


def mff_forward(fused, x_block1, x_block2, x_block3, x_block4, size):
    H, W = size
    cols = []
    for x in (x_block1, x_block2, x_block3, x_block4):
        xh = jnp.transpose(x, (0, 2, 3, 1)).astype(jnp.float32)   # NCHW -> NHWC
        # Modern PyTorch F.upsample(mode='bilinear') defaults to
        # align_corners=False, which jax.image.resize('bilinear') matches.
        xh = jax.image.resize(xh, (xh.shape[0], H, W, xh.shape[3]),
                              method="bilinear")
        cols.append(_im2col_5x5(xh))
    xcol = jnp.concatenate(cols, axis=-1)          # (N, H*W, 25*sum(Cin))
    k_pad = fused["wA"].shape[0]
    if xcol.shape[-1] < k_pad:                     # zero-pad K to lane multiple
        xcol = jnp.pad(xcol, ((0, 0), (0, 0), (0, k_pad - xcol.shape[-1])))
    xcol = xcol.astype(fused["wA"].dtype)          # bf16 MXU operands

    y = _mff_fused_pallas(xcol, fused["wA"], fused["wB"], fused["wC"],
                          fused["biases"], H=H, W=W)   # (N, H*W, 64) f32
    y = y.reshape(y.shape[0], H, W, y.shape[-1])
    return jnp.transpose(y, (0, 3, 1, 2))              # NHWC -> NCHW


# ----------------------------------------------------------------------------
# Main
# ----------------------------------------------------------------------------
if __name__ == "__main__":
    key = jax.random.PRNGKey(0)
    k_p, k1, k2, k3, k4 = jax.random.split(key, 5)

    block_channel = [4, 8, 8, 16]
    N = 2
    size = (16, 16)

    # PyTorch-convention NCHW feature maps at decreasing resolution.
    x_block1 = jax.random.normal(k1, (N, block_channel[0], 16, 16), jnp.float32)
    x_block2 = jax.random.normal(k2, (N, block_channel[1], 8, 8), jnp.float32)
    x_block3 = jax.random.normal(k3, (N, block_channel[2], 4, 4), jnp.float32)
    x_block4 = jax.random.normal(k4, (N, block_channel[3], 2, 2), jnp.float32)

    params = make_mff_params(k_p, block_channel, num_features=64)
    fused = build_fused_weights(params, block_channel, num_features=64)

    fwd = jax.jit(functools.partial(mff_forward, size=size))
    out = fwd(fused, x_block1, x_block2, x_block3, x_block4)
    out = jax.block_until_ready(out)

    assert out.shape == (N, 64, size[0], size[1]), out.shape
    assert bool(jnp.all(jnp.isfinite(out)))
    print("KERNEL_OK")
</pallas_src>

<mosaic_0001>
module attributes {stable_mosaic.version = 11 : i64} {
  func.func @_mff_fused_kernel(%arg0: i32, %arg1: memref<1x256x1024xbf16, #tpu.memory_space<vmem>>, %arg2: memref<1024x128xbf16, #tpu.memory_space<vmem>>, %arg3: memref<3x192x64xbf16, #tpu.memory_space<vmem>>, %arg4: memref<5x320x64xbf16, #tpu.memory_space<vmem>>, %arg5: memref<4x1x64xf32, #tpu.memory_space<vmem>>, %arg6: memref<1x256x64xf32, #tpu.memory_space<vmem>>, %arg7: memref<18x18x64xbf16, #tpu.memory_space<vmem>>, %arg8: memref<20x20x64xbf16, #tpu.memory_space<vmem>>) attributes {dimension_semantics = [#tpu.dimension_semantics<parallel>], iteration_bounds = array<i64: 2>, scalar_prefetch = 0 : i64, scratch_operands = 2 : i64, tpu.core_type = #tpu.core_type<tc>, window_params = [{transform_indices = @transform_0, window_bounds = array<i64: 1, 256, 1024>}, {pipeline_mode = #tpu.pipeline_mode<synchronous>, transform_indices = @transform_1, window_bounds = array<i64: 1024, 128>}, {pipeline_mode = #tpu.pipeline_mode<synchronous>, transform_indices = @transform_2, window_bounds = array<i64: 3, 192, 64>}, {pipeline_mode = #tpu.pipeline_mode<synchronous>, transform_indices = @transform_3, window_bounds = array<i64: 5, 320, 64>}, {pipeline_mode = #tpu.pipeline_mode<synchronous>, transform_indices = @transform_4, window_bounds = array<i64: 4, 1, 64>}, {transform_indices = @transform_5, window_bounds = array<i64: 1, 256, 64>}]} {
    %c0 = arith.constant 0 : index
    %c0_0 = arith.constant 0 : index
    %c0_1 = arith.constant 0 : index
    %0 = vector.load %arg1[%c0, %c0_0, %c0_1] : memref<1x256x1024xbf16, #tpu.memory_space<vmem>>, vector<1x256x1024xbf16>
    %1 = vector.shape_cast %0 : vector<1x256x1024xbf16> to vector<256x1024xbf16>
    %c0_2 = arith.constant 0 : index
    %c0_3 = arith.constant 0 : index
    %2 = vector.load %arg2[%c0_2, %c0_3] : memref<1024x128xbf16, #tpu.memory_space<vmem>>, vector<1024x128xbf16>
    %cst = arith.constant dense<0.000000e+00> : vector<256x128xf32>
    %3 = tpu.matmul %1, %2, %cst {dimension_numbers = #tpu.dot_dimension_numbers<[1], [0], [0], [1], [0, 0, 1, 1], [], []>} : vector<256x1024xbf16>, vector<1024x128xbf16>, vector<256x128xf32> -> vector<256x128xf32>
    %4 = vector.extract_strided_slice %3 {offsets = [0, 0], sizes = [256, 64], strides = [1, 1]} : vector<256x128xf32> to vector<256x64xf32>
    %c0_4 = arith.constant 0 : index
    %c0_5 = arith.constant 0 : index
    %c0_6 = arith.constant 0 : index
    %5 = vector.load %arg5[%c0_4, %c0_5, %c0_6] : memref<4x1x64xf32, #tpu.memory_space<vmem>>, vector<1x1x64xf32>
    %6 = vector.shape_cast %5 : vector<1x1x64xf32> to vector<1x64xf32>
    %7 = vector.broadcast %6 : vector<1x64xf32> to vector<256x64xf32>
    %8 = arith.addf %4, %7 : vector<256x64xf32>
    %cst_7 = arith.constant 0.000000e+00 : f32
    %9 = vector.broadcast %cst_7 : f32 to vector<256x64xf32>
    %10 = arith.maximumf %8, %9 : vector<256x64xf32>
    %11 = vector.extract_strided_slice %3 {offsets = [0, 64], sizes = [256, 64], strides = [1, 1]} : vector<256x128xf32> to vector<256x64xf32>
    %c1 = arith.constant 1 : index
    %c0_8 = arith.constant 0 : index
    %c0_9 = arith.constant 0 : index
    %12 = vector.load %arg5[%c1, %c0_8, %c0_9] : memref<4x1x64xf32, #tpu.memory_space<vmem>>, vector<1x1x64xf32>
    %13 = vector.shape_cast %12 : vector<1x1x64xf32> to vector<1x64xf32>
    %14 = vector.broadcast %13 : vector<1x64xf32> to vector<256x64xf32>
    %15 = arith.addf %11, %14 : vector<256x64xf32>
    %cst_10 = arith.constant 0.000000e+00 : bf16
    %16 = vector.broadcast %cst_10 : bf16 to vector<18x18x64xbf16>
    %c0_11 = arith.constant 0 : index
    %c0_12 = arith.constant 0 : index
    %c0_13 = arith.constant 0 : index
    %17 = vector.load %arg7[%c0_11, %c0_12, %c0_13] : memref<18x18x64xbf16, #tpu.memory_space<vmem>>, vector<18x18x64xbf16>
    tpu.vector_store %arg7[%c0_11, %c0_12, %c0_13], %16 {strides = array<i32>} : memref<18x18x64xbf16, #tpu.memory_space<vmem>>, vector<18x18x64xbf16>,
    %18 = vector.shape_cast %10 : vector<256x64xf32> to vector<16x16x64xf32>
    %19 = arith.truncf %18 : vector<16x16x64xf32> to vector<16x16x64xbf16>
    %c1_14 = arith.constant 1 : index
    %c1_15 = arith.constant 1 : index
    %c0_16 = arith.constant 0 : index
    %20 = vector.load %arg7[%c1_14, %c1_15, %c0_16] : memref<18x18x64xbf16, #tpu.memory_space<vmem>>, vector<16x16x64xbf16>
    tpu.vector_store %arg7[%c1_14, %c1_15, %c0_16], %19 {strides = array<i32>} : memref<18x18x64xbf16, #tpu.memory_space<vmem>>, vector<16x16x64xbf16>,
    %c0_17 = arith.constant 0 : index
    %c0_18 = arith.constant 0 : index
    %c0_19 = arith.constant 0 : index
    %21 = vector.load %arg7[%c0_17, %c0_18, %c0_19] : memref<18x18x64xbf16, #tpu.memory_space<vmem>>, vector<16x18x64xbf16>
    %22 = vector.extract_strided_slice %21 {offsets = [0, 0, 0], sizes = [16, 16, 64], strides = [1, 1, 1]} : vector<16x18x64xbf16> to vector<16x16x64xbf16>
    %23 = vector.extract_strided_slice %21 {offsets = [0, 1, 0], sizes = [16, 16, 64], strides = [1, 1, 1]} : vector<16x18x64xbf16> to vector<16x16x64xbf16>
    %24 = vector.extract_strided_slice %21 {offsets = [0, 2, 0], sizes = [16, 16, 64], strides = [1, 1, 1]} : vector<16x18x64xbf16> to vector<16x16x64xbf16>
    %25 = tpu.concatenate %22, %23, %24 in 2 : vector<16x16x64xbf16>, vector<16x16x64xbf16>, vector<16x16x64xbf16> -> vector<16x16x192xbf16>
    %26 = vector.shape_cast %25 : vector<16x16x192xbf16> to vector<256x192xbf16>
    %c0_20 = arith.constant 0 : index
    %c0_21 = arith.constant 0 : index
    %c0_22 = arith.constant 0 : index
    %27 = vector.load %arg3[%c0_20, %c0_21, %c0_22] : memref<3x192x64xbf16, #tpu.memory_space<vmem>>, vector<1x192x64xbf16>
    %28 = vector.shape_cast %27 : vector<1x192x64xbf16> to vector<192x64xbf16>
    %cst_23 = arith.constant dense<0.000000e+00> : vector<256x64xf32>
    %29 = tpu.matmul %26, %28, %cst_23 {dimension_numbers = #tpu.dot_dimension_numbers<[1], [0], [0], [1], [0, 0, 1, 1], [], []>} : vector<256x192xbf16>, vector<192x64xbf16>, vector<256x64xf32> -> vector<256x64xf32>
    %30 = arith.addf %15, %29 : vector<256x64xf32>
    %c1_24 = arith.constant 1 : index
    %c0_25 = arith.constant 0 : index
    %c0_26 = arith.constant 0 : index
    %31 = vector.load %arg7[%c1_24, %c0_25, %c0_26] : memref<18x18x64xbf16, #tpu.memory_space<vmem>>, vector<16x18x64xbf16>
    %32 = vector.extract_strided_slice %31 {offsets = [0, 0, 0], sizes = [16, 16, 64], strides = [1, 1, 1]} : vector<16x18x64xbf16> to vector<16x16x64xbf16>
    %33 = vector.extract_strided_slice %31 {offsets = [0, 1, 0], sizes = [16, 16, 64], strides = [1, 1, 1]} : vector<16x18x64xbf16> to vector<16x16x64xbf16>
    %34 = vector.extract_strided_slice %31 {offsets = [0, 2, 0], sizes = [16, 16, 64], strides = [1, 1, 1]} : vector<16x18x64xbf16> to vector<16x16x64xbf16>
    %35 = tpu.concatenate %32, %33, %34 in 2 : vector<16x16x64xbf16>, vector<16x16x64xbf16>, vector<16x16x64xbf16> -> vector<16x16x192xbf16>
    %36 = vector.shape_cast %35 : vector<16x16x192xbf16> to vector<256x192xbf16>
    %c1_27 = arith.constant 1 : index
    %c0_28 = arith.constant 0 : index
    %c0_29 = arith.constant 0 : index
    %37 = vector.load %arg3[%c1_27, %c0_28, %c0_29] : memref<3x192x64xbf16, #tpu.memory_space<vmem>>, vector<1x192x64xbf16>
    %38 = vector.shape_cast %37 : vector<1x192x64xbf16> to vector<192x64xbf16>
    %cst_30 = arith.constant dense<0.000000e+00> : vector<256x64xf32>
    %39 = tpu.matmul %36, %38, %cst_30 {dimension_numbers = #tpu.dot_dimension_numbers<[1], [0], [0], [1], [0, 0, 1, 1], [], []>} : vector<256x192xbf16>, vector<192x64xbf16>, vector<256x64xf32> -> vector<256x64xf32>
    %40 = arith.addf %30, %39 : vector<256x64xf32>
    %c2 = arith.constant 2 : index
    %c0_31 = arith.constant 0 : index
    %c0_32 = arith.constant 0 : index
    %41 = vector.load %arg7[%c2, %c0_31, %c0_32] : memref<18x18x64xbf16, #tpu.memory_space<vmem>>, vector<16x18x64xbf16>
    %42 = vector.extract_strided_slice %41 {offsets = [0, 0, 0], sizes = [16, 16, 64], strides = [1, 1, 1]} : vector<16x18x64xbf16> to vector<16x16x64xbf16>
    %43 = vector.extract_strided_slice %41 {offsets = [0, 1, 0], sizes = [16, 16, 64], strides = [1, 1, 1]} : vector<16x18x64xbf16> to vector<16x16x64xbf16>
    %44 = vector.extract_strided_slice %41 {offsets = [0, 2, 0], sizes = [16, 16, 64], strides = [1, 1, 1]} : vector<16x18x64xbf16> to vector<16x16x64xbf16>
    %45 = tpu.concatenate %42, %43, %44 in 2 : vector<16x16x64xbf16>, vector<16x16x64xbf16>, vector<16x16x64xbf16> -> vector<16x16x192xbf16>
    %46 = vector.shape_cast %45 : vector<16x16x192xbf16> to vector<256x192xbf16>
    %c2_33 = arith.constant 2 : index
    %c0_34 = arith.constant 0 : index
    %c0_35 = arith.constant 0 : index
    %47 = vector.load %arg3[%c2_33, %c0_34, %c0_35] : memref<3x192x64xbf16, #tpu.memory_space<vmem>>, vector<1x192x64xbf16>
    %48 = vector.shape_cast %47 : vector<1x192x64xbf16> to vector<192x64xbf16>
    %cst_36 = arith.constant dense<0.000000e+00> : vector<256x64xf32>
    %49 = tpu.matmul %46, %48, %cst_36 {dimension_numbers = #tpu.dot_dimension_numbers<[1], [0], [0], [1], [0, 0, 1, 1], [], []>} : vector<256x192xbf16>, vector<192x64xbf16>, vector<256x64xf32> -> vector<256x64xf32>
    %50 = arith.addf %40, %49 : vector<256x64xf32>
    %c2_37 = arith.constant 2 : index
    %c0_38 = arith.constant 0 : index
    %c0_39 = arith.constant 0 : index
    %51 = vector.load %arg5[%c2_37, %c0_38, %c0_39] : memref<4x1x64xf32, #tpu.memory_space<vmem>>, vector<1x1x64xf32>
    %52 = vector.shape_cast %51 : vector<1x1x64xf32> to vector<1x64xf32>
    %53 = vector.broadcast %52 : vector<1x64xf32> to vector<256x64xf32>
    %54 = arith.addf %50, %53 : vector<256x64xf32>
    %cst_40 = arith.constant 0.000000e+00 : f32
    %55 = vector.broadcast %cst_40 : f32 to vector<256x64xf32>
    %56 = arith.maximumf %54, %55 : vector<256x64xf32>
    %cst_41 = arith.constant 0.000000e+00 : bf16
    %57 = vector.broadcast %cst_41 : bf16 to vector<20x20x64xbf16>
    %c0_42 = arith.constant 0 : index
    %c0_43 = arith.constant 0 : index
    %c0_44 = arith.constant 0 : index
    %58 = vector.load %arg8[%c0_42, %c0_43, %c0_44] : memref<20x20x64xbf16, #tpu.memory_space<vmem>>, vector<20x20x64xbf16>
    tpu.vector_store %arg8[%c0_42, %c0_43, %c0_44], %57 {strides = array<i32>} : memref<20x20x64xbf16, #tpu.memory_space<vmem>>, vector<20x20x64xbf16>,
    %59 = vector.shape_cast %56 : vector<256x64xf32> to vector<16x16x64xf32>
    %60 = arith.truncf %59 : vector<16x16x64xf32> to vector<16x16x64xbf16>
    %c2_45 = arith.constant 2 : index
    %c2_46 = arith.constant 2 : index
    %c0_47 = arith.constant 0 : index
    %61 = vector.load %arg8[%c2_45, %c2_46, %c0_47] : memref<20x20x64xbf16, #tpu.memory_space<vmem>>, vector<16x16x64xbf16>
    tpu.vector_store %arg8[%c2_45, %c2_46, %c0_47], %60 {strides = array<i32>} : memref<20x20x64xbf16, #tpu.memory_space<vmem>>, vector<16x16x64xbf16>,
    %cst_48 = arith.constant 0.000000e+00 : f32
    %62 = vector.broadcast %cst_48 : f32 to vector<256x64xf32>
    %c0_49 = arith.constant 0 : index
    %c0_50 = arith.constant 0 : index
    %c0_51 = arith.constant 0 : index
    %63 = vector.load %arg8[%c0_49, %c0_50, %c0_51] : memref<20x20x64xbf16, #tpu.memory_space<vmem>>, vector<16x20x64xbf16>
    %64 = vector.extract_strided_slice %63 {offsets = [0, 0, 0], sizes = [16, 16, 64], strides = [1, 1, 1]} : vector<16x20x64xbf16> to vector<16x16x64xbf16>
    %65 = vector.extract_strided_slice %63 {offsets = [0, 1, 0], sizes = [16, 16, 64], strides = [1, 1, 1]} : vector<16x20x64xbf16> to vector<16x16x64xbf16>
    %66 = vector.extract_strided_slice %63 {offsets = [0, 2, 0], sizes = [16, 16, 64], strides = [1, 1, 1]} : vector<16x20x64xbf16> to vector<16x16x64xbf16>
    %67 = vector.extract_strided_slice %63 {offsets = [0, 3, 0], sizes = [16, 16, 64], strides = [1, 1, 1]} : vector<16x20x64xbf16> to vector<16x16x64xbf16>
    %68 = vector.extract_strided_slice %63 {offsets = [0, 4, 0], sizes = [16, 16, 64], strides = [1, 1, 1]} : vector<16x20x64xbf16> to vector<16x16x64xbf16>
    %69 = tpu.concatenate %64, %65, %66, %67, %68 in 2 : vector<16x16x64xbf16>, vector<16x16x64xbf16>, vector<16x16x64xbf16>, vector<16x16x64xbf16>, vector<16x16x64xbf16> -> vector<16x16x320xbf16>
    %70 = vector.shape_cast %69 : vector<16x16x320xbf16> to vector<256x320xbf16>
    %c0_52 = arith.constant 0 : index
    %c0_53 = arith.constant 0 : index
    %c0_54 = arith.constant 0 : index
    %71 = vector.load %arg4[%c0_52, %c0_53, %c0_54] : memref<5x320x64xbf16, #tpu.memory_space<vmem>>, vector<1x320x64xbf16>
    %72 = vector.shape_cast %71 : vector<1x320x64xbf16> to vector<320x64xbf16>
    %cst_55 = arith.constant dense<0.000000e+00> : vector<256x64xf32>
    %73 = tpu.matmul %70, %72, %cst_55 {dimension_numbers = #tpu.dot_dimension_numbers<[1], [0], [0], [1], [0, 0, 1, 1], [], []>} : vector<256x320xbf16>, vector<320x64xbf16>, vector<256x64xf32> -> vector<256x64xf32>
    %74 = arith.addf %62, %73 : vector<256x64xf32>
    %c1_56 = arith.constant 1 : index
    %c0_57 = arith.constant 0 : index
    %c0_58 = arith.constant 0 : index
    %75 = vector.load %arg8[%c1_56, %c0_57, %c0_58] : memref<20x20x64xbf16, #tpu.memory_space<vmem>>, vector<16x20x64xbf16>
    %76 = vector.extract_strided_slice %75 {offsets = [0, 0, 0], sizes = [16, 16, 64], strides = [1, 1, 1]} : vector<16x20x64xbf16> to vector<16x16x64xbf16>
    %77 = vector.extract_strided_slice %75 {offsets = [0, 1, 0], sizes = [16, 16, 64], strides = [1, 1, 1]} : vector<16x20x64xbf16> to vector<16x16x64xbf16>
    %78 = vector.extract_strided_slice %75 {offsets = [0, 2, 0], sizes = [16, 16, 64], strides = [1, 1, 1]} : vector<16x20x64xbf16> to vector<16x16x64xbf16>
    %79 = vector.extract_strided_slice %75 {offsets = [0, 3, 0], sizes = [16, 16, 64], strides = [1, 1, 1]} : vector<16x20x64xbf16> to vector<16x16x64xbf16>
    %80 = vector.extract_strided_slice %75 {offsets = [0, 4, 0], sizes = [16, 16, 64], strides = [1, 1, 1]} : vector<16x20x64xbf16> to vector<16x16x64xbf16>
    %81 = tpu.concatenate %76, %77, %78, %79, %80 in 2 : vector<16x16x64xbf16>, vector<16x16x64xbf16>, vector<16x16x64xbf16>, vector<16x16x64xbf16>, vector<16x16x64xbf16> -> vector<16x16x320xbf16>
    %82 = vector.shape_cast %81 : vector<16x16x320xbf16> to vector<256x320xbf16>
    %c1_59 = arith.constant 1 : index
    %c0_60 = arith.constant 0 : index
    %c0_61 = arith.constant 0 : index
    %83 = vector.load %arg4[%c1_59, %c0_60, %c0_61] : memref<5x320x64xbf16, #tpu.memory_space<vmem>>, vector<1x320x64xbf16>
    %84 = vector.shape_cast %83 : vector<1x320x64xbf16> to vector<320x64xbf16>
    %cst_62 = arith.constant dense<0.000000e+00> : vector<256x64xf32>
    %85 = tpu.matmul %82, %84, %cst_62 {dimension_numbers = #tpu.dot_dimension_numbers<[1], [0], [0], [1], [0, 0, 1, 1], [], []>} : vector<256x320xbf16>, vector<320x64xbf16>, vector<256x64xf32> -> vector<256x64xf32>
    %86 = arith.addf %74, %85 : vector<256x64xf32>
    %c2_63 = arith.constant 2 : index
    %c0_64 = arith.constant 0 : index
    %c0_65 = arith.constant 0 : index
    %87 = vector.load %arg8[%c2_63, %c0_64, %c0_65] : memref<20x20x64xbf16, #tpu.memory_space<vmem>>, vector<16x20x64xbf16>
    %88 = vector.extract_strided_slice %87 {offsets = [0, 0, 0], sizes = [16, 16, 64], strides = [1, 1, 1]} : vector<16x20x64xbf16> to vector<16x16x64xbf16>
    %89 = vector.extract_strided_slice %87 {offsets = [0, 1, 0], sizes = [16, 16, 64], strides = [1, 1, 1]} : vector<16x20x64xbf16> to vector<16x16x64xbf16>
    %90 = vector.extract_strided_slice %87 {offsets = [0, 2, 0], sizes = [16, 16, 64], strides = [1, 1, 1]} : vector<16x20x64xbf16> to vector<16x16x64xbf16>
    %91 = vector.extract_strided_slice %87 {offsets = [0, 3, 0], sizes = [16, 16, 64], strides = [1, 1, 1]} : vector<16x20x64xbf16> to vector<16x16x64xbf16>
    %92 = vector.extract_strided_slice %87 {offsets = [0, 4, 0], sizes = [16, 16, 64], strides = [1, 1, 1]} : vector<16x20x64xbf16> to vector<16x16x64xbf16>
    %93 = tpu.concatenate %88, %89, %90, %91, %92 in 2 : vector<16x16x64xbf16>, vector<16x16x64xbf16>, vector<16x16x64xbf16>, vector<16x16x64xbf16>, vector<16x16x64xbf16> -> vector<16x16x320xbf16>
    %94 = vector.shape_cast %93 : vector<16x16x320xbf16> to vector<256x320xbf16>
    %c2_66 = arith.constant 2 : index
    %c0_67 = arith.constant 0 : index
    %c0_68 = arith.constant 0 : index
    %95 = vector.load %arg4[%c2_66, %c0_67, %c0_68] : memref<5x320x64xbf16, #tpu.memory_space<vmem>>, vector<1x320x64xbf16>
    %96 = vector.shape_cast %95 : vector<1x320x64xbf16> to vector<320x64xbf16>
    %cst_69 = arith.constant dense<0.000000e+00> : vector<256x64xf32>
    %97 = tpu.matmul %94, %96, %cst_69 {dimension_numbers = #tpu.dot_dimension_numbers<[1], [0], [0], [1], [0, 0, 1, 1], [], []>} : vector<256x320xbf16>, vector<320x64xbf16>, vector<256x64xf32> -> vector<256x64xf32>
    %98 = arith.addf %86, %97 : vector<256x64xf32>
    %c3 = arith.constant 3 : index
    %c0_70 = arith.constant 0 : index
    %c0_71 = arith.constant 0 : index
    %99 = vector.load %arg8[%c3, %c0_70, %c0_71] : memref<20x20x64xbf16, #tpu.memory_space<vmem>>, vector<16x20x64xbf16>
    %100 = vector.extract_strided_slice %99 {offsets = [0, 0, 0], sizes = [16, 16, 64], strides = [1, 1, 1]} : vector<16x20x64xbf16> to vector<16x16x64xbf16>
    %101 = vector.extract_strided_slice %99 {offsets = [0, 1, 0], sizes = [16, 16, 64], strides = [1, 1, 1]} : vector<16x20x64xbf16> to vector<16x16x64xbf16>
    %102 = vector.extract_strided_slice %99 {offsets = [0, 2, 0], sizes = [16, 16, 64], strides = [1, 1, 1]} : vector<16x20x64xbf16> to vector<16x16x64xbf16>
    %103 = vector.extract_strided_slice %99 {offsets = [0, 3, 0], sizes = [16, 16, 64], strides = [1, 1, 1]} : vector<16x20x64xbf16> to vector<16x16x64xbf16>
    %104 = vector.extract_strided_slice %99 {offsets = [0, 4, 0], sizes = [16, 16, 64], strides = [1, 1, 1]} : vector<16x20x64xbf16> to vector<16x16x64xbf16>
    %105 = tpu.concatenate %100, %101, %102, %103, %104 in 2 : vector<16x16x64xbf16>, vector<16x16x64xbf16>, vector<16x16x64xbf16>, vector<16x16x64xbf16>, vector<16x16x64xbf16> -> vector<16x16x320xbf16>
    %106 = vector.shape_cast %105 : vector<16x16x320xbf16> to vector<256x320xbf16>
    %c3_72 = arith.constant 3 : index
    %c0_73 = arith.constant 0 : index
    %c0_74 = arith.constant 0 : index
    %107 = vector.load %arg4[%c3_72, %c0_73, %c0_74] : memref<5x320x64xbf16, #tpu.memory_space<vmem>>, vector<1x320x64xbf16>
    %108 = vector.shape_cast %107 : vector<1x320x64xbf16> to vector<320x64xbf16>
    %cst_75 = arith.constant dense<0.000000e+00> : vector<256x64xf32>
    %109 = tpu.matmul %106, %108, %cst_75 {dimension_numbers = #tpu.dot_dimension_numbers<[1], [0], [0], [1], [0, 0, 1, 1], [], []>} : vector<256x320xbf16>, vector<320x64xbf16>, vector<256x64xf32> -> vector<256x64xf32>
    %110 = arith.addf %98, %109 : vector<256x64xf32>
    %c4 = arith.constant 4 : index
    %c0_76 = arith.constant 0 : index
    %c0_77 = arith.constant 0 : index
    %111 = vector.load %arg8[%c4, %c0_76, %c0_77] : memref<20x20x64xbf16, #tpu.memory_space<vmem>>, vector<16x20x64xbf16>
    %112 = vector.extract_strided_slice %111 {offsets = [0, 0, 0], sizes = [16, 16, 64], strides = [1, 1, 1]} : vector<16x20x64xbf16> to vector<16x16x64xbf16>
    %113 = vector.extract_strided_slice %111 {offsets = [0, 1, 0], sizes = [16, 16, 64], strides = [1, 1, 1]} : vector<16x20x64xbf16> to vector<16x16x64xbf16>
    %114 = vector.extract_strided_slice %111 {offsets = [0, 2, 0], sizes = [16, 16, 64], strides = [1, 1, 1]} : vector<16x20x64xbf16> to vector<16x16x64xbf16>
    %115 = vector.extract_strided_slice %111 {offsets = [0, 3, 0], sizes = [16, 16, 64], strides = [1, 1, 1]} : vector<16x20x64xbf16> to vector<16x16x64xbf16>
    %116 = vector.extract_strided_slice %111 {offsets = [0, 4, 0], sizes = [16, 16, 64], strides = [1, 1, 1]} : vector<16x20x64xbf16> to vector<16x16x64xbf16>
    %117 = tpu.concatenate %112, %113, %114, %115, %116 in 2 : vector<16x16x64xbf16>, vector<16x16x64xbf16>, vector<16x16x64xbf16>, vector<16x16x64xbf16>, vector<16x16x64xbf16> -> vector<16x16x320xbf16>
    %118 = vector.shape_cast %117 : vector<16x16x320xbf16> to vector<256x320xbf16>
    %c4_78 = arith.constant 4 : index
    %c0_79 = arith.constant 0 : index
    %c0_80 = arith.constant 0 : index
    %119 = vector.load %arg4[%c4_78, %c0_79, %c0_80] : memref<5x320x64xbf16, #tpu.memory_space<vmem>>, vector<1x320x64xbf16>
    %120 = vector.shape_cast %119 : vector<1x320x64xbf16> to vector<320x64xbf16>
    %cst_81 = arith.constant dense<0.000000e+00> : vector<256x64xf32>
    %121 = tpu.matmul %118, %120, %cst_81 {dimension_numbers = #tpu.dot_dimension_numbers<[1], [0], [0], [1], [0, 0, 1, 1], [], []>} : vector<256x320xbf16>, vector<320x64xbf16>, vector<256x64xf32> -> vector<256x64xf32>
    %122 = arith.addf %110, %121 : vector<256x64xf32>
    %c3_82 = arith.constant 3 : index
    %c0_83 = arith.constant 0 : index
    %c0_84 = arith.constant 0 : index
    %123 = vector.load %arg5[%c3_82, %c0_83, %c0_84] : memref<4x1x64xf32, #tpu.memory_space<vmem>>, vector<1x1x64xf32>
    %124 = vector.shape_cast %123 : vector<1x1x64xf32> to vector<1x64xf32>
    %125 = vector.broadcast %124 : vector<1x64xf32> to vector<256x64xf32>
    %126 = arith.addf %122, %125 : vector<256x64xf32>
    %cst_85 = arith.constant 0.000000e+00 : f32
    %127 = vector.broadcast %cst_85 : f32 to vector<256x64xf32>
    %128 = arith.maximumf %126, %127 : vector<256x64xf32>
    %c0_86 = arith.constant 0 : index
    %c0_87 = arith.constant 0 : index
    %c0_88 = arith.constant 0 : index
    %129 = vector.load %arg6[%c0_86, %c0_87, %c0_88] : memref<1x256x64xf32, #tpu.memory_space<vmem>>, vector<1x256x64xf32>
    %130 = vector.shape_cast %129 : vector<1x256x64xf32> to vector<256x64xf32>
    %131 = vector.shape_cast %128 : vector<256x64xf32> to vector<1x256x64xf32>
    tpu.vector_store %arg6[%c0_86, %c0_87, %c0_88], %131 {strides = array<i32>} : memref<1x256x64xf32, #tpu.memory_space<vmem>>, vector<1x256x64xf32>,
    return
  }
  func.func @transform_0(%arg0: i32) -> (i32, i32, i32) {
    %c0_i32 = arith.constant 0 : i32
    %c0_i32_0 = arith.constant 0 : i32
    %c0_i32_1 = arith.constant 0 : i32
    return %arg0, %c0_i32, %c0_i32_0 : i32, i32, i32
  }
  func.func @transform_1(%arg0: i32) -> (i32, i32) {
    %c0_i32 = arith.constant 0 : i32
    %c0_i32_0 = arith.constant 0 : i32
    %c0_i32_1 = arith.constant 0 : i32
    return %c0_i32, %c0_i32_0 : i32, i32
  }
  func.func @transform_2(%arg0: i32) -> (i32, i32, i32) {
    %c0_i32 = arith.constant 0 : i32
    %c0_i32_0 = arith.constant 0 : i32
    %c0_i32_1 = arith.constant 0 : i32
    %c0_i32_2 = arith.constant 0 : i32
    return %c0_i32, %c0_i32_0, %c0_i32_1 : i32, i32, i32
  }
  func.func @transform_3(%arg0: i32) -> (i32, i32, i32) {
    %c0_i32 = arith.constant 0 : i32
    %c0_i32_0 = arith.constant 0 : i32
    %c0_i32_1 = arith.constant 0 : i32
    %c0_i32_2 = arith.constant 0 : i32
    return %c0_i32, %c0_i32_0, %c0_i32_1 : i32, i32, i32
  }
  func.func @transform_4(%arg0: i32) -> (i32, i32, i32) {
    %c0_i32 = arith.constant 0 : i32
    %c0_i32_0 = arith.constant 0 : i32
    %c0_i32_1 = arith.constant 0 : i32
    %c0_i32_2 = arith.constant 0 : i32
    return %c0_i32, %c0_i32_0, %c0_i32_1 : i32, i32, i32
  }
  func.func @transform_5(%arg0: i32) -> (i32, i32, i32) {
    %c0_i32 = arith.constant 0 : i32
    %c0_i32_0 = arith.constant 0 : i32
    %c0_i32_1 = arith.constant 0 : i32
    return %arg0, %c0_i32, %c0_i32_0 : i32, i32, i32
  }
}

</mosaic_0001>

<llo_original>
// kernel: mff_forward.1
$region0: #{mff_forward.1}
  #allocation0 [shape = 'u32[]', space=smem, size = 0x4, offset = 0x4, fixed_abs, tag = 'smem constant byte address 0x4 - core index']
  #allocation1 [shape = 'u32[72,128]{1,0:T(1,128)}', space=vmem, size = 0x9000, scoped, tag = 'internal scratch']
  #allocation2 [shape = 'bf16[18,18,64]{2,1,0:T(8,128)(2,1)}', space=vmem, size = 0x1b000, scoped, tag = 'scratch operand']
  #allocation3 [shape = 'bf16[20,20,64]{2,1,0:T(8,128)(2,1)}', space=vmem, size = 0x1e000, scoped, tag = 'scratch operand']
  %s0 = inlined_call_operand.vmem [shape: bf16[2,256,1024], index: 0, kind: input, shape index: {}]
  %s1 = inlined_call_operand.vmem [shape: bf16[1024,128], index: 1, kind: input, shape index: {}]
  %s2 = inlined_call_operand.vmem [shape: bf16[3,192,64], index: 2, kind: input, shape index: {}]
  %s3 = inlined_call_operand.vmem [shape: bf16[5,320,64], index: 3, kind: input, shape index: {}]
  %s4 = inlined_call_operand.vmem [shape: f32[4,1,64], index: 4, kind: input, shape index: {}]
  %s5 = inlined_call_operand.hbm [shape: f32[2,256,64], index: 5, kind: output, shape index: {}]
  %s6 = sld [smem:[#allocation0]]
  $region53: #{mff_forward.1} parent=0
    _
  %s8 = ssub.s32 1, %s6
  %s9 = scalar_select 0, %s8, %s6
  $region1: #{mff_forward.1} parent=0
    #allocation4 [shape = 'u8[262144]{0}', space=vmem, size = 0x40000, scoped, tag = 'output window, operand 0']
    #allocation5 [shape = 's32[2]{0}', space=sflag, size = 0x8, scoped, tag = 'scoped memory for mff_forward.1']
    %10 = vsyncpa [#allocation5], 0
    %s11 = scalar_lea.sflag [#allocation5], 1
    %12 = vsyncpa %s11, 0
    loop: start=0, step=1, limit=4
    $region2: #{mff_forward.1} parent=1 // loop_pre_header
      _
    $region3: #{mff_forward.1} parent=1 // loop_header
      %s14 = sphi 0, %s18
      %p15 = scmp.ge.s32.totalorder %s14, 4
      %s24 = sphi 0, %s26
      %s27 = sphi 0, %s24
      %s28 = sphi 0, %s27
      %s44 = sphi 0, %s28
      %s48 = sphi 0, %s48
      %s50 = sphi 0, %s48
      %s51 = sphi 0, %s50
      %s65 = sphi 0, %s51
      %s69 = sphi 0, %s69
      %s71 = sphi 0, %s69
      %s72 = sphi 0, %s71
      %s86 = sphi 0, %s72
      %s90 = sphi 0, %s90
      %s92 = sphi 0, %s90
      %s93 = sphi 0, %s92
      %s107 = sphi 0, %s93
      %s111 = sphi 0, %s111
      %s113 = sphi 0, %s111
      %s114 = sphi 0, %s113
      %s128 = sphi 0, %s114
      %s134 = sphi 0, %s136
      %s137 = sphi 0, %s134
      %s138 = sphi 0, %s137
      %s154 = sphi 0, %s138
    $region4: #{mff_forward.1} parent=1 // loop_header_branch
      %17 = sbr.rel (%p15) target = $region8
    $region5: #{mff_forward.1} parent=1 // loop_body
      %s19 = ssub.s32 %s14, 1
      %s20 = ssub.s32 %s14, 2
      %s21 = sadd.s32 %s14, 1
      %s22 = ssub.s32 %s14, %s21
      %p23 = scmp.eq.s32.totalorder %s22, 0
      %s25 = sadd.s32 %s24, 1
      %s26 = scalar_select %p23, %s24, %s25
      %p29 = pneg %p23
      %p30 = scmp.eq.s32.totalorder %s14, 1
      %p31 = por %p29, %p30
      %p32 = scmp.ne.s32.totalorder %s24, %s27
      %p33 = scmp.eq.s32.totalorder %s14, 0
      %p34 = por %p32, %p33
      %p35 = scmp.ne.s32.totalorder %s24, %s27
      %p36 = scmp.eq.s32.totalorder %s19, 1
      %p37 = por %p35, %p36
      %p38 = scmp.ne.s32.totalorder %s27, %s28
      %p39 = scmp.eq.s32.totalorder %s19, 0
      %p40 = por %p38, %p39
      %p41 = scmp.ne.s32.totalorder %s27, %s28
      %p42 = scmp.eq.s32.totalorder %s20, 1
      %p43 = por %p41, %p42
      %p45 = scmp.ne.s32.totalorder %s28, %s44
      %p46 = scmp.eq.s32.totalorder %s20, 0
      %p47 = por %p45, %p46
      %s49 = sadd.s32 %s48, 1
      %p52 = scmp.eq.s32.totalorder %s14, 1
      %p53 = scmp.ne.s32.totalorder %s48, %s50
      %p54 = scmp.eq.s32.totalorder %s14, 0
      %p55 = por %p53, %p54
      %p56 = scmp.ne.s32.totalorder %s48, %s50
      %p57 = scmp.eq.s32.totalorder %s19, 1
      %p58 = por %p56, %p57
      %p59 = scmp.ne.s32.totalorder %s50, %s51
      %p60 = scmp.eq.s32.totalorder %s19, 0
      %p61 = por %p59, %p60
      %p62 = scmp.ne.s32.totalorder %s50, %s51
      %p63 = scmp.eq.s32.totalorder %s20, 1
      %p64 = por %p62, %p63
      %p66 = scmp.ne.s32.totalorder %s51, %s65
      %p67 = scmp.eq.s32.totalorder %s20, 0
      %p68 = por %p66, %p67
      %s70 = sadd.s32 %s69, 1
      %p73 = scmp.eq.s32.totalorder %s14, 1
      %p74 = scmp.ne.s32.totalorder %s69, %s71
      %p75 = scmp.eq.s32.totalorder %s14, 0
      %p76 = por %p74, %p75
      %p77 = scmp.ne.s32.totalorder %s69, %s71
      %p78 = scmp.eq.s32.totalorder %s19, 1
      %p79 = por %p77, %p78
      %p80 = scmp.ne.s32.totalorder %s71, %s72
      %p81 = scmp.eq.s32.totalorder %s19, 0
      %p82 = por %p80, %p81
      %p83 = scmp.ne.s32.totalorder %s71, %s72
      %p84 = scmp.eq.s32.totalorder %s20, 1
      %p85 = por %p83, %p84
      %p87 = scmp.ne.s32.totalorder %s72, %s86
      %p88 = scmp.eq.s32.totalorder %s20, 0
      %p89 = por %p87, %p88
      %s91 = sadd.s32 %s90, 1
      %p94 = scmp.eq.s32.totalorder %s14, 1
      %p95 = scmp.ne.s32.totalorder %s90, %s92
      %p96 = scmp.eq.s32.totalorder %s14, 0
      %p97 = por %p95, %p96
      %p98 = scmp.ne.s32.totalorder %s90, %s92
      %p99 = scmp.eq.s32.totalorder %s19, 1
      %p100 = por %p98, %p99
      %p101 = scmp.ne.s32.totalorder %s92, %s93
      %p102 = scmp.eq.s32.totalorder %s19, 0
      %p103 = por %p101, %p102
      %p104 = scmp.ne.s32.totalorder %s92, %s93
      %p105 = scmp.eq.s32.totalorder %s20, 1
      %p106 = por %p104, %p105
      %p108 = scmp.ne.s32.totalorder %s93, %s107
      %p109 = scmp.eq.s32.totalorder %s20, 0
      %p110 = por %p108, %p109
      %s112 = sadd.s32 %s111, 1
      %p115 = scmp.eq.s32.totalorder %s14, 1
      %p116 = scmp.ne.s32.totalorder %s111, %s113
      %p117 = scmp.eq.s32.totalorder %s14, 0
      %p118 = por %p116, %p117
      %p119 = scmp.ne.s32.totalorder %s111, %s113
      %p120 = scmp.eq.s32.totalorder %s19, 1
      %p121 = por %p119, %p120
      %p122 = scmp.ne.s32.totalorder %s113, %s114
      %p123 = scmp.eq.s32.totalorder %s19, 0
      %p124 = por %p122, %p123
      %p125 = scmp.ne.s32.totalorder %s113, %s114
      %p126 = scmp.eq.s32.totalorder %s20, 1
      %p127 = por %p125, %p126
      %p129 = scmp.ne.s32.totalorder %s114, %s128
      %p130 = scmp.eq.s32.totalorder %s20, 0
      %p131 = por %p129, %p130
      %s132 = ssub.s32 %s14, %s21
      %p133 = scmp.eq.s32.totalorder %s132, 0
      %s135 = sadd.s32 %s134, 1
      %s136 = scalar_select %p133, %s134, %s135
      %p139 = pneg %p133
      %p140 = scmp.eq.s32.totalorder %s14, 1
      %p141 = por %p139, %p140
      %p142 = scmp.ne.s32.totalorder %s134, %s137
      %p143 = scmp.eq.s32.totalorder %s14, 0
      %p144 = por %p142, %p143
      %p145 = scmp.ne.s32.totalorder %s134, %s137
      %p146 = scmp.eq.s32.totalorder %s19, 1
      %p147 = por %p145, %p146
      %p148 = scmp.ne.s32.totalorder %s137, %s138
      %p149 = scmp.eq.s32.totalorder %s19, 0
      %p150 = por %p148, %p149
      %p151 = scmp.ne.s32.totalorder %s137, %s138
      %p152 = scmp.eq.s32.totalorder %s20, 1
      %p153 = por %p151, %p152
      %p155 = scmp.ne.s32.totalorder %s138, %s154
      %p156 = scmp.eq.s32.totalorder %s20, 0
      %p157 = por %p155, %p156
      %p158 = scmp.le.s32.totalorder 1, %s14
      %p159 = scmp.lt.s32.totalorder %s14, 3
      %p160 = pnand %p158, %p159
      %p161 = pneg %p160
      // Predicated region
      $region9: #{mff_forward.1} parent=5 // pred_check
        _
      $region10: #{mff_forward.1} parent=5 // pred_check_branch
        %163 = sbr.rel (%p160) target = $region12
      $region11: #{mff_forward.1} parent=5 // pred_region
        %s164 = ssub.s32 %s14, 1
        // Predicated region
        $region13: #{mff_forward.1} parent=11 // pred_check
          %p165 = pneg %p61
        $region14: #{mff_forward.1} parent=11 // pred_check_branch
          %167 = sbr.rel (%p165) target = $region16
        $region15: #{mff_forward.1} parent=11 // pred_region
          _
        $region16: #{mff_forward.1} parent=11 // pred_fallthru
          _
        // Predicated region
        $region17: #{mff_forward.1} parent=11 // pred_check
          %p168 = pneg %p82
        $region18: #{mff_forward.1} parent=11 // pred_check_branch
          %170 = sbr.rel (%p168) target = $region20
        $region19: #{mff_forward.1} parent=11 // pred_region
          _
        $region20: #{mff_forward.1} parent=11 // pred_fallthru
          _
        // Predicated region
        $region21: #{mff_forward.1} parent=11 // pred_check
          %p171 = pneg %p103
        $region22: #{mff_forward.1} parent=11 // pred_check_branch
          %173 = sbr.rel (%p171) target = $region24
        $region23: #{mff_forward.1} parent=11 // pred_region
          _
        $region24: #{mff_forward.1} parent=11 // pred_fallthru
          _
        // Predicated region
        $region25: #{mff_forward.1} parent=11 // pred_check
          %p174 = pneg %p124
        $region26: #{mff_forward.1} parent=11 // pred_check_branch
          %176 = sbr.rel (%p174) target = $region28
        $region27: #{mff_forward.1} parent=11 // pred_region
          _
        $region28: #{mff_forward.1} parent=11 // pred_fallthru
          _
      $region12: #{mff_forward.1} parent=5 // pred_fallthru
        _
      %p177 = scmp.lt.s32.totalorder %s14, 2
      // Predicated region
      $region29: #{mff_forward.1} parent=5 // pred_check
        %p178 = pneg %p177
      $region30: #{mff_forward.1} parent=5 // pred_check_branch
        %180 = sbr.rel (%p178) target = $region32
      $region31: #{mff_forward.1} parent=5 // pred_region
        // Predicated region
        $region33: #{mff_forward.1} parent=31 // pred_check
          %p181 = pneg %p34
        $region34: #{mff_forward.1} parent=31 // pred_check_branch
          %183 = sbr.rel (%p181) target = $region36
        $region35: #{mff_forward.1} parent=31 // pred_region
          %p184 = scmp.lt.s32.totalorder %s14, 1
          %s185 = scalar_select %p184, %s14, 1
          %s186 = smul.addr %s185, 256
          %s187 = smul.addr %s186, 4
          %s188 = scalar_lea.vmem %s0, %s187
        $region36: #{mff_forward.1} parent=31 // pred_fallthru
          _
      $region32: #{mff_forward.1} parent=5 // pred_fallthru
        _
      %p189 = scmp.le.s32.totalorder 1, %s14
      %p190 = scmp.lt.s32.totalorder %s14, 3
      %p191 = pnand %p189, %p190
      %p192 = pneg %p191
      // Predicated region
      $region37: #{mff_forward.1} parent=5 // pred_check
        _
      $region38: #{mff_forward.1} parent=5 // pred_check_branch
        %194 = sbr.rel (%p191) target = $region40
      $region39: #{mff_forward.1} parent=5 // pred_region
        %s195 = ssub.s32 %s14, 1
        %p196 = scmp.lt.s32.totalorder %s19, 1
        %s197 = scalar_select %p196, %s19, 1
        %s198 = smul.addr %s197, 256
        %s199 = smul.addr %s198, 4
        %s200 = scalar_lea.vmem %s0, %s199
        %p201 = pneg %p40
        %p202 = pneg %p37
        %p203 = pneg %p61
        %p204 = pneg %p58
        %p205 = pneg %p82
        %p206 = pneg %p79
        %p207 = pneg %p103
        %p208 = pneg %p100
        %p209 = pneg %p124
        %p210 = pneg %p121
        %p211 = pneg %p150
        %p212 = pneg %p147
        %s213 = sand.u32 %s137, 1
        %s214 = scalar_lea.sflag [#allocation5], %s213
        %s215 = sand.u32 %s137, 1
        %s216 = smul.addr %s215, 256
        %s217 = scalar_lea.vmem [#allocation4], %s216
        %p218 = scmp.lt.s32.totalorder %s19, 1
        %s219 = scalar_select %p218, %s19, 1
        %s220 = smul.addr %s219, 256
        %s221 = smul.addr %s220, 4
        %s222 = scalar_lea.vmem %s0, %s221
        %v224 = vld [vmem:[%s222] sm:$0xff]
        %v225 = vld [vmem:[%s222 + $0x8] sm:$0xff]
        %v226 = vld [vmem:[%s222 + $0x10] sm:$0xff]
        %v227 = vld [vmem:[%s222 + $0x18] sm:$0xff]
        %v228 = vld [vmem:[%s222 + $0x20] sm:$0xff]
        %v229 = vld [vmem:[%s222 + $0x28] sm:$0xff]
        %v230 = vld [vmem:[%s222 + $0x30] sm:$0xff]
        %v231 = vld [vmem:[%s222 + $0x38] sm:$0xff]
        %v232 = vld [vmem:[%s222 + $0x40] sm:$0xff]
        %v233 = vld [vmem:[%s222 + $0x48] sm:$0xff]
        %v234 = vld [vmem:[%s222 + $0x50] sm:$0xff]
        %v235 = vld [vmem:[%s222 + $0x58] sm:$0xff]
        %v236 = vld [vmem:[%s222 + $0x60] sm:$0xff]
        %v237 = vld [vmem:[%s222 + $0x68] sm:$0xff]
        %v238 = vld [vmem:[%s222 + $0x70] sm:$0xff]
        %v239 = vld [vmem:[%s222 + $0x78] sm:$0xff]
        %v240 = vld [vmem:[%s222 + $0x80] sm:$0xff]
        %v241 = vld [vmem:[%s222 + $0x88] sm:$0xff]
        %v242 = vld [vmem:[%s222 + $0x90] sm:$0xff]
        %v243 = vld [vmem:[%s222 + $0x98] sm:$0xff]
        %v244 = vld [vmem:[%s222 + $0xa0] sm:$0xff]
        %v245 = vld [vmem:[%s222 + $0xa8] sm:$0xff]
        %v246 = vld [vmem:[%s222 + $0xb0] sm:$0xff]
        %v247 = vld [vmem:[%s222 + $0xb8] sm:$0xff]
        %v248 = vld [vmem:[%s222 + $0xc0] sm:$0xff]
        %v249 = vld [vmem:[%s222 + $0xc8] sm:$0xff]
        %v250 = vld [vmem:[%s222 + $0xd0] sm:$0xff]
        %v251 = vld [vmem:[%s222 + $0xd8] sm:$0xff]
        %v252 = vld [vmem:[%s222 + $0xe0] sm:$0xff]
        %v253 = vld [vmem:[%s222 + $0xe8] sm:$0xff]
        %v254 = vld [vmem:[%s222 + $0xf0] sm:$0xff]
        %v255 = vld [vmem:[%s222 + $0xf8] sm:$0xff]
        %v256 = vld [vmem:[%s222 + $0x100] sm:$0xff]
        %v257 = vld [vmem:[%s222 + $0x108] sm:$0xff]
        %v258 = vld [vmem:[%s222 + $0x110] sm:$0xff]
        %v259 = vld [vmem:[%s222 + $0x118] sm:$0xff]
        %v260 = vld [vmem:[%s222 + $0x120] sm:$0xff]
        %v261 = vld [vmem:[%s222 + $0x128] sm:$0xff]
        %v262 = vld [vmem:[%s222 + $0x130] sm:$0xff]
        %v263 = vld [vmem:[%s222 + $0x138] sm:$0xff]
        %v264 = vld [vmem:[%s222 + $0x140] sm:$0xff]
        %v265 = vld [vmem:[%s222 + $0x148] sm:$0xff]
        %v266 = vld [vmem:[%s222 + $0x150] sm:$0xff]
        %v267 = vld [vmem:[%s222 + $0x158] sm:$0xff]
        %v268 = vld [vmem:[%s222 + $0x160] sm:$0xff]
        %v269 = vld [vmem:[%s222 + $0x168] sm:$0xff]
        %v270 = vld [vmem:[%s222 + $0x170] sm:$0xff]
        %v271 = vld [vmem:[%s222 + $0x178] sm:$0xff]
        %v272 = vld [vmem:[%s222 + $0x180] sm:$0xff]
        %v273 = vld [vmem:[%s222 + $0x188] sm:$0xff]
        %v274 = vld [vmem:[%s222 + $0x190] sm:$0xff]
        %v275 = vld [vmem:[%s222 + $0x198] sm:$0xff]
        %v276 = vld [vmem:[%s222 + $0x1a0] sm:$0xff]
        %v277 = vld [vmem:[%s222 + $0x1a8] sm:$0xff]
        %v278 = vld [vmem:[%s222 + $0x1b0] sm:$0xff]
        %v279 = vld [vmem:[%s222 + $0x1b8] sm:$0xff]
        %v280 = vld [vmem:[%s222 + $0x1c0] sm:$0xff]
        %v281 = vld [vmem:[%s222 + $0x1c8] sm:$0xff]
        %v282 = vld [vmem:[%s222 + $0x1d0] sm:$0xff]
        %v283 = vld [vmem:[%s222 + $0x1d8] sm:$0xff]
        %v284 = vld [vmem:[%s222 + $0x1e0] sm:$0xff]
        %v285 = vld [vmem:[%s222 + $0x1e8] sm:$0xff]
        %v286 = vld [vmem:[%s222 + $0x1f0] sm:$0xff]
        %v287 = vld [vmem:[%s222 + $0x1f8] sm:$0xff]
        %v288 = vld [vmem:[%s222 + $0x200] sm:$0xff]
        %v289 = vld [vmem:[%s222 + $0x208] sm:$0xff]
        %v290 = vld [vmem:[%s222 + $0x210] sm:$0xff]
        %v291 = vld [vmem:[%s222 + $0x218] sm:$0xff]
        %v292 = vld [vmem:[%s222 + $0x220] sm:$0xff]
        %v293 = vld [vmem:[%s222 + $0x228] sm:$0xff]
        %v294 = vld [vmem:[%s222 + $0x230] sm:$0xff]
        %v295 = vld [vmem:[%s222 + $0x238] sm:$0xff]
        %v296 = vld [vmem:[%s222 + $0x240] sm:$0xff]
        %v297 = vld [vmem:[%s222 + $0x248] sm:$0xff]
        %v298 = vld [vmem:[%s222 + $0x250] sm:$0xff]
        %v299 = vld [vmem:[%s222 + $0x258] sm:$0xff]
        %v300 = vld [vmem:[%s222 + $0x260] sm:$0xff]
        %v301 = vld [vmem:[%s222 + $0x268] sm:$0xff]
        %v302 = vld [vmem:[%s222 + $0x270] sm:$0xff]
        %v303 = vld [vmem:[%s222 + $0x278] sm:$0xff]
        %v304 = vld [vmem:[%s222 + $0x280] sm:$0xff]
        %v305 = vld [vmem:[%s222 + $0x288] sm:$0xff]
        %v306 = vld [vmem:[%s222 + $0x290] sm:$0xff]
        %v307 = vld [vmem:[%s222 + $0x298] sm:$0xff]
        %v308 = vld [vmem:[%s222 + $0x2a0] sm:$0xff]
        %v309 = vld [vmem:[%s222 + $0x2a8] sm:$0xff]
        %v310 = vld [vmem:[%s222 + $0x2b0] sm:$0xff]
        %v311 = vld [vmem:[%s222 + $0x2b8] sm:$0xff]
        %v312 = vld [vmem:[%s222 + $0x2c0] sm:$0xff]
        %v313 = vld [vmem:[%s222 + $0x2c8] sm:$0xff]
        %v314 = vld [vmem:[%s222 + $0x2d0] sm:$0xff]
        %v315 = vld [vmem:[%s222 + $0x2d8] sm:$0xff]
        %v316 = vld [vmem:[%s222 + $0x2e0] sm:$0xff]
        %v317 = vld [vmem:[%s222 + $0x2e8] sm:$0xff]
        %v318 = vld [vmem:[%s222 + $0x2f0] sm:$0xff]
        %v319 = vld [vmem:[%s222 + $0x2f8] sm:$0xff]
        %v320 = vld [vmem:[%s222 + $0x300] sm:$0xff]
        %v321 = vld [vmem:[%s222 + $0x308] sm:$0xff]
        %v322 = vld [vmem:[%s222 + $0x310] sm:$0xff]
        %v323 = vld [vmem:[%s222 + $0x318] sm:$0xff]
        %v324 = vld [vmem:[%s222 + $0x320] sm:$0xff]
        %v325 = vld [vmem:[%s222 + $0x328] sm:$0xff]
        %v326 = vld [vmem:[%s222 + $0x330] sm:$0xff]
        %v327 = vld [vmem:[%s222 + $0x338] sm:$0xff]
        %v328 = vld [vmem:[%s222 + $0x340] sm:$0xff]
        %v329 = vld [vmem:[%s222 + $0x348] sm:$0xff]
        %v330 = vld [vmem:[%s222 + $0x350] sm:$0xff]
        %v331 = vld [vmem:[%s222 + $0x358] sm:$0xff]
        %v332 = vld [vmem:[%s222 + $0x360] sm:$0xff]
        %v333 = vld [vmem:[%s222 + $0x368] sm:$0xff]
        %v334 = vld [vmem:[%s222 + $0x370] sm:$0xff]
        %v335 = vld [vmem:[%s222 + $0x378] sm:$0xff]
        %v336 = vld [vmem:[%s222 + $0x380] sm:$0xff]
        %v337 = vld [vmem:[%s222 + $0x388] sm:$0xff]
        %v338 = vld [vmem:[%s222 + $0x390] sm:$0xff]
        %v339 = vld [vmem:[%s222 + $0x398] sm:$0xff]
        %v340 = vld [vmem:[%s222 + $0x3a0] sm:$0xff]
        %v341 = vld [vmem:[%s222 + $0x3a8] sm:$0xff]
        %v342 = vld [vmem:[%s222 + $0x3b0] sm:$0xff]
        %v343 = vld [vmem:[%s222 + $0x3b8] sm:$0xff]
        %v344 = vld [vmem:[%s222 + $0x3c0] sm:$0xff]
        %v345 = vld [vmem:[%s222 + $0x3c8] sm:$0xff]
        %v346 = vld [vmem:[%s222 + $0x3d0] sm:$0xff]
        %v347 = vld [vmem:[%s222 + $0x3d8] sm:$0xff]
        %v348 = vld [vmem:[%s222 + $0x3e0] sm:$0xff]
        %v349 = vld [vmem:[%s222 + $0x3e8] sm:$0xff]
        %v350 = vld [vmem:[%s222 + $0x3f0] sm:$0xff]
        %v351 = vld [vmem:[%s222 + $0x3f8] sm:$0xff]
        %v352 = vld [vmem:[%s1] sm:$0xf]
        %v353 = vld [vmem:[%s1 + $0x4] sm:$0xf]
        %v354 = vld [vmem:[%s1 + $0x8] sm:$0xf]
        %v355 = vld [vmem:[%s1 + $0xc] sm:$0xf]
        %v356 = vld [vmem:[%s1 + $0x10] sm:$0xf]
        %v357 = vld [vmem:[%s1 + $0x14] sm:$0xf]
        %v358 = vld [vmem:[%s1 + $0x18] sm:$0xf]
        %v359 = vld [vmem:[%s1 + $0x1c] sm:$0xf]
        %v360 = vld [vmem:[%s1 + $0x20] sm:$0xf]
        %v361 = vld [vmem:[%s1 + $0x24] sm:$0xf]
        %v362 = vld [vmem:[%s1 + $0x28] sm:$0xf]
        %v363 = vld [vmem:[%s1 + $0x2c] sm:$0xf]
        %v364 = vld [vmem:[%s1 + $0x30] sm:$0xf]
        %v365 = vld [vmem:[%s1 + $0x34] sm:$0xf]
        %v366 = vld [vmem:[%s1 + $0x38] sm:$0xf]
        %v367 = vld [vmem:[%s1 + $0x3c] sm:$0xf]
        %v368 = vld [vmem:[%s1 + $0x40] sm:$0xf]
        %v369 = vld [vmem:[%s1 + $0x44] sm:$0xf]
        %v370 = vld [vmem:[%s1 + $0x48] sm:$0xf]
        %v371 = vld [vmem:[%s1 + $0x4c] sm:$0xf]
        %v372 = vld [vmem:[%s1 + $0x50] sm:$0xf]
        %v373 = vld [vmem:[%s1 + $0x54] sm:$0xf]
        %v374 = vld [vmem:[%s1 + $0x58] sm:$0xf]
        %v375 = vld [vmem:[%s1 + $0x5c] sm:$0xf]
        %v376 = vld [vmem:[%s1 + $0x60] sm:$0xf]
        %v377 = vld [vmem:[%s1 + $0x64] sm:$0xf]
        %v378 = vld [vmem:[%s1 + $0x68] sm:$0xf]
        %v379 = vld [vmem:[%s1 + $0x6c] sm:$0xf]
        %v380 = vld [vmem:[%s1 + $0x70] sm:$0xf]
        %v381 = vld [vmem:[%s1 + $0x74] sm:$0xf]
        %v382 = vld [vmem:[%s1 + $0x78] sm:$0xf]
        %v383 = vld [vmem:[%s1 + $0x7c] sm:$0xf]
        %v384 = vld [vmem:[%s1 + $0x80] sm:$0xf]
        %v385 = vld [vmem:[%s1 + $0x84] sm:$0xf]
        %v386 = vld [vmem:[%s1 + $0x88] sm:$0xf]
        %v387 = vld [vmem:[%s1 + $0x8c] sm:$0xf]
        %v388 = vld [vmem:[%s1 + $0x90] sm:$0xf]
        %v389 = vld [vmem:[%s1 + $0x94] sm:$0xf]
        %v390 = vld [vmem:[%s1 + $0x98] sm:$0xf]
        %v391 = vld [vmem:[%s1 + $0x9c] sm:$0xf]
        %v392 = vld [vmem:[%s1 + $0xa0] sm:$0xf]
        %v393 = vld [vmem:[%s1 + $0xa4] sm:$0xf]
        %v394 = vld [vmem:[%s1 + $0xa8] sm:$0xf]
        %v395 = vld [vmem:[%s1 + $0xac] sm:$0xf]
        %v396 = vld [vmem:[%s1 + $0xb0] sm:$0xf]
        %v397 = vld [vmem:[%s1 + $0xb4] sm:$0xf]
        %v398 = vld [vmem:[%s1 + $0xb8] sm:$0xf]
        %v399 = vld [vmem:[%s1 + $0xbc] sm:$0xf]
        %v400 = vld [vmem:[%s1 + $0xc0] sm:$0xf]
        %v401 = vld [vmem:[%s1 + $0xc4] sm:$0xf]
        %v402 = vld [vmem:[%s1 + $0xc8] sm:$0xf]
        %v403 = vld [vmem:[%s1 + $0xcc] sm:$0xf]
        %v404 = vld [vmem:[%s1 + $0xd0] sm:$0xf]
        %v405 = vld [vmem:[%s1 + $0xd4] sm:$0xf]
        %v406 = vld [vmem:[%s1 + $0xd8] sm:$0xf]
        %v407 = vld [vmem:[%s1 + $0xdc] sm:$0xf]
        %v408 = vld [vmem:[%s1 + $0xe0] sm:$0xf]
        %v409 = vld [vmem:[%s1 + $0xe4] sm:$0xf]
        %v410 = vld [vmem:[%s1 + $0xe8] sm:$0xf]
        %v411 = vld [vmem:[%s1 + $0xec] sm:$0xf]
        %v412 = vld [vmem:[%s1 + $0xf0] sm:$0xf]
        %v413 = vld [vmem:[%s1 + $0xf4] sm:$0xf]
        %v414 = vld [vmem:[%s1 + $0xf8] sm:$0xf]
        %v415 = vld [vmem:[%s1 + $0xfc] sm:$0xf]
        %v416 = vld [vmem:[%s1 + $0x100] sm:$0xf]
        %v417 = vld [vmem:[%s1 + $0x104] sm:$0xf]
        %v418 = vld [vmem:[%s1 + $0x108] sm:$0xf]
        %v419 = vld [vmem:[%s1 + $0x10c] sm:$0xf]
        %v420 = vld [vmem:[%s1 + $0x110] sm:$0xf]
        %v421 = vld [vmem:[%s1 + $0x114] sm:$0xf]
        %v422 = vld [vmem:[%s1 + $0x118] sm:$0xf]
        %v423 = vld [vmem:[%s1 + $0x11c] sm:$0xf]
        %v424 = vld [vmem:[%s1 + $0x120] sm:$0xf]
        %v425 = vld [vmem:[%s1 + $0x124] sm:$0xf]
        %v426 = vld [vmem:[%s1 + $0x128] sm:$0xf]
        %v427 = vld [vmem:[%s1 + $0x12c] sm:$0xf]
        %v428 = vld [vmem:[%s1 + $0x130] sm:$0xf]
        %v429 = vld [vmem:[%s1 + $0x134] sm:$0xf]
        %v430 = vld [vmem:[%s1 + $0x138] sm:$0xf]
        %v431 = vld [vmem:[%s1 + $0x13c] sm:$0xf]
        %v432 = vld [vmem:[%s1 + $0x140] sm:$0xf]
        %v433 = vld [vmem:[%s1 + $0x144] sm:$0xf]
        %v434 = vld [vmem:[%s1 + $0x148] sm:$0xf]
        %v435 = vld [vmem:[%s1 + $0x14c] sm:$0xf]
        %v436 = vld [vmem:[%s1 + $0x150] sm:$0xf]
        %v437 = vld [vmem:[%s1 + $0x154] sm:$0xf]
        %v438 = vld [vmem:[%s1 + $0x158] sm:$0xf]
        %v439 = vld [vmem:[%s1 + $0x15c] sm:$0xf]
        %v440 = vld [vmem:[%s1 + $0x160] sm:$0xf]
        %v441 = vld [vmem:[%s1 + $0x164] sm:$0xf]
        %v442 = vld [vmem:[%s1 + $0x168] sm:$0xf]
        %v443 = vld [vmem:[%s1 + $0x16c] sm:$0xf]
        %v444 = vld [vmem:[%s1 + $0x170] sm:$0xf]
        %v445 = vld [vmem:[%s1 + $0x174] sm:$0xf]
        %v446 = vld [vmem:[%s1 + $0x178] sm:$0xf]
        %v447 = vld [vmem:[%s1 + $0x17c] sm:$0xf]
        %v448 = vld [vmem:[%s1 + $0x180] sm:$0xf]
        %v449 = vld [vmem:[%s1 + $0x184] sm:$0xf]
        %v450 = vld [vmem:[%s1 + $0x188] sm:$0xf]
        %v451 = vld [vmem:[%s1 + $0x18c] sm:$0xf]
        %v452 = vld [vmem:[%s1 + $0x190] sm:$0xf]
        %v453 = vld [vmem:[%s1 + $0x194] sm:$0xf]
        %v454 = vld [vmem:[%s1 + $0x198] sm:$0xf]
        %v455 = vld [vmem:[%s1 + $0x19c] sm:$0xf]
        %v456 = vld [vmem:[%s1 + $0x1a0] sm:$0xf]
        %v457 = vld [vmem:[%s1 + $0x1a4] sm:$0xf]
        %v458 = vld [vmem:[%s1 + $0x1a8] sm:$0xf]
        %v459 = vld [vmem:[%s1 + $0x1ac] sm:$0xf]
        %v460 = vld [vmem:[%s1 + $0x1b0] sm:$0xf]
        %v461 = vld [vmem:[%s1 + $0x1b4] sm:$0xf]
        %v462 = vld [vmem:[%s1 + $0x1b8] sm:$0xf]
        %v463 = vld [vmem:[%s1 + $0x1bc] sm:$0xf]
        %v464 = vld [vmem:[%s1 + $0x1c0] sm:$0xf]
        %v465 = vld [vmem:[%s1 + $0x1c4] sm:$0xf]
        %v466 = vld [vmem:[%s1 + $0x1c8] sm:$0xf]
        %v467 = vld [vmem:[%s1 + $0x1cc] sm:$0xf]
        %v468 = vld [vmem:[%s1 + $0x1d0] sm:$0xf]
        %v469 = vld [vmem:[%s1 + $0x1d4] sm:$0xf]
        %v470 = vld [vmem:[%s1 + $0x1d8] sm:$0xf]
        %v471 = vld [vmem:[%s1 + $0x1dc] sm:$0xf]
        %v472 = vld [vmem:[%s1 + $0x1e0] sm:$0xf]
        %v473 = vld [vmem:[%s1 + $0x1e4] sm:$0xf]
        %v474 = vld [vmem:[%s1 + $0x1e8] sm:$0xf]
        %v475 = vld [vmem:[%s1 + $0x1ec] sm:$0xf]
        %v476 = vld [vmem:[%s1 + $0x1f0] sm:$0xf]
        %v477 = vld [vmem:[%s1 + $0x1f4] sm:$0xf]
        %v478 = vld [vmem:[%s1 + $0x1f8] sm:$0xf]
        %v479 = vld [vmem:[%s1 + $0x1fc] sm:$0xf]
        %v608 = vunpack.c.l.b16 %v224
        %v609 = vunpack.c.h.b16 %v224
        %v610 = vunpack.c.l.b16 %v225
        %v611 = vunpack.c.h.b16 %v225
        %v612 = vunpack.c.l.b16 %v226
        %v613 = vunpack.c.h.b16 %v226
        %v614 = vunpack.c.l.b16 %v227
        %v615 = vunpack.c.h.b16 %v227
        %v616 = vunpack.c.l.b16 %v228
        %v617 = vunpack.c.h.b16 %v228
        %v618 = vunpack.c.l.b16 %v229
        %v619 = vunpack.c.h.b16 %v229
        %v620 = vunpack.c.l.b16 %v230
        %v621 = vunpack.c.h.b16 %v230
        %v622 = vunpack.c.l.b16 %v231
        %v623 = vunpack.c.h.b16 %v231
        %v624 = vunpack.c.l.b16 %v232
        %v625 = vunpack.c.h.b16 %v232
        %v626 = vunpack.c.l.b16 %v233
        %v627 = vunpack.c.h.b16 %v233
        %v628 = vunpack.c.l.b16 %v234
        %v629 = vunpack.c.h.b16 %v234
        %v630 = vunpack.c.l.b16 %v235
        %v631 = vunpack.c.h.b16 %v235
        %v632 = vunpack.c.l.b16 %v236
        %v633 = vunpack.c.h.b16 %v236
        %v634 = vunpack.c.l.b16 %v237
        %v635 = vunpack.c.h.b16 %v237
        %v636 = vunpack.c.l.b16 %v238
        %v637 = vunpack.c.h.b16 %v238
        %v638 = vunpack.c.l.b16 %v239
        %v639 = vunpack.c.h.b16 %v239
        %v640 = vunpack.c.l.b16 %v240
        %v641 = vunpack.c.h.b16 %v240
        %v642 = vunpack.c.l.b16 %v241
        %v643 = vunpack.c.h.b16 %v241
        %v644 = vunpack.c.l.b16 %v242
        %v645 = vunpack.c.h.b16 %v242
        %v646 = vunpack.c.l.b16 %v243
        %v647 = vunpack.c.h.b16 %v243
        %v648 = vunpack.c.l.b16 %v244
        %v649 = vunpack.c.h.b16 %v244
        %v650 = vunpack.c.l.b16 %v245
        %v651 = vunpack.c.h.b16 %v245
        %v652 = vunpack.c.l.b16 %v246
        %v653 = vunpack.c.h.b16 %v246
        %v654 = vunpack.c.l.b16 %v247
        %v655 = vunpack.c.h.b16 %v247
        %v656 = vunpack.c.l.b16 %v248
        %v657 = vunpack.c.h.b16 %v248
        %v658 = vunpack.c.l.b16 %v249
        %v659 = vunpack.c.h.b16 %v249
        %v660 = vunpack.c.l.b16 %v250
        %v661 = vunpack.c.h.b16 %v250
        %v662 = vunpack.c.l.b16 %v251
        %v663 = vunpack.c.h.b16 %v251
        %v664 = vunpack.c.l.b16 %v252
        %v665 = vunpack.c.h.b16 %v252
        %v666 = vunpack.c.l.b16 %v253
        %v667 = vunpack.c.h.b16 %v253
        %v668 = vunpack.c.l.b16 %v254
        %v669 = vunpack.c.h.b16 %v254
        %v670 = vunpack.c.l.b16 %v255
        %v671 = vunpack.c.h.b16 %v255
        %v672 = vunpack.c.l.b16 %v256
        %v673 = vunpack.c.h.b16 %v256
        %v674 = vunpack.c.l.b16 %v257
        %v675 = vunpack.c.h.b16 %v257
        %v676 = vunpack.c.l.b16 %v258
        %v677 = vunpack.c.h.b16 %v258
        %v678 = vunpack.c.l.b16 %v259
        %v679 = vunpack.c.h.b16 %v259
        %v680 = vunpack.c.l.b16 %v260
        %v681 = vunpack.c.h.b16 %v260
        %v682 = vunpack.c.l.b16 %v261
        %v683 = vunpack.c.h.b16 %v261
        %v684 = vunpack.c.l.b16 %v262
        %v685 = vunpack.c.h.b16 %v262
        %v686 = vunpack.c.l.b16 %v263
        %v687 = vunpack.c.h.b16 %v263
        %v688 = vunpack.c.l.b16 %v264
        %v689 = vunpack.c.h.b16 %v264
        %v690 = vunpack.c.l.b16 %v265
        %v691 = vunpack.c.h.b16 %v265
        %v692 = vunpack.c.l.b16 %v266
        %v693 = vunpack.c.h.b16 %v266
        %v694 = vunpack.c.l.b16 %v267
        %v695 = vunpack.c.h.b16 %v267
        %v696 = vunpack.c.l.b16 %v268
        %v697 = vunpack.c.h.b16 %v268
        %v698 = vunpack.c.l.b16 %v269
        %v699 = vunpack.c.h.b16 %v269
        %v700 = vunpack.c.l.b16 %v270
        %v701 = vunpack.c.h.b16 %v270
        %v702 = vunpack.c.l.b16 %v271
        %v703 = vunpack.c.h.b16 %v271
        %v704 = vunpack.c.l.b16 %v272
        %v705 = vunpack.c.h.b16 %v272
        %v706 = vunpack.c.l.b16 %v273
        %v707 = vunpack.c.h.b16 %v273
        %v708 = vunpack.c.l.b16 %v274
        %v709 = vunpack.c.h.b16 %v274
        %v710 = vunpack.c.l.b16 %v275
        %v711 = vunpack.c.h.b16 %v275
        %v712 = vunpack.c.l.b16 %v276
        %v713 = vunpack.c.h.b16 %v276
        %v714 = vunpack.c.l.b16 %v277
        %v715 = vunpack.c.h.b16 %v277
        %v716 = vunpack.c.l.b16 %v278
        %v717 = vunpack.c.h.b16 %v278
        %v718 = vunpack.c.l.b16 %v279
        %v719 = vunpack.c.h.b16 %v279
        %v720 = vunpack.c.l.b16 %v280
        %v721 = vunpack.c.h.b16 %v280
        %v722 = vunpack.c.l.b16 %v281
        %v723 = vunpack.c.h.b16 %v281
        %v724 = vunpack.c.l.b16 %v282
        %v725 = vunpack.c.h.b16 %v282
        %v726 = vunpack.c.l.b16 %v283
        %v727 = vunpack.c.h.b16 %v283
        %v728 = vunpack.c.l.b16 %v284
        %v729 = vunpack.c.h.b16 %v284
        %v730 = vunpack.c.l.b16 %v285
        %v731 = vunpack.c.h.b16 %v285
        %v732 = vunpack.c.l.b16 %v286
        %v733 = vunpack.c.h.b16 %v286
        %v734 = vunpack.c.l.b16 %v287
        %v735 = vunpack.c.h.b16 %v287
        %v736 = vunpack.c.l.b16 %v288
        %v737 = vunpack.c.h.b16 %v288
        %v738 = vunpack.c.l.b16 %v289
        %v739 = vunpack.c.h.b16 %v289
        %v740 = vunpack.c.l.b16 %v290
        %v741 = vunpack.c.h.b16 %v290
        %v742 = vunpack.c.l.b16 %v291
        %v743 = vunpack.c.h.b16 %v291
        %v744 = vunpack.c.l.b16 %v292
        %v745 = vunpack.c.h.b16 %v292
        %v746 = vunpack.c.l.b16 %v293
        %v747 = vunpack.c.h.b16 %v293
        %v748 = vunpack.c.l.b16 %v294
        %v749 = vunpack.c.h.b16 %v294
        %v750 = vunpack.c.l.b16 %v295
        %v751 = vunpack.c.h.b16 %v295
        %v752 = vunpack.c.l.b16 %v296
        %v753 = vunpack.c.h.b16 %v296
        %v754 = vunpack.c.l.b16 %v297
        %v755 = vunpack.c.h.b16 %v297
        %v756 = vunpack.c.l.b16 %v298
        %v757 = vunpack.c.h.b16 %v298
        %v758 = vunpack.c.l.b16 %v299
        %v759 = vunpack.c.h.b16 %v299
        %v760 = vunpack.c.l.b16 %v300
        %v761 = vunpack.c.h.b16 %v300
        %v762 = vunpack.c.l.b16 %v301
        %v763 = vunpack.c.h.b16 %v301
        %v764 = vunpack.c.l.b16 %v302
        %v765 = vunpack.c.h.b16 %v302
        %v766 = vunpack.c.l.b16 %v303
        %v767 = vunpack.c.h.b16 %v303
        %v768 = vunpack.c.l.b16 %v304
        %v769 = vunpack.c.h.b16 %v304
        %v770 = vunpack.c.l.b16 %v305
        %v771 = vunpack.c.h.b16 %v305
        %v772 = vunpack.c.l.b16 %v306
        %v773 = vunpack.c.h.b16 %v306
        %v774 = vunpack.c.l.b16 %v307
        %v775 = vunpack.c.h.b16 %v307
        %v776 = vunpack.c.l.b16 %v308
        %v777 = vunpack.c.h.b16 %v308
        %v778 = vunpack.c.l.b16 %v309
        %v779 = vunpack.c.h.b16 %v309
        %v780 = vunpack.c.l.b16 %v310
        %v781 = vunpack.c.h.b16 %v310
        %v782 = vunpack.c.l.b16 %v311
        %v783 = vunpack.c.h.b16 %v311
        %v784 = vunpack.c.l.b16 %v312
        %v785 = vunpack.c.h.b16 %v312
        %v786 = vunpack.c.l.b16 %v313
        %v787 = vunpack.c.h.b16 %v313
        %v788 = vunpack.c.l.b16 %v314
        %v789 = vunpack.c.h.b16 %v314
        %v790 = vunpack.c.l.b16 %v315
        %v791 = vunpack.c.h.b16 %v315
        %v792 = vunpack.c.l.b16 %v316
        %v793 = vunpack.c.h.b16 %v316
        %v794 = vunpack.c.l.b16 %v317
        %v795 = vunpack.c.h.b16 %v317
        %v796 = vunpack.c.l.b16 %v318
        %v797 = vunpack.c.h.b16 %v318
        %v798 = vunpack.c.l.b16 %v319
        %v799 = vunpack.c.h.b16 %v319
        %v800 = vunpack.c.l.b16 %v320
        %v801 = vunpack.c.h.b16 %v320
        %v802 = vunpack.c.l.b16 %v321
        %v803 = vunpack.c.h.b16 %v321
        %v804 = vunpack.c.l.b16 %v322
        %v805 = vunpack.c.h.b16 %v322
        %v806 = vunpack.c.l.b16 %v323
        %v807 = vunpack.c.h.b16 %v323
        %v808 = vunpack.c.l.b16 %v324
        %v809 = vunpack.c.h.b16 %v324
        %v810 = vunpack.c.l.b16 %v325
        %v811 = vunpack.c.h.b16 %v325
        %v812 = vunpack.c.l.b16 %v326
        %v813 = vunpack.c.h.b16 %v326
        %v814 = vunpack.c.l.b16 %v327
        %v815 = vunpack.c.h.b16 %v327
        %v816 = vunpack.c.l.b16 %v328
        %v817 = vunpack.c.h.b16 %v328
        %v818 = vunpack.c.l.b16 %v329
        %v819 = vunpack.c.h.b16 %v329
        %v820 = vunpack.c.l.b16 %v330
        %v821 = vunpack.c.h.b16 %v330
        %v822 = vunpack.c.l.b16 %v331
        %v823 = vunpack.c.h.b16 %v331
        %v824 = vunpack.c.l.b16 %v332
        %v825 = vunpack.c.h.b16 %v332
        %v826 = vunpack.c.l.b16 %v333
        %v827 = vunpack.c.h.b16 %v333
        %v828 = vunpack.c.l.b16 %v334
        %v829 = vunpack.c.h.b16 %v334
        %v830 = vunpack.c.l.b16 %v335
        %v831 = vunpack.c.h.b16 %v335
        %v832 = vunpack.c.l.b16 %v336
        %v833 = vunpack.c.h.b16 %v336
        %v834 = vunpack.c.l.b16 %v337
        %v835 = vunpack.c.h.b16 %v337
        %v836 = vunpack.c.l.b16 %v338
        %v837 = vunpack.c.h.b16 %v338
        %v838 = vunpack.c.l.b16 %v339
        %v839 = vunpack.c.h.b16 %v339
        %v840 = vunpack.c.l.b16 %v340
        %v841 = vunpack.c.h.b16 %v340
        %v842 = vunpack.c.l.b16 %v341
        %v843 = vunpack.c.h.b16 %v341
        %v844 = vunpack.c.l.b16 %v342
        %v845 = vunpack.c.h.b16 %v342
        %v846 = vunpack.c.l.b16 %v343
        %v847 = vunpack.c.h.b16 %v343
        %v848 = vunpack.c.l.b16 %v344
        %v849 = vunpack.c.h.b16 %v344
        %v850 = vunpack.c.l.b16 %v345
        %v851 = vunpack.c.h.b16 %v345
        %v852 = vunpack.c.l.b16 %v346
        %v853 = vunpack.c.h.b16 %v346
        %v854 = vunpack.c.l.b16 %v347
        %v855 = vunpack.c.h.b16 %v347
        %v856 = vunpack.c.l.b16 %v348
        %v857 = vunpack.c.h.b16 %v348
        %v858 = vunpack.c.l.b16 %v349
        %v859 = vunpack.c.h.b16 %v349
        %v860 = vunpack.c.l.b16 %v350
        %v861 = vunpack.c.h.b16 %v350
        %v862 = vunpack.c.l.b16 %v351
        %v863 = vunpack.c.h.b16 %v351
        %v864 = vpack.c.b16 %v616, %v608
        %v865 = vpack.c.b16 %v617, %v609
        %v866 = vpack.c.b16 %v618, %v610
        %v867 = vpack.c.b16 %v619, %v611
        %v868 = vpack.c.b16 %v620, %v612
        %v869 = vpack.c.b16 %v621, %v613
        %v870 = vpack.c.b16 %v622, %v614
        %v871 = vpack.c.b16 %v623, %v615
        %v872 = vpack.c.b16 %v632, %v624
        %v873 = vpack.c.b16 %v633, %v625
        %v874 = vpack.c.b16 %v634, %v626
        %v875 = vpack.c.b16 %v635, %v627
        %v876 = vpack.c.b16 %v636, %v628
        %v877 = vpack.c.b16 %v637, %v629
        %v878 = vpack.c.b16 %v638, %v630
        %v879 = vpack.c.b16 %v639, %v631
        %v880 = vpack.c.b16 %v648, %v640
        %v881 = vpack.c.b16 %v649, %v641
        %v882 = vpack.c.b16 %v650, %v642
        %v883 = vpack.c.b16 %v651, %v643
        %v884 = vpack.c.b16 %v652, %v644
        %v885 = vpack.c.b16 %v653, %v645
        %v886 = vpack.c.b16 %v654, %v646
        %v887 = vpack.c.b16 %v655, %v647
        %v888 = vpack.c.b16 %v664, %v656
        %v889 = vpack.c.b16 %v665, %v657
        %v890 = vpack.c.b16 %v666, %v658
        %v891 = vpack.c.b16 %v667, %v659
        %v892 = vpack.c.b16 %v668, %v660
        %v893 = vpack.c.b16 %v669, %v661
        %v894 = vpack.c.b16 %v670, %v662
        %v895 = vpack.c.b16 %v671, %v663
        %v896 = vpack.c.b16 %v680, %v672
        %v897 = vpack.c.b16 %v681, %v673
        %v898 = vpack.c.b16 %v682, %v674
        %v899 = vpack.c.b16 %v683, %v675
        %v900 = vpack.c.b16 %v684, %v676
        %v901 = vpack.c.b16 %v685, %v677
        %v902 = vpack.c.b16 %v686, %v678
        %v903 = vpack.c.b16 %v687, %v679
        %v904 = vpack.c.b16 %v696, %v688
        %v905 = vpack.c.b16 %v697, %v689
        %v906 = vpack.c.b16 %v698, %v690
        %v907 = vpack.c.b16 %v699, %v691
        %v908 = vpack.c.b16 %v700, %v692
        %v909 = vpack.c.b16 %v701, %v693
        %v910 = vpack.c.b16 %v702, %v694
        %v911 = vpack.c.b16 %v703, %v695
        %v912 = vpack.c.b16 %v712, %v704
        %v913 = vpack.c.b16 %v713, %v705
        %v914 = vpack.c.b16 %v714, %v706
        %v915 = vpack.c.b16 %v715, %v707
        %v916 = vpack.c.b16 %v716, %v708
        %v917 = vpack.c.b16 %v717, %v709
        %v918 = vpack.c.b16 %v718, %v710
        %v919 = vpack.c.b16 %v719, %v711
        %v920 = vpack.c.b16 %v728, %v720
        %v921 = vpack.c.b16 %v729, %v721
        %v922 = vpack.c.b16 %v730, %v722
        %v923 = vpack.c.b16 %v731, %v723
        %v924 = vpack.c.b16 %v732, %v724
        %v925 = vpack.c.b16 %v733, %v725
        %v926 = vpack.c.b16 %v734, %v726
        %v927 = vpack.c.b16 %v735, %v727
        %v928 = vpack.c.b16 %v744, %v736
        %v929 = vpack.c.b16 %v745, %v737
        %v930 = vpack.c.b16 %v746, %v738
        %v931 = vpack.c.b16 %v747, %v739
        %v932 = vpack.c.b16 %v748, %v740
        %v933 = vpack.c.b16 %v749, %v741
        %v934 = vpack.c.b16 %v750, %v742
        %v935 = vpack.c.b16 %v751, %v743
        %v936 = vpack.c.b16 %v760, %v752
        %v937 = vpack.c.b16 %v761, %v753
        %v938 = vpack.c.b16 %v762, %v754
        %v939 = vpack.c.b16 %v763, %v755
        %v940 = vpack.c.b16 %v764, %v756
        %v941 = vpack.c.b16 %v765, %v757
        %v942 = vpack.c.b16 %v766, %v758
        %v943 = vpack.c.b16 %v767, %v759
        %v944 = vpack.c.b16 %v776, %v768
        %v945 = vpack.c.b16 %v777, %v769
        %v946 = vpack.c.b16 %v778, %v770
        %v947 = vpack.c.b16 %v779, %v771
        %v948 = vpack.c.b16 %v780, %v772
        %v949 = vpack.c.b16 %v781, %v773
        %v950 = vpack.c.b16 %v782, %v774
        %v951 = vpack.c.b16 %v783, %v775
        %v952 = vpack.c.b16 %v792, %v784
        %v953 = vpack.c.b16 %v793, %v785
        %v954 = vpack.c.b16 %v794, %v786
        %v955 = vpack.c.b16 %v795, %v787
        %v956 = vpack.c.b16 %v796, %v788
        %v957 = vpack.c.b16 %v797, %v789
        %v958 = vpack.c.b16 %v798, %v790
        %v959 = vpack.c.b16 %v799, %v791
        %v960 = vpack.c.b16 %v808, %v800
        %v961 = vpack.c.b16 %v809, %v801
        %v962 = vpack.c.b16 %v810, %v802
        %v963 = vpack.c.b16 %v811, %v803
        %v964 = vpack.c.b16 %v812, %v804
        %v965 = vpack.c.b16 %v813, %v805
        %v966 = vpack.c.b16 %v814, %v806
        %v967 = vpack.c.b16 %v815, %v807
        %v968 = vpack.c.b16 %v824, %v816
        %v969 = vpack.c.b16 %v825, %v817
        %v970 = vpack.c.b16 %v826, %v818
        %v971 = vpack.c.b16 %v827, %v819
        %v972 = vpack.c.b16 %v828, %v820
        %v973 = vpack.c.b16 %v829, %v821
        %v974 = vpack.c.b16 %v830, %v822
        %v975 = vpack.c.b16 %v831, %v823
        %v976 = vpack.c.b16 %v840, %v832
        %v977 = vpack.c.b16 %v841, %v833
        %v978 = vpack.c.b16 %v842, %v834
        %v979 = vpack.c.b16 %v843, %v835
        %v980 = vpack.c.b16 %v844, %v836
        %v981 = vpack.c.b16 %v845, %v837
        %v982 = vpack.c.b16 %v846, %v838
        %v983 = vpack.c.b16 %v847, %v839
        %v984 = vpack.c.b16 %v856, %v848
        %v985 = vpack.c.b16 %v857, %v849
        %v986 = vpack.c.b16 %v858, %v850
        %v987 = vpack.c.b16 %v859, %v851
        %v988 = vpack.c.b16 %v860, %v852
        %v989 = vpack.c.b16 %v861, %v853
        %v990 = vpack.c.b16 %v862, %v854
        %v991 = vpack.c.b16 %v863, %v855
        %v1248 = vunpack.c.l.b16 %v352
        %v1249 = vunpack.c.l.b16 %v353
        %v1250 = vunpack.c.l.b16 %v354
        %v1251 = vunpack.c.l.b16 %v355
        %v1252 = vunpack.c.l.b16 %v356
        %v1253 = vunpack.c.l.b16 %v357
        %v1254 = vunpack.c.l.b16 %v358
        %v1255 = vunpack.c.l.b16 %v359
        %v1256 = vunpack.c.l.b16 %v360
        %v1257 = vunpack.c.l.b16 %v361
        %v1258 = vunpack.c.l.b16 %v362
        %v1259 = vunpack.c.l.b16 %v363
        %v1260 = vunpack.c.l.b16 %v364
        %v1261 = vunpack.c.l.b16 %v365
        %v1262 = vunpack.c.l.b16 %v366
        %v1263 = vunpack.c.l.b16 %v367
        %v1264 = vunpack.c.l.b16 %v368
        %v1265 = vunpack.c.l.b16 %v369
        %v1266 = vunpack.c.l.b16 %v370
        %v1267 = vunpack.c.l.b16 %v371
        %v1268 = vunpack.c.l.b16 %v372
        %v1269 = vunpack.c.l.b16 %v373
        %v1270 = vunpack.c.l.b16 %v374
        %v1271 = vunpack.c.l.b16 %v375
        %v1272 = vunpack.c.l.b16 %v376
        %v1273 = vunpack.c.l.b16 %v377
        %v1274 = vunpack.c.l.b16 %v378
        %v1275 = vunpack.c.l.b16 %v379
        %v1276 = vunpack.c.l.b16 %v380
        %v1277 = vunpack.c.l.b16 %v381
        %v1278 = vunpack.c.l.b16 %v382
        %v1279 = vunpack.c.l.b16 %v383
        %v1280 = vunpack.c.l.b16 %v384
        %v1281 = vunpack.c.l.b16 %v385
        %v1282 = vunpack.c.l.b16 %v386
        %v1283 = vunpack.c.l.b16 %v387
        %v1284 = vunpack.c.l.b16 %v388
        %v1285 = vunpack.c.l.b16 %v389
        %v1286 = vunpack.c.l.b16 %v390
        %v1287 = vunpack.c.l.b16 %v391
        %v1288 = vunpack.c.l.b16 %v392
        %v1289 = vunpack.c.l.b16 %v393
        %v1290 = vunpack.c.l.b16 %v394
        %v1291 = vunpack.c.l.b16 %v395
        %v1292 = vunpack.c.l.b16 %v396
        %v1293 = vunpack.c.l.b16 %v397
        %v1294 = vunpack.c.l.b16 %v398
        %v1295 = vunpack.c.l.b16 %v399
        %v1296 = vunpack.c.l.b16 %v400
        %v1297 = vunpack.c.l.b16 %v401
        %v1298 = vunpack.c.l.b16 %v402
        %v1299 = vunpack.c.l.b16 %v403
        %v1300 = vunpack.c.l.b16 %v404
        %v1301 = vunpack.c.l.b16 %v405
        %v1302 = vunpack.c.l.b16 %v406
        %v1303 = vunpack.c.l.b16 %v407
        %v1304 = vunpack.c.l.b16 %v408
        %v1305 = vunpack.c.l.b16 %v409
        %v1306 = vunpack.c.l.b16 %v410
        %v1307 = vunpack.c.l.b16 %v411
        %v1308 = vunpack.c.l.b16 %v412
        %v1309 = vunpack.c.l.b16 %v413
        %v1310 = vunpack.c.l.b16 %v414
        %v1311 = vunpack.c.l.b16 %v415
        %v1312 = vunpack.c.l.b16 %v416
        %v1313 = vunpack.c.l.b16 %v417
        %v1314 = vunpack.c.l.b16 %v418
        %v1315 = vunpack.c.l.b16 %v419
        %v1316 = vunpack.c.l.b16 %v420
        %v1317 = vunpack.c.l.b16 %v421
        %v1318 = vunpack.c.l.b16 %v422
        %v1319 = vunpack.c.l.b16 %v423
        %v1320 = vunpack.c.l.b16 %v424
        %v1321 = vunpack.c.l.b16 %v425
        %v1322 = vunpack.c.l.b16 %v426
        %v1323 = vunpack.c.l.b16 %v427
        %v1324 = vunpack.c.l.b16 %v428
        %v1325 = vunpack.c.l.b16 %v429
        %v1326 = vunpack.c.l.b16 %v430
        %v1327 = vunpack.c.l.b16 %v431
        %v1328 = vunpack.c.l.b16 %v432
        %v1329 = vunpack.c.l.b16 %v433
        %v1330 = vunpack.c.l.b16 %v434
        %v1331 = vunpack.c.l.b16 %v435
        %v1332 = vunpack.c.l.b16 %v436
        %v1333 = vunpack.c.l.b16 %v437
        %v1334 = vunpack.c.l.b16 %v438
        %v1335 = vunpack.c.l.b16 %v439
        %v1336 = vunpack.c.l.b16 %v440
        %v1337 = vunpack.c.l.b16 %v441
        %v1338 = vunpack.c.l.b16 %v442
        %v1339 = vunpack.c.l.b16 %v443
        %v1340 = vunpack.c.l.b16 %v444
        %v1341 = vunpack.c.l.b16 %v445
        %v1342 = vunpack.c.l.b16 %v446
        %v1343 = vunpack.c.l.b16 %v447
        %v1344 = vunpack.c.l.b16 %v448
        %v1345 = vunpack.c.l.b16 %v449
        %v1346 = vunpack.c.l.b16 %v450
        %v1347 = vunpack.c.l.b16 %v451
        %v1348 = vunpack.c.l.b16 %v452
        %v1349 = vunpack.c.l.b16 %v453
        %v1350 = vunpack.c.l.b16 %v454
        %v1351 = vunpack.c.l.b16 %v455
        %v1352 = vunpack.c.l.b16 %v456
        %v1353 = vunpack.c.l.b16 %v457
        %v1354 = vunpack.c.l.b16 %v458
        %v1355 = vunpack.c.l.b16 %v459
        %v1356 = vunpack.c.l.b16 %v460
        %v1357 = vunpack.c.l.b16 %v461
        %v1358 = vunpack.c.l.b16 %v462
        %v1359 = vunpack.c.l.b16 %v463
        %v1360 = vunpack.c.l.b16 %v464
        %v1361 = vunpack.c.l.b16 %v465
        %v1362 = vunpack.c.l.b16 %v466
        %v1363 = vunpack.c.l.b16 %v467
        %v1364 = vunpack.c.l.b16 %v468
        %v1365 = vunpack.c.l.b16 %v469
        %v1366 = vunpack.c.l.b16 %v470
        %v1367 = vunpack.c.l.b16 %v471
        %v1368 = vunpack.c.l.b16 %v472
        %v1369 = vunpack.c.l.b16 %v473
        %v1370 = vunpack.c.l.b16 %v474
        %v1371 = vunpack.c.l.b16 %v475
        %v1372 = vunpack.c.l.b16 %v476
        %v1373 = vunpack.c.l.b16 %v477
        %v1374 = vunpack.c.l.b16 %v478
        %v1375 = vunpack.c.l.b16 %v479
        %v1376 = vpack.c.b16 %v1249, %v1248
        %v1377 = vpack.c.b16 %v1251, %v1250
        %v1378 = vpack.c.b16 %v1253, %v1252
        %v1379 = vpack.c.b16 %v1255, %v1254
        %v1380 = vpack.c.b16 %v1257, %v1256
        %v1381 = vpack.c.b16 %v1259, %v1258
        %v1382 = vpack.c.b16 %v1261, %v1260
        %v1383 = vpack.c.b16 %v1263, %v1262
        %v1384 = vpack.c.b16 %v1265, %v1264
        %v1385 = vpack.c.b16 %v1267, %v1266
        %v1386 = vpack.c.b16 %v1269, %v1268
        %v1387 = vpack.c.b16 %v1271, %v1270
        %v1388 = vpack.c.b16 %v1273, %v1272
        %v1389 = vpack.c.b16 %v1275, %v1274
        %v1390 = vpack.c.b16 %v1277, %v1276
        %v1391 = vpack.c.b16 %v1279, %v1278
        %v1392 = vpack.c.b16 %v1281, %v1280
        %v1393 = vpack.c.b16 %v1283, %v1282
        %v1394 = vpack.c.b16 %v1285, %v1284
        %v1395 = vpack.c.b16 %v1287, %v1286
        %v1396 = vpack.c.b16 %v1289, %v1288
        %v1397 = vpack.c.b16 %v1291, %v1290
        %v1398 = vpack.c.b16 %v1293, %v1292
        %v1399 = vpack.c.b16 %v1295, %v1294
        %v1400 = vpack.c.b16 %v1297, %v1296
        %v1401 = vpack.c.b16 %v1299, %v1298
        %v1402 = vpack.c.b16 %v1301, %v1300
        %v1403 = vpack.c.b16 %v1303, %v1302
        %v1404 = vpack.c.b16 %v1305, %v1304
        %v1405 = vpack.c.b16 %v1307, %v1306
        %v1406 = vpack.c.b16 %v1309, %v1308
        %v1407 = vpack.c.b16 %v1311, %v1310
        %v1408 = vpack.c.b16 %v1313, %v1312
        %v1409 = vpack.c.b16 %v1315, %v1314
        %v1410 = vpack.c.b16 %v1317, %v1316
        %v1411 = vpack.c.b16 %v1319, %v1318
        %v1412 = vpack.c.b16 %v1321, %v1320
        %v1413 = vpack.c.b16 %v1323, %v1322
        %v1414 = vpack.c.b16 %v1325, %v1324
        %v1415 = vpack.c.b16 %v1327, %v1326
        %v1416 = vpack.c.b16 %v1329, %v1328
        %v1417 = vpack.c.b16 %v1331, %v1330
        %v1418 = vpack.c.b16 %v1333, %v1332
        %v1419 = vpack.c.b16 %v1335, %v1334
        %v1420 = vpack.c.b16 %v1337, %v1336
        %v1421 = vpack.c.b16 %v1339, %v1338
        %v1422 = vpack.c.b16 %v1341, %v1340
        %v1423 = vpack.c.b16 %v1343, %v1342
        %v1424 = vpack.c.b16 %v1345, %v1344
        %v1425 = vpack.c.b16 %v1347, %v1346
        %v1426 = vpack.c.b16 %v1349, %v1348
        %v1427 = vpack.c.b16 %v1351, %v1350
        %v1428 = vpack.c.b16 %v1353, %v1352
        %v1429 = vpack.c.b16 %v1355, %v1354
        %v1430 = vpack.c.b16 %v1357, %v1356
        %v1431 = vpack.c.b16 %v1359, %v1358
        %v1432 = vpack.c.b16 %v1361, %v1360
        %v1433 = vpack.c.b16 %v1363, %v1362
        %v1434 = vpack.c.b16 %v1365, %v1364
        %v1435 = vpack.c.b16 %v1367, %v1366
        %v1436 = vpack.c.b16 %v1369, %v1368
        %v1437 = vpack.c.b16 %v1371, %v1370
        %v1438 = vpack.c.b16 %v1373, %v1372
        %v1439 = vpack.c.b16 %v1375, %v1374
        %1504 = vmatpush.bf16.msra.mxu0 %v1383
        %1505 = vmatpush.bf16.msra.mxu0 %v1382
        %1506 = vmatpush.bf16.msra.mxu0 %v1381
        %1507 = vmatpush.bf16.msra.mxu0 %v1380
        %1508 = vmatpush.bf16.msra.mxu0 %v1379
        %1509 = vmatpush.bf16.msra.mxu0 %v1378
        %1510 = vmatpush.bf16.msra.mxu0 %v1377
        %1511 = vmatpush.bf16.msra.mxu0 %v1376
        %1512 = vmatmul.bf16.gmra.mxu0 %v864
        %v1513 = vpop.f32.mrf.mxu0
        %v1514 = vadd.f32 0.0, %v1513
        %v1515 = vpop.f32.mrf.mxu0
        %v1516 = vadd.f32 0.0, %v1515
        %1517 = vmatmul.bf16.gmra.mxu0 %v872
        %v1518 = vpop.f32.mrf.mxu0
        %v1519 = vadd.f32 0.0, %v1518
        %v1520 = vpop.f32.mrf.mxu0
        %v1521 = vadd.f32 0.0, %v1520
        %1522 = vmatmul.bf16.gmra.mxu0 %v880
        %v1523 = vpop.f32.mrf.mxu0
        %v1524 = vadd.f32 0.0, %v1523
        %v1525 = vpop.f32.mrf.mxu0
        %v1526 = vadd.f32 0.0, %v1525
        %1527 = vmatmul.bf16.gmra.mxu0 %v888
        %v1528 = vpop.f32.mrf.mxu0
        %v1529 = vadd.f32 0.0, %v1528
        %v1530 = vpop.f32.mrf.mxu0
        %v1531 = vadd.f32 0.0, %v1530
        %1532 = vmatmul.bf16.gmra.mxu0 %v896
        %v1533 = vpop.f32.mrf.mxu0
        %v1534 = vadd.f32 0.0, %v1533
        %v1535 = vpop.f32.mrf.mxu0
        %v1536 = vadd.f32 0.0, %v1535
        %1537 = vmatmul.bf16.gmra.mxu0 %v904
        %v1538 = vpop.f32.mrf.mxu0
        %v1539 = vadd.f32 0.0, %v1538
        %v1540 = vpop.f32.mrf.mxu0
        %v1541 = vadd.f32 0.0, %v1540
        %1542 = vmatmul.bf16.gmra.mxu0 %v912
        %v1543 = vpop.f32.mrf.mxu0
        %v1544 = vadd.f32 0.0, %v1543
        %v1545 = vpop.f32.mrf.mxu0
        %v1546 = vadd.f32 0.0, %v1545
        %1547 = vmatmul.bf16.gmra.mxu0 %v920
        %v1548 = vpop.f32.mrf.mxu0
        %v1549 = vadd.f32 0.0, %v1548
        %v1550 = vpop.f32.mrf.mxu0
        %v1551 = vadd.f32 0.0, %v1550
        %1552 = vmatmul.bf16.gmra.mxu0 %v928
        %v1553 = vpop.f32.mrf.mxu0
        %v1554 = vadd.f32 0.0, %v1553
        %v1555 = vpop.f32.mrf.mxu0
        %v1556 = vadd.f32 0.0, %v1555
        %1557 = vmatmul.bf16.gmra.mxu0 %v936
        %v1558 = vpop.f32.mrf.mxu0
        %v1559 = vadd.f32 0.0, %v1558
        %v1560 = vpop.f32.mrf.mxu0
        %v1561 = vadd.f32 0.0, %v1560
        %1562 = vmatmul.bf16.gmra.mxu0 %v944
        %v1563 = vpop.f32.mrf.mxu0
        %v1564 = vadd.f32 0.0, %v1563
        %v1565 = vpop.f32.mrf.mxu0
        %v1566 = vadd.f32 0.0, %v1565
        %1567 = vmatmul.bf16.gmra.mxu0 %v952
        %v1568 = vpop.f32.mrf.mxu0
        %v1569 = vadd.f32 0.0, %v1568
        %v1570 = vpop.f32.mrf.mxu0
        %v1571 = vadd.f32 0.0, %v1570
        %1572 = vmatmul.bf16.gmra.mxu0 %v960
        %v1573 = vpop.f32.mrf.mxu0
        %v1574 = vadd.f32 0.0, %v1573
        %v1575 = vpop.f32.mrf.mxu0
        %v1576 = vadd.f32 0.0, %v1575
        %1577 = vmatmul.bf16.gmra.mxu0 %v968
        %v1578 = vpop.f32.mrf.mxu0
        %v1579 = vadd.f32 0.0, %v1578
        %v1580 = vpop.f32.mrf.mxu0
        %v1581 = vadd.f32 0.0, %v1580
        %1582 = vmatmul.bf16.gmra.mxu0 %v976
        %v1583 = vpop.f32.mrf.mxu0
        %v1584 = vadd.f32 0.0, %v1583
        %v1585 = vpop.f32.mrf.mxu0
        %v1586 = vadd.f32 0.0, %v1585
        %1587 = vmatmul.bf16.gmra.mxu0 %v984
        %v1588 = vpop.f32.mrf.mxu0
        %v1589 = vadd.f32 0.0, %v1588
        %v1590 = vpop.f32.mrf.mxu0
        %v1591 = vadd.f32 0.0, %v1590
        %1592 = vdwg.mxu0
        %1593 = vmatpush.bf16.msra.mxu0 %v1391
        %1594 = vmatpush.bf16.msra.mxu0 %v1390
        %1595 = vmatpush.bf16.msra.mxu0 %v1389
        %1596 = vmatpush.bf16.msra.mxu0 %v1388
        %1597 = vmatpush.bf16.msra.mxu0 %v1387
        %1598 = vmatpush.bf16.msra.mxu0 %v1386
        %1599 = vmatpush.bf16.msra.mxu0 %v1385
        %1600 = vmatpush.bf16.msra.mxu0 %v1384
        %1601 = vmatmul.bf16.gmra.mxu0 %v865
        %v1602 = vpop.f32.mrf.mxu0
        %v1603 = vadd.f32 %v1514, %v1602
        %v1604 = vpop.f32.mrf.mxu0
        %v1605 = vadd.f32 %v1516, %v1604
        %1606 = vmatmul.bf16.gmra.mxu0 %v873
        %v1607 = vpop.f32.mrf.mxu0
        %v1608 = vadd.f32 %v1519, %v1607
        %v1609 = vpop.f32.mrf.mxu0
        %v1610 = vadd.f32 %v1521, %v1609
        %1611 = vmatmul.bf16.gmra.mxu0 %v881
        %v1612 = vpop.f32.mrf.mxu0
        %v1613 = vadd.f32 %v1524, %v1612
        %v1614 = vpop.f32.mrf.mxu0
        %v1615 = vadd.f32 %v1526, %v1614
        %1616 = vmatmul.bf16.gmra.mxu0 %v889
        %v1617 = vpop.f32.mrf.mxu0
        %v1618 = vadd.f32 %v1529, %v1617
        %v1619 = vpop.f32.mrf.mxu0
        %v1620 = vadd.f32 %v1531, %v1619
        %1621 = vmatmul.bf16.gmra.mxu0 %v897
        %v1622 = vpop.f32.mrf.mxu0
        %v1623 = vadd.f32 %v1534, %v1622
        %v1624 = vpop.f32.mrf.mxu0
        %v1625 = vadd.f32 %v1536, %v1624
        %1626 = vmatmul.bf16.gmra.mxu0 %v905
        %v1627 = vpop.f32.mrf.mxu0
        %v1628 = vadd.f32 %v1539, %v1627
        %v1629 = vpop.f32.mrf.mxu0
        %v1630 = vadd.f32 %v1541, %v1629
        %1631 = vmatmul.bf16.gmra.mxu0 %v913
        %v1632 = vpop.f32.mrf.mxu0
        %v1633 = vadd.f32 %v1544, %v1632
        %v1634 = vpop.f32.mrf.mxu0
        %v1635 = vadd.f32 %v1546, %v1634
        %1636 = vmatmul.bf16.gmra.mxu0 %v921
        %v1637 = vpop.f32.mrf.mxu0
        %v1638 = vadd.f32 %v1549, %v1637
        %v1639 = vpop.f32.mrf.mxu0
        %v1640 = vadd.f32 %v1551, %v1639
        %1641 = vmatmul.bf16.gmra.mxu0 %v929
        %v1642 = vpop.f32.mrf.mxu0
        %v1643 = vadd.f32 %v1554, %v1642
        %v1644 = vpop.f32.mrf.mxu0
        %v1645 = vadd.f32 %v1556, %v1644
        %1646 = vmatmul.bf16.gmra.mxu0 %v937
        %v1647 = vpop.f32.mrf.mxu0
        %v1648 = vadd.f32 %v1559, %v1647
        %v1649 = vpop.f32.mrf.mxu0
        %v1650 = vadd.f32 %v1561, %v1649
        %1651 = vmatmul.bf16.gmra.mxu0 %v945
        %v1652 = vpop.f32.mrf.mxu0
        %v1653 = vadd.f32 %v1564, %v1652
        %v1654 = vpop.f32.mrf.mxu0
        %v1655 = vadd.f32 %v1566, %v1654
        %1656 = vmatmul.bf16.gmra.mxu0 %v953
        %v1657 = vpop.f32.mrf.mxu0
        %v1658 = vadd.f32 %v1569, %v1657
        %v1659 = vpop.f32.mrf.mxu0
        %v1660 = vadd.f32 %v1571, %v1659
        %1661 = vmatmul.bf16.gmra.mxu0 %v961
        %v1662 = vpop.f32.mrf.mxu0
        %v1663 = vadd.f32 %v1574, %v1662
        %v1664 = vpop.f32.mrf.mxu0
        %v1665 = vadd.f32 %v1576, %v1664
        %1666 = vmatmul.bf16.gmra.mxu0 %v969
        %v1667 = vpop.f32.mrf.mxu0
        %v1668 = vadd.f32 %v1579, %v1667
        %v1669 = vpop.f32.mrf.mxu0
        %v1670 = vadd.f32 %v1581, %v1669
        %1671 = vmatmul.bf16.gmra.mxu0 %v977
        %v1672 = vpop.f32.mrf.mxu0
        %v1673 = vadd.f32 %v1584, %v1672
        %v1674 = vpop.f32.mrf.mxu0
        %v1675 = vadd.f32 %v1586, %v1674
        %1676 = vmatmul.bf16.gmra.mxu0 %v985
        %v1677 = vpop.f32.mrf.mxu0
        %v1678 = vadd.f32 %v1589, %v1677
        %v1679 = vpop.f32.mrf.mxu0
        %v1680 = vadd.f32 %v1591, %v1679
        %1681 = vdwg.mxu0
        %1682 = vmatpush.bf16.msra.mxu0 %v1399
        %1683 = vmatpush.bf16.msra.mxu0 %v1398
        %1684 = vmatpush.bf16.msra.mxu0 %v1397
        %1685 = vmatpush.bf16.msra.mxu0 %v1396
        %1686 = vmatpush.bf16.msra.mxu0 %v1395
        %1687 = vmatpush.bf16.msra.mxu0 %v1394
        %1688 = vmatpush.bf16.msra.mxu0 %v1393
        %1689 = vmatpush.bf16.msra.mxu0 %v1392
        %1690 = vmatmul.bf16.gmra.mxu0 %v866
        %v1691 = vpop.f32.mrf.mxu0
        %v1692 = vadd.f32 %v1603, %v1691
        %v1693 = vpop.f32.mrf.mxu0
        %v1694 = vadd.f32 %v1605, %v1693
        %1695 = vmatmul.bf16.gmra.mxu0 %v874
        %v1696 = vpop.f32.mrf.mxu0
        %v1697 = vadd.f32 %v1608, %v1696
        %v1698 = vpop.f32.mrf.mxu0
        %v1699 = vadd.f32 %v1610, %v1698
        %1700 = vmatmul.bf16.gmra.mxu0 %v882
        %v1701 = vpop.f32.mrf.mxu0
        %v1702 = vadd.f32 %v1613, %v1701
        %v1703 = vpop.f32.mrf.mxu0
        %v1704 = vadd.f32 %v1615, %v1703
        %1705 = vmatmul.bf16.gmra.mxu0 %v890
        %v1706 = vpop.f32.mrf.mxu0
        %v1707 = vadd.f32 %v1618, %v1706
        %v1708 = vpop.f32.mrf.mxu0
        %v1709 = vadd.f32 %v1620, %v1708
        %1710 = vmatmul.bf16.gmra.mxu0 %v898
        %v1711 = vpop.f32.mrf.mxu0
        %v1712 = vadd.f32 %v1623, %v1711
        %v1713 = vpop.f32.mrf.mxu0
        %v1714 = vadd.f32 %v1625, %v1713
        %1715 = vmatmul.bf16.gmra.mxu0 %v906
        %v1716 = vpop.f32.mrf.mxu0
        %v1717 = vadd.f32 %v1628, %v1716
        %v1718 = vpop.f32.mrf.mxu0
        %v1719 = vadd.f32 %v1630, %v1718
        %1720 = vmatmul.bf16.gmra.mxu0 %v914
        %v1721 = vpop.f32.mrf.mxu0
        %v1722 = vadd.f32 %v1633, %v1721
        %v1723 = vpop.f32.mrf.mxu0
        %v1724 = vadd.f32 %v1635, %v1723
        %1725 = vmatmul.bf16.gmra.mxu0 %v922
        %v1726 = vpop.f32.mrf.mxu0
        %v1727 = vadd.f32 %v1638, %v1726
        %v1728 = vpop.f32.mrf.mxu0
        %v1729 = vadd.f32 %v1640, %v1728
        %1730 = vmatmul.bf16.gmra.mxu0 %v930
        %v1731 = vpop.f32.mrf.mxu0
        %v1732 = vadd.f32 %v1643, %v1731
        %v1733 = vpop.f32.mrf.mxu0
        %v1734 = vadd.f32 %v1645, %v1733
        %1735 = vmatmul.bf16.gmra.mxu0 %v938
        %v1736 = vpop.f32.mrf.mxu0
        %v1737 = vadd.f32 %v1648, %v1736
        %v1738 = vpop.f32.mrf.mxu0
        %v1739 = vadd.f32 %v1650, %v1738
        %1740 = vmatmul.bf16.gmra.mxu0 %v946
        %v1741 = vpop.f32.mrf.mxu0
        %v1742 = vadd.f32 %v1653, %v1741
        %v1743 = vpop.f32.mrf.mxu0
        %v1744 = vadd.f32 %v1655, %v1743
        %1745 = vmatmul.bf16.gmra.mxu0 %v954
        %v1746 = vpop.f32.mrf.mxu0
        %v1747 = vadd.f32 %v1658, %v1746
        %v1748 = vpop.f32.mrf.mxu0
        %v1749 = vadd.f32 %v1660, %v1748
        %1750 = vmatmul.bf16.gmra.mxu0 %v962
        %v1751 = vpop.f32.mrf.mxu0
        %v1752 = vadd.f32 %v1663, %v1751
        %v1753 = vpop.f32.mrf.mxu0
        %v1754 = vadd.f32 %v1665, %v1753
        %1755 = vmatmul.bf16.gmra.mxu0 %v970
        %v1756 = vpop.f32.mrf.mxu0
        %v1757 = vadd.f32 %v1668, %v1756
        %v1758 = vpop.f32.mrf.mxu0
        %v1759 = vadd.f32 %v1670, %v1758
        %1760 = vmatmul.bf16.gmra.mxu0 %v978
        %v1761 = vpop.f32.mrf.mxu0
        %v1762 = vadd.f32 %v1673, %v1761
        %v1763 = vpop.f32.mrf.mxu0
        %v1764 = vadd.f32 %v1675, %v1763
        %1765 = vmatmul.bf16.gmra.mxu0 %v986
        %v1766 = vpop.f32.mrf.mxu0
        %v1767 = vadd.f32 %v1678, %v1766
        %v1768 = vpop.f32.mrf.mxu0
        %v1769 = vadd.f32 %v1680, %v1768
        %1770 = vdwg.mxu0
        %1771 = vmatpush.bf16.msra.mxu0 %v1407
        %1772 = vmatpush.bf16.msra.mxu0 %v1406
        %1773 = vmatpush.bf16.msra.mxu0 %v1405
        %1774 = vmatpush.bf16.msra.mxu0 %v1404
        %1775 = vmatpush.bf16.msra.mxu0 %v1403
        %1776 = vmatpush.bf16.msra.mxu0 %v1402
        %1777 = vmatpush.bf16.msra.mxu0 %v1401
        %1778 = vmatpush.bf16.msra.mxu0 %v1400
        %1779 = vmatmul.bf16.gmra.mxu0 %v867
        %v1780 = vpop.f32.mrf.mxu0
        %v1781 = vadd.f32 %v1692, %v1780
        %v1782 = vpop.f32.mrf.mxu0
        %v1783 = vadd.f32 %v1694, %v1782
        %1784 = vmatmul.bf16.gmra.mxu0 %v875
        %v1785 = vpop.f32.mrf.mxu0
        %v1786 = vadd.f32 %v1697, %v1785
        %v1787 = vpop.f32.mrf.mxu0
        %v1788 = vadd.f32 %v1699, %v1787
        %1789 = vmatmul.bf16.gmra.mxu0 %v883
        %v1790 = vpop.f32.mrf.mxu0
        %v1791 = vadd.f32 %v1702, %v1790
        %v1792 = vpop.f32.mrf.mxu0
        %v1793 = vadd.f32 %v1704, %v1792
        %1794 = vmatmul.bf16.gmra.mxu0 %v891
        %v1795 = vpop.f32.mrf.mxu0
        %v1796 = vadd.f32 %v1707, %v1795
        %v1797 = vpop.f32.mrf.mxu0
        %v1798 = vadd.f32 %v1709, %v1797
        %1799 = vmatmul.bf16.gmra.mxu0 %v899
        %v1800 = vpop.f32.mrf.mxu0
        %v1801 = vadd.f32 %v1712, %v1800
        %v1802 = vpop.f32.mrf.mxu0
        %v1803 = vadd.f32 %v1714, %v1802
        %1804 = vmatmul.bf16.gmra.mxu0 %v907
        %v1805 = vpop.f32.mrf.mxu0
        %v1806 = vadd.f32 %v1717, %v1805
        %v1807 = vpop.f32.mrf.mxu0
        %v1808 = vadd.f32 %v1719, %v1807
        %1809 = vmatmul.bf16.gmra.mxu0 %v915
        %v1810 = vpop.f32.mrf.mxu0
        %v1811 = vadd.f32 %v1722, %v1810
        %v1812 = vpop.f32.mrf.mxu0
        %v1813 = vadd.f32 %v1724, %v1812
        %1814 = vmatmul.bf16.gmra.mxu0 %v923
        %v1815 = vpop.f32.mrf.mxu0
        %v1816 = vadd.f32 %v1727, %v1815
        %v1817 = vpop.f32.mrf.mxu0
        %v1818 = vadd.f32 %v1729, %v1817
        %1819 = vmatmul.bf16.gmra.mxu0 %v931
        %v1820 = vpop.f32.mrf.mxu0
        %v1821 = vadd.f32 %v1732, %v1820
        %v1822 = vpop.f32.mrf.mxu0
        %v1823 = vadd.f32 %v1734, %v1822
        %1824 = vmatmul.bf16.gmra.mxu0 %v939
        %v1825 = vpop.f32.mrf.mxu0
        %v1826 = vadd.f32 %v1737, %v1825
        %v1827 = vpop.f32.mrf.mxu0
        %v1828 = vadd.f32 %v1739, %v1827
        %1829 = vmatmul.bf16.gmra.mxu0 %v947
        %v1830 = vpop.f32.mrf.mxu0
        %v1831 = vadd.f32 %v1742, %v1830
        %v1832 = vpop.f32.mrf.mxu0
        %v1833 = vadd.f32 %v1744, %v1832
        %1834 = vmatmul.bf16.gmra.mxu0 %v955
        %v1835 = vpop.f32.mrf.mxu0
        %v1836 = vadd.f32 %v1747, %v1835
        %v1837 = vpop.f32.mrf.mxu0
        %v1838 = vadd.f32 %v1749, %v1837
        %1839 = vmatmul.bf16.gmra.mxu0 %v963
        %v1840 = vpop.f32.mrf.mxu0
        %v1841 = vadd.f32 %v1752, %v1840
        %v1842 = vpop.f32.mrf.mxu0
        %v1843 = vadd.f32 %v1754, %v1842
        %1844 = vmatmul.bf16.gmra.mxu0 %v971
        %v1845 = vpop.f32.mrf.mxu0
        %v1846 = vadd.f32 %v1757, %v1845
        %v1847 = vpop.f32.mrf.mxu0
        %v1848 = vadd.f32 %v1759, %v1847
        %1849 = vmatmul.bf16.gmra.mxu0 %v979
        %v1850 = vpop.f32.mrf.mxu0
        %v1851 = vadd.f32 %v1762, %v1850
        %v1852 = vpop.f32.mrf.mxu0
        %v1853 = vadd.f32 %v1764, %v1852
        %1854 = vmatmul.bf16.gmra.mxu0 %v987
        %v1855 = vpop.f32.mrf.mxu0
        %v1856 = vadd.f32 %v1767, %v1855
        %v1857 = vpop.f32.mrf.mxu0
        %v1858 = vadd.f32 %v1769, %v1857
        %1859 = vdwg.mxu0
        %1860 = vmatpush.bf16.msra.mxu0 %v1415
        %1861 = vmatpush.bf16.msra.mxu0 %v1414
        %1862 = vmatpush.bf16.msra.mxu0 %v1413
        %1863 = vmatpush.bf16.msra.mxu0 %v1412
        %1864 = vmatpush.bf16.msra.mxu0 %v1411
        %1865 = vmatpush.bf16.msra.mxu0 %v1410
        %1866 = vmatpush.bf16.msra.mxu0 %v1409
        %1867 = vmatpush.bf16.msra.mxu0 %v1408
        %1868 = vmatmul.bf16.gmra.mxu0 %v868
        %v1869 = vpop.f32.mrf.mxu0
        %v1870 = vadd.f32 %v1781, %v1869
        %v1871 = vpop.f32.mrf.mxu0
        %v1872 = vadd.f32 %v1783, %v1871
        %1873 = vmatmul.bf16.gmra.mxu0 %v876
        %v1874 = vpop.f32.mrf.mxu0
        %v1875 = vadd.f32 %v1786, %v1874
        %v1876 = vpop.f32.mrf.mxu0
        %v1877 = vadd.f32 %v1788, %v1876
        %1878 = vmatmul.bf16.gmra.mxu0 %v884
        %v1879 = vpop.f32.mrf.mxu0
        %v1880 = vadd.f32 %v1791, %v1879
        %v1881 = vpop.f32.mrf.mxu0
        %v1882 = vadd.f32 %v1793, %v1881
        %1883 = vmatmul.bf16.gmra.mxu0 %v892
        %v1884 = vpop.f32.mrf.mxu0
        %v1885 = vadd.f32 %v1796, %v1884
        %v1886 = vpop.f32.mrf.mxu0
        %v1887 = vadd.f32 %v1798, %v1886
        %1888 = vmatmul.bf16.gmra.mxu0 %v900
        %v1889 = vpop.f32.mrf.mxu0
        %v1890 = vadd.f32 %v1801, %v1889
        %v1891 = vpop.f32.mrf.mxu0
        %v1892 = vadd.f32 %v1803, %v1891
        %1893 = vmatmul.bf16.gmra.mxu0 %v908
        %v1894 = vpop.f32.mrf.mxu0
        %v1895 = vadd.f32 %v1806, %v1894
        %v1896 = vpop.f32.mrf.mxu0
        %v1897 = vadd.f32 %v1808, %v1896
        %1898 = vmatmul.bf16.gmra.mxu0 %v916
        %v1899 = vpop.f32.mrf.mxu0
        %v1900 = vadd.f32 %v1811, %v1899
        %v1901 = vpop.f32.mrf.mxu0
        %v1902 = vadd.f32 %v1813, %v1901
        %1903 = vmatmul.bf16.gmra.mxu0 %v924
        %v1904 = vpop.f32.mrf.mxu0
        %v1905 = vadd.f32 %v1816, %v1904
        %v1906 = vpop.f32.mrf.mxu0
        %v1907 = vadd.f32 %v1818, %v1906
        %1908 = vmatmul.bf16.gmra.mxu0 %v932
        %v1909 = vpop.f32.mrf.mxu0
        %v1910 = vadd.f32 %v1821, %v1909
        %v1911 = vpop.f32.mrf.mxu0
        %v1912 = vadd.f32 %v1823, %v1911
        %1913 = vmatmul.bf16.gmra.mxu0 %v940
        %v1914 = vpop.f32.mrf.mxu0
        %v1915 = vadd.f32 %v1826, %v1914
        %v1916 = vpop.f32.mrf.mxu0
        %v1917 = vadd.f32 %v1828, %v1916
        %1918 = vmatmul.bf16.gmra.mxu0 %v948
        %v1919 = vpop.f32.mrf.mxu0
        %v1920 = vadd.f32 %v1831, %v1919
        %v1921 = vpop.f32.mrf.mxu0
        %v1922 = vadd.f32 %v1833, %v1921
        %1923 = vmatmul.bf16.gmra.mxu0 %v956
        %v1924 = vpop.f32.mrf.mxu0
        %v1925 = vadd.f32 %v1836, %v1924
        %v1926 = vpop.f32.mrf.mxu0
        %v1927 = vadd.f32 %v1838, %v1926
        %1928 = vmatmul.bf16.gmra.mxu0 %v964
        %v1929 = vpop.f32.mrf.mxu0
        %v1930 = vadd.f32 %v1841, %v1929
        %v1931 = vpop.f32.mrf.mxu0
        %v1932 = vadd.f32 %v1843, %v1931
        %1933 = vmatmul.bf16.gmra.mxu0 %v972
        %v1934 = vpop.f32.mrf.mxu0
        %v1935 = vadd.f32 %v1846, %v1934
        %v1936 = vpop.f32.mrf.mxu0
        %v1937 = vadd.f32 %v1848, %v1936
        %1938 = vmatmul.bf16.gmra.mxu0 %v980
        %v1939 = vpop.f32.mrf.mxu0
        %v1940 = vadd.f32 %v1851, %v1939
        %v1941 = vpop.f32.mrf.mxu0
        %v1942 = vadd.f32 %v1853, %v1941
        %1943 = vmatmul.bf16.gmra.mxu0 %v988
        %v1944 = vpop.f32.mrf.mxu0
        %v1945 = vadd.f32 %v1856, %v1944
        %v1946 = vpop.f32.mrf.mxu0
        %v1947 = vadd.f32 %v1858, %v1946
        %1948 = vdwg.mxu0
        %1949 = vmatpush.bf16.msra.mxu0 %v1423
        %1950 = vmatpush.bf16.msra.mxu0 %v1422
        %1951 = vmatpush.bf16.msra.mxu0 %v1421
        %1952 = vmatpush.bf16.msra.mxu0 %v1420
        %1953 = vmatpush.bf16.msra.mxu0 %v1419
        %1954 = vmatpush.bf16.msra.mxu0 %v1418
        %1955 = vmatpush.bf16.msra.mxu0 %v1417
        %1956 = vmatpush.bf16.msra.mxu0 %v1416
        %1957 = vmatmul.bf16.gmra.mxu0 %v869
        %v1958 = vpop.f32.mrf.mxu0
        %v1959 = vadd.f32 %v1870, %v1958
        %v1960 = vpop.f32.mrf.mxu0
        %v1961 = vadd.f32 %v1872, %v1960
        %1962 = vmatmul.bf16.gmra.mxu0 %v877
        %v1963 = vpop.f32.mrf.mxu0
        %v1964 = vadd.f32 %v1875, %v1963
        %v1965 = vpop.f32.mrf.mxu0
        %v1966 = vadd.f32 %v1877, %v1965
        %1967 = vmatmul.bf16.gmra.mxu0 %v885
        %v1968 = vpop.f32.mrf.mxu0
        %v1969 = vadd.f32 %v1880, %v1968
        %v1970 = vpop.f32.mrf.mxu0
        %v1971 = vadd.f32 %v1882, %v1970
        %1972 = vmatmul.bf16.gmra.mxu0 %v893
        %v1973 = vpop.f32.mrf.mxu0
        %v1974 = vadd.f32 %v1885, %v1973
        %v1975 = vpop.f32.mrf.mxu0
        %v1976 = vadd.f32 %v1887, %v1975
        %1977 = vmatmul.bf16.gmra.mxu0 %v901
        %v1978 = vpop.f32.mrf.mxu0
        %v1979 = vadd.f32 %v1890, %v1978
        %v1980 = vpop.f32.mrf.mxu0
        %v1981 = vadd.f32 %v1892, %v1980
        %1982 = vmatmul.bf16.gmra.mxu0 %v909
        %v1983 = vpop.f32.mrf.mxu0
        %v1984 = vadd.f32 %v1895, %v1983
        %v1985 = vpop.f32.mrf.mxu0
        %v1986 = vadd.f32 %v1897, %v1985
        %1987 = vmatmul.bf16.gmra.mxu0 %v917
        %v1988 = vpop.f32.mrf.mxu0
        %v1989 = vadd.f32 %v1900, %v1988
        %v1990 = vpop.f32.mrf.mxu0
        %v1991 = vadd.f32 %v1902, %v1990
        %1992 = vmatmul.bf16.gmra.mxu0 %v925
        %v1993 = vpop.f32.mrf.mxu0
        %v1994 = vadd.f32 %v1905, %v1993
        %v1995 = vpop.f32.mrf.mxu0
        %v1996 = vadd.f32 %v1907, %v1995
        %1997 = vmatmul.bf16.gmra.mxu0 %v933
        %v1998 = vpop.f32.mrf.mxu0
        %v1999 = vadd.f32 %v1910, %v1998
        %v2000 = vpop.f32.mrf.mxu0
        %v2001 = vadd.f32 %v1912, %v2000
        %2002 = vmatmul.bf16.gmra.mxu0 %v941
        %v2003 = vpop.f32.mrf.mxu0
        %v2004 = vadd.f32 %v1915, %v2003
        %v2005 = vpop.f32.mrf.mxu0
        %v2006 = vadd.f32 %v1917, %v2005
        %2007 = vmatmul.bf16.gmra.mxu0 %v949
        %v2008 = vpop.f32.mrf.mxu0
        %v2009 = vadd.f32 %v1920, %v2008
        %v2010 = vpop.f32.mrf.mxu0
        %v2011 = vadd.f32 %v1922, %v2010
        %2012 = vmatmul.bf16.gmra.mxu0 %v957
        %v2013 = vpop.f32.mrf.mxu0
        %v2014 = vadd.f32 %v1925, %v2013
        %v2015 = vpop.f32.mrf.mxu0
        %v2016 = vadd.f32 %v1927, %v2015
        %2017 = vmatmul.bf16.gmra.mxu0 %v965
        %v2018 = vpop.f32.mrf.mxu0
        %v2019 = vadd.f32 %v1930, %v2018
        %v2020 = vpop.f32.mrf.mxu0
        %v2021 = vadd.f32 %v1932, %v2020
        %2022 = vmatmul.bf16.gmra.mxu0 %v973
        %v2023 = vpop.f32.mrf.mxu0
        %v2024 = vadd.f32 %v1935, %v2023
        %v2025 = vpop.f32.mrf.mxu0
        %v2026 = vadd.f32 %v1937, %v2025
        %2027 = vmatmul.bf16.gmra.mxu0 %v981
        %v2028 = vpop.f32.mrf.mxu0
        %v2029 = vadd.f32 %v1940, %v2028
        %v2030 = vpop.f32.mrf.mxu0
        %v2031 = vadd.f32 %v1942, %v2030
        %2032 = vmatmul.bf16.gmra.mxu0 %v989
        %v2033 = vpop.f32.mrf.mxu0
        %v2034 = vadd.f32 %v1945, %v2033
        %v2035 = vpop.f32.mrf.mxu0
        %v2036 = vadd.f32 %v1947, %v2035
        %2037 = vdwg.mxu0
        %2038 = vmatpush.bf16.msra.mxu0 %v1431
        %2039 = vmatpush.bf16.msra.mxu0 %v1430
        %2040 = vmatpush.bf16.msra.mxu0 %v1429
        %2041 = vmatpush.bf16.msra.mxu0 %v1428
        %2042 = vmatpush.bf16.msra.mxu0 %v1427
        %2043 = vmatpush.bf16.msra.mxu0 %v1426
        %2044 = vmatpush.bf16.msra.mxu0 %v1425
        %2045 = vmatpush.bf16.msra.mxu0 %v1424
        %2046 = vmatmul.bf16.gmra.mxu0 %v870
        %v2047 = vpop.f32.mrf.mxu0
        %v2048 = vadd.f32 %v1959, %v2047
        %v2049 = vpop.f32.mrf.mxu0
        %v2050 = vadd.f32 %v1961, %v2049
        %2051 = vmatmul.bf16.gmra.mxu0 %v878
        %v2052 = vpop.f32.mrf.mxu0
        %v2053 = vadd.f32 %v1964, %v2052
        %v2054 = vpop.f32.mrf.mxu0
        %v2055 = vadd.f32 %v1966, %v2054
        %2056 = vmatmul.bf16.gmra.mxu0 %v886
        %v2057 = vpop.f32.mrf.mxu0
        %v2058 = vadd.f32 %v1969, %v2057
        %v2059 = vpop.f32.mrf.mxu0
        %v2060 = vadd.f32 %v1971, %v2059
        %2061 = vmatmul.bf16.gmra.mxu0 %v894
        %v2062 = vpop.f32.mrf.mxu0
        %v2063 = vadd.f32 %v1974, %v2062
        %v2064 = vpop.f32.mrf.mxu0
        %v2065 = vadd.f32 %v1976, %v2064
        %2066 = vmatmul.bf16.gmra.mxu0 %v902
        %v2067 = vpop.f32.mrf.mxu0
        %v2068 = vadd.f32 %v1979, %v2067
        %v2069 = vpop.f32.mrf.mxu0
        %v2070 = vadd.f32 %v1981, %v2069
        %2071 = vmatmul.bf16.gmra.mxu0 %v910
        %v2072 = vpop.f32.mrf.mxu0
        %v2073 = vadd.f32 %v1984, %v2072
        %v2074 = vpop.f32.mrf.mxu0
        %v2075 = vadd.f32 %v1986, %v2074
        %2076 = vmatmul.bf16.gmra.mxu0 %v918
        %v2077 = vpop.f32.mrf.mxu0
        %v2078 = vadd.f32 %v1989, %v2077
        %v2079 = vpop.f32.mrf.mxu0
        %v2080 = vadd.f32 %v1991, %v2079
        %2081 = vmatmul.bf16.gmra.mxu0 %v926
        %v2082 = vpop.f32.mrf.mxu0
        %v2083 = vadd.f32 %v1994, %v2082
        %v2084 = vpop.f32.mrf.mxu0
        %v2085 = vadd.f32 %v1996, %v2084
        %2086 = vmatmul.bf16.gmra.mxu0 %v934
        %v2087 = vpop.f32.mrf.mxu0
        %v2088 = vadd.f32 %v1999, %v2087
        %v2089 = vpop.f32.mrf.mxu0
        %v2090 = vadd.f32 %v2001, %v2089
        %2091 = vmatmul.bf16.gmra.mxu0 %v942
        %v2092 = vpop.f32.mrf.mxu0
        %v2093 = vadd.f32 %v2004, %v2092
        %v2094 = vpop.f32.mrf.mxu0
        %v2095 = vadd.f32 %v2006, %v2094
        %2096 = vmatmul.bf16.gmra.mxu0 %v950
        %v2097 = vpop.f32.mrf.mxu0
        %v2098 = vadd.f32 %v2009, %v2097
        %v2099 = vpop.f32.mrf.mxu0
        %v2100 = vadd.f32 %v2011, %v2099
        %2101 = vmatmul.bf16.gmra.mxu0 %v958
        %v2102 = vpop.f32.mrf.mxu0
        %v2103 = vadd.f32 %v2014, %v2102
        %v2104 = vpop.f32.mrf.mxu0
        %v2105 = vadd.f32 %v2016, %v2104
        %2106 = vmatmul.bf16.gmra.mxu0 %v966
        %v2107 = vpop.f32.mrf.mxu0
        %v2108 = vadd.f32 %v2019, %v2107
        %v2109 = vpop.f32.mrf.mxu0
        %v2110 = vadd.f32 %v2021, %v2109
        %2111 = vmatmul.bf16.gmra.mxu0 %v974
        %v2112 = vpop.f32.mrf.mxu0
        %v2113 = vadd.f32 %v2024, %v2112
        %v2114 = vpop.f32.mrf.mxu0
        %v2115 = vadd.f32 %v2026, %v2114
        %2116 = vmatmul.bf16.gmra.mxu0 %v982
        %v2117 = vpop.f32.mrf.mxu0
        %v2118 = vadd.f32 %v2029, %v2117
        %v2119 = vpop.f32.mrf.mxu0
        %v2120 = vadd.f32 %v2031, %v2119
        %2121 = vmatmul.bf16.gmra.mxu0 %v990
        %v2122 = vpop.f32.mrf.mxu0
        %v2123 = vadd.f32 %v2034, %v2122
        %v2124 = vpop.f32.mrf.mxu0
        %v2125 = vadd.f32 %v2036, %v2124
        %2126 = vdwg.mxu0
        %2127 = vmatpush.bf16.msra.mxu0 %v1439
        %2128 = vmatpush.bf16.msra.mxu0 %v1438
        %2129 = vmatpush.bf16.msra.mxu0 %v1437
        %2130 = vmatpush.bf16.msra.mxu0 %v1436
        %2131 = vmatpush.bf16.msra.mxu0 %v1435
        %2132 = vmatpush.bf16.msra.mxu0 %v1434
        %2133 = vmatpush.bf16.msra.mxu0 %v1433
        %2134 = vmatpush.bf16.msra.mxu0 %v1432
        %2135 = vmatmul.bf16.gmra.mxu0 %v871
        %v2136 = vpop.f32.mrf.mxu0
        %v2137 = vadd.f32 %v2048, %v2136
        %v2138 = vpop.f32.mrf.mxu0
        %v2139 = vadd.f32 %v2050, %v2138
        %2140 = vmatmul.bf16.gmra.mxu0 %v879
        %v2141 = vpop.f32.mrf.mxu0
        %v2142 = vadd.f32 %v2053, %v2141
        %v2143 = vpop.f32.mrf.mxu0
        %v2144 = vadd.f32 %v2055, %v2143
        %2145 = vmatmul.bf16.gmra.mxu0 %v887
        %v2146 = vpop.f32.mrf.mxu0
        %v2147 = vadd.f32 %v2058, %v2146
        %v2148 = vpop.f32.mrf.mxu0
        %v2149 = vadd.f32 %v2060, %v2148
        %2150 = vmatmul.bf16.gmra.mxu0 %v895
        %v2151 = vpop.f32.mrf.mxu0
        %v2152 = vadd.f32 %v2063, %v2151
        %v2153 = vpop.f32.mrf.mxu0
        %v2154 = vadd.f32 %v2065, %v2153
        %2155 = vmatmul.bf16.gmra.mxu0 %v903
        %v2156 = vpop.f32.mrf.mxu0
        %v2157 = vadd.f32 %v2068, %v2156
        %v2158 = vpop.f32.mrf.mxu0
        %v2159 = vadd.f32 %v2070, %v2158
        %2160 = vmatmul.bf16.gmra.mxu0 %v911
        %v2161 = vpop.f32.mrf.mxu0
        %v2162 = vadd.f32 %v2073, %v2161
        %v2163 = vpop.f32.mrf.mxu0
        %v2164 = vadd.f32 %v2075, %v2163
        %2165 = vmatmul.bf16.gmra.mxu0 %v919
        %v2166 = vpop.f32.mrf.mxu0
        %v2167 = vadd.f32 %v2078, %v2166
        %v2168 = vpop.f32.mrf.mxu0
        %v2169 = vadd.f32 %v2080, %v2168
        %2170 = vmatmul.bf16.gmra.mxu0 %v927
        %v2171 = vpop.f32.mrf.mxu0
        %v2172 = vadd.f32 %v2083, %v2171
        %v2173 = vpop.f32.mrf.mxu0
        %v2174 = vadd.f32 %v2085, %v2173
        %2175 = vmatmul.bf16.gmra.mxu0 %v935
        %v2176 = vpop.f32.mrf.mxu0
        %v2177 = vadd.f32 %v2088, %v2176
        %v2178 = vpop.f32.mrf.mxu0
        %v2179 = vadd.f32 %v2090, %v2178
        %2180 = vmatmul.bf16.gmra.mxu0 %v943
        %v2181 = vpop.f32.mrf.mxu0
        %v2182 = vadd.f32 %v2093, %v2181
        %v2183 = vpop.f32.mrf.mxu0
        %v2184 = vadd.f32 %v2095, %v2183
        %2185 = vmatmul.bf16.gmra.mxu0 %v951
        %v2186 = vpop.f32.mrf.mxu0
        %v2187 = vadd.f32 %v2098, %v2186
        %v2188 = vpop.f32.mrf.mxu0
        %v2189 = vadd.f32 %v2100, %v2188
        %2190 = vmatmul.bf16.gmra.mxu0 %v959
        %v2191 = vpop.f32.mrf.mxu0
        %v2192 = vadd.f32 %v2103, %v2191
        %v2193 = vpop.f32.mrf.mxu0
        %v2194 = vadd.f32 %v2105, %v2193
        %2195 = vmatmul.bf16.gmra.mxu0 %v967
        %v2196 = vpop.f32.mrf.mxu0
        %v2197 = vadd.f32 %v2108, %v2196
        %v2198 = vpop.f32.mrf.mxu0
        %v2199 = vadd.f32 %v2110, %v2198
        %2200 = vmatmul.bf16.gmra.mxu0 %v975
        %v2201 = vpop.f32.mrf.mxu0
        %v2202 = vadd.f32 %v2113, %v2201
        %v2203 = vpop.f32.mrf.mxu0
        %v2204 = vadd.f32 %v2115, %v2203
        %2205 = vmatmul.bf16.gmra.mxu0 %v983
        %v2206 = vpop.f32.mrf.mxu0
        %v2207 = vadd.f32 %v2118, %v2206
        %v2208 = vpop.f32.mrf.mxu0
        %v2209 = vadd.f32 %v2120, %v2208
        %2210 = vmatmul.bf16.gmra.mxu0 %v991
        %v2211 = vpop.f32.mrf.mxu0
        %v2212 = vadd.f32 %v2123, %v2211
        %v2213 = vpop.f32.mrf.mxu0
        %v2214 = vadd.f32 %v2125, %v2213
        %2215 = vdwg.mxu0
        %v2216 = vld [vmem:[%s4] sm:$0x1]
        %v2218 = vperm.slane %v2216, 0
        %v2220 = vadd.f32 %v2137, %v2218
        %v2221 = vadd.f32 %v2139, %v2218
        %v2222 = vadd.f32 %v2142, %v2218
        %v2223 = vadd.f32 %v2144, %v2218
        %v2224 = vadd.f32 %v2147, %v2218
        %v2225 = vadd.f32 %v2149, %v2218
        %v2226 = vadd.f32 %v2152, %v2218
        %v2227 = vadd.f32 %v2154, %v2218
        %v2228 = vadd.f32 %v2157, %v2218
        %v2229 = vadd.f32 %v2159, %v2218
        %v2230 = vadd.f32 %v2162, %v2218
        %v2231 = vadd.f32 %v2164, %v2218
        %v2232 = vadd.f32 %v2167, %v2218
        %v2233 = vadd.f32 %v2169, %v2218
        %v2234 = vadd.f32 %v2172, %v2218
        %v2235 = vadd.f32 %v2174, %v2218
        %v2236 = vadd.f32 %v2177, %v2218
        %v2237 = vadd.f32 %v2179, %v2218
        %v2238 = vadd.f32 %v2182, %v2218
        %v2239 = vadd.f32 %v2184, %v2218
        %v2240 = vadd.f32 %v2187, %v2218
        %v2241 = vadd.f32 %v2189, %v2218
        %v2242 = vadd.f32 %v2192, %v2218
        %v2243 = vadd.f32 %v2194, %v2218
        %v2244 = vadd.f32 %v2197, %v2218
        %v2245 = vadd.f32 %v2199, %v2218
        %v2246 = vadd.f32 %v2202, %v2218
        %v2247 = vadd.f32 %v2204, %v2218
        %v2248 = vadd.f32 %v2207, %v2218
        %v2249 = vadd.f32 %v2209, %v2218
        %v2250 = vadd.f32 %v2212, %v2218
        %v2251 = vadd.f32 %v2214, %v2218
        %v2252 = vmax.f32 %v2220, 0.0
        %v2253 = vmax.f32 %v2221, 0.0
        %v2254 = vmax.f32 %v2222, 0.0
        %v2255 = vmax.f32 %v2223, 0.0
        %v2256 = vmax.f32 %v2224, 0.0
        %v2257 = vmax.f32 %v2225, 0.0
        %v2258 = vmax.f32 %v2226, 0.0
        %v2259 = vmax.f32 %v2227, 0.0
        %v2260 = vmax.f32 %v2228, 0.0
        %v2261 = vmax.f32 %v2229, 0.0
        %v2262 = vmax.f32 %v2230, 0.0
        %v2263 = vmax.f32 %v2231, 0.0
        %v2264 = vmax.f32 %v2232, 0.0
        %v2265 = vmax.f32 %v2233, 0.0
        %v2266 = vmax.f32 %v2234, 0.0
        %v2267 = vmax.f32 %v2235, 0.0
        %v2268 = vmax.f32 %v2236, 0.0
        %v2269 = vmax.f32 %v2237, 0.0
        %v2270 = vmax.f32 %v2238, 0.0
        %v2271 = vmax.f32 %v2239, 0.0
        %v2272 = vmax.f32 %v2240, 0.0
        %v2273 = vmax.f32 %v2241, 0.0
        %v2274 = vmax.f32 %v2242, 0.0
        %v2275 = vmax.f32 %v2243, 0.0
        %v2276 = vmax.f32 %v2244, 0.0
        %v2277 = vmax.f32 %v2245, 0.0
        %v2278 = vmax.f32 %v2246, 0.0
        %v2279 = vmax.f32 %v2247, 0.0
        %v2280 = vmax.f32 %v2248, 0.0
        %v2281 = vmax.f32 %v2249, 0.0
        %v2282 = vmax.f32 %v2250, 0.0
        %v2283 = vmax.f32 %v2251, 0.0
        %s2284 = scalar_lea.vmem %s4, 1
        %v2285 = vld [vmem:[%s2284] sm:$0x1]
        %v2287 = vperm.slane %v2285, 0
        %2288 = vrot.lane.b32.xlu0 %v2287, 64
        %v2289 = vpop.permute.xlu0 %2288
        %v2291 = vadd.f32 %v2137, %v2289
        %v2292 = vadd.f32 %v2139, %v2289
        %v2293 = vadd.f32 %v2142, %v2289
        %v2294 = vadd.f32 %v2144, %v2289
        %v2295 = vadd.f32 %v2147, %v2289
        %v2296 = vadd.f32 %v2149, %v2289
        %v2297 = vadd.f32 %v2152, %v2289
        %v2298 = vadd.f32 %v2154, %v2289
        %v2299 = vadd.f32 %v2157, %v2289
        %v2300 = vadd.f32 %v2159, %v2289
        %v2301 = vadd.f32 %v2162, %v2289
        %v2302 = vadd.f32 %v2164, %v2289
        %v2303 = vadd.f32 %v2167, %v2289
        %v2304 = vadd.f32 %v2169, %v2289
        %v2305 = vadd.f32 %v2172, %v2289
        %v2306 = vadd.f32 %v2174, %v2289
        %v2307 = vadd.f32 %v2177, %v2289
        %v2308 = vadd.f32 %v2179, %v2289
        %v2309 = vadd.f32 %v2182, %v2289
        %v2310 = vadd.f32 %v2184, %v2289
        %v2311 = vadd.f32 %v2187, %v2289
        %v2312 = vadd.f32 %v2189, %v2289
        %v2313 = vadd.f32 %v2192, %v2289
        %v2314 = vadd.f32 %v2194, %v2289
        %v2315 = vadd.f32 %v2197, %v2289
        %v2316 = vadd.f32 %v2199, %v2289
        %v2317 = vadd.f32 %v2202, %v2289
        %v2318 = vadd.f32 %v2204, %v2289
        %v2319 = vadd.f32 %v2207, %v2289
        %v2320 = vadd.f32 %v2209, %v2289
        %v2321 = vadd.f32 %v2212, %v2289
        %v2322 = vadd.f32 %v2214, %v2289
        %vm2323 = vcmask 519168
        %2324 = vst.msk [vmem:[#allocation2] sm:$0xf] %vm2323, 0
        %2325 = vst.msk [vmem:[#allocation2 + $0x4] sm:$0xf] %vm2323, 0
        %vm2326 = vcmask 516096
        %2327 = vst.msk [vmem:[#allocation2 + $0x8] sm:$0x1] %vm2326, 0
        %2328 = vst.msk [vmem:[#allocation2 + $0xc] sm:$0xf] %vm2323, 0
        %2329 = vst.msk [vmem:[#allocation2 + $0x10] sm:$0xf] %vm2323, 0
        %2330 = vst.msk [vmem:[#allocation2 + $0x14] sm:$0x1] %vm2326, 0
        %2331 = vst.msk [vmem:[#allocation2 + $0x18] sm:$0xf] %vm2323, 0
        %2332 = vst.msk [vmem:[#allocation2 + $0x1c] sm:$0xf] %vm2323, 0
        %2333 = vst.msk [vmem:[#allocation2 + $0x20] sm:$0x1] %vm2326, 0
        %2334 = vst.msk [vmem:[#allocation2 + $0x24] sm:$0xf] %vm2323, 0
        %2335 = vst.msk [vmem:[#allocation2 + $0x28] sm:$0xf] %vm2323, 0
        %2336 = vst.msk [vmem:[#allocation2 + $0x2c] sm:$0x1] %vm2326, 0
        %2337 = vst.msk [vmem:[#allocation2 + $0x30] sm:$0xf] %vm2323, 0
        %2338 = vst.msk [vmem:[#allocation2 + $0x34] sm:$0xf] %vm2323, 0
        %2339 = vst.msk [vmem:[#allocation2 + $0x38] sm:$0x1] %vm2326, 0
        %2340 = vst.msk [vmem:[#allocation2 + $0x3c] sm:$0xf] %vm2323, 0
        %2341 = vst.msk [vmem:[#allocation2 + $0x40] sm:$0xf] %vm2323, 0
        %2342 = vst.msk [vmem:[#allocation2 + $0x44] sm:$0x1] %vm2326, 0
        %2343 = vst.msk [vmem:[#allocation2 + $0x48] sm:$0xf] %vm2323, 0
        %2344 = vst.msk [vmem:[#allocation2 + $0x4c] sm:$0xf] %vm2323, 0
        %2345 = vst.msk [vmem:[#allocation2 + $0x50] sm:$0x1] %vm2326, 0
        %2346 = vst.msk [vmem:[#allocation2 + $0x54] sm:$0xf] %vm2323, 0
        %2347 = vst.msk [vmem:[#allocation2 + $0x58] sm:$0xf] %vm2323, 0
        %2348 = vst.msk [vmem:[#allocation2 + $0x5c] sm:$0x1] %vm2326, 0
        %2349 = vst.msk [vmem:[#allocation2 + $0x60] sm:$0xf] %vm2323, 0
        %2350 = vst.msk [vmem:[#allocation2 + $0x64] sm:$0xf] %vm2323, 0
        %2351 = vst.msk [vmem:[#allocation2 + $0x68] sm:$0x1] %vm2326, 0
        %2352 = vst.msk [vmem:[#allocation2 + $0x6c] sm:$0xf] %vm2323, 0
        %2353 = vst.msk [vmem:[#allocation2 + $0x70] sm:$0xf] %vm2323, 0
        %2354 = vst.msk [vmem:[#allocation2 + $0x74] sm:$0x1] %vm2326, 0
        %2355 = vst.msk [vmem:[#allocation2 + $0x78] sm:$0xf] %vm2323, 0
        %2356 = vst.msk [vmem:[#allocation2 + $0x7c] sm:$0xf] %vm2323, 0
        %2357 = vst.msk [vmem:[#allocation2 + $0x80] sm:$0x1] %vm2326, 0
        %2358 = vst.msk [vmem:[#allocation2 + $0x84] sm:$0xf] %vm2323, 0
        %2359 = vst.msk [vmem:[#allocation2 + $0x88] sm:$0xf] %vm2323, 0
        %2360 = vst.msk [vmem:[#allocation2 + $0x8c] sm:$0x1] %vm2326, 0
        %2361 = vst.msk [vmem:[#allocation2 + $0x90] sm:$0xf] %vm2323, 0
        %2362 = vst.msk [vmem:[#allocation2 + $0x94] sm:$0xf] %vm2323, 0
        %2363 = vst.msk [vmem:[#allocation2 + $0x98] sm:$0x1] %vm2326, 0
        %2364 = vst.msk [vmem:[#allocation2 + $0x9c] sm:$0xf] %vm2323, 0
        %2365 = vst.msk [vmem:[#allocation2 + $0xa0] sm:$0xf] %vm2323, 0
        %2366 = vst.msk [vmem:[#allocation2 + $0xa4] sm:$0x1] %vm2326, 0
        %2367 = vst.msk [vmem:[#allocation2 + $0xa8] sm:$0xf] %vm2323, 0
        %2368 = vst.msk [vmem:[#allocation2 + $0xac] sm:$0xf] %vm2323, 0
        %2369 = vst.msk [vmem:[#allocation2 + $0xb0] sm:$0x1] %vm2326, 0
        %2370 = vst.msk [vmem:[#allocation2 + $0xb4] sm:$0xf] %vm2323, 0
        %2371 = vst.msk [vmem:[#allocation2 + $0xb8] sm:$0xf] %vm2323, 0
        %2372 = vst.msk [vmem:[#allocation2 + $0xbc] sm:$0x1] %vm2326, 0
        %2373 = vst.msk [vmem:[#allocation2 + $0xc0] sm:$0xf] %vm2323, 0
        %2374 = vst.msk [vmem:[#allocation2 + $0xc4] sm:$0xf] %vm2323, 0
        %2375 = vst.msk [vmem:[#allocation2 + $0xc8] sm:$0x1] %vm2326, 0
        %2376 = vst.msk [vmem:[#allocation2 + $0xcc] sm:$0xf] %vm2323, 0
        %2377 = vst.msk [vmem:[#allocation2 + $0xd0] sm:$0xf] %vm2323, 0
        %2378 = vst.msk [vmem:[#allocation2 + $0xd4] sm:$0x1] %vm2326, 0
        %v2379 = vpack.c.bf16 %v2252, %v2252
        %v2380 = vpack.c.bf16 %v2253, %v2253
        %v2381 = vpack.c.bf16 %v2254, %v2254
        %v2382 = vpack.c.bf16 %v2255, %v2255
        %v2383 = vpack.c.bf16 %v2256, %v2256
        %v2384 = vpack.c.bf16 %v2257, %v2257
        %v2385 = vpack.c.bf16 %v2258, %v2258
        %v2386 = vpack.c.bf16 %v2259, %v2259
        %v2387 = vpack.c.bf16 %v2260, %v2260
        %v2388 = vpack.c.bf16 %v2261, %v2261
        %v2389 = vpack.c.bf16 %v2262, %v2262
        %v2390 = vpack.c.bf16 %v2263, %v2263
        %v2391 = vpack.c.bf16 %v2264, %v2264
        %v2392 = vpack.c.bf16 %v2265, %v2265
        %v2393 = vpack.c.bf16 %v2266, %v2266
        %v2394 = vpack.c.bf16 %v2267, %v2267
        %v2395 = vpack.c.bf16 %v2268, %v2268
        %v2396 = vpack.c.bf16 %v2269, %v2269
        %v2397 = vpack.c.bf16 %v2270, %v2270
        %v2398 = vpack.c.bf16 %v2271, %v2271
        %v2399 = vpack.c.bf16 %v2272, %v2272
        %v2400 = vpack.c.bf16 %v2273, %v2273
        %v2401 = vpack.c.bf16 %v2274, %v2274
        %v2402 = vpack.c.bf16 %v2275, %v2275
        %v2403 = vpack.c.bf16 %v2276, %v2276
        %v2404 = vpack.c.bf16 %v2277, %v2277
        %v2405 = vpack.c.bf16 %v2278, %v2278
        %v2406 = vpack.c.bf16 %v2279, %v2279
        %v2407 = vpack.c.bf16 %v2280, %v2280
        %v2408 = vpack.c.bf16 %v2281, %v2281
        %v2409 = vpack.c.bf16 %v2282, %v2282
        %v2410 = vpack.c.bf16 %v2283, %v2283
        %vm2411 = vsmask.f32 256
        %vm2412 = vsmask.f32 4368
        %vm2413 = vmor %vm2411, %vm2412
        %v2415 = vshrl.u32 %v2379, 16
        %v2417 = vrot.slane %v2415, 7
        %v2418 = vshll.u32 %v2379, 16
        %v2420 = vor.u32 %v2417, %v2418
        %v2421 = vrot.slane %v2417, 4
        %v2423 = vshrl.u32 %v2380, 16
        %v2425 = vrot.slane %v2423, 7
        %v2426 = vshll.u32 %v2380, 16
        %v2428 = vor.u32 %v2425, %v2426
        %v2429 = vsel %vm2413, %v2421, %v2428
        %v2430 = vrot.slane %v2425, 4
        %v2432 = vshrl.u32 %v2381, 16
        %v2434 = vrot.slane %v2432, 7
        %v2435 = vshll.u32 %v2381, 16
        %v2437 = vor.u32 %v2434, %v2435
        %v2438 = vrot.slane %v2434, 4
        %v2440 = vshrl.u32 %v2382, 16
        %v2442 = vrot.slane %v2440, 7
        %v2443 = vshll.u32 %v2382, 16
        %v2445 = vor.u32 %v2442, %v2443
        %v2446 = vsel %vm2413, %v2438, %v2445
        %v2447 = vrot.slane %v2442, 4
        %v2449 = vshrl.u32 %v2383, 16
        %v2451 = vrot.slane %v2449, 7
        %v2452 = vshll.u32 %v2383, 16
        %v2454 = vor.u32 %v2451, %v2452
        %v2455 = vrot.slane %v2451, 4
        %v2457 = vshrl.u32 %v2384, 16
        %v2459 = vrot.slane %v2457, 7
        %v2460 = vshll.u32 %v2384, 16
        %v2462 = vor.u32 %v2459, %v2460
        %v2463 = vsel %vm2413, %v2455, %v2462
        %v2464 = vrot.slane %v2459, 4
        %v2466 = vshrl.u32 %v2385, 16
        %v2468 = vrot.slane %v2466, 7
        %v2469 = vshll.u32 %v2385, 16
        %v2471 = vor.u32 %v2468, %v2469
        %v2472 = vrot.slane %v2468, 4
        %v2474 = vshrl.u32 %v2386, 16
        %v2476 = vrot.slane %v2474, 7
        %v2477 = vshll.u32 %v2386, 16
        %v2479 = vor.u32 %v2476, %v2477
        %v2480 = vsel %vm2413, %v2472, %v2479
        %v2481 = vrot.slane %v2476, 4
        %v2483 = vshrl.u32 %v2387, 16
        %v2485 = vrot.slane %v2483, 7
        %v2486 = vshll.u32 %v2387, 16
        %v2488 = vor.u32 %v2485, %v2486
        %v2489 = vrot.slane %v2485, 4
        %v2491 = vshrl.u32 %v2388, 16
        %v2493 = vrot.slane %v2491, 7
        %v2494 = vshll.u32 %v2388, 16
        %v2496 = vor.u32 %v2493, %v2494
        %v2497 = vsel %vm2413, %v2489, %v2496
        %v2498 = vrot.slane %v2493, 4
        %v2500 = vshrl.u32 %v2389, 16
        %v2502 = vrot.slane %v2500, 7
        %v2503 = vshll.u32 %v2389, 16
        %v2505 = vor.u32 %v2502, %v2503
        %v2506 = vrot.slane %v2502, 4
        %v2508 = vshrl.u32 %v2390, 16
        %v2510 = vrot.slane %v2508, 7
        %v2511 = vshll.u32 %v2390, 16
        %v2513 = vor.u32 %v2510, %v2511
        %v2514 = vsel %vm2413, %v2506, %v2513
        %v2515 = vrot.slane %v2510, 4
        %v2517 = vshrl.u32 %v2391, 16
        %v2519 = vrot.slane %v2517, 7
        %v2520 = vshll.u32 %v2391, 16
        %v2522 = vor.u32 %v2519, %v2520
        %v2523 = vrot.slane %v2519, 4
        %v2525 = vshrl.u32 %v2392, 16
        %v2527 = vrot.slane %v2525, 7
        %v2528 = vshll.u32 %v2392, 16
        %v2530 = vor.u32 %v2527, %v2528
        %v2531 = vsel %vm2413, %v2523, %v2530
        %v2532 = vrot.slane %v2527, 4
        %v2534 = vshrl.u32 %v2393, 16
        %v2536 = vrot.slane %v2534, 7
        %v2537 = vshll.u32 %v2393, 16
        %v2539 = vor.u32 %v2536, %v2537
        %v2540 = vrot.slane %v2536, 4
        %v2542 = vshrl.u32 %v2394, 16
        %v2544 = vrot.slane %v2542, 7
        %v2545 = vshll.u32 %v2394, 16
        %v2547 = vor.u32 %v2544, %v2545
        %v2548 = vsel %vm2413, %v2540, %v2547
        %v2549 = vrot.slane %v2544, 4
        %v2551 = vshrl.u32 %v2395, 16
        %v2553 = vrot.slane %v2551, 7
        %v2554 = vshll.u32 %v2395, 16
        %v2556 = vor.u32 %v2553, %v2554
        %v2557 = vrot.slane %v2553, 4
        %v2559 = vshrl.u32 %v2396, 16
        %v2561 = vrot.slane %v2559, 7
        %v2562 = vshll.u32 %v2396, 16
        %v2564 = vor.u32 %v2561, %v2562
        %v2565 = vsel %vm2413, %v2557, %v2564
        %v2566 = vrot.slane %v2561, 4
        %v2568 = vshrl.u32 %v2397, 16
        %v2570 = vrot.slane %v2568, 7
        %v2571 = vshll.u32 %v2397, 16
        %v2573 = vor.u32 %v2570, %v2571
        %v2574 = vrot.slane %v2570, 4
        %v2576 = vshrl.u32 %v2398, 16
        %v2578 = vrot.slane %v2576, 7
        %v2579 = vshll.u32 %v2398, 16
        %v2581 = vor.u32 %v2578, %v2579
        %v2582 = vsel %vm2413, %v2574, %v2581
        %v2583 = vrot.slane %v2578, 4
        %v2585 = vshrl.u32 %v2399, 16
        %v2587 = vrot.slane %v2585, 7
        %v2588 = vshll.u32 %v2399, 16
        %v2590 = vor.u32 %v2587, %v2588
        %v2591 = vrot.slane %v2587, 4
        %v2593 = vshrl.u32 %v2400, 16
        %v2595 = vrot.slane %v2593, 7
        %v2596 = vshll.u32 %v2400, 16
        %v2598 = vor.u32 %v2595, %v2596
        %v2599 = vsel %vm2413, %v2591, %v2598
        %v2600 = vrot.slane %v2595, 4
        %v2602 = vshrl.u32 %v2401, 16
        %v2604 = vrot.slane %v2602, 7
        %v2605 = vshll.u32 %v2401, 16
        %v2607 = vor.u32 %v2604, %v2605
        %v2608 = vrot.slane %v2604, 4
        %v2610 = vshrl.u32 %v2402, 16
        %v2612 = vrot.slane %v2610, 7
        %v2613 = vshll.u32 %v2402, 16
        %v2615 = vor.u32 %v2612, %v2613
        %v2616 = vsel %vm2413, %v2608, %v2615
        %v2617 = vrot.slane %v2612, 4
        %v2619 = vshrl.u32 %v2403, 16
        %v2621 = vrot.slane %v2619, 7
        %v2622 = vshll.u32 %v2403, 16
        %v2624 = vor.u32 %v2621, %v2622
        %v2625 = vrot.slane %v2621, 4
        %v2627 = vshrl.u32 %v2404, 16
        %v2629 = vrot.slane %v2627, 7
        %v2630 = vshll.u32 %v2404, 16
        %v2632 = vor.u32 %v2629, %v2630
        %v2633 = vsel %vm2413, %v2625, %v2632
        %v2634 = vrot.slane %v2629, 4
        %v2636 = vshrl.u32 %v2405, 16
        %v2638 = vrot.slane %v2636, 7
        %v2639 = vshll.u32 %v2405, 16
        %v2641 = vor.u32 %v2638, %v2639
        %v2642 = vrot.slane %v2638, 4
        %v2644 = vshrl.u32 %v2406, 16
        %v2646 = vrot.slane %v2644, 7
        %v2647 = vshll.u32 %v2406, 16
        %v2649 = vor.u32 %v2646, %v2647
        %v2650 = vsel %vm2413, %v2642, %v2649
        %v2651 = vrot.slane %v2646, 4
        %v2653 = vshrl.u32 %v2407, 16
        %v2655 = vrot.slane %v2653, 7
        %v2656 = vshll.u32 %v2407, 16
        %v2658 = vor.u32 %v2655, %v2656
        %v2659 = vrot.slane %v2655, 4
        %v2661 = vshrl.u32 %v2408, 16
        %v2663 = vrot.slane %v2661, 7
        %v2664 = vshll.u32 %v2408, 16
        %v2666 = vor.u32 %v2663, %v2664
        %v2667 = vsel %vm2413, %v2659, %v2666
        %v2668 = vrot.slane %v2663, 4
        %v2670 = vshrl.u32 %v2409, 16
        %v2672 = vrot.slane %v2670, 7
        %v2673 = vshll.u32 %v2409, 16
        %v2675 = vor.u32 %v2672, %v2673
        %v2676 = vrot.slane %v2672, 4
        %v2678 = vshrl.u32 %v2410, 16
        %v2680 = vrot.slane %v2678, 7
        %v2681 = vshll.u32 %v2410, 16
        %v2683 = vor.u32 %v2680, %v2681
        %v2684 = vsel %vm2413, %v2676, %v2683
        %v2685 = vrot.slane %v2680, 4
        %s2734 = scalar_lea.vmem [#allocation2], 12
        %vm2735 = vcmask 519168
        %vm2736 = vsmask.f32 7938
        %vm2737 = vmand %vm2735, %vm2736
        %v2738 = vld [vmem:[%s2734] sm:$0xf]
        %v2739 = vsel %vm2737, %v2420, %v2738
        %2740 = vst [vmem:[%s2734] sm:$0xf] %v2739
        %2741 = vst.msk [vmem:[%s2734 + $0x4] sm:$0xf] %vm2323, %v2429
        %vm2742 = vcmask 516096
        %vm2743 = vmand %vm2742, %vm2411
        %v2744 = vld [vmem:[%s2734 + $0x8] sm:$0x1]
        %v2745 = vsel %vm2743, %v2430, %v2744
        %2746 = vst [vmem:[%s2734 + $0x8] sm:$0x1] %v2745
        %v2747 = vld [vmem:[%s2734 + $0xc] sm:$0xf]
        %v2748 = vsel %vm2737, %v2437, %v2747
        %2749 = vst [vmem:[%s2734 + $0xc] sm:$0xf] %v2748
        %2750 = vst.msk [vmem:[%s2734 + $0x10] sm:$0xf] %vm2323, %v2446
        %v2751 = vld [vmem:[%s2734 + $0x14] sm:$0x1]
        %v2752 = vsel %vm2743, %v2447, %v2751
        %2753 = vst [vmem:[%s2734 + $0x14] sm:$0x1] %v2752
        %v2754 = vld [vmem:[%s2734 + $0x18] sm:$0xf]
        %v2755 = vsel %vm2737, %v2454, %v2754
        %2756 = vst [vmem:[%s2734 + $0x18] sm:$0xf] %v2755
        %2757 = vst.msk [vmem:[%s2734 + $0x1c] sm:$0xf] %vm2323, %v2463
        %v2758 = vld [vmem:[%s2734 + $0x20] sm:$0x1]
        %v2759 = vsel %vm2743, %v2464, %v2758
        %2760 = vst [vmem:[%s2734 + $0x20] sm:$0x1] %v2759
        %v2761 = vld [vmem:[%s2734 + $0x24] sm:$0xf]
        %v2762 = vsel %vm2737, %v2471, %v2761
        %2763 = vst [vmem:[%s2734 + $0x24] sm:$0xf] %v2762
        %2764 = vst.msk [vmem:[%s2734 + $0x28] sm:$0xf] %vm2323, %v2480
        %v2765 = vld [vmem:[%s2734 + $0x2c] sm:$0x1]
        %v2766 = vsel %vm2743, %v2481, %v2765
        %2767 = vst [vmem:[%s2734 + $0x2c] sm:$0x1] %v2766
        %v2768 = vld [vmem:[%s2734 + $0x30] sm:$0xf]
        %v2769 = vsel %vm2737, %v2488, %v2768
        %2770 = vst [vmem:[%s2734 + $0x30] sm:$0xf] %v2769
        %2771 = vst.msk [vmem:[%s2734 + $0x34] sm:$0xf] %vm2323, %v2497
        %v2772 = vld [vmem:[%s2734 + $0x38] sm:$0x1]
        %v2773 = vsel %vm2743, %v2498, %v2772
        %2774 = vst [vmem:[%s2734 + $0x38] sm:$0x1] %v2773
        %v2775 = vld [vmem:[%s2734 + $0x3c] sm:$0xf]
        %v2776 = vsel %vm2737, %v2505, %v2775
        %2777 = vst [vmem:[%s2734 + $0x3c] sm:$0xf] %v2776
        %2778 = vst.msk [vmem:[%s2734 + $0x40] sm:$0xf] %vm2323, %v2514
        %v2779 = vld [vmem:[%s2734 + $0x44] sm:$0x1]
        %v2780 = vsel %vm2743, %v2515, %v2779
        %2781 = vst [vmem:[%s2734 + $0x44] sm:$0x1] %v2780
        %v2782 = vld [vmem:[%s2734 + $0x48] sm:$0xf]
        %v2783 = vsel %vm2737, %v2522, %v2782
        %2784 = vst [vmem:[%s2734 + $0x48] sm:$0xf] %v2783
        %2785 = vst.msk [vmem:[%s2734 + $0x4c] sm:$0xf] %vm2323, %v2531
        %v2786 = vld [vmem:[%s2734 + $0x50] sm:$0x1]
        %v2787 = vsel %vm2743, %v2532, %v2786
        %2788 = vst [vmem:[%s2734 + $0x50] sm:$0x1] %v2787
        %v2789 = vld [vmem:[%s2734 + $0x54] sm:$0xf]
        %v2790 = vsel %vm2737, %v2539, %v2789
        %2791 = vst [vmem:[%s2734 + $0x54] sm:$0xf] %v2790
        %2792 = vst.msk [vmem:[%s2734 + $0x58] sm:$0xf] %vm2323, %v2548
        %v2793 = vld [vmem:[%s2734 + $0x5c] sm:$0x1]
        %v2794 = vsel %vm2743, %v2549, %v2793
        %2795 = vst [vmem:[%s2734 + $0x5c] sm:$0x1] %v2794
        %v2796 = vld [vmem:[%s2734 + $0x60] sm:$0xf]
        %v2797 = vsel %vm2737, %v2556, %v2796
        %2798 = vst [vmem:[%s2734 + $0x60] sm:$0xf] %v2797
        %2799 = vst.msk [vmem:[%s2734 + $0x64] sm:$0xf] %vm2323, %v2565
        %v2800 = vld [vmem:[%s2734 + $0x68] sm:$0x1]
        %v2801 = vsel %vm2743, %v2566, %v2800
        %2802 = vst [vmem:[%s2734 + $0x68] sm:$0x1] %v2801
        %v2803 = vld [vmem:[%s2734 + $0x6c] sm:$0xf]
        %v2804 = vsel %vm2737, %v2573, %v2803
        %2805 = vst [vmem:[%s2734 + $0x6c] sm:$0xf] %v2804
        %2806 = vst.msk [vmem:[%s2734 + $0x70] sm:$0xf] %vm2323, %v2582
        %v2807 = vld [vmem:[%s2734 + $0x74] sm:$0x1]
        %v2808 = vsel %vm2743, %v2583, %v2807
        %2809 = vst [vmem:[%s2734 + $0x74] sm:$0x1] %v2808
        %v2810 = vld [vmem:[%s2734 + $0x78] sm:$0xf]
        %v2811 = vsel %vm2737, %v2590, %v2810
        %2812 = vst [vmem:[%s2734 + $0x78] sm:$0xf] %v2811
        %2813 = vst.msk [vmem:[%s2734 + $0x7c] sm:$0xf] %vm2323, %v2599
        %v2814 = vld [vmem:[%s2734 + $0x80] sm:$0x1]
        %v2815 = vsel %vm2743, %v2600, %v2814
        %2816 = vst [vmem:[%s2734 + $0x80] sm:$0x1] %v2815
        %v2817 = vld [vmem:[%s2734 + $0x84] sm:$0xf]
        %v2818 = vsel %vm2737, %v2607, %v2817
        %2819 = vst [vmem:[%s2734 + $0x84] sm:$0xf] %v2818
        %2820 = vst.msk [vmem:[%s2734 + $0x88] sm:$0xf] %vm2323, %v2616
        %v2821 = vld [vmem:[%s2734 + $0x8c] sm:$0x1]
        %v2822 = vsel %vm2743, %v2617, %v2821
        %2823 = vst [vmem:[%s2734 + $0x8c] sm:$0x1] %v2822
        %v2824 = vld [vmem:[%s2734 + $0x90] sm:$0xf]
        %v2825 = vsel %vm2737, %v2624, %v2824
        %2826 = vst [vmem:[%s2734 + $0x90] sm:$0xf] %v2825
        %2827 = vst.msk [vmem:[%s2734 + $0x94] sm:$0xf] %vm2323, %v2633
        %v2828 = vld [vmem:[%s2734 + $0x98] sm:$0x1]
        %v2829 = vsel %vm2743, %v2634, %v2828
        %2830 = vst [vmem:[%s2734 + $0x98] sm:$0x1] %v2829
        %v2831 = vld [vmem:[%s2734 + $0x9c] sm:$0xf]
        %v2832 = vsel %vm2737, %v2641, %v2831
        %2833 = vst [vmem:[%s2734 + $0x9c] sm:$0xf] %v2832
        %2834 = vst.msk [vmem:[%s2734 + $0xa0] sm:$0xf] %vm2323, %v2650
        %v2835 = vld [vmem:[%s2734 + $0xa4] sm:$0x1]
        %v2836 = vsel %vm2743, %v2651, %v2835
        %2837 = vst [vmem:[%s2734 + $0xa4] sm:$0x1] %v2836
        %v2838 = vld [vmem:[%s2734 + $0xa8] sm:$0xf]
        %v2839 = vsel %vm2737, %v2658, %v2838
        %2840 = vst [vmem:[%s2734 + $0xa8] sm:$0xf] %v2839
        %2841 = vst.msk [vmem:[%s2734 + $0xac] sm:$0xf] %vm2323, %v2667
        %v2842 = vld [vmem:[%s2734 + $0xb0] sm:$0x1]
        %v2843 = vsel %vm2743, %v2668, %v2842
        %2844 = vst [vmem:[%s2734 + $0xb0] sm:$0x1] %v2843
        %v2845 = vld [vmem:[%s2734 + $0xb4] sm:$0xf]
        %v2846 = vsel %vm2737, %v2675, %v2845
        %2847 = vst [vmem:[%s2734 + $0xb4] sm:$0xf] %v2846
        %2848 = vst.msk [vmem:[%s2734 + $0xb8] sm:$0xf] %vm2323, %v2684
        %v2849 = vld [vmem:[%s2734 + $0xbc] sm:$0x1]
        %v2850 = vsel %vm2743, %v2685, %v2849
        %2851 = vst [vmem:[%s2734 + $0xbc] sm:$0x1] %v2850
        %v2852 = vld [vmem:[#allocation2] sm:$0xf]
        %v2853 = vld [vmem:[#allocation2 + $0x4] sm:$0xf]
        %v2854 = vld [vmem:[#allocation2 + $0x8] sm:$0x1]
        %v2855 = vld [vmem:[#allocation2 + $0xc] sm:$0xf]
        %v2856 = vld [vmem:[#allocation2 + $0x10] sm:$0xf]
        %v2857 = vld [vmem:[#allocation2 + $0x14] sm:$0x1]
        %v2858 = vld [vmem:[#allocation2 + $0x18] sm:$0xf]
        %v2859 = vld [vmem:[#allocation2 + $0x1c] sm:$0xf]
        %v2860 = vld [vmem:[#allocation2 + $0x20] sm:$0x1]
        %v2861 = vld [vmem:[#allocation2 + $0x24] sm:$0xf]
        %v2862 = vld [vmem:[#allocation2 + $0x28] sm:$0xf]
        %v2863 = vld [vmem:[#allocation2 + $0x2c] sm:$0x1]
        %v2864 = vld [vmem:[#allocation2 + $0x30] sm:$0xf]
        %v2865 = vld [vmem:[#allocation2 + $0x34] sm:$0xf]
        %v2866 = vld [vmem:[#allocation2 + $0x38] sm:$0x1]
        %v2867 = vld [vmem:[#allocation2 + $0x3c] sm:$0xf]
        %v2868 = vld [vmem:[#allocation2 + $0x40] sm:$0xf]
        %v2869 = vld [vmem:[#allocation2 + $0x44] sm:$0x1]
        %v2870 = vld [vmem:[#allocation2 + $0x48] sm:$0xf]
        %v2871 = vld [vmem:[#allocation2 + $0x4c] sm:$0xf]
        %v2872 = vld [vmem:[#allocation2 + $0x50] sm:$0x1]
        %v2873 = vld [vmem:[#allocation2 + $0x54] sm:$0xf]
        %v2874 = vld [vmem:[#allocation2 + $0x58] sm:$0xf]
        %v2875 = vld [vmem:[#allocation2 + $0x5c] sm:$0x1]
        %v2876 = vld [vmem:[#allocation2 + $0x60] sm:$0xf]
        %v2877 = vld [vmem:[#allocation2 + $0x64] sm:$0xf]
        %v2878 = vld [vmem:[#allocation2 + $0x68] sm:$0x1]
        %v2879 = vld [vmem:[#allocation2 + $0x6c] sm:$0xf]
        %v2880 = vld [vmem:[#allocation2 + $0x70] sm:$0xf]
        %v2881 = vld [vmem:[#allocation2 + $0x74] sm:$0x1]
        %v2882 = vld [vmem:[#allocation2 + $0x78] sm:$0xf]
        %v2883 = vld [vmem:[#allocation2 + $0x7c] sm:$0xf]
        %v2884 = vld [vmem:[#allocation2 + $0x80] sm:$0x1]
        %v2885 = vld [vmem:[#allocation2 + $0x84] sm:$0xf]
        %v2886 = vld [vmem:[#allocation2 + $0x88] sm:$0xf]
        %v2887 = vld [vmem:[#allocation2 + $0x8c] sm:$0x1]
        %v2888 = vld [vmem:[#allocation2 + $0x90] sm:$0xf]
        %v2889 = vld [vmem:[#allocation2 + $0x94] sm:$0xf]
        %v2890 = vld [vmem:[#allocation2 + $0x98] sm:$0x1]
        %v2891 = vld [vmem:[#allocation2 + $0x9c] sm:$0xf]
        %v2892 = vld [vmem:[#allocation2 + $0xa0] sm:$0xf]
        %v2893 = vld [vmem:[#allocation2 + $0xa4] sm:$0x1]
        %v2894 = vld [vmem:[#allocation2 + $0xa8] sm:$0xf]
        %v2895 = vld [vmem:[#allocation2 + $0xac] sm:$0xf]
        %v2896 = vld [vmem:[#allocation2 + $0xb0] sm:$0x1]
        %v2897 = vld [vmem:[#allocation2 + $0xb4] sm:$0xf]
        %v2898 = vld [vmem:[#allocation2 + $0xb8] sm:$0xf]
        %v2899 = vld [vmem:[#allocation2 + $0xbc] sm:$0x1]
        %v2932 = vunpack.c.l.b16 %v2852
        %v2933 = vunpack.c.l.b16 %v2853
        %v2934 = vunpack.c.l.b16 %v2855
        %v2935 = vunpack.c.l.b16 %v2856
        %v2936 = vunpack.c.l.b16 %v2858
        %v2937 = vunpack.c.l.b16 %v2859
        %v2938 = vunpack.c.l.b16 %v2861
        %v2939 = vunpack.c.l.b16 %v2862
        %v2940 = vunpack.c.l.b16 %v2864
        %v2941 = vunpack.c.l.b16 %v2865
        %v2942 = vunpack.c.l.b16 %v2867
        %v2943 = vunpack.c.l.b16 %v2868
        %v2944 = vunpack.c.l.b16 %v2870
        %v2945 = vunpack.c.l.b16 %v2871
        %v2946 = vunpack.c.l.b16 %v2873
        %v2947 = vunpack.c.l.b16 %v2874
        %v2948 = vunpack.c.l.b16 %v2876
        %v2949 = vunpack.c.l.b16 %v2877
        %v2950 = vunpack.c.l.b16 %v2879
        %v2951 = vunpack.c.l.b16 %v2880
        %v2952 = vunpack.c.l.b16 %v2882
        %v2953 = vunpack.c.l.b16 %v2883
        %v2954 = vunpack.c.l.b16 %v2885
        %v2955 = vunpack.c.l.b16 %v2886
        %v2956 = vunpack.c.l.b16 %v2888
        %v2957 = vunpack.c.l.b16 %v2889
        %v2958 = vunpack.c.l.b16 %v2891
        %v2959 = vunpack.c.l.b16 %v2892
        %v2960 = vunpack.c.l.b16 %v2894
        %v2961 = vunpack.c.l.b16 %v2895
        %v2962 = vunpack.c.l.b16 %v2897
        %v2963 = vunpack.c.l.b16 %v2898
        %v2964 = vpack.c.b16 %v2933, %v2932
        %v2965 = vpack.c.b16 %v2935, %v2934
        %v2966 = vpack.c.b16 %v2937, %v2936
        %v2967 = vpack.c.b16 %v2939, %v2938
        %v2968 = vpack.c.b16 %v2941, %v2940
        %v2969 = vpack.c.b16 %v2943, %v2942
        %v2970 = vpack.c.b16 %v2945, %v2944
        %v2971 = vpack.c.b16 %v2947, %v2946
        %v2972 = vpack.c.b16 %v2949, %v2948
        %v2973 = vpack.c.b16 %v2951, %v2950
        %v2974 = vpack.c.b16 %v2953, %v2952
        %v2975 = vpack.c.b16 %v2955, %v2954
        %v2976 = vpack.c.b16 %v2957, %v2956
        %v2977 = vpack.c.b16 %v2959, %v2958
        %v2978 = vpack.c.b16 %v2961, %v2960
        %v2979 = vpack.c.b16 %v2963, %v2962
        %v2996 = vunpack.c.l.b16 %v2854
        %v2997 = vunpack.c.l.b16 %v2857
        %v2998 = vunpack.c.l.b16 %v2860
        %v2999 = vunpack.c.l.b16 %v2863
        %v3000 = vunpack.c.l.b16 %v2866
        %v3001 = vunpack.c.l.b16 %v2869
        %v3002 = vunpack.c.l.b16 %v2872
        %v3003 = vunpack.c.l.b16 %v2875
        %v3004 = vunpack.c.l.b16 %v2878
        %v3005 = vunpack.c.l.b16 %v2881
        %v3006 = vunpack.c.l.b16 %v2884
        %v3007 = vunpack.c.l.b16 %v2887
        %v3008 = vunpack.c.l.b16 %v2890
        %v3009 = vunpack.c.l.b16 %v2893
        %v3010 = vunpack.c.l.b16 %v2896
        %v3011 = vunpack.c.l.b16 %v2899
        %v3012 = vpack.c.b16 %v2996, %v2996
        %v3013 = vpack.c.b16 %v2997, %v2997
        %v3014 = vpack.c.b16 %v2998, %v2998
        %v3015 = vpack.c.b16 %v2999, %v2999
        %v3016 = vpack.c.b16 %v3000, %v3000
        %v3017 = vpack.c.b16 %v3001, %v3001
        %v3018 = vpack.c.b16 %v3002, %v3002
        %v3019 = vpack.c.b16 %v3003, %v3003
        %v3020 = vpack.c.b16 %v3004, %v3004
        %v3021 = vpack.c.b16 %v3005, %v3005
        %v3022 = vpack.c.b16 %v3006, %v3006
        %v3023 = vpack.c.b16 %v3007, %v3007
        %v3024 = vpack.c.b16 %v3008, %v3008
        %v3025 = vpack.c.b16 %v3009, %v3009
        %v3026 = vpack.c.b16 %v3010, %v3010
        %v3027 = vpack.c.b16 %v3011, %v3011
        %vm3028 = vsmask.f32 7424
        %v3030 = vshrl.u32 %v2964, 16
        %v3032 = vshll.u32 %v2964, 16
        %v3034 = vrot.slane %v3032, 1
        %v3035 = vor.u32 %v3030, %v3034
        %v3037 = vshll.u32 %v3012, 16
        %v3039 = vrot.slane %v3037, 1
        %v3040 = vsel %vm3028, %v3035, %v3039
        %v3042 = vshrl.u32 %v2965, 16
        %v3044 = vshll.u32 %v2965, 16
        %v3046 = vrot.slane %v3044, 1
        %v3047 = vor.u32 %v3042, %v3046
        %v3049 = vshll.u32 %v3013, 16
        %v3051 = vrot.slane %v3049, 1
        %v3052 = vsel %vm3028, %v3047, %v3051
        %v3054 = vshrl.u32 %v2966, 16
        %v3056 = vshll.u32 %v2966, 16
        %v3058 = vrot.slane %v3056, 1
        %v3059 = vor.u32 %v3054, %v3058
        %v3061 = vshll.u32 %v3014, 16
        %v3063 = vrot.slane %v3061, 1
        %v3064 = vsel %vm3028, %v3059, %v3063
        %v3066 = vshrl.u32 %v2967, 16
        %v3068 = vshll.u32 %v2967, 16
        %v3070 = vrot.slane %v3068, 1
        %v3071 = vor.u32 %v3066, %v3070
        %v3073 = vshll.u32 %v3015, 16
        %v3075 = vrot.slane %v3073, 1
        %v3076 = vsel %vm3028, %v3071, %v3075
        %v3078 = vshrl.u32 %v2968, 16
        %v3080 = vshll.u32 %v2968, 16
        %v3082 = vrot.slane %v3080, 1
        %v3083 = vor.u32 %v3078, %v3082
        %v3085 = vshll.u32 %v3016, 16
        %v3087 = vrot.slane %v3085, 1
        %v3088 = vsel %vm3028, %v3083, %v3087
        %v3090 = vshrl.u32 %v2969, 16
        %v3092 = vshll.u32 %v2969, 16
        %v3094 = vrot.slane %v3092, 1
        %v3095 = vor.u32 %v3090, %v3094
        %v3097 = vshll.u32 %v3017, 16
        %v3099 = vrot.slane %v3097, 1
        %v3100 = vsel %vm3028, %v3095, %v3099
        %v3102 = vshrl.u32 %v2970, 16
        %v3104 = vshll.u32 %v2970, 16
        %v3106 = vrot.slane %v3104, 1
        %v3107 = vor.u32 %v3102, %v3106
        %v3109 = vshll.u32 %v3018, 16
        %v3111 = vrot.slane %v3109, 1
        %v3112 = vsel %vm3028, %v3107, %v3111
        %v3114 = vshrl.u32 %v2971, 16
        %v3116 = vshll.u32 %v2971, 16
        %v3118 = vrot.slane %v3116, 1
        %v3119 = vor.u32 %v3114, %v3118
        %v3121 = vshll.u32 %v3019, 16
        %v3123 = vrot.slane %v3121, 1
        %v3124 = vsel %vm3028, %v3119, %v3123
        %v3126 = vshrl.u32 %v2972, 16
        %v3128 = vshll.u32 %v2972, 16
        %v3130 = vrot.slane %v3128, 1
        %v3131 = vor.u32 %v3126, %v3130
        %v3133 = vshll.u32 %v3020, 16
        %v3135 = vrot.slane %v3133, 1
        %v3136 = vsel %vm3028, %v3131, %v3135
        %v3138 = vshrl.u32 %v2973, 16
        %v3140 = vshll.u32 %v2973, 16
        %v3142 = vrot.slane %v3140, 1
        %v3143 = vor.u32 %v3138, %v3142
        %v3145 = vshll.u32 %v3021, 16
        %v3147 = vrot.slane %v3145, 1
        %v3148 = vsel %vm3028, %v3143, %v3147
        %v3150 = vshrl.u32 %v2974, 16
        %v3152 = vshll.u32 %v2974, 16
        %v3154 = vrot.slane %v3152, 1
        %v3155 = vor.u32 %v3150, %v3154
        %v3157 = vshll.u32 %v3022, 16
        %v3159 = vrot.slane %v3157, 1
        %v3160 = vsel %vm3028, %v3155, %v3159
        %v3162 = vshrl.u32 %v2975, 16
        %v3164 = vshll.u32 %v2975, 16
        %v3166 = vrot.slane %v3164, 1
        %v3167 = vor.u32 %v3162, %v3166
        %v3169 = vshll.u32 %v3023, 16
        %v3171 = vrot.slane %v3169, 1
        %v3172 = vsel %vm3028, %v3167, %v3171
        %v3174 = vshrl.u32 %v2976, 16
        %v3176 = vshll.u32 %v2976, 16
        %v3178 = vrot.slane %v3176, 1
        %v3179 = vor.u32 %v3174, %v3178
        %v3181 = vshll.u32 %v3024, 16
        %v3183 = vrot.slane %v3181, 1
        %v3184 = vsel %vm3028, %v3179, %v3183
        %v3186 = vshrl.u32 %v2977, 16
        %v3188 = vshll.u32 %v2977, 16
        %v3190 = vrot.slane %v3188, 1
        %v3191 = vor.u32 %v3186, %v3190
        %v3193 = vshll.u32 %v3025, 16
        %v3195 = vrot.slane %v3193, 1
        %v3196 = vsel %vm3028, %v3191, %v3195
        %v3198 = vshrl.u32 %v2978, 16
        %v3200 = vshll.u32 %v2978, 16
        %v3202 = vrot.slane %v3200, 1
        %v3203 = vor.u32 %v3198, %v3202
        %v3205 = vshll.u32 %v3026, 16
        %v3207 = vrot.slane %v3205, 1
        %v3208 = vsel %vm3028, %v3203, %v3207
        %v3210 = vshrl.u32 %v2979, 16
        %v3212 = vshll.u32 %v2979, 16
        %v3214 = vrot.slane %v3212, 1
        %v3215 = vor.u32 %v3210, %v3214
        %v3217 = vshll.u32 %v3027, 16
        %v3219 = vrot.slane %v3217, 1
        %v3220 = vsel %vm3028, %v3215, %v3219
        %3221 = vrot.lane.b32.xlu0 %v3040, 64
        %v3222 = vpop.permute.xlu0 %3221
        %3223 = vrot.lane.b32.xlu0 %v3052, 64
        %v3224 = vpop.permute.xlu0 %3223
        %3225 = vrot.lane.b32.xlu0 %v3064, 64
        %v3226 = vpop.permute.xlu0 %3225
        %3227 = vrot.lane.b32.xlu0 %v3076, 64
        %v3228 = vpop.permute.xlu0 %3227
        %3229 = vrot.lane.b32.xlu0 %v3088, 64
        %v3230 = vpop.permute.xlu0 %3229
        %3231 = vrot.lane.b32.xlu0 %v3100, 64
        %v3232 = vpop.permute.xlu0 %3231
        %3233 = vrot.lane.b32.xlu0 %v3112, 64
        %v3234 = vpop.permute.xlu0 %3233
        %3235 = vrot.lane.b32.xlu0 %v3124, 64
        %v3236 = vpop.permute.xlu0 %3235
        %3237 = vrot.lane.b32.xlu0 %v3136, 64
        %v3238 = vpop.permute.xlu0 %3237
        %3239 = vrot.lane.b32.xlu0 %v3148, 64
        %v3240 = vpop.permute.xlu0 %3239
        %3241 = vrot.lane.b32.xlu0 %v3160, 64
        %v3242 = vpop.permute.xlu0 %3241
        %3243 = vrot.lane.b32.xlu0 %v3172, 64
        %v3244 = vpop.permute.xlu0 %3243
        %3245 = vrot.lane.b32.xlu0 %v3184, 64
        %v3246 = vpop.permute.xlu0 %3245
        %3247 = vrot.lane.b32.xlu0 %v3196, 64
        %v3248 = vpop.permute.xlu0 %3247
        %3249 = vrot.lane.b32.xlu0 %v3208, 64
        %v3250 = vpop.permute.xlu0 %3249
        %3251 = vrot.lane.b32.xlu0 %v3220, 64
        %v3252 = vpop.permute.xlu0 %3251
        %vm3253 = vcmask 1046528
        %v3254 = vrot.slane %v2964, 1
        %v3255 = vrot.slane %v3012, 1
        %v3256 = vsel %vm3253, %v3254, %v3255
        %v3257 = vrot.slane %v2965, 1
        %v3258 = vrot.slane %v3013, 1
        %v3259 = vsel %vm3253, %v3257, %v3258
        %v3260 = vrot.slane %v2966, 1
        %v3261 = vrot.slane %v3014, 1
        %v3262 = vsel %vm3253, %v3260, %v3261
        %v3263 = vrot.slane %v2967, 1
        %v3264 = vrot.slane %v3015, 1
        %v3265 = vsel %vm3253, %v3263, %v3264
        %v3266 = vrot.slane %v2968, 1
        %v3267 = vrot.slane %v3016, 1
        %v3268 = vsel %vm3253, %v3266, %v3267
        %v3269 = vrot.slane %v2969, 1
        %v3270 = vrot.slane %v3017, 1
        %v3271 = vsel %vm3253, %v3269, %v3270
        %v3272 = vrot.slane %v2970, 1
        %v3273 = vrot.slane %v3018, 1
        %v3274 = vsel %vm3253, %v3272, %v3273
        %v3275 = vrot.slane %v2971, 1
        %v3276 = vrot.slane %v3019, 1
        %v3277 = vsel %vm3253, %v3275, %v3276
        %v3278 = vrot.slane %v2972, 1
        %v3279 = vrot.slane %v3020, 1
        %v3280 = vsel %vm3253, %v3278, %v3279
        %v3281 = vrot.slane %v2973, 1
        %v3282 = vrot.slane %v3021, 1
        %v3283 = vsel %vm3253, %v3281, %v3282
        %v3284 = vrot.slane %v2974, 1
        %v3285 = vrot.slane %v3022, 1
        %v3286 = vsel %vm3253, %v3284, %v3285
        %v3287 = vrot.slane %v2975, 1
        %v3288 = vrot.slane %v3023, 1
        %v3289 = vsel %vm3253, %v3287, %v3288
        %v3290 = vrot.slane %v2976, 1
        %v3291 = vrot.slane %v3024, 1
        %v3292 = vsel %vm3253, %v3290, %v3291
        %v3293 = vrot.slane %v2977, 1
        %v3294 = vrot.slane %v3025, 1
        %v3295 = vsel %vm3253, %v3293, %v3294
        %v3296 = vrot.slane %v2978, 1
        %v3297 = vrot.slane %v3026, 1
        %v3298 = vsel %vm3253, %v3296, %v3297
        %v3299 = vrot.slane %v2979, 1
        %v3300 = vrot.slane %v3027, 1
        %v3301 = vsel %vm3253, %v3299, %v3300
        %vm3302 = vcmask 523264
        %v3304 = vsel %vm3302, %v2964, %v3222
        %v3307 = vsel %vm3302, %v2965, %v3224
        %v3310 = vsel %vm3302, %v2966, %v3226
        %v3313 = vsel %vm3302, %v2967, %v3228
        %v3316 = vsel %vm3302, %v2968, %v3230
        %v3319 = vsel %vm3302, %v2969, %v3232
        %v3322 = vsel %vm3302, %v2970, %v3234
        %v3325 = vsel %vm3302, %v2971, %v3236
        %v3328 = vsel %vm3302, %v2972, %v3238
        %v3331 = vsel %vm3302, %v2973, %v3240
        %v3334 = vsel %vm3302, %v2974, %v3242
        %v3337 = vsel %vm3302, %v2975, %v3244
        %v3340 = vsel %vm3302, %v2976, %v3246
        %v3343 = vsel %vm3302, %v2977, %v3248
        %v3346 = vsel %vm3302, %v2978, %v3250
        %v3349 = vsel %vm3302, %v2979, %v3252
        %v3351 = vld [vmem:[%s2] sm:$0xf]
        %v3352 = vld [vmem:[%s2 + $0x4] sm:$0xf]
        %v3353 = vld [vmem:[%s2 + $0x8] sm:$0xf]
        %v3354 = vld [vmem:[%s2 + $0xc] sm:$0xf]
        %v3355 = vld [vmem:[%s2 + $0x10] sm:$0xf]
        %v3356 = vld [vmem:[%s2 + $0x14] sm:$0xf]
        %v3357 = vld [vmem:[%s2 + $0x18] sm:$0xf]
        %v3358 = vld [vmem:[%s2 + $0x1c] sm:$0xf]
        %v3359 = vld [vmem:[%s2 + $0x20] sm:$0xf]
        %v3360 = vld [vmem:[%s2 + $0x24] sm:$0xf]
        %v3361 = vld [vmem:[%s2 + $0x28] sm:$0xf]
        %v3362 = vld [vmem:[%s2 + $0x2c] sm:$0xf]
        %v3363 = vld [vmem:[%s2 + $0x30] sm:$0xf]
        %v3364 = vld [vmem:[%s2 + $0x34] sm:$0xf]
        %v3365 = vld [vmem:[%s2 + $0x38] sm:$0xf]
        %v3366 = vld [vmem:[%s2 + $0x3c] sm:$0xf]
        %v3367 = vld [vmem:[%s2 + $0x40] sm:$0xf]
        %v3368 = vld [vmem:[%s2 + $0x44] sm:$0xf]
        %v3369 = vld [vmem:[%s2 + $0x48] sm:$0xf]
        %v3370 = vld [vmem:[%s2 + $0x4c] sm:$0xf]
        %v3371 = vld [vmem:[%s2 + $0x50] sm:$0xf]
        %v3372 = vld [vmem:[%s2 + $0x54] sm:$0xf]
        %v3373 = vld [vmem:[%s2 + $0x58] sm:$0xf]
        %v3374 = vld [vmem:[%s2 + $0x5c] sm:$0xf]
        %v3399 = vunpack.c.l.b16 %v3351
        %v3400 = vunpack.c.l.b16 %v3352
        %v3401 = vunpack.c.l.b16 %v3353
        %v3402 = vunpack.c.l.b16 %v3354
        %v3403 = vunpack.c.l.b16 %v3355
        %v3404 = vunpack.c.l.b16 %v3356
        %v3405 = vunpack.c.l.b16 %v3357
        %v3406 = vunpack.c.l.b16 %v3358
        %v3407 = vunpack.c.l.b16 %v3359
        %v3408 = vunpack.c.l.b16 %v3360
        %v3409 = vunpack.c.l.b16 %v3361
        %v3410 = vunpack.c.l.b16 %v3362
        %v3411 = vunpack.c.l.b16 %v3363
        %v3412 = vunpack.c.l.b16 %v3364
        %v3413 = vunpack.c.l.b16 %v3365
        %v3414 = vunpack.c.l.b16 %v3366
        %v3415 = vunpack.c.l.b16 %v3367
        %v3416 = vunpack.c.l.b16 %v3368
        %v3417 = vunpack.c.l.b16 %v3369
        %v3418 = vunpack.c.l.b16 %v3370
        %v3419 = vunpack.c.l.b16 %v3371
        %v3420 = vunpack.c.l.b16 %v3372
        %v3421 = vunpack.c.l.b16 %v3373
        %v3422 = vunpack.c.l.b16 %v3374
        %v3423 = vpack.c.b16 %v3400, %v3399
        %v3424 = vpack.c.b16 %v3402, %v3401
        %v3425 = vpack.c.b16 %v3404, %v3403
        %v3426 = vpack.c.b16 %v3406, %v3405
        %v3427 = vpack.c.b16 %v3408, %v3407
        %v3428 = vpack.c.b16 %v3410, %v3409
        %v3429 = vpack.c.b16 %v3412, %v3411
        %v3430 = vpack.c.b16 %v3414, %v3413
        %v3431 = vpack.c.b16 %v3416, %v3415
        %v3432 = vpack.c.b16 %v3418, %v3417
        %v3433 = vpack.c.b16 %v3420, %v3419
        %v3434 = vpack.c.b16 %v3422, %v3421
        %v3448 = vsel %vm3302, %v3256, 0
        %v3451 = vsel %vm3302, %v3259, 0
        %v3454 = vsel %vm3302, %v3262, 0
        %v3457 = vsel %vm3302, %v3265, 0
        %v3460 = vsel %vm3302, %v3268, 0
        %v3463 = vsel %vm3302, %v3271, 0
        %v3466 = vsel %vm3302, %v3274, 0
        %v3469 = vsel %vm3302, %v3277, 0
        %v3472 = vsel %vm3302, %v3280, 0
        %v3475 = vsel %vm3302, %v3283, 0
        %v3478 = vsel %vm3302, %v3286, 0
        %v3481 = vsel %vm3302, %v3289, 0
        %v3484 = vsel %vm3302, %v3292, 0
        %v3487 = vsel %vm3302, %v3295, 0
        %v3490 = vsel %vm3302, %v3298, 0
        %v3493 = vsel %vm3302, %v3301, 0
        %3495 = vmatpush.bf16.msra.mxu0 %v3430
        %3496 = vmatpush.bf16.msra.mxu0 %v3429
        %3497 = vmatpush.bf16.msra.mxu0 %v3428
        %3498 = vmatpush.bf16.msra.mxu0 %v3427
        %3499 = vmatpush.bf16.msra.mxu0 %v3426
        %3500 = vmatpush.bf16.msra.mxu0 %v3425
        %3501 = vmatpush.bf16.msra.mxu0 %v3424
        %3502 = vmatpush.bf16.msra.mxu0 %v3423
        %3503 = vmatmul.bf16.gmra.mxu0 %v3304
        %v3504 = vpop.f32.mrf.mxu0
        %v3505 = vadd.f32 0.0, %v3504
        %v3506 = vpop.f32.mrf.mxu0
        %v3507 = vadd.f32 0.0, %v3506
        %3508 = vmatmul.bf16.gmra.mxu0 %v3307
        %v3509 = vpop.f32.mrf.mxu0
        %v3510 = vadd.f32 0.0, %v3509
        %v3511 = vpop.f32.mrf.mxu0
        %v3512 = vadd.f32 0.0, %v3511
        %3513 = vmatmul.bf16.gmra.mxu0 %v3310
        %v3514 = vpop.f32.mrf.mxu0
        %v3515 = vadd.f32 0.0, %v3514
        %v3516 = vpop.f32.mrf.mxu0
        %v3517 = vadd.f32 0.0, %v3516
        %3518 = vmatmul.bf16.gmra.mxu0 %v3313
        %v3519 = vpop.f32.mrf.mxu0
        %v3520 = vadd.f32 0.0, %v3519
        %v3521 = vpop.f32.mrf.mxu0
        %v3522 = vadd.f32 0.0, %v3521
        %3523 = vmatmul.bf16.gmra.mxu0 %v3316
        %v3524 = vpop.f32.mrf.mxu0
        %v3525 = vadd.f32 0.0, %v3524
        %v3526 = vpop.f32.mrf.mxu0
        %v3527 = vadd.f32 0.0, %v3526
        %3528 = vmatmul.bf16.gmra.mxu0 %v3319
        %v3529 = vpop.f32.mrf.mxu0
        %v3530 = vadd.f32 0.0, %v3529
        %v3531 = vpop.f32.mrf.mxu0
        %v3532 = vadd.f32 0.0, %v3531
        %3533 = vmatmul.bf16.gmra.mxu0 %v3322
        %v3534 = vpop.f32.mrf.mxu0
        %v3535 = vadd.f32 0.0, %v3534
        %v3536 = vpop.f32.mrf.mxu0
        %v3537 = vadd.f32 0.0, %v3536
        %3538 = vmatmul.bf16.gmra.mxu0 %v3325
        %v3539 = vpop.f32.mrf.mxu0
        %v3540 = vadd.f32 0.0, %v3539
        %v3541 = vpop.f32.mrf.mxu0
        %v3542 = vadd.f32 0.0, %v3541
        %3543 = vmatmul.bf16.gmra.mxu0 %v3328
        %v3544 = vpop.f32.mrf.mxu0
        %v3545 = vadd.f32 0.0, %v3544
        %v3546 = vpop.f32.mrf.mxu0
        %v3547 = vadd.f32 0.0, %v3546
        %3548 = vmatmul.bf16.gmra.mxu0 %v3331
        %v3549 = vpop.f32.mrf.mxu0
        %v3550 = vadd.f32 0.0, %v3549
        %v3551 = vpop.f32.mrf.mxu0
        %v3552 = vadd.f32 0.0, %v3551
        %3553 = vmatmul.bf16.gmra.mxu0 %v3334
        %v3554 = vpop.f32.mrf.mxu0
        %v3555 = vadd.f32 0.0, %v3554
        %v3556 = vpop.f32.mrf.mxu0
        %v3557 = vadd.f32 0.0, %v3556
        %3558 = vmatmul.bf16.gmra.mxu0 %v3337
        %v3559 = vpop.f32.mrf.mxu0
        %v3560 = vadd.f32 0.0, %v3559
        %v3561 = vpop.f32.mrf.mxu0
        %v3562 = vadd.f32 0.0, %v3561
        %3563 = vmatmul.bf16.gmra.mxu0 %v3340
        %v3564 = vpop.f32.mrf.mxu0
        %v3565 = vadd.f32 0.0, %v3564
        %v3566 = vpop.f32.mrf.mxu0
        %v3567 = vadd.f32 0.0, %v3566
        %3568 = vmatmul.bf16.gmra.mxu0 %v3343
        %v3569 = vpop.f32.mrf.mxu0
        %v3570 = vadd.f32 0.0, %v3569
        %v3571 = vpop.f32.mrf.mxu0
        %v3572 = vadd.f32 0.0, %v3571
        %3573 = vmatmul.bf16.gmra.mxu0 %v3346
        %v3574 = vpop.f32.mrf.mxu0
        %v3575 = vadd.f32 0.0, %v3574
        %v3576 = vpop.f32.mrf.mxu0
        %v3577 = vadd.f32 0.0, %v3576
        %3578 = vmatmul.bf16.gmra.mxu0 %v3349
        %v3579 = vpop.f32.mrf.mxu0
        %v3580 = vadd.f32 0.0, %v3579
        %v3581 = vpop.f32.mrf.mxu0
        %v3582 = vadd.f32 0.0, %v3581
        %3583 = vdwg.mxu0
        %3584 = vmatpush.bf16.msra.mxu0 0
        %3585 = vmatpush.bf16.msra.mxu0 0
        %3586 = vmatpush.bf16.msra.mxu0 0
        %3587 = vmatpush.bf16.msra.mxu0 0
        %3588 = vmatpush.bf16.msra.mxu0 %v3434
        %3589 = vmatpush.bf16.msra.mxu0 %v3433
        %3590 = vmatpush.bf16.msra.mxu0 %v3432
        %3591 = vmatpush.bf16.msra.mxu0 %v3431
        %3592 = vmatmul.bf16.gmra.mxu0 %v3448
        %v3593 = vpop.f32.mrf.mxu0
        %v3594 = vadd.f32 %v3505, %v3593
        %v3595 = vpop.f32.mrf.mxu0
        %v3596 = vadd.f32 %v3507, %v3595
        %3597 = vmatmul.bf16.gmra.mxu0 %v3451
        %v3598 = vpop.f32.mrf.mxu0
        %v3599 = vadd.f32 %v3510, %v3598
        %v3600 = vpop.f32.mrf.mxu0
        %v3601 = vadd.f32 %v3512, %v3600
        %3602 = vmatmul.bf16.gmra.mxu0 %v3454
        %v3603 = vpop.f32.mrf.mxu0
        %v3604 = vadd.f32 %v3515, %v3603
        %v3605 = vpop.f32.mrf.mxu0
        %v3606 = vadd.f32 %v3517, %v3605
        %3607 = vmatmul.bf16.gmra.mxu0 %v3457
        %v3608 = vpop.f32.mrf.mxu0
        %v3609 = vadd.f32 %v3520, %v3608
        %v3610 = vpop.f32.mrf.mxu0
        %v3611 = vadd.f32 %v3522, %v3610
        %3612 = vmatmul.bf16.gmra.mxu0 %v3460
        %v3613 = vpop.f32.mrf.mxu0
        %v3614 = vadd.f32 %v3525, %v3613
        %v3615 = vpop.f32.mrf.mxu0
        %v3616 = vadd.f32 %v3527, %v3615
        %3617 = vmatmul.bf16.gmra.mxu0 %v3463
        %v3618 = vpop.f32.mrf.mxu0
        %v3619 = vadd.f32 %v3530, %v3618
        %v3620 = vpop.f32.mrf.mxu0
        %v3621 = vadd.f32 %v3532, %v3620
        %3622 = vmatmul.bf16.gmra.mxu0 %v3466
        %v3623 = vpop.f32.mrf.mxu0
        %v3624 = vadd.f32 %v3535, %v3623
        %v3625 = vpop.f32.mrf.mxu0
        %v3626 = vadd.f32 %v3537, %v3625
        %3627 = vmatmul.bf16.gmra.mxu0 %v3469
        %v3628 = vpop.f32.mrf.mxu0
        %v3629 = vadd.f32 %v3540, %v3628
        %v3630 = vpop.f32.mrf.mxu0
        %v3631 = vadd.f32 %v3542, %v3630
        %3632 = vmatmul.bf16.gmra.mxu0 %v3472
        %v3633 = vpop.f32.mrf.mxu0
        %v3634 = vadd.f32 %v3545, %v3633
        %v3635 = vpop.f32.mrf.mxu0
        %v3636 = vadd.f32 %v3547, %v3635
        %3637 = vmatmul.bf16.gmra.mxu0 %v3475
        %v3638 = vpop.f32.mrf.mxu0
        %v3639 = vadd.f32 %v3550, %v3638
        %v3640 = vpop.f32.mrf.mxu0
        %v3641 = vadd.f32 %v3552, %v3640
        %3642 = vmatmul.bf16.gmra.mxu0 %v3478
        %v3643 = vpop.f32.mrf.mxu0
        %v3644 = vadd.f32 %v3555, %v3643
        %v3645 = vpop.f32.mrf.mxu0
        %v3646 = vadd.f32 %v3557, %v3645
        %3647 = vmatmul.bf16.gmra.mxu0 %v3481
        %v3648 = vpop.f32.mrf.mxu0
        %v3649 = vadd.f32 %v3560, %v3648
        %v3650 = vpop.f32.mrf.mxu0
        %v3651 = vadd.f32 %v3562, %v3650
        %3652 = vmatmul.bf16.gmra.mxu0 %v3484
        %v3653 = vpop.f32.mrf.mxu0
        %v3654 = vadd.f32 %v3565, %v3653
        %v3655 = vpop.f32.mrf.mxu0
        %v3656 = vadd.f32 %v3567, %v3655
        %3657 = vmatmul.bf16.gmra.mxu0 %v3487
        %v3658 = vpop.f32.mrf.mxu0
        %v3659 = vadd.f32 %v3570, %v3658
        %v3660 = vpop.f32.mrf.mxu0
        %v3661 = vadd.f32 %v3572, %v3660
        %3662 = vmatmul.bf16.gmra.mxu0 %v3490
        %v3663 = vpop.f32.mrf.mxu0
        %v3664 = vadd.f32 %v3575, %v3663
        %v3665 = vpop.f32.mrf.mxu0
        %v3666 = vadd.f32 %v3577, %v3665
        %3667 = vmatmul.bf16.gmra.mxu0 %v3493
        %v3668 = vpop.f32.mrf.mxu0
        %v3669 = vadd.f32 %v3580, %v3668
        %v3670 = vpop.f32.mrf.mxu0
        %v3671 = vadd.f32 %v3582, %v3670
        %3672 = vdwg.mxu0
        %3705 = vrot.lane.b32.xlu0 %v3594, 64
        %v3706 = vpop.permute.xlu0 %3705
        %3707 = vrot.lane.b32.xlu0 %v3596, 64
        %v3708 = vpop.permute.xlu0 %3707
        %3709 = vrot.lane.b32.xlu0 %v3599, 64
        %v3710 = vpop.permute.xlu0 %3709
        %3711 = vrot.lane.b32.xlu0 %v3601, 64
        %v3712 = vpop.permute.xlu0 %3711
        %3713 = vrot.lane.b32.xlu0 %v3604, 64
        %v3714 = vpop.permute.xlu0 %3713
        %3715 = vrot.lane.b32.xlu0 %v3606, 64
        %v3716 = vpop.permute.xlu0 %3715
        %3717 = vrot.lane.b32.xlu0 %v3609, 64
        %v3718 = vpop.permute.xlu0 %3717
        %3719 = vrot.lane.b32.xlu0 %v3611, 64
        %v3720 = vpop.permute.xlu0 %3719
        %3721 = vrot.lane.b32.xlu0 %v3614, 64
        %v3722 = vpop.permute.xlu0 %3721
        %3723 = vrot.lane.b32.xlu0 %v3616, 64
        %v3724 = vpop.permute.xlu0 %3723
        %3725 = vrot.lane.b32.xlu0 %v3619, 64
        %v3726 = vpop.permute.xlu0 %3725
        %3727 = vrot.lane.b32.xlu0 %v3621, 64
        %v3728 = vpop.permute.xlu0 %3727
        %3729 = vrot.lane.b32.xlu0 %v3624, 64
        %v3730 = vpop.permute.xlu0 %3729
        %3731 = vrot.lane.b32.xlu0 %v3626, 64
        %v3732 = vpop.permute.xlu0 %3731
        %3733 = vrot.lane.b32.xlu0 %v3629, 64
        %v3734 = vpop.permute.xlu0 %3733
        %3735 = vrot.lane.b32.xlu0 %v3631, 64
        %v3736 = vpop.permute.xlu0 %3735
        %3737 = vrot.lane.b32.xlu0 %v3634, 64
        %v3738 = vpop.permute.xlu0 %3737
        %3739 = vrot.lane.b32.xlu0 %v3636, 64
        %v3740 = vpop.permute.xlu0 %3739
        %3741 = vrot.lane.b32.xlu0 %v3639, 64
        %v3742 = vpop.permute.xlu0 %3741
        %3743 = vrot.lane.b32.xlu0 %v3641, 64
        %v3744 = vpop.permute.xlu0 %3743
        %3745 = vrot.lane.b32.xlu0 %v3644, 64
        %v3746 = vpop.permute.xlu0 %3745
        %3747 = vrot.lane.b32.xlu0 %v3646, 64
        %v3748 = vpop.permute.xlu0 %3747
        %3749 = vrot.lane.b32.xlu0 %v3649, 64
        %v3750 = vpop.permute.xlu0 %3749
        %3751 = vrot.lane.b32.xlu0 %v3651, 64
        %v3752 = vpop.permute.xlu0 %3751
        %3753 = vrot.lane.b32.xlu0 %v3654, 64
        %v3754 = vpop.permute.xlu0 %3753
        %3755 = vrot.lane.b32.xlu0 %v3656, 64
        %v3756 = vpop.permute.xlu0 %3755
        %3757 = vrot.lane.b32.xlu0 %v3659, 64
        %v3758 = vpop.permute.xlu0 %3757
        %3759 = vrot.lane.b32.xlu0 %v3661, 64
        %v3760 = vpop.permute.xlu0 %3759
        %3761 = vrot.lane.b32.xlu0 %v3664, 64
        %v3762 = vpop.permute.xlu0 %3761
        %3763 = vrot.lane.b32.xlu0 %v3666, 64
        %v3764 = vpop.permute.xlu0 %3763
        %3765 = vrot.lane.b32.xlu0 %v3669, 64
        %v3766 = vpop.permute.xlu0 %3765
        %3767 = vrot.lane.b32.xlu0 %v3671, 64
        %v3768 = vpop.permute.xlu0 %3767
        %v3801 = vadd.f32 %v2291, %v3706
        %v3802 = vadd.f32 %v2292, %v3708
        %v3803 = vadd.f32 %v2293, %v3710
        %v3804 = vadd.f32 %v2294, %v3712
        %v3805 = vadd.f32 %v2295, %v3714
        %v3806 = vadd.f32 %v2296, %v3716
        %v3807 = vadd.f32 %v2297, %v3718
        %v3808 = vadd.f32 %v2298, %v3720
        %v3809 = vadd.f32 %v2299, %v3722
        %v3810 = vadd.f32 %v2300, %v3724
        %v3811 = vadd.f32 %v2301, %v3726
        %v3812 = vadd.f32 %v2302, %v3728
        %v3813 = vadd.f32 %v2303, %v3730
        %v3814 = vadd.f32 %v2304, %v3732
        %v3815 = vadd.f32 %v2305, %v3734
        %v3816 = vadd.f32 %v2306, %v3736
        %v3817 = vadd.f32 %v2307, %v3738
        %v3818 = vadd.f32 %v2308, %v3740
        %v3819 = vadd.f32 %v2309, %v3742
        %v3820 = vadd.f32 %v2310, %v3744
        %v3821 = vadd.f32 %v2311, %v3746
        %v3822 = vadd.f32 %v2312, %v3748
        %v3823 = vadd.f32 %v2313, %v3750
        %v3824 = vadd.f32 %v2314, %v3752
        %v3825 = vadd.f32 %v2315, %v3754
        %v3826 = vadd.f32 %v2316, %v3756
        %v3827 = vadd.f32 %v2317, %v3758
        %v3828 = vadd.f32 %v2318, %v3760
        %v3829 = vadd.f32 %v2319, %v3762
        %v3830 = vadd.f32 %v2320, %v3764
        %v3831 = vadd.f32 %v2321, %v3766
        %v3832 = vadd.f32 %v2322, %v3768
        %v3833 = vld [vmem:[%s2734] sm:$0xf]
        %v3834 = vld [vmem:[%s2734 + $0x4] sm:$0xf]
        %v3835 = vld [vmem:[%s2734 + $0x8] sm:$0x1]
        %v3836 = vld [vmem:[%s2734 + $0xc] sm:$0xf]
        %v3837 = vld [vmem:[%s2734 + $0x10] sm:$0xf]
        %v3838 = vld [vmem:[%s2734 + $0x14] sm:$0x1]
        %v3839 = vld [vmem:[%s2734 + $0x18] sm:$0xf]
        %v3840 = vld [vmem:[%s2734 + $0x1c] sm:$0xf]
        %v3841 = vld [vmem:[%s2734 + $0x20] sm:$0x1]
        %v3842 = vld [vmem:[%s2734 + $0x24] sm:$0xf]
        %v3843 = vld [vmem:[%s2734 + $0x28] sm:$0xf]
        %v3844 = vld [vmem:[%s2734 + $0x2c] sm:$0x1]
        %v3845 = vld [vmem:[%s2734 + $0x30] sm:$0xf]
        %v3846 = vld [vmem:[%s2734 + $0x34] sm:$0xf]
        %v3847 = vld [vmem:[%s2734 + $0x38] sm:$0x1]
        %v3848 = vld [vmem:[%s2734 + $0x3c] sm:$0xf]
        %v3849 = vld [vmem:[%s2734 + $0x40] sm:$0xf]
        %v3850 = vld [vmem:[%s2734 + $0x44] sm:$0x1]
        %v3851 = vld [vmem:[%s2734 + $0x48] sm:$0xf]
        %v3852 = vld [vmem:[%s2734 + $0x4c] sm:$0xf]
        %v3853 = vld [vmem:[%s2734 + $0x50] sm:$0x1]
        %v3854 = vld [vmem:[%s2734 + $0x54] sm:$0xf]
        %v3855 = vld [vmem:[%s2734 + $0x58] sm:$0xf]
        %v3856 = vld [vmem:[%s2734 + $0x5c] sm:$0x1]
        %v3857 = vld [vmem:[%s2734 + $0x60] sm:$0xf]
        %v3858 = vld [vmem:[%s2734 + $0x64] sm:$0xf]
        %v3859 = vld [vmem:[%s2734 + $0x68] sm:$0x1]
        %v3860 = vld [vmem:[%s2734 + $0x6c] sm:$0xf]
        %v3861 = vld [vmem:[%s2734 + $0x70] sm:$0xf]
        %v3862 = vld [vmem:[%s2734 + $0x74] sm:$0x1]
        %v3863 = vld [vmem:[%s2734 + $0x78] sm:$0xf]
        %v3864 = vld [vmem:[%s2734 + $0x7c] sm:$0xf]
        %v3865 = vld [vmem:[%s2734 + $0x80] sm:$0x1]
        %v3866 = vld [vmem:[%s2734 + $0x84] sm:$0xf]
        %v3867 = vld [vmem:[%s2734 + $0x88] sm:$0xf]
        %v3868 = vld [vmem:[%s2734 + $0x8c] sm:$0x1]
        %v3869 = vld [vmem:[%s2734 + $0x90] sm:$0xf]
        %v3870 = vld [vmem:[%s2734 + $0x94] sm:$0xf]
        %v3871 = vld [vmem:[%s2734 + $0x98] sm:$0x1]
        %v3872 = vld [vmem:[%s2734 + $0x9c] sm:$0xf]
        %v3873 = vld [vmem:[%s2734 + $0xa0] sm:$0xf]
        %v3874 = vld [vmem:[%s2734 + $0xa4] sm:$0x1]
        %v3875 = vld [vmem:[%s2734 + $0xa8] sm:$0xf]
        %v3876 = vld [vmem:[%s2734 + $0xac] sm:$0xf]
        %v3877 = vld [vmem:[%s2734 + $0xb0] sm:$0x1]
        %v3878 = vld [vmem:[%s2734 + $0xb4] sm:$0xf]
        %v3879 = vld [vmem:[%s2734 + $0xb8] sm:$0xf]
        %v3880 = vld [vmem:[%s2734 + $0xbc] sm:$0x1]
        %v3913 = vunpack.c.l.b16 %v3833
        %v3914 = vunpack.c.l.b16 %v3834
        %v3915 = vunpack.c.l.b16 %v3836
        %v3916 = vunpack.c.l.b16 %v3837
        %v3917 = vunpack.c.l.b16 %v3839
        %v3918 = vunpack.c.l.b16 %v3840
        %v3919 = vunpack.c.l.b16 %v3842
        %v3920 = vunpack.c.l.b16 %v3843
        %v3921 = vunpack.c.l.b16 %v3845
        %v3922 = vunpack.c.l.b16 %v3846
        %v3923 = vunpack.c.l.b16 %v3848
        %v3924 = vunpack.c.l.b16 %v3849
        %v3925 = vunpack.c.l.b16 %v3851
        %v3926 = vunpack.c.l.b16 %v3852
        %v3927 = vunpack.c.l.b16 %v3854
        %v3928 = vunpack.c.l.b16 %v3855
        %v3929 = vunpack.c.l.b16 %v3857
        %v3930 = vunpack.c.l.b16 %v3858
        %v3931 = vunpack.c.l.b16 %v3860
        %v3932 = vunpack.c.l.b16 %v3861
        %v3933 = vunpack.c.l.b16 %v3863
        %v3934 = vunpack.c.l.b16 %v3864
        %v3935 = vunpack.c.l.b16 %v3866
        %v3936 = vunpack.c.l.b16 %v3867
        %v3937 = vunpack.c.l.b16 %v3869
        %v3938 = vunpack.c.l.b16 %v3870
        %v3939 = vunpack.c.l.b16 %v3872
        %v3940 = vunpack.c.l.b16 %v3873
        %v3941 = vunpack.c.l.b16 %v3875
        %v3942 = vunpack.c.l.b16 %v3876
        %v3943 = vunpack.c.l.b16 %v3878
        %v3944 = vunpack.c.l.b16 %v3879
        %v3945 = vpack.c.b16 %v3914, %v3913
        %v3946 = vpack.c.b16 %v3916, %v3915
        %v3947 = vpack.c.b16 %v3918, %v3917
        %v3948 = vpack.c.b16 %v3920, %v3919
        %v3949 = vpack.c.b16 %v3922, %v3921
        %v3950 = vpack.c.b16 %v3924, %v3923
        %v3951 = vpack.c.b16 %v3926, %v3925
        %v3952 = vpack.c.b16 %v3928, %v3927
        %v3953 = vpack.c.b16 %v3930, %v3929
        %v3954 = vpack.c.b16 %v3932, %v3931
        %v3955 = vpack.c.b16 %v3934, %v3933
        %v3956 = vpack.c.b16 %v3936, %v3935
        %v3957 = vpack.c.b16 %v3938, %v3937
        %v3958 = vpack.c.b16 %v3940, %v3939
        %v3959 = vpack.c.b16 %v3942, %v3941
        %v3960 = vpack.c.b16 %v3944, %v3943
        %v3977 = vunpack.c.l.b16 %v3835
        %v3978 = vunpack.c.l.b16 %v3838
        %v3979 = vunpack.c.l.b16 %v3841
        %v3980 = vunpack.c.l.b16 %v3844
        %v3981 = vunpack.c.l.b16 %v3847
        %v3982 = vunpack.c.l.b16 %v3850
        %v3983 = vunpack.c.l.b16 %v3853
        %v3984 = vunpack.c.l.b16 %v3856
        %v3985 = vunpack.c.l.b16 %v3859
        %v3986 = vunpack.c.l.b16 %v3862
        %v3987 = vunpack.c.l.b16 %v3865
        %v3988 = vunpack.c.l.b16 %v3868
        %v3989 = vunpack.c.l.b16 %v3871
        %v3990 = vunpack.c.l.b16 %v3874
        %v3991 = vunpack.c.l.b16 %v3877
        %v3992 = vunpack.c.l.b16 %v3880
        %v3993 = vpack.c.b16 %v3977, %v3977
        %v3994 = vpack.c.b16 %v3978, %v3978
        %v3995 = vpack.c.b16 %v3979, %v3979
        %v3996 = vpack.c.b16 %v3980, %v3980
        %v3997 = vpack.c.b16 %v3981, %v3981
        %v3998 = vpack.c.b16 %v3982, %v3982
        %v3999 = vpack.c.b16 %v3983, %v3983
        %v4000 = vpack.c.b16 %v3984, %v3984
        %v4001 = vpack.c.b16 %v3985, %v3985
        %v4002 = vpack.c.b16 %v3986, %v3986
        %v4003 = vpack.c.b16 %v3987, %v3987
        %v4004 = vpack.c.b16 %v3988, %v3988
        %v4005 = vpack.c.b16 %v3989, %v3989
        %v4006 = vpack.c.b16 %v3990, %v3990
        %v4007 = vpack.c.b16 %v3991, %v3991
        %v4008 = vpack.c.b16 %v3992, %v3992
        %v4010 = vshrl.u32 %v3945, 16
        %v4012 = vshll.u32 %v3945, 16
        %v4014 = vrot.slane %v4012, 1
        %v4015 = vor.u32 %v4010, %v4014
        %v4017 = vshll.u32 %v3993, 16
        %v4019 = vrot.slane %v4017, 1
        %v4020 = vsel %vm3028, %v4015, %v4019
        %v4022 = vshrl.u32 %v3946, 16
        %v4024 = vshll.u32 %v3946, 16
        %v4026 = vrot.slane %v4024, 1
        %v4027 = vor.u32 %v4022, %v4026
        %v4029 = vshll.u32 %v3994, 16
        %v4031 = vrot.slane %v4029, 1
        %v4032 = vsel %vm3028, %v4027, %v4031
        %v4034 = vshrl.u32 %v3947, 16
        %v4036 = vshll.u32 %v3947, 16
        %v4038 = vrot.slane %v4036, 1
        %v4039 = vor.u32 %v4034, %v4038
        %v4041 = vshll.u32 %v3995, 16
        %v4043 = vrot.slane %v4041, 1
        %v4044 = vsel %vm3028, %v4039, %v4043
        %v4046 = vshrl.u32 %v3948, 16
        %v4048 = vshll.u32 %v3948, 16
        %v4050 = vrot.slane %v4048, 1
        %v4051 = vor.u32 %v4046, %v4050
        %v4053 = vshll.u32 %v3996, 16
        %v4055 = vrot.slane %v4053, 1
        %v4056 = vsel %vm3028, %v4051, %v4055
        %v4058 = vshrl.u32 %v3949, 16
        %v4060 = vshll.u32 %v3949, 16
        %v4062 = vrot.slane %v4060, 1
        %v4063 = vor.u32 %v4058, %v4062
        %v4065 = vshll.u32 %v3997, 16
        %v4067 = vrot.slane %v4065, 1
        %v4068 = vsel %vm3028, %v4063, %v4067
        %v4070 = vshrl.u32 %v3950, 16
        %v4072 = vshll.u32 %v3950, 16
        %v4074 = vrot.slane %v4072, 1
        %v4075 = vor.u32 %v4070, %v4074
        %v4077 = vshll.u32 %v3998, 16
        %v4079 = vrot.slane %v4077, 1
        %v4080 = vsel %vm3028, %v4075, %v4079
        %v4082 = vshrl.u32 %v3951, 16
        %v4084 = vshll.u32 %v3951, 16
        %v4086 = vrot.slane %v4084, 1
        %v4087 = vor.u32 %v4082, %v4086
        %v4089 = vshll.u32 %v3999, 16
        %v4091 = vrot.slane %v4089, 1
        %v4092 = vsel %vm3028, %v4087, %v4091
        %v4094 = vshrl.u32 %v3952, 16
        %v4096 = vshll.u32 %v3952, 16
        %v4098 = vrot.slane %v4096, 1
        %v4099 = vor.u32 %v4094, %v4098
        %v4101 = vshll.u32 %v4000, 16
        %v4103 = vrot.slane %v4101, 1
        %v4104 = vsel %vm3028, %v4099, %v4103
        %v4106 = vshrl.u32 %v3953, 16
        %v4108 = vshll.u32 %v3953, 16
        %v4110 = vrot.slane %v4108, 1
        %v4111 = vor.u32 %v4106, %v4110
        %v4113 = vshll.u32 %v4001, 16
        %v4115 = vrot.slane %v4113, 1
        %v4116 = vsel %vm3028, %v4111, %v4115
        %v4118 = vshrl.u32 %v3954, 16
        %v4120 = vshll.u32 %v3954, 16
        %v4122 = vrot.slane %v4120, 1
        %v4123 = vor.u32 %v4118, %v4122
        %v4125 = vshll.u32 %v4002, 16
        %v4127 = vrot.slane %v4125, 1
        %v4128 = vsel %vm3028, %v4123, %v4127
        %v4130 = vshrl.u32 %v3955, 16
        %v4132 = vshll.u32 %v3955, 16
        %v4134 = vrot.slane %v4132, 1
        %v4135 = vor.u32 %v4130, %v4134
        %v4137 = vshll.u32 %v4003, 16
        %v4139 = vrot.slane %v4137, 1
        %v4140 = vsel %vm3028, %v4135, %v4139
        %v4142 = vshrl.u32 %v3956, 16
        %v4144 = vshll.u32 %v3956, 16
        %v4146 = vrot.slane %v4144, 1
        %v4147 = vor.u32 %v4142, %v4146
        %v4149 = vshll.u32 %v4004, 16
        %v4151 = vrot.slane %v4149, 1
        %v4152 = vsel %vm3028, %v4147, %v4151
        %v4154 = vshrl.u32 %v3957, 16
        %v4156 = vshll.u32 %v3957, 16
        %v4158 = vrot.slane %v4156, 1
        %v4159 = vor.u32 %v4154, %v4158
        %v4161 = vshll.u32 %v4005, 16
        %v4163 = vrot.slane %v4161, 1
        %v4164 = vsel %vm3028, %v4159, %v4163
        %v4166 = vshrl.u32 %v3958, 16
        %v4168 = vshll.u32 %v3958, 16
        %v4170 = vrot.slane %v4168, 1
        %v4171 = vor.u32 %v4166, %v4170
        %v4173 = vshll.u32 %v4006, 16
        %v4175 = vrot.slane %v4173, 1
        %v4176 = vsel %vm3028, %v4171, %v4175
        %v4178 = vshrl.u32 %v3959, 16
        %v4180 = vshll.u32 %v3959, 16
        %v4182 = vrot.slane %v4180, 1
        %v4183 = vor.u32 %v4178, %v4182
        %v4185 = vshll.u32 %v4007, 16
        %v4187 = vrot.slane %v4185, 1
        %v4188 = vsel %vm3028, %v4183, %v4187
        %v4190 = vshrl.u32 %v3960, 16
        %v4192 = vshll.u32 %v3960, 16
        %v4194 = vrot.slane %v4192, 1
        %v4195 = vor.u32 %v4190, %v4194
        %v4197 = vshll.u32 %v4008, 16
        %v4199 = vrot.slane %v4197, 1
        %v4200 = vsel %vm3028, %v4195, %v4199
        %4201 = vrot.lane.b32.xlu0 %v4020, 64
        %v4202 = vpop.permute.xlu0 %4201
        %4203 = vrot.lane.b32.xlu0 %v4032, 64
        %v4204 = vpop.permute.xlu0 %4203
        %4205 = vrot.lane.b32.xlu0 %v4044, 64
        %v4206 = vpop.permute.xlu0 %4205
        %4207 = vrot.lane.b32.xlu0 %v4056, 64
        %v4208 = vpop.permute.xlu0 %4207
        %4209 = vrot.lane.b32.xlu0 %v4068, 64
        %v4210 = vpop.permute.xlu0 %4209
        %4211 = vrot.lane.b32.xlu0 %v4080, 64
        %v4212 = vpop.permute.xlu0 %4211
        %4213 = vrot.lane.b32.xlu0 %v4092, 64
        %v4214 = vpop.permute.xlu0 %4213
        %4215 = vrot.lane.b32.xlu0 %v4104, 64
        %v4216 = vpop.permute.xlu0 %4215
        %4217 = vrot.lane.b32.xlu0 %v4116, 64
        %v4218 = vpop.permute.xlu0 %4217
        %4219 = vrot.lane.b32.xlu0 %v4128, 64
        %v4220 = vpop.permute.xlu0 %4219
        %4221 = vrot.lane.b32.xlu0 %v4140, 64
        %v4222 = vpop.permute.xlu0 %4221
        %4223 = vrot.lane.b32.xlu0 %v4152, 64
        %v4224 = vpop.permute.xlu0 %4223
        %4225 = vrot.lane.b32.xlu0 %v4164, 64
        %v4226 = vpop.permute.xlu0 %4225
        %4227 = vrot.lane.b32.xlu0 %v4176, 64
        %v4228 = vpop.permute.xlu0 %4227
        %4229 = vrot.lane.b32.xlu0 %v4188, 64
        %v4230 = vpop.permute.xlu0 %4229
        %4231 = vrot.lane.b32.xlu0 %v4200, 64
        %v4232 = vpop.permute.xlu0 %4231
        %v4233 = vrot.slane %v3945, 1
        %v4234 = vrot.slane %v3993, 1
        %v4235 = vsel %vm3253, %v4233, %v4234
        %v4236 = vrot.slane %v3946, 1
        %v4237 = vrot.slane %v3994, 1
        %v4238 = vsel %vm3253, %v4236, %v4237
        %v4239 = vrot.slane %v3947, 1
        %v4240 = vrot.slane %v3995, 1
        %v4241 = vsel %vm3253, %v4239, %v4240
        %v4242 = vrot.slane %v3948, 1
        %v4243 = vrot.slane %v3996, 1
        %v4244 = vsel %vm3253, %v4242, %v4243
        %v4245 = vrot.slane %v3949, 1
        %v4246 = vrot.slane %v3997, 1
        %v4247 = vsel %vm3253, %v4245, %v4246
        %v4248 = vrot.slane %v3950, 1
        %v4249 = vrot.slane %v3998, 1
        %v4250 = vsel %vm3253, %v4248, %v4249
        %v4251 = vrot.slane %v3951, 1
        %v4252 = vrot.slane %v3999, 1
        %v4253 = vsel %vm3253, %v4251, %v4252
        %v4254 = vrot.slane %v3952, 1
        %v4255 = vrot.slane %v4000, 1
        %v4256 = vsel %vm3253, %v4254, %v4255
        %v4257 = vrot.slane %v3953, 1
        %v4258 = vrot.slane %v4001, 1
        %v4259 = vsel %vm3253, %v4257, %v4258
        %v4260 = vrot.slane %v3954, 1
        %v4261 = vrot.slane %v4002, 1
        %v4262 = vsel %vm3253, %v4260, %v4261
        %v4263 = vrot.slane %v3955, 1
        %v4264 = vrot.slane %v4003, 1
        %v4265 = vsel %vm3253, %v4263, %v4264
        %v4266 = vrot.slane %v3956, 1
        %v4267 = vrot.slane %v4004, 1
        %v4268 = vsel %vm3253, %v4266, %v4267
        %v4269 = vrot.slane %v3957, 1
        %v4270 = vrot.slane %v4005, 1
        %v4271 = vsel %vm3253, %v4269, %v4270
        %v4272 = vrot.slane %v3958, 1
        %v4273 = vrot.slane %v4006, 1
        %v4274 = vsel %vm3253, %v4272, %v4273
        %v4275 = vrot.slane %v3959, 1
        %v4276 = vrot.slane %v4007, 1
        %v4277 = vsel %vm3253, %v4275, %v4276
        %v4278 = vrot.slane %v3960, 1
        %v4279 = vrot.slane %v4008, 1
        %v4280 = vsel %vm3253, %v4278, %v4279
        %v4282 = vsel %vm3302, %v3945, %v4202
        %v4285 = vsel %vm3302, %v3946, %v4204
        %v4288 = vsel %vm3302, %v3947, %v4206
        %v4291 = vsel %vm3302, %v3948, %v4208
        %v4294 = vsel %vm3302, %v3949, %v4210
        %v4297 = vsel %vm3302, %v3950, %v4212
        %v4300 = vsel %vm3302, %v3951, %v4214
        %v4303 = vsel %vm3302, %v3952, %v4216
        %v4306 = vsel %vm3302, %v3953, %v4218
        %v4309 = vsel %vm3302, %v3954, %v4220
        %v4312 = vsel %vm3302, %v3955, %v4222
        %v4315 = vsel %vm3302, %v3956, %v4224
        %v4318 = vsel %vm3302, %v3957, %v4226
        %v4321 = vsel %vm3302, %v3958, %v4228
        %v4324 = vsel %vm3302, %v3959, %v4230
        %v4327 = vsel %vm3302, %v3960, %v4232
        %s4329 = scalar_lea.vmem %s2, 96
        %v4330 = vld [vmem:[%s4329] sm:$0xf]
        %v4331 = vld [vmem:[%s4329 + $0x4] sm:$0xf]
        %v4332 = vld [vmem:[%s4329 + $0x8] sm:$0xf]
        %v4333 = vld [vmem:[%s4329 + $0xc] sm:$0xf]
        %v4334 = vld [vmem:[%s4329 + $0x10] sm:$0xf]
        %v4335 = vld [vmem:[%s4329 + $0x14] sm:$0xf]
        %v4336 = vld [vmem:[%s4329 + $0x18] sm:$0xf]
        %v4337 = vld [vmem:[%s4329 + $0x1c] sm:$0xf]
        %v4338 = vld [vmem:[%s4329 + $0x20] sm:$0xf]
        %v4339 = vld [vmem:[%s4329 + $0x24] sm:$0xf]
        %v4340 = vld [vmem:[%s4329 + $0x28] sm:$0xf]
        %v4341 = vld [vmem:[%s4329 + $0x2c] sm:$0xf]
        %v4342 = vld [vmem:[%s4329 + $0x30] sm:$0xf]
        %v4343 = vld [vmem:[%s4329 + $0x34] sm:$0xf]
        %v4344 = vld [vmem:[%s4329 + $0x38] sm:$0xf]
        %v4345 = vld [vmem:[%s4329 + $0x3c] sm:$0xf]
        %v4346 = vld [vmem:[%s4329 + $0x40] sm:$0xf]
        %v4347 = vld [vmem:[%s4329 + $0x44] sm:$0xf]
        %v4348 = vld [vmem:[%s4329 + $0x48] sm:$0xf]
        %v4349 = vld [vmem:[%s4329 + $0x4c] sm:$0xf]
        %v4350 = vld [vmem:[%s4329 + $0x50] sm:$0xf]
        %v4351 = vld [vmem:[%s4329 + $0x54] sm:$0xf]
        %v4352 = vld [vmem:[%s4329 + $0x58] sm:$0xf]
        %v4353 = vld [vmem:[%s4329 + $0x5c] sm:$0xf]
        %v4378 = vunpack.c.l.b16 %v4330
        %v4379 = vunpack.c.l.b16 %v4331
        %v4380 = vunpack.c.l.b16 %v4332
        %v4381 = vunpack.c.l.b16 %v4333
        %v4382 = vunpack.c.l.b16 %v4334
        %v4383 = vunpack.c.l.b16 %v4335
        %v4384 = vunpack.c.l.b16 %v4336
        %v4385 = vunpack.c.l.b16 %v4337
        %v4386 = vunpack.c.l.b16 %v4338
        %v4387 = vunpack.c.l.b16 %v4339
        %v4388 = vunpack.c.l.b16 %v4340
        %v4389 = vunpack.c.l.b16 %v4341
        %v4390 = vunpack.c.l.b16 %v4342
        %v4391 = vunpack.c.l.b16 %v4343
        %v4392 = vunpack.c.l.b16 %v4344
        %v4393 = vunpack.c.l.b16 %v4345
        %v4394 = vunpack.c.l.b16 %v4346
        %v4395 = vunpack.c.l.b16 %v4347
        %v4396 = vunpack.c.l.b16 %v4348
        %v4397 = vunpack.c.l.b16 %v4349
        %v4398 = vunpack.c.l.b16 %v4350
        %v4399 = vunpack.c.l.b16 %v4351
        %v4400 = vunpack.c.l.b16 %v4352
        %v4401 = vunpack.c.l.b16 %v4353
        %v4402 = vpack.c.b16 %v4379, %v4378
        %v4403 = vpack.c.b16 %v4381, %v4380
        %v4404 = vpack.c.b16 %v4383, %v4382
        %v4405 = vpack.c.b16 %v4385, %v4384
        %v4406 = vpack.c.b16 %v4387, %v4386
        %v4407 = vpack.c.b16 %v4389, %v4388
        %v4408 = vpack.c.b16 %v4391, %v4390
        %v4409 = vpack.c.b16 %v4393, %v4392
        %v4410 = vpack.c.b16 %v4395, %v4394
        %v4411 = vpack.c.b16 %v4397, %v4396
        %v4412 = vpack.c.b16 %v4399, %v4398
        %v4413 = vpack.c.b16 %v4401, %v4400
        %v4427 = vsel %vm3302, %v4235, 0
        %v4430 = vsel %vm3302, %v4238, 0
        %v4433 = vsel %vm3302, %v4241, 0
        %v4436 = vsel %vm3302, %v4244, 0
        %v4439 = vsel %vm3302, %v4247, 0
        %v4442 = vsel %vm3302, %v4250, 0
        %v4445 = vsel %vm3302, %v4253, 0
        %v4448 = vsel %vm3302, %v4256, 0
        %v4451 = vsel %vm3302, %v4259, 0
        %v4454 = vsel %vm3302, %v4262, 0
        %v4457 = vsel %vm3302, %v4265, 0
        %v4460 = vsel %vm3302, %v4268, 0
        %v4463 = vsel %vm3302, %v4271, 0
        %v4466 = vsel %vm3302, %v4274, 0
        %v4469 = vsel %vm3302, %v4277, 0
        %v4472 = vsel %vm3302, %v4280, 0
        %4474 = vmatpush.bf16.msra.mxu0 %v4409
        %4475 = vmatpush.bf16.msra.mxu0 %v4408
        %4476 = vmatpush.bf16.msra.mxu0 %v4407
        %4477 = vmatpush.bf16.msra.mxu0 %v4406
        %4478 = vmatpush.bf16.msra.mxu0 %v4405
        %4479 = vmatpush.bf16.msra.mxu0 %v4404
        %4480 = vmatpush.bf16.msra.mxu0 %v4403
        %4481 = vmatpush.bf16.msra.mxu0 %v4402
        %4482 = vmatmul.bf16.gmra.mxu0 %v4282
        %v4483 = vpop.f32.mrf.mxu0
        %v4484 = vadd.f32 0.0, %v4483
        %v4485 = vpop.f32.mrf.mxu0
        %v4486 = vadd.f32 0.0, %v4485
        %4487 = vmatmul.bf16.gmra.mxu0 %v4285
        %v4488 = vpop.f32.mrf.mxu0
        %v4489 = vadd.f32 0.0, %v4488
        %v4490 = vpop.f32.mrf.mxu0
        %v4491 = vadd.f32 0.0, %v4490
        %4492 = vmatmul.bf16.gmra.mxu0 %v4288
        %v4493 = vpop.f32.mrf.mxu0
        %v4494 = vadd.f32 0.0, %v4493
        %v4495 = vpop.f32.mrf.mxu0
        %v4496 = vadd.f32 0.0, %v4495
        %4497 = vmatmul.bf16.gmra.mxu0 %v4291
        %v4498 = vpop.f32.mrf.mxu0
        %v4499 = vadd.f32 0.0, %v4498
        %v4500 = vpop.f32.mrf.mxu0
        %v4501 = vadd.f32 0.0, %v4500
        %4502 = vmatmul.bf16.gmra.mxu0 %v4294
        %v4503 = vpop.f32.mrf.mxu0
        %v4504 = vadd.f32 0.0, %v4503
        %v4505 = vpop.f32.mrf.mxu0
        %v4506 = vadd.f32 0.0, %v4505
        %4507 = vmatmul.bf16.gmra.mxu0 %v4297
        %v4508 = vpop.f32.mrf.mxu0
        %v4509 = vadd.f32 0.0, %v4508
        %v4510 = vpop.f32.mrf.mxu0
        %v4511 = vadd.f32 0.0, %v4510
        %4512 = vmatmul.bf16.gmra.mxu0 %v4300
        %v4513 = vpop.f32.mrf.mxu0
        %v4514 = vadd.f32 0.0, %v4513
        %v4515 = vpop.f32.mrf.mxu0
        %v4516 = vadd.f32 0.0, %v4515
        %4517 = vmatmul.bf16.gmra.mxu0 %v4303
        %v4518 = vpop.f32.mrf.mxu0
        %v4519 = vadd.f32 0.0, %v4518
        %v4520 = vpop.f32.mrf.mxu0
        %v4521 = vadd.f32 0.0, %v4520
        %4522 = vmatmul.bf16.gmra.mxu0 %v4306
        %v4523 = vpop.f32.mrf.mxu0
        %v4524 = vadd.f32 0.0, %v4523
        %v4525 = vpop.f32.mrf.mxu0
        %v4526 = vadd.f32 0.0, %v4525
        %4527 = vmatmul.bf16.gmra.mxu0 %v4309
        %v4528 = vpop.f32.mrf.mxu0
        %v4529 = vadd.f32 0.0, %v4528
        %v4530 = vpop.f32.mrf.mxu0
        %v4531 = vadd.f32 0.0, %v4530
        %4532 = vmatmul.bf16.gmra.mxu0 %v4312
        %v4533 = vpop.f32.mrf.mxu0
        %v4534 = vadd.f32 0.0, %v4533
        %v4535 = vpop.f32.mrf.mxu0
        %v4536 = vadd.f32 0.0, %v4535
        %4537 = vmatmul.bf16.gmra.mxu0 %v4315
        %v4538 = vpop.f32.mrf.mxu0
        %v4539 = vadd.f32 0.0, %v4538
        %v4540 = vpop.f32.mrf.mxu0
        %v4541 = vadd.f32 0.0, %v4540
        %4542 = vmatmul.bf16.gmra.mxu0 %v4318
        %v4543 = vpop.f32.mrf.mxu0
        %v4544 = vadd.f32 0.0, %v4543
        %v4545 = vpop.f32.mrf.mxu0
        %v4546 = vadd.f32 0.0, %v4545
        %4547 = vmatmul.bf16.gmra.mxu0 %v4321
        %v4548 = vpop.f32.mrf.mxu0
        %v4549 = vadd.f32 0.0, %v4548
        %v4550 = vpop.f32.mrf.mxu0
        %v4551 = vadd.f32 0.0, %v4550
        %4552 = vmatmul.bf16.gmra.mxu0 %v4324
        %v4553 = vpop.f32.mrf.mxu0
        %v4554 = vadd.f32 0.0, %v4553
        %v4555 = vpop.f32.mrf.mxu0
        %v4556 = vadd.f32 0.0, %v4555
        %4557 = vmatmul.bf16.gmra.mxu0 %v4327
        %v4558 = vpop.f32.mrf.mxu0
        %v4559 = vadd.f32 0.0, %v4558
        %v4560 = vpop.f32.mrf.mxu0
        %v4561 = vadd.f32 0.0, %v4560
        %4562 = vdwg.mxu0
        %4563 = vmatpush.bf16.msra.mxu0 0
        %4564 = vmatpush.bf16.msra.mxu0 0
        %4565 = vmatpush.bf16.msra.mxu0 0
        %4566 = vmatpush.bf16.msra.mxu0 0
        %4567 = vmatpush.bf16.msra.mxu0 %v4413
        %4568 = vmatpush.bf16.msra.mxu0 %v4412
        %4569 = vmatpush.bf16.msra.mxu0 %v4411
        %4570 = vmatpush.bf16.msra.mxu0 %v4410
        %4571 = vmatmul.bf16.gmra.mxu0 %v4427
        %v4572 = vpop.f32.mrf.mxu0
        %v4573 = vadd.f32 %v4484, %v4572
        %v4574 = vpop.f32.mrf.mxu0
        %v4575 = vadd.f32 %v4486, %v4574
        %4576 = vmatmul.bf16.gmra.mxu0 %v4430
        %v4577 = vpop.f32.mrf.mxu0
        %v4578 = vadd.f32 %v4489, %v4577
        %v4579 = vpop.f32.mrf.mxu0
        %v4580 = vadd.f32 %v4491, %v4579
        %4581 = vmatmul.bf16.gmra.mxu0 %v4433
        %v4582 = vpop.f32.mrf.mxu0
        %v4583 = vadd.f32 %v4494, %v4582
        %v4584 = vpop.f32.mrf.mxu0
        %v4585 = vadd.f32 %v4496, %v4584
        %4586 = vmatmul.bf16.gmra.mxu0 %v4436
        %v4587 = vpop.f32.mrf.mxu0
        %v4588 = vadd.f32 %v4499, %v4587
        %v4589 = vpop.f32.mrf.mxu0
        %v4590 = vadd.f32 %v4501, %v4589
        %4591 = vmatmul.bf16.gmra.mxu0 %v4439
        %v4592 = vpop.f32.mrf.mxu0
        %v4593 = vadd.f32 %v4504, %v4592
        %v4594 = vpop.f32.mrf.mxu0
        %v4595 = vadd.f32 %v4506, %v4594
        %4596 = vmatmul.bf16.gmra.mxu0 %v4442
        %v4597 = vpop.f32.mrf.mxu0
        %v4598 = vadd.f32 %v4509, %v4597
        %v4599 = vpop.f32.mrf.mxu0
        %v4600 = vadd.f32 %v4511, %v4599
        %4601 = vmatmul.bf16.gmra.mxu0 %v4445
        %v4602 = vpop.f32.mrf.mxu0
        %v4603 = vadd.f32 %v4514, %v4602
        %v4604 = vpop.f32.mrf.mxu0
        %v4605 = vadd.f32 %v4516, %v4604
        %4606 = vmatmul.bf16.gmra.mxu0 %v4448
        %v4607 = vpop.f32.mrf.mxu0
        %v4608 = vadd.f32 %v4519, %v4607
        %v4609 = vpop.f32.mrf.mxu0
        %v4610 = vadd.f32 %v4521, %v4609
        %4611 = vmatmul.bf16.gmra.mxu0 %v4451
        %v4612 = vpop.f32.mrf.mxu0
        %v4613 = vadd.f32 %v4524, %v4612
        %v4614 = vpop.f32.mrf.mxu0
        %v4615 = vadd.f32 %v4526, %v4614
        %4616 = vmatmul.bf16.gmra.mxu0 %v4454
        %v4617 = vpop.f32.mrf.mxu0
        %v4618 = vadd.f32 %v4529, %v4617
        %v4619 = vpop.f32.mrf.mxu0
        %v4620 = vadd.f32 %v4531, %v4619
        %4621 = vmatmul.bf16.gmra.mxu0 %v4457
        %v4622 = vpop.f32.mrf.mxu0
        %v4623 = vadd.f32 %v4534, %v4622
        %v4624 = vpop.f32.mrf.mxu0
        %v4625 = vadd.f32 %v4536, %v4624
        %4626 = vmatmul.bf16.gmra.mxu0 %v4460
        %v4627 = vpop.f32.mrf.mxu0
        %v4628 = vadd.f32 %v4539, %v4627
        %v4629 = vpop.f32.mrf.mxu0
        %v4630 = vadd.f32 %v4541, %v4629
        %4631 = vmatmul.bf16.gmra.mxu0 %v4463
        %v4632 = vpop.f32.mrf.mxu0
        %v4633 = vadd.f32 %v4544, %v4632
        %v4634 = vpop.f32.mrf.mxu0
        %v4635 = vadd.f32 %v4546, %v4634
        %4636 = vmatmul.bf16.gmra.mxu0 %v4466
        %v4637 = vpop.f32.mrf.mxu0
        %v4638 = vadd.f32 %v4549, %v4637
        %v4639 = vpop.f32.mrf.mxu0
        %v4640 = vadd.f32 %v4551, %v4639
        %4641 = vmatmul.bf16.gmra.mxu0 %v4469
        %v4642 = vpop.f32.mrf.mxu0
        %v4643 = vadd.f32 %v4554, %v4642
        %v4644 = vpop.f32.mrf.mxu0
        %v4645 = vadd.f32 %v4556, %v4644
        %4646 = vmatmul.bf16.gmra.mxu0 %v4472
        %v4647 = vpop.f32.mrf.mxu0
        %v4648 = vadd.f32 %v4559, %v4647
        %v4649 = vpop.f32.mrf.mxu0
        %v4650 = vadd.f32 %v4561, %v4649
        %4651 = vdwg.mxu0
        %4684 = vrot.lane.b32.xlu0 %v4573, 64
        %v4685 = vpop.permute.xlu0 %4684
        %4686 = vrot.lane.b32.xlu0 %v4575, 64
        %v4687 = vpop.permute.xlu0 %4686
        %4688 = vrot.lane.b32.xlu0 %v4578, 64
        %v4689 = vpop.permute.xlu0 %4688
        %4690 = vrot.lane.b32.xlu0 %v4580, 64
        %v4691 = vpop.permute.xlu0 %4690
        %4692 = vrot.lane.b32.xlu0 %v4583, 64
        %v4693 = vpop.permute.xlu0 %4692
        %4694 = vrot.lane.b32.xlu0 %v4585, 64
        %v4695 = vpop.permute.xlu0 %4694
        %4696 = vrot.lane.b32.xlu0 %v4588, 64
        %v4697 = vpop.permute.xlu0 %4696
        %4698 = vrot.lane.b32.xlu0 %v4590, 64
        %v4699 = vpop.permute.xlu0 %4698
        %4700 = vrot.lane.b32.xlu0 %v4593, 64
        %v4701 = vpop.permute.xlu0 %4700
        %4702 = vrot.lane.b32.xlu0 %v4595, 64
        %v4703 = vpop.permute.xlu0 %4702
        %4704 = vrot.lane.b32.xlu0 %v4598, 64
        %v4705 = vpop.permute.xlu0 %4704
        %4706 = vrot.lane.b32.xlu0 %v4600, 64
        %v4707 = vpop.permute.xlu0 %4706
        %4708 = vrot.lane.b32.xlu0 %v4603, 64
        %v4709 = vpop.permute.xlu0 %4708
        %4710 = vrot.lane.b32.xlu0 %v4605, 64
        %v4711 = vpop.permute.xlu0 %4710
        %4712 = vrot.lane.b32.xlu0 %v4608, 64
        %v4713 = vpop.permute.xlu0 %4712
        %4714 = vrot.lane.b32.xlu0 %v4610, 64
        %v4715 = vpop.permute.xlu0 %4714
        %4716 = vrot.lane.b32.xlu0 %v4613, 64
        %v4717 = vpop.permute.xlu0 %4716
        %4718 = vrot.lane.b32.xlu0 %v4615, 64
        %v4719 = vpop.permute.xlu0 %4718
        %4720 = vrot.lane.b32.xlu0 %v4618, 64
        %v4721 = vpop.permute.xlu0 %4720
        %4722 = vrot.lane.b32.xlu0 %v4620, 64
        %v4723 = vpop.permute.xlu0 %4722
        %4724 = vrot.lane.b32.xlu0 %v4623, 64
        %v4725 = vpop.permute.xlu0 %4724
        %4726 = vrot.lane.b32.xlu0 %v4625, 64
        %v4727 = vpop.permute.xlu0 %4726
        %4728 = vrot.lane.b32.xlu0 %v4628, 64
        %v4729 = vpop.permute.xlu0 %4728
        %4730 = vrot.lane.b32.xlu0 %v4630, 64
        %v4731 = vpop.permute.xlu0 %4730
        %4732 = vrot.lane.b32.xlu0 %v4633, 64
        %v4733 = vpop.permute.xlu0 %4732
        %4734 = vrot.lane.b32.xlu0 %v4635, 64
        %v4735 = vpop.permute.xlu0 %4734
        %4736 = vrot.lane.b32.xlu0 %v4638, 64
        %v4737 = vpop.permute.xlu0 %4736
        %4738 = vrot.lane.b32.xlu0 %v4640, 64
        %v4739 = vpop.permute.xlu0 %4738
        %4740 = vrot.lane.b32.xlu0 %v4643, 64
        %v4741 = vpop.permute.xlu0 %4740
        %4742 = vrot.lane.b32.xlu0 %v4645, 64
        %v4743 = vpop.permute.xlu0 %4742
        %4744 = vrot.lane.b32.xlu0 %v4648, 64
        %v4745 = vpop.permute.xlu0 %4744
        %4746 = vrot.lane.b32.xlu0 %v4650, 64
        %v4747 = vpop.permute.xlu0 %4746
        %v4780 = vadd.f32 %v3801, %v4685
        %v4781 = vadd.f32 %v3802, %v4687
        %v4782 = vadd.f32 %v3803, %v4689
        %v4783 = vadd.f32 %v3804, %v4691
        %v4784 = vadd.f32 %v3805, %v4693
        %v4785 = vadd.f32 %v3806, %v4695
        %v4786 = vadd.f32 %v3807, %v4697
        %v4787 = vadd.f32 %v3808, %v4699
        %v4788 = vadd.f32 %v3809, %v4701
        %v4789 = vadd.f32 %v3810, %v4703
        %v4790 = vadd.f32 %v3811, %v4705
        %v4791 = vadd.f32 %v3812, %v4707
        %v4792 = vadd.f32 %v3813, %v4709
        %v4793 = vadd.f32 %v3814, %v4711
        %v4794 = vadd.f32 %v3815, %v4713
        %v4795 = vadd.f32 %v3816, %v4715
        %v4796 = vadd.f32 %v3817, %v4717
        %v4797 = vadd.f32 %v3818, %v4719
        %v4798 = vadd.f32 %v3819, %v4721
        %v4799 = vadd.f32 %v3820, %v4723
        %v4800 = vadd.f32 %v3821, %v4725
        %v4801 = vadd.f32 %v3822, %v4727
        %v4802 = vadd.f32 %v3823, %v4729
        %v4803 = vadd.f32 %v3824, %v4731
        %v4804 = vadd.f32 %v3825, %v4733
        %v4805 = vadd.f32 %v3826, %v4735
        %v4806 = vadd.f32 %v3827, %v4737
        %v4807 = vadd.f32 %v3828, %v4739
        %v4808 = vadd.f32 %v3829, %v4741
        %v4809 = vadd.f32 %v3830, %v4743
        %v4810 = vadd.f32 %v3831, %v4745
        %v4811 = vadd.f32 %v3832, %v4747
        %s4812 = scalar_lea.vmem [#allocation2], 24
        %v4813 = vld [vmem:[%s4812] sm:$0xf]
        %v4814 = vld [vmem:[%s4812 + $0x4] sm:$0xf]
        %v4815 = vld [vmem:[%s4812 + $0x8] sm:$0x1]
        %v4816 = vld [vmem:[%s4812 + $0xc] sm:$0xf]
        %v4817 = vld [vmem:[%s4812 + $0x10] sm:$0xf]
        %v4818 = vld [vmem:[%s4812 + $0x14] sm:$0x1]
        %v4819 = vld [vmem:[%s4812 + $0x18] sm:$0xf]
        %v4820 = vld [vmem:[%s4812 + $0x1c] sm:$0xf]
        %v4821 = vld [vmem:[%s4812 + $0x20] sm:$0x1]
        %v4822 = vld [vmem:[%s4812 + $0x24] sm:$0xf]
        %v4823 = vld [vmem:[%s4812 + $0x28] sm:$0xf]
        %v4824 = vld [vmem:[%s4812 + $0x2c] sm:$0x1]
        %v4825 = vld [vmem:[%s4812 + $0x30] sm:$0xf]
        %v4826 = vld [vmem:[%s4812 + $0x34] sm:$0xf]
        %v4827 = vld [vmem:[%s4812 + $0x38] sm:$0x1]
        %v4828 = vld [vmem:[%s4812 + $0x3c] sm:$0xf]
        %v4829 = vld [vmem:[%s4812 + $0x40] sm:$0xf]
        %v4830 = vld [vmem:[%s4812 + $0x44] sm:$0x1]
        %v4831 = vld [vmem:[%s4812 + $0x48] sm:$0xf]
        %v4832 = vld [vmem:[%s4812 + $0x4c] sm:$0xf]
        %v4833 = vld [vmem:[%s4812 + $0x50] sm:$0x1]
        %v4834 = vld [vmem:[%s4812 + $0x54] sm:$0xf]
        %v4835 = vld [vmem:[%s4812 + $0x58] sm:$0xf]
        %v4836 = vld [vmem:[%s4812 + $0x5c] sm:$0x1]
        %v4837 = vld [vmem:[%s4812 + $0x60] sm:$0xf]
        %v4838 = vld [vmem:[%s4812 + $0x64] sm:$0xf]
        %v4839 = vld [vmem:[%s4812 + $0x68] sm:$0x1]
        %v4840 = vld [vmem:[%s4812 + $0x6c] sm:$0xf]
        %v4841 = vld [vmem:[%s4812 + $0x70] sm:$0xf]
        %v4842 = vld [vmem:[%s4812 + $0x74] sm:$0x1]
        %v4843 = vld [vmem:[%s4812 + $0x78] sm:$0xf]
        %v4844 = vld [vmem:[%s4812 + $0x7c] sm:$0xf]
        %v4845 = vld [vmem:[%s4812 + $0x80] sm:$0x1]
        %v4846 = vld [vmem:[%s4812 + $0x84] sm:$0xf]
        %v4847 = vld [vmem:[%s4812 + $0x88] sm:$0xf]
        %v4848 = vld [vmem:[%s4812 + $0x8c] sm:$0x1]
        %v4849 = vld [vmem:[%s4812 + $0x90] sm:$0xf]
        %v4850 = vld [vmem:[%s4812 + $0x94] sm:$0xf]
        %v4851 = vld [vmem:[%s4812 + $0x98] sm:$0x1]
        %v4852 = vld [vmem:[%s4812 + $0x9c] sm:$0xf]
        %v4853 = vld [vmem:[%s4812 + $0xa0] sm:$0xf]
        %v4854 = vld [vmem:[%s4812 + $0xa4] sm:$0x1]
        %v4855 = vld [vmem:[%s4812 + $0xa8] sm:$0xf]
        %v4856 = vld [vmem:[%s4812 + $0xac] sm:$0xf]
        %v4857 = vld [vmem:[%s4812 + $0xb0] sm:$0x1]
        %v4858 = vld [vmem:[%s4812 + $0xb4] sm:$0xf]
        %v4859 = vld [vmem:[%s4812 + $0xb8] sm:$0xf]
        %v4860 = vld [vmem:[%s4812 + $0xbc] sm:$0x1]
        %v4893 = vunpack.c.l.b16 %v4813
        %v4894 = vunpack.c.l.b16 %v4814
        %v4895 = vunpack.c.l.b16 %v4816
        %v4896 = vunpack.c.l.b16 %v4817
        %v4897 = vunpack.c.l.b16 %v4819
        %v4898 = vunpack.c.l.b16 %v4820
        %v4899 = vunpack.c.l.b16 %v4822
        %v4900 = vunpack.c.l.b16 %v4823
        %v4901 = vunpack.c.l.b16 %v4825
        %v4902 = vunpack.c.l.b16 %v4826
        %v4903 = vunpack.c.l.b16 %v4828
        %v4904 = vunpack.c.l.b16 %v4829
        %v4905 = vunpack.c.l.b16 %v4831
        %v4906 = vunpack.c.l.b16 %v4832
        %v4907 = vunpack.c.l.b16 %v4834
        %v4908 = vunpack.c.l.b16 %v4835
        %v4909 = vunpack.c.l.b16 %v4837
        %v4910 = vunpack.c.l.b16 %v4838
        %v4911 = vunpack.c.l.b16 %v4840
        %v4912 = vunpack.c.l.b16 %v4841
        %v4913 = vunpack.c.l.b16 %v4843
        %v4914 = vunpack.c.l.b16 %v4844
        %v4915 = vunpack.c.l.b16 %v4846
        %v4916 = vunpack.c.l.b16 %v4847
        %v4917 = vunpack.c.l.b16 %v4849
        %v4918 = vunpack.c.l.b16 %v4850
        %v4919 = vunpack.c.l.b16 %v4852
        %v4920 = vunpack.c.l.b16 %v4853
        %v4921 = vunpack.c.l.b16 %v4855
        %v4922 = vunpack.c.l.b16 %v4856
        %v4923 = vunpack.c.l.b16 %v4858
        %v4924 = vunpack.c.l.b16 %v4859
        %v4925 = vpack.c.b16 %v4894, %v4893
        %v4926 = vpack.c.b16 %v4896, %v4895
        %v4927 = vpack.c.b16 %v4898, %v4897
        %v4928 = vpack.c.b16 %v4900, %v4899
        %v4929 = vpack.c.b16 %v4902, %v4901
        %v4930 = vpack.c.b16 %v4904, %v4903
        %v4931 = vpack.c.b16 %v4906, %v4905
        %v4932 = vpack.c.b16 %v4908, %v4907
        %v4933 = vpack.c.b16 %v4910, %v4909
        %v4934 = vpack.c.b16 %v4912, %v4911
        %v4935 = vpack.c.b16 %v4914, %v4913
        %v4936 = vpack.c.b16 %v4916, %v4915
        %v4937 = vpack.c.b16 %v4918, %v4917
        %v4938 = vpack.c.b16 %v4920, %v4919
        %v4939 = vpack.c.b16 %v4922, %v4921
        %v4940 = vpack.c.b16 %v4924, %v4923
        %v4957 = vunpack.c.l.b16 %v4815
        %v4958 = vunpack.c.l.b16 %v4818
        %v4959 = vunpack.c.l.b16 %v4821
        %v4960 = vunpack.c.l.b16 %v4824
        %v4961 = vunpack.c.l.b16 %v4827
        %v4962 = vunpack.c.l.b16 %v4830
        %v4963 = vunpack.c.l.b16 %v4833
        %v4964 = vunpack.c.l.b16 %v4836
        %v4965 = vunpack.c.l.b16 %v4839
        %v4966 = vunpack.c.l.b16 %v4842
        %v4967 = vunpack.c.l.b16 %v4845
        %v4968 = vunpack.c.l.b16 %v4848
        %v4969 = vunpack.c.l.b16 %v4851
        %v4970 = vunpack.c.l.b16 %v4854
        %v4971 = vunpack.c.l.b16 %v4857
        %v4972 = vunpack.c.l.b16 %v4860
        %v4973 = vpack.c.b16 %v4957, %v4957
        %v4974 = vpack.c.b16 %v4958, %v4958
        %v4975 = vpack.c.b16 %v4959, %v4959
        %v4976 = vpack.c.b16 %v4960, %v4960
        %v4977 = vpack.c.b16 %v4961, %v4961
        %v4978 = vpack.c.b16 %v4962, %v4962
        %v4979 = vpack.c.b16 %v4963, %v4963
        %v4980 = vpack.c.b16 %v4964, %v4964
        %v4981 = vpack.c.b16 %v4965, %v4965
        %v4982 = vpack.c.b16 %v4966, %v4966
        %v4983 = vpack.c.b16 %v4967, %v4967
        %v4984 = vpack.c.b16 %v4968, %v4968
        %v4985 = vpack.c.b16 %v4969, %v4969
        %v4986 = vpack.c.b16 %v4970, %v4970
        %v4987 = vpack.c.b16 %v4971, %v4971
        %v4988 = vpack.c.b16 %v4972, %v4972
        %v4990 = vshrl.u32 %v4925, 16
        %v4992 = vshll.u32 %v4925, 16
        %v4994 = vrot.slane %v4992, 1
        %v4995 = vor.u32 %v4990, %v4994
        %v4997 = vshll.u32 %v4973, 16
        %v4999 = vrot.slane %v4997, 1
        %v5000 = vsel %vm3028, %v4995, %v4999
        %v5002 = vshrl.u32 %v4926, 16
        %v5004 = vshll.u32 %v4926, 16
        %v5006 = vrot.slane %v5004, 1
        %v5007 = vor.u32 %v5002, %v5006
        %v5009 = vshll.u32 %v4974, 16
        %v5011 = vrot.slane %v5009, 1
        %v5012 = vsel %vm3028, %v5007, %v5011
        %v5014 = vshrl.u32 %v4927, 16
        %v5016 = vshll.u32 %v4927, 16
        %v5018 = vrot.slane %v5016, 1
        %v5019 = vor.u32 %v5014, %v5018
        %v5021 = vshll.u32 %v4975, 16
        %v5023 = vrot.slane %v5021, 1
        %v5024 = vsel %vm3028, %v5019, %v5023
        %v5026 = vshrl.u32 %v4928, 16
        %v5028 = vshll.u32 %v4928, 16
        %v5030 = vrot.slane %v5028, 1
        %v5031 = vor.u32 %v5026, %v5030
        %v5033 = vshll.u32 %v4976, 16
        %v5035 = vrot.slane %v5033, 1
        %v5036 = vsel %vm3028, %v5031, %v5035
        %v5038 = vshrl.u32 %v4929, 16
        %v5040 = vshll.u32 %v4929, 16
        %v5042 = vrot.slane %v5040, 1
        %v5043 = vor.u32 %v5038, %v5042
        %v5045 = vshll.u32 %v4977, 16
        %v5047 = vrot.slane %v5045, 1
        %v5048 = vsel %vm3028, %v5043, %v5047
        %v5050 = vshrl.u32 %v4930, 16
        %v5052 = vshll.u32 %v4930, 16
        %v5054 = vrot.slane %v5052, 1
        %v5055 = vor.u32 %v5050, %v5054
        %v5057 = vshll.u32 %v4978, 16
        %v5059 = vrot.slane %v5057, 1
        %v5060 = vsel %vm3028, %v5055, %v5059
        %v5062 = vshrl.u32 %v4931, 16
        %v5064 = vshll.u32 %v4931, 16
        %v5066 = vrot.slane %v5064, 1
        %v5067 = vor.u32 %v5062, %v5066
        %v5069 = vshll.u32 %v4979, 16
        %v5071 = vrot.slane %v5069, 1
        %v5072 = vsel %vm3028, %v5067, %v5071
        %v5074 = vshrl.u32 %v4932, 16
        %v5076 = vshll.u32 %v4932, 16
        %v5078 = vrot.slane %v5076, 1
        %v5079 = vor.u32 %v5074, %v5078
        %v5081 = vshll.u32 %v4980, 16
        %v5083 = vrot.slane %v5081, 1
        %v5084 = vsel %vm3028, %v5079, %v5083
        %v5086 = vshrl.u32 %v4933, 16
        %v5088 = vshll.u32 %v4933, 16
        %v5090 = vrot.slane %v5088, 1
        %v5091 = vor.u32 %v5086, %v5090
        %v5093 = vshll.u32 %v4981, 16
        %v5095 = vrot.slane %v5093, 1
        %v5096 = vsel %vm3028, %v5091, %v5095
        %v5098 = vshrl.u32 %v4934, 16
        %v5100 = vshll.u32 %v4934, 16
        %v5102 = vrot.slane %v5100, 1
        %v5103 = vor.u32 %v5098, %v5102
        %v5105 = vshll.u32 %v4982, 16
        %v5107 = vrot.slane %v5105, 1
        %v5108 = vsel %vm3028, %v5103, %v5107
        %v5110 = vshrl.u32 %v4935, 16
        %v5112 = vshll.u32 %v4935, 16
        %v5114 = vrot.slane %v5112, 1
        %v5115 = vor.u32 %v5110, %v5114
        %v5117 = vshll.u32 %v4983, 16
        %v5119 = vrot.slane %v5117, 1
        %v5120 = vsel %vm3028, %v5115, %v5119
        %v5122 = vshrl.u32 %v4936, 16
        %v5124 = vshll.u32 %v4936, 16
        %v5126 = vrot.slane %v5124, 1
        %v5127 = vor.u32 %v5122, %v5126
        %v5129 = vshll.u32 %v4984, 16
        %v5131 = vrot.slane %v5129, 1
        %v5132 = vsel %vm3028, %v5127, %v5131
        %v5134 = vshrl.u32 %v4937, 16
        %v5136 = vshll.u32 %v4937, 16
        %v5138 = vrot.slane %v5136, 1
        %v5139 = vor.u32 %v5134, %v5138
        %v5141 = vshll.u32 %v4985, 16
        %v5143 = vrot.slane %v5141, 1
        %v5144 = vsel %vm3028, %v5139, %v5143
        %v5146 = vshrl.u32 %v4938, 16
        %v5148 = vshll.u32 %v4938, 16
        %v5150 = vrot.slane %v5148, 1
        %v5151 = vor.u32 %v5146, %v5150
        %v5153 = vshll.u32 %v4986, 16
        %v5155 = vrot.slane %v5153, 1
        %v5156 = vsel %vm3028, %v5151, %v5155
        %v5158 = vshrl.u32 %v4939, 16
        %v5160 = vshll.u32 %v4939, 16
        %v5162 = vrot.slane %v5160, 1
        %v5163 = vor.u32 %v5158, %v5162
        %v5165 = vshll.u32 %v4987, 16
        %v5167 = vrot.slane %v5165, 1
        %v5168 = vsel %vm3028, %v5163, %v5167
        %v5170 = vshrl.u32 %v4940, 16
        %v5172 = vshll.u32 %v4940, 16
        %v5174 = vrot.slane %v5172, 1
        %v5175 = vor.u32 %v5170, %v5174
        %v5177 = vshll.u32 %v4988, 16
        %v5179 = vrot.slane %v5177, 1
        %v5180 = vsel %vm3028, %v5175, %v5179
        %5181 = vrot.lane.b32.xlu0 %v5000, 64
        %v5182 = vpop.permute.xlu0 %5181
        %5183 = vrot.lane.b32.xlu0 %v5012, 64
        %v5184 = vpop.permute.xlu0 %5183
        %5185 = vrot.lane.b32.xlu0 %v5024, 64
        %v5186 = vpop.permute.xlu0 %5185
        %5187 = vrot.lane.b32.xlu0 %v5036, 64
        %v5188 = vpop.permute.xlu0 %5187
        %5189 = vrot.lane.b32.xlu0 %v5048, 64
        %v5190 = vpop.permute.xlu0 %5189
        %5191 = vrot.lane.b32.xlu0 %v5060, 64
        %v5192 = vpop.permute.xlu0 %5191
        %5193 = vrot.lane.b32.xlu0 %v5072, 64
        %v5194 = vpop.permute.xlu0 %5193
        %5195 = vrot.lane.b32.xlu0 %v5084, 64
        %v5196 = vpop.permute.xlu0 %5195
        %5197 = vrot.lane.b32.xlu0 %v5096, 64
        %v5198 = vpop.permute.xlu0 %5197
        %5199 = vrot.lane.b32.xlu0 %v5108, 64
        %v5200 = vpop.permute.xlu0 %5199
        %5201 = vrot.lane.b32.xlu0 %v5120, 64
        %v5202 = vpop.permute.xlu0 %5201
        %5203 = vrot.lane.b32.xlu0 %v5132, 64
        %v5204 = vpop.permute.xlu0 %5203
        %5205 = vrot.lane.b32.xlu0 %v5144, 64
        %v5206 = vpop.permute.xlu0 %5205
        %5207 = vrot.lane.b32.xlu0 %v5156, 64
        %v5208 = vpop.permute.xlu0 %5207
        %5209 = vrot.lane.b32.xlu0 %v5168, 64
        %v5210 = vpop.permute.xlu0 %5209
        %5211 = vrot.lane.b32.xlu0 %v5180, 64
        %v5212 = vpop.permute.xlu0 %5211
        %v5213 = vrot.slane %v4925, 1
        %v5214 = vrot.slane %v4973, 1
        %v5215 = vsel %vm3253, %v5213, %v5214
        %v5216 = vrot.slane %v4926, 1
        %v5217 = vrot.slane %v4974, 1
        %v5218 = vsel %vm3253, %v5216, %v5217
        %v5219 = vrot.slane %v4927, 1
        %v5220 = vrot.slane %v4975, 1
        %v5221 = vsel %vm3253, %v5219, %v5220
        %v5222 = vrot.slane %v4928, 1
        %v5223 = vrot.slane %v4976, 1
        %v5224 = vsel %vm3253, %v5222, %v5223
        %v5225 = vrot.slane %v4929, 1
        %v5226 = vrot.slane %v4977, 1
        %v5227 = vsel %vm3253, %v5225, %v5226
        %v5228 = vrot.slane %v4930, 1
        %v5229 = vrot.slane %v4978, 1
        %v5230 = vsel %vm3253, %v5228, %v5229
        %v5231 = vrot.slane %v4931, 1
        %v5232 = vrot.slane %v4979, 1
        %v5233 = vsel %vm3253, %v5231, %v5232
        %v5234 = vrot.slane %v4932, 1
        %v5235 = vrot.slane %v4980, 1
        %v5236 = vsel %vm3253, %v5234, %v5235
        %v5237 = vrot.slane %v4933, 1
        %v5238 = vrot.slane %v4981, 1
        %v5239 = vsel %vm3253, %v5237, %v5238
        %v5240 = vrot.slane %v4934, 1
        %v5241 = vrot.slane %v4982, 1
        %v5242 = vsel %vm3253, %v5240, %v5241
        %v5243 = vrot.slane %v4935, 1
        %v5244 = vrot.slane %v4983, 1
        %v5245 = vsel %vm3253, %v5243, %v5244
        %v5246 = vrot.slane %v4936, 1
        %v5247 = vrot.slane %v4984, 1
        %v5248 = vsel %vm3253, %v5246, %v5247
        %v5249 = vrot.slane %v4937, 1
        %v5250 = vrot.slane %v4985, 1
        %v5251 = vsel %vm3253, %v5249, %v5250
        %v5252 = vrot.slane %v4938, 1
        %v5253 = vrot.slane %v4986, 1
        %v5254 = vsel %vm3253, %v5252, %v5253
        %v5255 = vrot.slane %v4939, 1
        %v5256 = vrot.slane %v4987, 1
        %v5257 = vsel %vm3253, %v5255, %v5256
        %v5258 = vrot.slane %v4940, 1
        %v5259 = vrot.slane %v4988, 1
        %v5260 = vsel %vm3253, %v5258, %v5259
        %v5262 = vsel %vm3302, %v4925, %v5182
        %v5265 = vsel %vm3302, %v4926, %v5184
        %v5268 = vsel %vm3302, %v4927, %v5186
        %v5271 = vsel %vm3302, %v4928, %v5188
        %v5274 = vsel %vm3302, %v4929, %v5190
        %v5277 = vsel %vm3302, %v4930, %v5192
        %v5280 = vsel %vm3302, %v4931, %v5194
        %v5283 = vsel %vm3302, %v4932, %v5196
        %v5286 = vsel %vm3302, %v4933, %v5198
        %v5289 = vsel %vm3302, %v4934, %v5200
        %v5292 = vsel %vm3302, %v4935, %v5202
        %v5295 = vsel %vm3302, %v4936, %v5204
        %v5298 = vsel %vm3302, %v4937, %v5206
        %v5301 = vsel %vm3302, %v4938, %v5208
        %v5304 = vsel %vm3302, %v4939, %v5210
        %v5307 = vsel %vm3302, %v4940, %v5212
        %s5309 = scalar_lea.vmem %s2, 192
        %v5310 = vld [vmem:[%s5309] sm:$0xf]
        %v5311 = vld [vmem:[%s5309 + $0x4] sm:$0xf]
        %v5312 = vld [vmem:[%s5309 + $0x8] sm:$0xf]
        %v5313 = vld [vmem:[%s5309 + $0xc] sm:$0xf]
        %v5314 = vld [vmem:[%s5309 + $0x10] sm:$0xf]
        %v5315 = vld [vmem:[%s5309 + $0x14] sm:$0xf]
        %v5316 = vld [vmem:[%s5309 + $0x18] sm:$0xf]
        %v5317 = vld [vmem:[%s5309 + $0x1c] sm:$0xf]
        %v5318 = vld [vmem:[%s5309 + $0x20] sm:$0xf]
        %v5319 = vld [vmem:[%s5309 + $0x24] sm:$0xf]
        %v5320 = vld [vmem:[%s5309 + $0x28] sm:$0xf]
        %v5321 = vld [vmem:[%s5309 + $0x2c] sm:$0xf]
        %v5322 = vld [vmem:[%s5309 + $0x30] sm:$0xf]
        %v5323 = vld [vmem:[%s5309 + $0x34] sm:$0xf]
        %v5324 = vld [vmem:[%s5309 + $0x38] sm:$0xf]
        %v5325 = vld [vmem:[%s5309 + $0x3c] sm:$0xf]
        %v5326 = vld [vmem:[%s5309 + $0x40] sm:$0xf]
        %v5327 = vld [vmem:[%s5309 + $0x44] sm:$0xf]
        %v5328 = vld [vmem:[%s5309 + $0x48] sm:$0xf]
        %v5329 = vld [vmem:[%s5309 + $0x4c] sm:$0xf]
        %v5330 = vld [vmem:[%s5309 + $0x50] sm:$0xf]
        %v5331 = vld [vmem:[%s5309 + $0x54] sm:$0xf]
        %v5332 = vld [vmem:[%s5309 + $0x58] sm:$0xf]
        %v5333 = vld [vmem:[%s5309 + $0x5c] sm:$0xf]
        %v5358 = vunpack.c.l.b16 %v5310
        %v5359 = vunpack.c.l.b16 %v5311
        %v5360 = vunpack.c.l.b16 %v5312
        %v5361 = vunpack.c.l.b16 %v5313
        %v5362 = vunpack.c.l.b16 %v5314
        %v5363 = vunpack.c.l.b16 %v5315
        %v5364 = vunpack.c.l.b16 %v5316
        %v5365 = vunpack.c.l.b16 %v5317
        %v5366 = vunpack.c.l.b16 %v5318
        %v5367 = vunpack.c.l.b16 %v5319
        %v5368 = vunpack.c.l.b16 %v5320
        %v5369 = vunpack.c.l.b16 %v5321
        %v5370 = vunpack.c.l.b16 %v5322
        %v5371 = vunpack.c.l.b16 %v5323
        %v5372 = vunpack.c.l.b16 %v5324
        %v5373 = vunpack.c.l.b16 %v5325
        %v5374 = vunpack.c.l.b16 %v5326
        %v5375 = vunpack.c.l.b16 %v5327
        %v5376 = vunpack.c.l.b16 %v5328
        %v5377 = vunpack.c.l.b16 %v5329
        %v5378 = vunpack.c.l.b16 %v5330
        %v5379 = vunpack.c.l.b16 %v5331
        %v5380 = vunpack.c.l.b16 %v5332
        %v5381 = vunpack.c.l.b16 %v5333
        %v5382 = vpack.c.b16 %v5359, %v5358
        %v5383 = vpack.c.b16 %v5361, %v5360
        %v5384 = vpack.c.b16 %v5363, %v5362
        %v5385 = vpack.c.b16 %v5365, %v5364
        %v5386 = vpack.c.b16 %v5367, %v5366
        %v5387 = vpack.c.b16 %v5369, %v5368
        %v5388 = vpack.c.b16 %v5371, %v5370
        %v5389 = vpack.c.b16 %v5373, %v5372
        %v5390 = vpack.c.b16 %v5375, %v5374
        %v5391 = vpack.c.b16 %v5377, %v5376
        %v5392 = vpack.c.b16 %v5379, %v5378
        %v5393 = vpack.c.b16 %v5381, %v5380
        %v5407 = vsel %vm3302, %v5215, 0
        %v5410 = vsel %vm3302, %v5218, 0
        %v5413 = vsel %vm3302, %v5221, 0
        %v5416 = vsel %vm3302, %v5224, 0
        %v5419 = vsel %vm3302, %v5227, 0
        %v5422 = vsel %vm3302, %v5230, 0
        %v5425 = vsel %vm3302, %v5233, 0
        %v5428 = vsel %vm3302, %v5236, 0
        %v5431 = vsel %vm3302, %v5239, 0
        %v5434 = vsel %vm3302, %v5242, 0
        %v5437 = vsel %vm3302, %v5245, 0
        %v5440 = vsel %vm3302, %v5248, 0
        %v5443 = vsel %vm3302, %v5251, 0
        %v5446 = vsel %vm3302, %v5254, 0
        %v5449 = vsel %vm3302, %v5257, 0
        %v5452 = vsel %vm3302, %v5260, 0
        %5454 = vmatpush.bf16.msra.mxu0 %v5389
        %5455 = vmatpush.bf16.msra.mxu0 %v5388
        %5456 = vmatpush.bf16.msra.mxu0 %v5387
        %5457 = vmatpush.bf16.msra.mxu0 %v5386
        %5458 = vmatpush.bf16.msra.mxu0 %v5385
        %5459 = vmatpush.bf16.msra.mxu0 %v5384
        %5460 = vmatpush.bf16.msra.mxu0 %v5383
        %5461 = vmatpush.bf16.msra.mxu0 %v5382
        %5462 = vmatmul.bf16.gmra.mxu0 %v5262
        %v5463 = vpop.f32.mrf.mxu0
        %v5464 = vadd.f32 0.0, %v5463
        %v5465 = vpop.f32.mrf.mxu0
        %v5466 = vadd.f32 0.0, %v5465
        %5467 = vmatmul.bf16.gmra.mxu0 %v5265
        %v5468 = vpop.f32.mrf.mxu0
        %v5469 = vadd.f32 0.0, %v5468
        %v5470 = vpop.f32.mrf.mxu0
        %v5471 = vadd.f32 0.0, %v5470
        %5472 = vmatmul.bf16.gmra.mxu0 %v5268
        %v5473 = vpop.f32.mrf.mxu0
        %v5474 = vadd.f32 0.0, %v5473
        %v5475 = vpop.f32.mrf.mxu0
        %v5476 = vadd.f32 0.0, %v5475
        %5477 = vmatmul.bf16.gmra.mxu0 %v5271
        %v5478 = vpop.f32.mrf.mxu0
        %v5479 = vadd.f32 0.0, %v5478
        %v5480 = vpop.f32.mrf.mxu0
        %v5481 = vadd.f32 0.0, %v5480
        %5482 = vmatmul.bf16.gmra.mxu0 %v5274
        %v5483 = vpop.f32.mrf.mxu0
        %v5484 = vadd.f32 0.0, %v5483
        %v5485 = vpop.f32.mrf.mxu0
        %v5486 = vadd.f32 0.0, %v5485
        %5487 = vmatmul.bf16.gmra.mxu0 %v5277
        %v5488 = vpop.f32.mrf.mxu0
        %v5489 = vadd.f32 0.0, %v5488
        %v5490 = vpop.f32.mrf.mxu0
        %v5491 = vadd.f32 0.0, %v5490
        %5492 = vmatmul.bf16.gmra.mxu0 %v5280
        %v5493 = vpop.f32.mrf.mxu0
        %v5494 = vadd.f32 0.0, %v5493
        %v5495 = vpop.f32.mrf.mxu0
        %v5496 = vadd.f32 0.0, %v5495
        %5497 = vmatmul.bf16.gmra.mxu0 %v5283
        %v5498 = vpop.f32.mrf.mxu0
        %v5499 = vadd.f32 0.0, %v5498
        %v5500 = vpop.f32.mrf.mxu0
        %v5501 = vadd.f32 0.0, %v5500
        %5502 = vmatmul.bf16.gmra.mxu0 %v5286
        %v5503 = vpop.f32.mrf.mxu0
        %v5504 = vadd.f32 0.0, %v5503
        %v5505 = vpop.f32.mrf.mxu0
        %v5506 = vadd.f32 0.0, %v5505
        %5507 = vmatmul.bf16.gmra.mxu0 %v5289
        %v5508 = vpop.f32.mrf.mxu0
        %v5509 = vadd.f32 0.0, %v5508
        %v5510 = vpop.f32.mrf.mxu0
        %v5511 = vadd.f32 0.0, %v5510
        %5512 = vmatmul.bf16.gmra.mxu0 %v5292
        %v5513 = vpop.f32.mrf.mxu0
        %v5514 = vadd.f32 0.0, %v5513
        %v5515 = vpop.f32.mrf.mxu0
        %v5516 = vadd.f32 0.0, %v5515
        %5517 = vmatmul.bf16.gmra.mxu0 %v5295
        %v5518 = vpop.f32.mrf.mxu0
        %v5519 = vadd.f32 0.0, %v5518
        %v5520 = vpop.f32.mrf.mxu0
        %v5521 = vadd.f32 0.0, %v5520
        %5522 = vmatmul.bf16.gmra.mxu0 %v5298
        %v5523 = vpop.f32.mrf.mxu0
        %v5524 = vadd.f32 0.0, %v5523
        %v5525 = vpop.f32.mrf.mxu0
        %v5526 = vadd.f32 0.0, %v5525
        %5527 = vmatmul.bf16.gmra.mxu0 %v5301
        %v5528 = vpop.f32.mrf.mxu0
        %v5529 = vadd.f32 0.0, %v5528
        %v5530 = vpop.f32.mrf.mxu0
        %v5531 = vadd.f32 0.0, %v5530
        %5532 = vmatmul.bf16.gmra.mxu0 %v5304
        %v5533 = vpop.f32.mrf.mxu0
        %v5534 = vadd.f32 0.0, %v5533
        %v5535 = vpop.f32.mrf.mxu0
        %v5536 = vadd.f32 0.0, %v5535
        %5537 = vmatmul.bf16.gmra.mxu0 %v5307
        %v5538 = vpop.f32.mrf.mxu0
        %v5539 = vadd.f32 0.0, %v5538
        %v5540 = vpop.f32.mrf.mxu0
        %v5541 = vadd.f32 0.0, %v5540
        %5542 = vdwg.mxu0
        %5543 = vmatpush.bf16.msra.mxu0 0
        %5544 = vmatpush.bf16.msra.mxu0 0
        %5545 = vmatpush.bf16.msra.mxu0 0
        %5546 = vmatpush.bf16.msra.mxu0 0
        %5547 = vmatpush.bf16.msra.mxu0 %v5393
        %5548 = vmatpush.bf16.msra.mxu0 %v5392
        %5549 = vmatpush.bf16.msra.mxu0 %v5391
        %5550 = vmatpush.bf16.msra.mxu0 %v5390
        %5551 = vmatmul.bf16.gmra.mxu0 %v5407
        %v5552 = vpop.f32.mrf.mxu0
        %v5553 = vadd.f32 %v5464, %v5552
        %v5554 = vpop.f32.mrf.mxu0
        %v5555 = vadd.f32 %v5466, %v5554
        %5556 = vmatmul.bf16.gmra.mxu0 %v5410
        %v5557 = vpop.f32.mrf.mxu0
        %v5558 = vadd.f32 %v5469, %v5557
        %v5559 = vpop.f32.mrf.mxu0
        %v5560 = vadd.f32 %v5471, %v5559
        %5561 = vmatmul.bf16.gmra.mxu0 %v5413
        %v5562 = vpop.f32.mrf.mxu0
        %v5563 = vadd.f32 %v5474, %v5562
        %v5564 = vpop.f32.mrf.mxu0
        %v5565 = vadd.f32 %v5476, %v5564
        %5566 = vmatmul.bf16.gmra.mxu0 %v5416
        %v5567 = vpop.f32.mrf.mxu0
        %v5568 = vadd.f32 %v5479, %v5567
        %v5569 = vpop.f32.mrf.mxu0
        %v5570 = vadd.f32 %v5481, %v5569
        %5571 = vmatmul.bf16.gmra.mxu0 %v5419
        %v5572 = vpop.f32.mrf.mxu0
        %v5573 = vadd.f32 %v5484, %v5572
        %v5574 = vpop.f32.mrf.mxu0
        %v5575 = vadd.f32 %v5486, %v5574
        %5576 = vmatmul.bf16.gmra.mxu0 %v5422
        %v5577 = vpop.f32.mrf.mxu0
        %v5578 = vadd.f32 %v5489, %v5577
        %v5579 = vpop.f32.mrf.mxu0
        %v5580 = vadd.f32 %v5491, %v5579
        %5581 = vmatmul.bf16.gmra.mxu0 %v5425
        %v5582 = vpop.f32.mrf.mxu0
        %v5583 = vadd.f32 %v5494, %v5582
        %v5584 = vpop.f32.mrf.mxu0
        %v5585 = vadd.f32 %v5496, %v5584
        %5586 = vmatmul.bf16.gmra.mxu0 %v5428
        %v5587 = vpop.f32.mrf.mxu0
        %v5588 = vadd.f32 %v5499, %v5587
        %v5589 = vpop.f32.mrf.mxu0
        %v5590 = vadd.f32 %v5501, %v5589
        %5591 = vmatmul.bf16.gmra.mxu0 %v5431
        %v5592 = vpop.f32.mrf.mxu0
        %v5593 = vadd.f32 %v5504, %v5592
        %v5594 = vpop.f32.mrf.mxu0
        %v5595 = vadd.f32 %v5506, %v5594
        %5596 = vmatmul.bf16.gmra.mxu0 %v5434
        %v5597 = vpop.f32.mrf.mxu0
        %v5598 = vadd.f32 %v5509, %v5597
        %v5599 = vpop.f32.mrf.mxu0
        %v5600 = vadd.f32 %v5511, %v5599
        %5601 = vmatmul.bf16.gmra.mxu0 %v5437
        %v5602 = vpop.f32.mrf.mxu0
        %v5603 = vadd.f32 %v5514, %v5602
        %v5604 = vpop.f32.mrf.mxu0
        %v5605 = vadd.f32 %v5516, %v5604
        %5606 = vmatmul.bf16.gmra.mxu0 %v5440
        %v5607 = vpop.f32.mrf.mxu0
        %v5608 = vadd.f32 %v5519, %v5607
        %v5609 = vpop.f32.mrf.mxu0
        %v5610 = vadd.f32 %v5521, %v5609
        %5611 = vmatmul.bf16.gmra.mxu0 %v5443
        %v5612 = vpop.f32.mrf.mxu0
        %v5613 = vadd.f32 %v5524, %v5612
        %v5614 = vpop.f32.mrf.mxu0
        %v5615 = vadd.f32 %v5526, %v5614
        %5616 = vmatmul.bf16.gmra.mxu0 %v5446
        %v5617 = vpop.f32.mrf.mxu0
        %v5618 = vadd.f32 %v5529, %v5617
        %v5619 = vpop.f32.mrf.mxu0
        %v5620 = vadd.f32 %v5531, %v5619
        %5621 = vmatmul.bf16.gmra.mxu0 %v5449
        %v5622 = vpop.f32.mrf.mxu0
        %v5623 = vadd.f32 %v5534, %v5622
        %v5624 = vpop.f32.mrf.mxu0
        %v5625 = vadd.f32 %v5536, %v5624
        %5626 = vmatmul.bf16.gmra.mxu0 %v5452
        %v5627 = vpop.f32.mrf.mxu0
        %v5628 = vadd.f32 %v5539, %v5627
        %v5629 = vpop.f32.mrf.mxu0
        %v5630 = vadd.f32 %v5541, %v5629
        %5631 = vdwg.mxu0
        %5664 = vrot.lane.b32.xlu0 %v5553, 64
        %v5665 = vpop.permute.xlu0 %5664
        %5666 = vrot.lane.b32.xlu0 %v5555, 64
        %v5667 = vpop.permute.xlu0 %5666
        %5668 = vrot.lane.b32.xlu0 %v5558, 64
        %v5669 = vpop.permute.xlu0 %5668
        %5670 = vrot.lane.b32.xlu0 %v5560, 64
        %v5671 = vpop.permute.xlu0 %5670
        %5672 = vrot.lane.b32.xlu0 %v5563, 64
        %v5673 = vpop.permute.xlu0 %5672
        %5674 = vrot.lane.b32.xlu0 %v5565, 64
        %v5675 = vpop.permute.xlu0 %5674
        %5676 = vrot.lane.b32.xlu0 %v5568, 64
        %v5677 = vpop.permute.xlu0 %5676
        %5678 = vrot.lane.b32.xlu0 %v5570, 64
        %v5679 = vpop.permute.xlu0 %5678
        %5680 = vrot.lane.b32.xlu0 %v5573, 64
        %v5681 = vpop.permute.xlu0 %5680
        %5682 = vrot.lane.b32.xlu0 %v5575, 64
        %v5683 = vpop.permute.xlu0 %5682
        %5684 = vrot.lane.b32.xlu0 %v5578, 64
        %v5685 = vpop.permute.xlu0 %5684
        %5686 = vrot.lane.b32.xlu0 %v5580, 64
        %v5687 = vpop.permute.xlu0 %5686
        %5688 = vrot.lane.b32.xlu0 %v5583, 64
        %v5689 = vpop.permute.xlu0 %5688
        %5690 = vrot.lane.b32.xlu0 %v5585, 64
        %v5691 = vpop.permute.xlu0 %5690
        %5692 = vrot.lane.b32.xlu0 %v5588, 64
        %v5693 = vpop.permute.xlu0 %5692
        %5694 = vrot.lane.b32.xlu0 %v5590, 64
        %v5695 = vpop.permute.xlu0 %5694
        %5696 = vrot.lane.b32.xlu0 %v5593, 64
        %v5697 = vpop.permute.xlu0 %5696
        %5698 = vrot.lane.b32.xlu0 %v5595, 64
        %v5699 = vpop.permute.xlu0 %5698
        %5700 = vrot.lane.b32.xlu0 %v5598, 64
        %v5701 = vpop.permute.xlu0 %5700
        %5702 = vrot.lane.b32.xlu0 %v5600, 64
        %v5703 = vpop.permute.xlu0 %5702
        %5704 = vrot.lane.b32.xlu0 %v5603, 64
        %v5705 = vpop.permute.xlu0 %5704
        %5706 = vrot.lane.b32.xlu0 %v5605, 64
        %v5707 = vpop.permute.xlu0 %5706
        %5708 = vrot.lane.b32.xlu0 %v5608, 64
        %v5709 = vpop.permute.xlu0 %5708
        %5710 = vrot.lane.b32.xlu0 %v5610, 64
        %v5711 = vpop.permute.xlu0 %5710
        %5712 = vrot.lane.b32.xlu0 %v5613, 64
        %v5713 = vpop.permute.xlu0 %5712
        %5714 = vrot.lane.b32.xlu0 %v5615, 64
        %v5715 = vpop.permute.xlu0 %5714
        %5716 = vrot.lane.b32.xlu0 %v5618, 64
        %v5717 = vpop.permute.xlu0 %5716
        %5718 = vrot.lane.b32.xlu0 %v5620, 64
        %v5719 = vpop.permute.xlu0 %5718
        %5720 = vrot.lane.b32.xlu0 %v5623, 64
        %v5721 = vpop.permute.xlu0 %5720
        %5722 = vrot.lane.b32.xlu0 %v5625, 64
        %v5723 = vpop.permute.xlu0 %5722
        %5724 = vrot.lane.b32.xlu0 %v5628, 64
        %v5725 = vpop.permute.xlu0 %5724
        %5726 = vrot.lane.b32.xlu0 %v5630, 64
        %v5727 = vpop.permute.xlu0 %5726
        %v5760 = vadd.f32 %v4780, %v5665
        %v5761 = vadd.f32 %v4781, %v5667
        %v5762 = vadd.f32 %v4782, %v5669
        %v5763 = vadd.f32 %v4783, %v5671
        %v5764 = vadd.f32 %v4784, %v5673
        %v5765 = vadd.f32 %v4785, %v5675
        %v5766 = vadd.f32 %v4786, %v5677
        %v5767 = vadd.f32 %v4787, %v5679
        %v5768 = vadd.f32 %v4788, %v5681
        %v5769 = vadd.f32 %v4789, %v5683
        %v5770 = vadd.f32 %v4790, %v5685
        %v5771 = vadd.f32 %v4791, %v5687
        %v5772 = vadd.f32 %v4792, %v5689
        %v5773 = vadd.f32 %v4793, %v5691
        %v5774 = vadd.f32 %v4794, %v5693
        %v5775 = vadd.f32 %v4795, %v5695
        %v5776 = vadd.f32 %v4796, %v5697
        %v5777 = vadd.f32 %v4797, %v5699
        %v5778 = vadd.f32 %v4798, %v5701
        %v5779 = vadd.f32 %v4799, %v5703
        %v5780 = vadd.f32 %v4800, %v5705
        %v5781 = vadd.f32 %v4801, %v5707
        %v5782 = vadd.f32 %v4802, %v5709
        %v5783 = vadd.f32 %v4803, %v5711
        %v5784 = vadd.f32 %v4804, %v5713
        %v5785 = vadd.f32 %v4805, %v5715
        %v5786 = vadd.f32 %v4806, %v5717
        %v5787 = vadd.f32 %v4807, %v5719
        %v5788 = vadd.f32 %v4808, %v5721
        %v5789 = vadd.f32 %v4809, %v5723
        %v5790 = vadd.f32 %v4810, %v5725
        %v5791 = vadd.f32 %v4811, %v5727
        %s5792 = scalar_lea.vmem %s4, 2
        %v5793 = vld [vmem:[%s5792] sm:$0x1]
        %v5795 = vperm.slane %v5793, 0
        %5796 = vrot.lane.b32.xlu0 %v5795, 64
        %v5797 = vpop.permute.xlu0 %5796
        %v5799 = vadd.f32 %v5760, %v5797
        %v5800 = vadd.f32 %v5761, %v5797
        %v5801 = vadd.f32 %v5762, %v5797
        %v5802 = vadd.f32 %v5763, %v5797
        %v5803 = vadd.f32 %v5764, %v5797
        %v5804 = vadd.f32 %v5765, %v5797
        %v5805 = vadd.f32 %v5766, %v5797
        %v5806 = vadd.f32 %v5767, %v5797
        %v5807 = vadd.f32 %v5768, %v5797
        %v5808 = vadd.f32 %v5769, %v5797
        %v5809 = vadd.f32 %v5770, %v5797
        %v5810 = vadd.f32 %v5771, %v5797
        %v5811 = vadd.f32 %v5772, %v5797
        %v5812 = vadd.f32 %v5773, %v5797
        %v5813 = vadd.f32 %v5774, %v5797
        %v5814 = vadd.f32 %v5775, %v5797
        %v5815 = vadd.f32 %v5776, %v5797
        %v5816 = vadd.f32 %v5777, %v5797
        %v5817 = vadd.f32 %v5778, %v5797
        %v5818 = vadd.f32 %v5779, %v5797
        %v5819 = vadd.f32 %v5780, %v5797
        %v5820 = vadd.f32 %v5781, %v5797
        %v5821 = vadd.f32 %v5782, %v5797
        %v5822 = vadd.f32 %v5783, %v5797
        %v5823 = vadd.f32 %v5784, %v5797
        %v5824 = vadd.f32 %v5785, %v5797
        %v5825 = vadd.f32 %v5786, %v5797
        %v5826 = vadd.f32 %v5787, %v5797
        %v5827 = vadd.f32 %v5788, %v5797
        %v5828 = vadd.f32 %v5789, %v5797
        %v5829 = vadd.f32 %v5790, %v5797
        %v5830 = vadd.f32 %v5791, %v5797
        %v5831 = vmax.f32 %v5799, 0.0
        %v5832 = vmax.f32 %v5800, 0.0
        %v5833 = vmax.f32 %v5801, 0.0
        %v5834 = vmax.f32 %v5802, 0.0
        %v5835 = vmax.f32 %v5803, 0.0
        %v5836 = vmax.f32 %v5804, 0.0
        %v5837 = vmax.f32 %v5805, 0.0
        %v5838 = vmax.f32 %v5806, 0.0
        %v5839 = vmax.f32 %v5807, 0.0
        %v5840 = vmax.f32 %v5808, 0.0
        %v5841 = vmax.f32 %v5809, 0.0
        %v5842 = vmax.f32 %v5810, 0.0
        %v5843 = vmax.f32 %v5811, 0.0
        %v5844 = vmax.f32 %v5812, 0.0
        %v5845 = vmax.f32 %v5813, 0.0
        %v5846 = vmax.f32 %v5814, 0.0
        %v5847 = vmax.f32 %v5815, 0.0
        %v5848 = vmax.f32 %v5816, 0.0
        %v5849 = vmax.f32 %v5817, 0.0
        %v5850 = vmax.f32 %v5818, 0.0
        %v5851 = vmax.f32 %v5819, 0.0
        %v5852 = vmax.f32 %v5820, 0.0
        %v5853 = vmax.f32 %v5821, 0.0
        %v5854 = vmax.f32 %v5822, 0.0
        %v5855 = vmax.f32 %v5823, 0.0
        %v5856 = vmax.f32 %v5824, 0.0
        %v5857 = vmax.f32 %v5825, 0.0
        %v5858 = vmax.f32 %v5826, 0.0
        %v5859 = vmax.f32 %v5827, 0.0
        %v5860 = vmax.f32 %v5828, 0.0
        %v5861 = vmax.f32 %v5829, 0.0
        %v5862 = vmax.f32 %v5830, 0.0
        %5863 = vst.msk [vmem:[#allocation3] sm:$0xf] %vm2323, 0
        %5864 = vst.msk [vmem:[#allocation3 + $0x4] sm:$0xf] %vm2323, 0
        %vm5865 = vcmask 517120
        %5866 = vst.msk [vmem:[#allocation3 + $0x8] sm:$0x3] %vm5865, 0
        %5867 = vst.msk [vmem:[#allocation3 + $0xc] sm:$0xf] %vm2323, 0
        %5868 = vst.msk [vmem:[#allocation3 + $0x10] sm:$0xf] %vm2323, 0
        %5869 = vst.msk [vmem:[#allocation3 + $0x14] sm:$0x3] %vm5865, 0
        %5870 = vst.msk [vmem:[#allocation3 + $0x18] sm:$0xf] %vm2323, 0
        %5871 = vst.msk [vmem:[#allocation3 + $0x1c] sm:$0xf] %vm2323, 0
        %5872 = vst.msk [vmem:[#allocation3 + $0x20] sm:$0x3] %vm5865, 0
        %5873 = vst.msk [vmem:[#allocation3 + $0x24] sm:$0xf] %vm2323, 0
        %5874 = vst.msk [vmem:[#allocation3 + $0x28] sm:$0xf] %vm2323, 0
        %5875 = vst.msk [vmem:[#allocation3 + $0x2c] sm:$0x3] %vm5865, 0
        %5876 = vst.msk [vmem:[#allocation3 + $0x30] sm:$0xf] %vm2323, 0
        %5877 = vst.msk [vmem:[#allocation3 + $0x34] sm:$0xf] %vm2323, 0
        %5878 = vst.msk [vmem:[#allocation3 + $0x38] sm:$0x3] %vm5865, 0
        %5879 = vst.msk [vmem:[#allocation3 + $0x3c] sm:$0xf] %vm2323, 0
        %5880 = vst.msk [vmem:[#allocation3 + $0x40] sm:$0xf] %vm2323, 0
        %5881 = vst.msk [vmem:[#allocation3 + $0x44] sm:$0x3] %vm5865, 0
        %5882 = vst.msk [vmem:[#allocation3 + $0x48] sm:$0xf] %vm2323, 0
        %5883 = vst.msk [vmem:[#allocation3 + $0x4c] sm:$0xf] %vm2323, 0
        %5884 = vst.msk [vmem:[#allocation3 + $0x50] sm:$0x3] %vm5865, 0
        %5885 = vst.msk [vmem:[#allocation3 + $0x54] sm:$0xf] %vm2323, 0
        %5886 = vst.msk [vmem:[#allocation3 + $0x58] sm:$0xf] %vm2323, 0
        %5887 = vst.msk [vmem:[#allocation3 + $0x5c] sm:$0x3] %vm5865, 0
        %5888 = vst.msk [vmem:[#allocation3 + $0x60] sm:$0xf] %vm2323, 0
        %5889 = vst.msk [vmem:[#allocation3 + $0x64] sm:$0xf] %vm2323, 0
        %5890 = vst.msk [vmem:[#allocation3 + $0x68] sm:$0x3] %vm5865, 0
        %5891 = vst.msk [vmem:[#allocation3 + $0x6c] sm:$0xf] %vm2323, 0
        %5892 = vst.msk [vmem:[#allocation3 + $0x70] sm:$0xf] %vm2323, 0
        %5893 = vst.msk [vmem:[#allocation3 + $0x74] sm:$0x3] %vm5865, 0
        %5894 = vst.msk [vmem:[#allocation3 + $0x78] sm:$0xf] %vm2323, 0
        %5895 = vst.msk [vmem:[#allocation3 + $0x7c] sm:$0xf] %vm2323, 0
        %5896 = vst.msk [vmem:[#allocation3 + $0x80] sm:$0x3] %vm5865, 0
        %5897 = vst.msk [vmem:[#allocation3 + $0x84] sm:$0xf] %vm2323, 0
        %5898 = vst.msk [vmem:[#allocation3 + $0x88] sm:$0xf] %vm2323, 0
        %5899 = vst.msk [vmem:[#allocation3 + $0x8c] sm:$0x3] %vm5865, 0
        %5900 = vst.msk [vmem:[#allocation3 + $0x90] sm:$0xf] %vm2323, 0
        %5901 = vst.msk [vmem:[#allocation3 + $0x94] sm:$0xf] %vm2323, 0
        %5902 = vst.msk [vmem:[#allocation3 + $0x98] sm:$0x3] %vm5865, 0
        %5903 = vst.msk [vmem:[#allocation3 + $0x9c] sm:$0xf] %vm2323, 0
        %5904 = vst.msk [vmem:[#allocation3 + $0xa0] sm:$0xf] %vm2323, 0
        %5905 = vst.msk [vmem:[#allocation3 + $0xa4] sm:$0x3] %vm5865, 0
        %5906 = vst.msk [vmem:[#allocation3 + $0xa8] sm:$0xf] %vm2323, 0
        %5907 = vst.msk [vmem:[#allocation3 + $0xac] sm:$0xf] %vm2323, 0
        %5908 = vst.msk [vmem:[#allocation3 + $0xb0] sm:$0x3] %vm5865, 0
        %5909 = vst.msk [vmem:[#allocation3 + $0xb4] sm:$0xf] %vm2323, 0
        %5910 = vst.msk [vmem:[#allocation3 + $0xb8] sm:$0xf] %vm2323, 0
        %5911 = vst.msk [vmem:[#allocation3 + $0xbc] sm:$0x3] %vm5865, 0
        %5912 = vst.msk [vmem:[#allocation3 + $0xc0] sm:$0xf] %vm2323, 0
        %5913 = vst.msk [vmem:[#allocation3 + $0xc4] sm:$0xf] %vm2323, 0
        %5914 = vst.msk [vmem:[#allocation3 + $0xc8] sm:$0x3] %vm5865, 0
        %5915 = vst.msk [vmem:[#allocation3 + $0xcc] sm:$0xf] %vm2323, 0
        %5916 = vst.msk [vmem:[#allocation3 + $0xd0] sm:$0xf] %vm2323, 0
        %5917 = vst.msk [vmem:[#allocation3 + $0xd4] sm:$0x3] %vm5865, 0
        %5918 = vst.msk [vmem:[#allocation3 + $0xd8] sm:$0xf] %vm2323, 0
        %5919 = vst.msk [vmem:[#allocation3 + $0xdc] sm:$0xf] %vm2323, 0
        %5920 = vst.msk [vmem:[#allocation3 + $0xe0] sm:$0x3] %vm5865, 0
        %5921 = vst.msk [vmem:[#allocation3 + $0xe4] sm:$0xf] %vm2323, 0
        %5922 = vst.msk [vmem:[#allocation3 + $0xe8] sm:$0xf] %vm2323, 0
        %5923 = vst.msk [vmem:[#allocation3 + $0xec] sm:$0x3] %vm5865, 0
        %v5924 = vpack.c.bf16 %v5831, %v5831
        %v5925 = vpack.c.bf16 %v5832, %v5832
        %v5926 = vpack.c.bf16 %v5833, %v5833
        %v5927 = vpack.c.bf16 %v5834, %v5834
        %v5928 = vpack.c.bf16 %v5835, %v5835
        %v5929 = vpack.c.bf16 %v5836, %v5836
        %v5930 = vpack.c.bf16 %v5837, %v5837
        %v5931 = vpack.c.bf16 %v5838, %v5838
        %v5932 = vpack.c.bf16 %v5839, %v5839
        %v5933 = vpack.c.bf16 %v5840, %v5840
        %v5934 = vpack.c.bf16 %v5841, %v5841
        %v5935 = vpack.c.bf16 %v5842, %v5842
        %v5936 = vpack.c.bf16 %v5843, %v5843
        %v5937 = vpack.c.bf16 %v5844, %v5844
        %v5938 = vpack.c.bf16 %v5845, %v5845
        %v5939 = vpack.c.bf16 %v5846, %v5846
        %v5940 = vpack.c.bf16 %v5847, %v5847
        %v5941 = vpack.c.bf16 %v5848, %v5848
        %v5942 = vpack.c.bf16 %v5849, %v5849
        %v5943 = vpack.c.bf16 %v5850, %v5850
        %v5944 = vpack.c.bf16 %v5851, %v5851
        %v5945 = vpack.c.bf16 %v5852, %v5852
        %v5946 = vpack.c.bf16 %v5853, %v5853
        %v5947 = vpack.c.bf16 %v5854, %v5854
        %v5948 = vpack.c.bf16 %v5855, %v5855
        %v5949 = vpack.c.bf16 %v5856, %v5856
        %v5950 = vpack.c.bf16 %v5857, %v5857
        %v5951 = vpack.c.bf16 %v5858, %v5858
        %v5952 = vpack.c.bf16 %v5859, %v5859
        %v5953 = vpack.c.bf16 %v5860, %v5860
        %v5954 = vpack.c.bf16 %v5861, %v5861
        %v5955 = vpack.c.bf16 %v5862, %v5862
        %vm5988 = vcmask 1040384
        %vm5989 = vcmask 1044484
        %vm5990 = vmor %vm5988, %vm5989
        %v5991 = vrot.slane %v5924, 7
        %v5992 = vrot.slane %v5991, 4
        %v5993 = vrot.slane %v5925, 7
        %v5994 = vsel %vm5990, %v5992, %v5993
        %v5995 = vrot.slane %v5993, 4
        %v5996 = vrot.slane %v5926, 7
        %v5997 = vrot.slane %v5996, 4
        %v5998 = vrot.slane %v5927, 7
        %v5999 = vsel %vm5990, %v5997, %v5998
        %v6000 = vrot.slane %v5998, 4
        %v6001 = vrot.slane %v5928, 7
        %v6002 = vrot.slane %v6001, 4
        %v6003 = vrot.slane %v5929, 7
        %v6004 = vsel %vm5990, %v6002, %v6003
        %v6005 = vrot.slane %v6003, 4
        %v6006 = vrot.slane %v5930, 7
        %v6007 = vrot.slane %v6006, 4
        %v6008 = vrot.slane %v5931, 7
        %v6009 = vsel %vm5990, %v6007, %v6008
        %v6010 = vrot.slane %v6008, 4
        %v6011 = vrot.slane %v5932, 7
        %v6012 = vrot.slane %v6011, 4
        %v6013 = vrot.slane %v5933, 7
        %v6014 = vsel %vm5990, %v6012, %v6013
        %v6015 = vrot.slane %v6013, 4
        %v6016 = vrot.slane %v5934, 7
        %v6017 = vrot.slane %v6016, 4
        %v6018 = vrot.slane %v5935, 7
        %v6019 = vsel %vm5990, %v6017, %v6018
        %v6020 = vrot.slane %v6018, 4
        %v6021 = vrot.slane %v5936, 7
        %v6022 = vrot.slane %v6021, 4
        %v6023 = vrot.slane %v5937, 7
        %v6024 = vsel %vm5990, %v6022, %v6023
        %v6025 = vrot.slane %v6023, 4
        %v6026 = vrot.slane %v5938, 7
        %v6027 = vrot.slane %v6026, 4
        %v6028 = vrot.slane %v5939, 7
        %v6029 = vsel %vm5990, %v6027, %v6028
        %v6030 = vrot.slane %v6028, 4
        %v6031 = vrot.slane %v5940, 7
        %v6032 = vrot.slane %v6031, 4
        %v6033 = vrot.slane %v5941, 7
        %v6034 = vsel %vm5990, %v6032, %v6033
        %v6035 = vrot.slane %v6033, 4
        %v6036 = vrot.slane %v5942, 7
        %v6037 = vrot.slane %v6036, 4
        %v6038 = vrot.slane %v5943, 7
        %v6039 = vsel %vm5990, %v6037, %v6038
        %v6040 = vrot.slane %v6038, 4
        %v6041 = vrot.slane %v5944, 7
        %v6042 = vrot.slane %v6041, 4
        %v6043 = vrot.slane %v5945, 7
        %v6044 = vsel %vm5990, %v6042, %v6043
        %v6045 = vrot.slane %v6043, 4
        %v6046 = vrot.slane %v5946, 7
        %v6047 = vrot.slane %v6046, 4
        %v6048 = vrot.slane %v5947, 7
        %v6049 = vsel %vm5990, %v6047, %v6048
        %v6050 = vrot.slane %v6048, 4
        %v6051 = vrot.slane %v5948, 7
        %v6052 = vrot.slane %v6051, 4
        %v6053 = vrot.slane %v5949, 7
        %v6054 = vsel %vm5990, %v6052, %v6053
        %v6055 = vrot.slane %v6053, 4
        %v6056 = vrot.slane %v5950, 7
        %v6057 = vrot.slane %v6056, 4
        %v6058 = vrot.slane %v5951, 7
        %v6059 = vsel %vm5990, %v6057, %v6058
        %v6060 = vrot.slane %v6058, 4
        %v6061 = vrot.slane %v5952, 7
        %v6062 = vrot.slane %v6061, 4
        %v6063 = vrot.slane %v5953, 7
        %v6064 = vsel %vm5990, %v6062, %v6063
        %v6065 = vrot.slane %v6063, 4
        %v6066 = vrot.slane %v5954, 7
        %v6067 = vrot.slane %v6066, 4
        %v6068 = vrot.slane %v5955, 7
        %v6069 = vsel %vm5990, %v6067, %v6068
        %v6070 = vrot.slane %v6068, 4
        %6071 = vrot.lane.b32.xlu0 %v5991, 64
        %v6072 = vpop.permute.xlu0 %6071
        %6073 = vrot.lane.b32.xlu0 %v5994, 64
        %v6074 = vpop.permute.xlu0 %6073
        %6075 = vrot.lane.b32.xlu0 %v5995, 64
        %v6076 = vpop.permute.xlu0 %6075
        %6077 = vrot.lane.b32.xlu0 %v5996, 64
        %v6078 = vpop.permute.xlu0 %6077
        %6079 = vrot.lane.b32.xlu0 %v5999, 64
        %v6080 = vpop.permute.xlu0 %6079
        %6081 = vrot.lane.b32.xlu0 %v6000, 64
        %v6082 = vpop.permute.xlu0 %6081
        %6083 = vrot.lane.b32.xlu0 %v6001, 64
        %v6084 = vpop.permute.xlu0 %6083
        %6085 = vrot.lane.b32.xlu0 %v6004, 64
        %v6086 = vpop.permute.xlu0 %6085
        %6087 = vrot.lane.b32.xlu0 %v6005, 64
        %v6088 = vpop.permute.xlu0 %6087
        %6089 = vrot.lane.b32.xlu0 %v6006, 64
        %v6090 = vpop.permute.xlu0 %6089
        %6091 = vrot.lane.b32.xlu0 %v6009, 64
        %v6092 = vpop.permute.xlu0 %6091
        %6093 = vrot.lane.b32.xlu0 %v6010, 64
        %v6094 = vpop.permute.xlu0 %6093
        %6095 = vrot.lane.b32.xlu0 %v6011, 64
        %v6096 = vpop.permute.xlu0 %6095
        %6097 = vrot.lane.b32.xlu0 %v6014, 64
        %v6098 = vpop.permute.xlu0 %6097
        %6099 = vrot.lane.b32.xlu0 %v6015, 64
        %v6100 = vpop.permute.xlu0 %6099
        %6101 = vrot.lane.b32.xlu0 %v6016, 64
        %v6102 = vpop.permute.xlu0 %6101
        %6103 = vrot.lane.b32.xlu0 %v6019, 64
        %v6104 = vpop.permute.xlu0 %6103
        %6105 = vrot.lane.b32.xlu0 %v6020, 64
        %v6106 = vpop.permute.xlu0 %6105
        %6107 = vrot.lane.b32.xlu0 %v6021, 64
        %v6108 = vpop.permute.xlu0 %6107
        %6109 = vrot.lane.b32.xlu0 %v6024, 64
        %v6110 = vpop.permute.xlu0 %6109
        %6111 = vrot.lane.b32.xlu0 %v6025, 64
        %v6112 = vpop.permute.xlu0 %6111
        %6113 = vrot.lane.b32.xlu0 %v6026, 64
        %v6114 = vpop.permute.xlu0 %6113
        %6115 = vrot.lane.b32.xlu0 %v6029, 64
        %v6116 = vpop.permute.xlu0 %6115
        %6117 = vrot.lane.b32.xlu0 %v6030, 64
        %v6118 = vpop.permute.xlu0 %6117
        %6119 = vrot.lane.b32.xlu0 %v6031, 64
        %v6120 = vpop.permute.xlu0 %6119
        %6121 = vrot.lane.b32.xlu0 %v6034, 64
        %v6122 = vpop.permute.xlu0 %6121
        %6123 = vrot.lane.b32.xlu0 %v6035, 64
        %v6124 = vpop.permute.xlu0 %6123
        %6125 = vrot.lane.b32.xlu0 %v6036, 64
        %v6126 = vpop.permute.xlu0 %6125
        %6127 = vrot.lane.b32.xlu0 %v6039, 64
        %v6128 = vpop.permute.xlu0 %6127
        %6129 = vrot.lane.b32.xlu0 %v6040, 64
        %v6130 = vpop.permute.xlu0 %6129
        %6131 = vrot.lane.b32.xlu0 %v6041, 64
        %v6132 = vpop.permute.xlu0 %6131
        %6133 = vrot.lane.b32.xlu0 %v6044, 64
        %v6134 = vpop.permute.xlu0 %6133
        %6135 = vrot.lane.b32.xlu0 %v6045, 64
        %v6136 = vpop.permute.xlu0 %6135
        %6137 = vrot.lane.b32.xlu0 %v6046, 64
        %v6138 = vpop.permute.xlu0 %6137
        %6139 = vrot.lane.b32.xlu0 %v6049, 64
        %v6140 = vpop.permute.xlu0 %6139
        %6141 = vrot.lane.b32.xlu0 %v6050, 64
        %v6142 = vpop.permute.xlu0 %6141
        %6143 = vrot.lane.b32.xlu0 %v6051, 64
        %v6144 = vpop.permute.xlu0 %6143
        %6145 = vrot.lane.b32.xlu0 %v6054, 64
        %v6146 = vpop.permute.xlu0 %6145
        %6147 = vrot.lane.b32.xlu0 %v6055, 64
        %v6148 = vpop.permute.xlu0 %6147
        %6149 = vrot.lane.b32.xlu0 %v6056, 64
        %v6150 = vpop.permute.xlu0 %6149
        %6151 = vrot.lane.b32.xlu0 %v6059, 64
        %v6152 = vpop.permute.xlu0 %6151
        %6153 = vrot.lane.b32.xlu0 %v6060, 64
        %v6154 = vpop.permute.xlu0 %6153
        %6155 = vrot.lane.b32.xlu0 %v6061, 64
        %v6156 = vpop.permute.xlu0 %6155
        %6157 = vrot.lane.b32.xlu0 %v6064, 64
        %v6158 = vpop.permute.xlu0 %6157
        %6159 = vrot.lane.b32.xlu0 %v6065, 64
        %v6160 = vpop.permute.xlu0 %6159
        %6161 = vrot.lane.b32.xlu0 %v6066, 64
        %v6162 = vpop.permute.xlu0 %6161
        %6163 = vrot.lane.b32.xlu0 %v6069, 64
        %v6164 = vpop.permute.xlu0 %6163
        %6165 = vrot.lane.b32.xlu0 %v6070, 64
        %v6166 = vpop.permute.xlu0 %6165
        %s6215 = scalar_lea.vmem [#allocation3], 24
        %vm6216 = vcmask 519169
        %6217 = vst.msk [vmem:[%s6215] sm:$0xe] %vm6216, %v6072
        %6218 = vst.msk [vmem:[%s6215 + $0x4] sm:$0xf] %vm2323, %v6074
        %6219 = vst.msk [vmem:[%s6215 + $0x8] sm:$0x1] %vm2326, %v6076
        %6220 = vst.msk [vmem:[%s6215 + $0xc] sm:$0xe] %vm6216, %v6078
        %6221 = vst.msk [vmem:[%s6215 + $0x10] sm:$0xf] %vm2323, %v6080
        %6222 = vst.msk [vmem:[%s6215 + $0x14] sm:$0x1] %vm2326, %v6082
        %6223 = vst.msk [vmem:[%s6215 + $0x18] sm:$0xe] %vm6216, %v6084
        %6224 = vst.msk [vmem:[%s6215 + $0x1c] sm:$0xf] %vm2323, %v6086
        %6225 = vst.msk [vmem:[%s6215 + $0x20] sm:$0x1] %vm2326, %v6088
        %6226 = vst.msk [vmem:[%s6215 + $0x24] sm:$0xe] %vm6216, %v6090
        %6227 = vst.msk [vmem:[%s6215 + $0x28] sm:$0xf] %vm2323, %v6092
        %6228 = vst.msk [vmem:[%s6215 + $0x2c] sm:$0x1] %vm2326, %v6094
        %6229 = vst.msk [vmem:[%s6215 + $0x30] sm:$0xe] %vm6216, %v6096
        %6230 = vst.msk [vmem:[%s6215 + $0x34] sm:$0xf] %vm2323, %v6098
        %6231 = vst.msk [vmem:[%s6215 + $0x38] sm:$0x1] %vm2326, %v6100
        %6232 = vst.msk [vmem:[%s6215 + $0x3c] sm:$0xe] %vm6216, %v6102
        %6233 = vst.msk [vmem:[%s6215 + $0x40] sm:$0xf] %vm2323, %v6104
        %6234 = vst.msk [vmem:[%s6215 + $0x44] sm:$0x1] %vm2326, %v6106
        %6235 = vst.msk [vmem:[%s6215 + $0x48] sm:$0xe] %vm6216, %v6108
        %6236 = vst.msk [vmem:[%s6215 + $0x4c] sm:$0xf] %vm2323, %v6110
        %6237 = vst.msk [vmem:[%s6215 + $0x50] sm:$0x1] %vm2326, %v6112
        %6238 = vst.msk [vmem:[%s6215 + $0x54] sm:$0xe] %vm6216, %v6114
        %6239 = vst.msk [vmem:[%s6215 + $0x58] sm:$0xf] %vm2323, %v6116
        %6240 = vst.msk [vmem:[%s6215 + $0x5c] sm:$0x1] %vm2326, %v6118
        %6241 = vst.msk [vmem:[%s6215 + $0x60] sm:$0xe] %vm6216, %v6120
        %6242 = vst.msk [vmem:[%s6215 + $0x64] sm:$0xf] %vm2323, %v6122
        %6243 = vst.msk [vmem:[%s6215 + $0x68] sm:$0x1] %vm2326, %v6124
        %6244 = vst.msk [vmem:[%s6215 + $0x6c] sm:$0xe] %vm6216, %v6126
        %6245 = vst.msk [vmem:[%s6215 + $0x70] sm:$0xf] %vm2323, %v6128
        %6246 = vst.msk [vmem:[%s6215 + $0x74] sm:$0x1] %vm2326, %v6130
        %6247 = vst.msk [vmem:[%s6215 + $0x78] sm:$0xe] %vm6216, %v6132
        %6248 = vst.msk [vmem:[%s6215 + $0x7c] sm:$0xf] %vm2323, %v6134
        %6249 = vst.msk [vmem:[%s6215 + $0x80] sm:$0x1] %vm2326, %v6136
        %6250 = vst.msk [vmem:[%s6215 + $0x84] sm:$0xe] %vm6216, %v6138
        %6251 = vst.msk [vmem:[%s6215 + $0x88] sm:$0xf] %vm2323, %v6140
        %6252 = vst.msk [vmem:[%s6215 + $0x8c] sm:$0x1] %vm2326, %v6142
        %6253 = vst.msk [vmem:[%s6215 + $0x90] sm:$0xe] %vm6216, %v6144
        %6254 = vst.msk [vmem:[%s6215 + $0x94] sm:$0xf] %vm2323, %v6146
        %6255 = vst.msk [vmem:[%s6215 + $0x98] sm:$0x1] %vm2326, %v6148
        %6256 = vst.msk [vmem:[%s6215 + $0x9c] sm:$0xe] %vm6216, %v6150
        %6257 = vst.msk [vmem:[%s6215 + $0xa0] sm:$0xf] %vm2323, %v6152
        %6258 = vst.msk [vmem:[%s6215 + $0xa4] sm:$0x1] %vm2326, %v6154
        %6259 = vst.msk [vmem:[%s6215 + $0xa8] sm:$0xe] %vm6216, %v6156
        %6260 = vst.msk [vmem:[%s6215 + $0xac] sm:$0xf] %vm2323, %v6158
        %6261 = vst.msk [vmem:[%s6215 + $0xb0] sm:$0x1] %vm2326, %v6160
        %6262 = vst.msk [vmem:[%s6215 + $0xb4] sm:$0xe] %vm6216, %v6162
        %6263 = vst.msk [vmem:[%s6215 + $0xb8] sm:$0xf] %vm2323, %v6164
        %6264 = vst.msk [vmem:[%s6215 + $0xbc] sm:$0x1] %vm2326, %v6166
        %v6265 = vld [vmem:[#allocation3] sm:$0xf]
        %v6266 = vld [vmem:[#allocation3 + $0x4] sm:$0xf]
        %v6267 = vld [vmem:[#allocation3 + $0x8] sm:$0x3]
        %v6268 = vld [vmem:[#allocation3 + $0xc] sm:$0xf]
        %v6269 = vld [vmem:[#allocation3 + $0x10] sm:$0xf]
        %v6270 = vld [vmem:[#allocation3 + $0x14] sm:$0x3]
        %v6271 = vld [vmem:[#allocation3 + $0x18] sm:$0xf]
        %v6272 = vld [vmem:[#allocation3 + $0x1c] sm:$0xf]
        %v6273 = vld [vmem:[#allocation3 + $0x20] sm:$0x3]
        %v6274 = vld [vmem:[#allocation3 + $0x24] sm:$0xf]
        %v6275 = vld [vmem:[#allocation3 + $0x28] sm:$0xf]
        %v6276 = vld [vmem:[#allocation3 + $0x2c] sm:$0x3]
        %v6277 = vld [vmem:[#allocation3 + $0x30] sm:$0xf]
        %v6278 = vld [vmem:[#allocation3 + $0x34] sm:$0xf]
        %v6279 = vld [vmem:[#allocation3 + $0x38] sm:$0x3]
        %v6280 = vld [vmem:[#allocation3 + $0x3c] sm:$0xf]
        %v6281 = vld [vmem:[#allocation3 + $0x40] sm:$0xf]
        %v6282 = vld [vmem:[#allocation3 + $0x44] sm:$0x3]
        %v6283 = vld [vmem:[#allocation3 + $0x48] sm:$0xf]
        %v6284 = vld [vmem:[#allocation3 + $0x4c] sm:$0xf]
        %v6285 = vld [vmem:[#allocation3 + $0x50] sm:$0x3]
        %v6286 = vld [vmem:[#allocation3 + $0x54] sm:$0xf]
        %v6287 = vld [vmem:[#allocation3 + $0x58] sm:$0xf]
        %v6288 = vld [vmem:[#allocation3 + $0x5c] sm:$0x3]
        %v6289 = vld [vmem:[#allocation3 + $0x60] sm:$0xf]
        %v6290 = vld [vmem:[#allocation3 + $0x64] sm:$0xf]
        %v6291 = vld [vmem:[#allocation3 + $0x68] sm:$0x3]
        %v6292 = vld [vmem:[#allocation3 + $0x6c] sm:$0xf]
        %v6293 = vld [vmem:[#allocation3 + $0x70] sm:$0xf]
        %v6294 = vld [vmem:[#allocation3 + $0x74] sm:$0x3]
        %v6295 = vld [vmem:[#allocation3 + $0x78] sm:$0xf]
        %v6296 = vld [vmem:[#allocation3 + $0x7c] sm:$0xf]
        %v6297 = vld [vmem:[#allocation3 + $0x80] sm:$0x3]
        %v6298 = vld [vmem:[#allocation3 + $0x84] sm:$0xf]
        %v6299 = vld [vmem:[#allocation3 + $0x88] sm:$0xf]
        %v6300 = vld [vmem:[#allocation3 + $0x8c] sm:$0x3]
        %v6301 = vld [vmem:[#allocation3 + $0x90] sm:$0xf]
        %v6302 = vld [vmem:[#allocation3 + $0x94] sm:$0xf]
        %v6303 = vld [vmem:[#allocation3 + $0x98] sm:$0x3]
        %v6304 = vld [vmem:[#allocation3 + $0x9c] sm:$0xf]
        %v6305 = vld [vmem:[#allocation3 + $0xa0] sm:$0xf]
        %v6306 = vld [vmem:[#allocation3 + $0xa4] sm:$0x3]
        %v6307 = vld [vmem:[#allocation3 + $0xa8] sm:$0xf]
        %v6308 = vld [vmem:[#allocation3 + $0xac] sm:$0xf]
        %v6309 = vld [vmem:[#allocation3 + $0xb0] sm:$0x3]
        %v6310 = vld [vmem:[#allocation3 + $0xb4] sm:$0xf]
        %v6311 = vld [vmem:[#allocation3 + $0xb8] sm:$0xf]
        %v6312 = vld [vmem:[#allocation3 + $0xbc] sm:$0x3]
        %v6345 = vunpack.c.l.b16 %v6265
        %v6346 = vunpack.c.l.b16 %v6266
        %v6347 = vunpack.c.l.b16 %v6268
        %v6348 = vunpack.c.l.b16 %v6269
        %v6349 = vunpack.c.l.b16 %v6271
        %v6350 = vunpack.c.l.b16 %v6272
        %v6351 = vunpack.c.l.b16 %v6274
        %v6352 = vunpack.c.l.b16 %v6275
        %v6353 = vunpack.c.l.b16 %v6277
        %v6354 = vunpack.c.l.b16 %v6278
        %v6355 = vunpack.c.l.b16 %v6280
        %v6356 = vunpack.c.l.b16 %v6281
        %v6357 = vunpack.c.l.b16 %v6283
        %v6358 = vunpack.c.l.b16 %v6284
        %v6359 = vunpack.c.l.b16 %v6286
        %v6360 = vunpack.c.l.b16 %v6287
        %v6361 = vunpack.c.l.b16 %v6289
        %v6362 = vunpack.c.l.b16 %v6290
        %v6363 = vunpack.c.l.b16 %v6292
        %v6364 = vunpack.c.l.b16 %v6293
        %v6365 = vunpack.c.l.b16 %v6295
        %v6366 = vunpack.c.l.b16 %v6296
        %v6367 = vunpack.c.l.b16 %v6298
        %v6368 = vunpack.c.l.b16 %v6299
        %v6369 = vunpack.c.l.b16 %v6301
        %v6370 = vunpack.c.l.b16 %v6302
        %v6371 = vunpack.c.l.b16 %v6304
        %v6372 = vunpack.c.l.b16 %v6305
        %v6373 = vunpack.c.l.b16 %v6307
        %v6374 = vunpack.c.l.b16 %v6308
        %v6375 = vunpack.c.l.b16 %v6310
        %v6376 = vunpack.c.l.b16 %v6311
        %v6377 = vpack.c.b16 %v6346, %v6345
        %v6378 = vpack.c.b16 %v6348, %v6347
        %v6379 = vpack.c.b16 %v6350, %v6349
        %v6380 = vpack.c.b16 %v6352, %v6351
        %v6381 = vpack.c.b16 %v6354, %v6353
        %v6382 = vpack.c.b16 %v6356, %v6355
        %v6383 = vpack.c.b16 %v6358, %v6357
        %v6384 = vpack.c.b16 %v6360, %v6359
        %v6385 = vpack.c.b16 %v6362, %v6361
        %v6386 = vpack.c.b16 %v6364, %v6363
        %v6387 = vpack.c.b16 %v6366, %v6365
        %v6388 = vpack.c.b16 %v6368, %v6367
        %v6389 = vpack.c.b16 %v6370, %v6369
        %v6390 = vpack.c.b16 %v6372, %v6371
        %v6391 = vpack.c.b16 %v6374, %v6373
        %v6392 = vpack.c.b16 %v6376, %v6375
        %v6409 = vunpack.c.l.b16 %v6267
        %v6410 = vunpack.c.l.b16 %v6270
        %v6411 = vunpack.c.l.b16 %v6273
        %v6412 = vunpack.c.l.b16 %v6276
        %v6413 = vunpack.c.l.b16 %v6279
        %v6414 = vunpack.c.l.b16 %v6282
        %v6415 = vunpack.c.l.b16 %v6285
        %v6416 = vunpack.c.l.b16 %v6288
        %v6417 = vunpack.c.l.b16 %v6291
        %v6418 = vunpack.c.l.b16 %v6294
        %v6419 = vunpack.c.l.b16 %v6297
        %v6420 = vunpack.c.l.b16 %v6300
        %v6421 = vunpack.c.l.b16 %v6303
        %v6422 = vunpack.c.l.b16 %v6306
        %v6423 = vunpack.c.l.b16 %v6309
        %v6424 = vunpack.c.l.b16 %v6312
        %v6425 = vpack.c.b16 %v6409, %v6409
        %v6426 = vpack.c.b16 %v6410, %v6410
        %v6427 = vpack.c.b16 %v6411, %v6411
        %v6428 = vpack.c.b16 %v6412, %v6412
        %v6429 = vpack.c.b16 %v6413, %v6413
        %v6430 = vpack.c.b16 %v6414, %v6414
        %v6431 = vpack.c.b16 %v6415, %v6415
        %v6432 = vpack.c.b16 %v6416, %v6416
        %v6433 = vpack.c.b16 %v6417, %v6417
        %v6434 = vpack.c.b16 %v6418, %v6418
        %v6435 = vpack.c.b16 %v6419, %v6419
        %v6436 = vpack.c.b16 %v6420, %v6420
        %v6437 = vpack.c.b16 %v6421, %v6421
        %v6438 = vpack.c.b16 %v6422, %v6422
        %v6439 = vpack.c.b16 %v6423, %v6423
        %v6440 = vpack.c.b16 %v6424, %v6424
        %v6442 = vshrl.u32 %v6377, 16
        %v6444 = vshll.u32 %v6377, 16
        %v6446 = vrot.slane %v6444, 1
        %v6447 = vor.u32 %v6442, %v6446
        %v6449 = vshll.u32 %v6425, 16
        %v6451 = vrot.slane %v6449, 1
        %v6452 = vsel %vm3028, %v6447, %v6451
        %v6454 = vshrl.u32 %v6378, 16
        %v6456 = vshll.u32 %v6378, 16
        %v6458 = vrot.slane %v6456, 1
        %v6459 = vor.u32 %v6454, %v6458
        %v6461 = vshll.u32 %v6426, 16
        %v6463 = vrot.slane %v6461, 1
        %v6464 = vsel %vm3028, %v6459, %v6463
        %v6466 = vshrl.u32 %v6379, 16
        %v6468 = vshll.u32 %v6379, 16
        %v6470 = vrot.slane %v6468, 1
        %v6471 = vor.u32 %v6466, %v6470
        %v6473 = vshll.u32 %v6427, 16
        %v6475 = vrot.slane %v6473, 1
        %v6476 = vsel %vm3028, %v6471, %v6475
        %v6478 = vshrl.u32 %v6380, 16
        %v6480 = vshll.u32 %v6380, 16
        %v6482 = vrot.slane %v6480, 1
        %v6483 = vor.u32 %v6478, %v6482
        %v6485 = vshll.u32 %v6428, 16
        %v6487 = vrot.slane %v6485, 1
        %v6488 = vsel %vm3028, %v6483, %v6487
        %v6490 = vshrl.u32 %v6381, 16
        %v6492 = vshll.u32 %v6381, 16
        %v6494 = vrot.slane %v6492, 1
        %v6495 = vor.u32 %v6490, %v6494
        %v6497 = vshll.u32 %v6429, 16
        %v6499 = vrot.slane %v6497, 1
        %v6500 = vsel %vm3028, %v6495, %v6499
        %v6502 = vshrl.u32 %v6382, 16
        %v6504 = vshll.u32 %v6382, 16
        %v6506 = vrot.slane %v6504, 1
        %v6507 = vor.u32 %v6502, %v6506
        %v6509 = vshll.u32 %v6430, 16
        %v6511 = vrot.slane %v6509, 1
        %v6512 = vsel %vm3028, %v6507, %v6511
        %v6514 = vshrl.u32 %v6383, 16
        %v6516 = vshll.u32 %v6383, 16
        %v6518 = vrot.slane %v6516, 1
        %v6519 = vor.u32 %v6514, %v6518
        %v6521 = vshll.u32 %v6431, 16
        %v6523 = vrot.slane %v6521, 1
        %v6524 = vsel %vm3028, %v6519, %v6523
        %v6526 = vshrl.u32 %v6384, 16
        %v6528 = vshll.u32 %v6384, 16
        %v6530 = vrot.slane %v6528, 1
        %v6531 = vor.u32 %v6526, %v6530
        %v6533 = vshll.u32 %v6432, 16
        %v6535 = vrot.slane %v6533, 1
        %v6536 = vsel %vm3028, %v6531, %v6535
        %v6538 = vshrl.u32 %v6385, 16
        %v6540 = vshll.u32 %v6385, 16
        %v6542 = vrot.slane %v6540, 1
        %v6543 = vor.u32 %v6538, %v6542
        %v6545 = vshll.u32 %v6433, 16
        %v6547 = vrot.slane %v6545, 1
        %v6548 = vsel %vm3028, %v6543, %v6547
        %v6550 = vshrl.u32 %v6386, 16
        %v6552 = vshll.u32 %v6386, 16
        %v6554 = vrot.slane %v6552, 1
        %v6555 = vor.u32 %v6550, %v6554
        %v6557 = vshll.u32 %v6434, 16
        %v6559 = vrot.slane %v6557, 1
        %v6560 = vsel %vm3028, %v6555, %v6559
        %v6562 = vshrl.u32 %v6387, 16
        %v6564 = vshll.u32 %v6387, 16
        %v6566 = vrot.slane %v6564, 1
        %v6567 = vor.u32 %v6562, %v6566
        %v6569 = vshll.u32 %v6435, 16
        %v6571 = vrot.slane %v6569, 1
        %v6572 = vsel %vm3028, %v6567, %v6571
        %v6574 = vshrl.u32 %v6388, 16
        %v6576 = vshll.u32 %v6388, 16
        %v6578 = vrot.slane %v6576, 1
        %v6579 = vor.u32 %v6574, %v6578
        %v6581 = vshll.u32 %v6436, 16
        %v6583 = vrot.slane %v6581, 1
        %v6584 = vsel %vm3028, %v6579, %v6583
        %v6586 = vshrl.u32 %v6389, 16
        %v6588 = vshll.u32 %v6389, 16
        %v6590 = vrot.slane %v6588, 1
        %v6591 = vor.u32 %v6586, %v6590
        %v6593 = vshll.u32 %v6437, 16
        %v6595 = vrot.slane %v6593, 1
        %v6596 = vsel %vm3028, %v6591, %v6595
        %v6598 = vshrl.u32 %v6390, 16
        %v6600 = vshll.u32 %v6390, 16
        %v6602 = vrot.slane %v6600, 1
        %v6603 = vor.u32 %v6598, %v6602
        %v6605 = vshll.u32 %v6438, 16
        %v6607 = vrot.slane %v6605, 1
        %v6608 = vsel %vm3028, %v6603, %v6607
        %v6610 = vshrl.u32 %v6391, 16
        %v6612 = vshll.u32 %v6391, 16
        %v6614 = vrot.slane %v6612, 1
        %v6615 = vor.u32 %v6610, %v6614
        %v6617 = vshll.u32 %v6439, 16
        %v6619 = vrot.slane %v6617, 1
        %v6620 = vsel %vm3028, %v6615, %v6619
        %v6622 = vshrl.u32 %v6392, 16
        %v6624 = vshll.u32 %v6392, 16
        %v6626 = vrot.slane %v6624, 1
        %v6627 = vor.u32 %v6622, %v6626
        %v6629 = vshll.u32 %v6440, 16
        %v6631 = vrot.slane %v6629, 1
        %v6632 = vsel %vm3028, %v6627, %v6631
        %6633 = vrot.lane.b32.xlu0 %v6452, 64
        %v6634 = vpop.permute.xlu0 %6633
        %6635 = vrot.lane.b32.xlu0 %v6464, 64
        %v6636 = vpop.permute.xlu0 %6635
        %6637 = vrot.lane.b32.xlu0 %v6476, 64
        %v6638 = vpop.permute.xlu0 %6637
        %6639 = vrot.lane.b32.xlu0 %v6488, 64
        %v6640 = vpop.permute.xlu0 %6639
        %6641 = vrot.lane.b32.xlu0 %v6500, 64
        %v6642 = vpop.permute.xlu0 %6641
        %6643 = vrot.lane.b32.xlu0 %v6512, 64
        %v6644 = vpop.permute.xlu0 %6643
        %6645 = vrot.lane.b32.xlu0 %v6524, 64
        %v6646 = vpop.permute.xlu0 %6645
        %6647 = vrot.lane.b32.xlu0 %v6536, 64
        %v6648 = vpop.permute.xlu0 %6647
        %6649 = vrot.lane.b32.xlu0 %v6548, 64
        %v6650 = vpop.permute.xlu0 %6649
        %6651 = vrot.lane.b32.xlu0 %v6560, 64
        %v6652 = vpop.permute.xlu0 %6651
        %6653 = vrot.lane.b32.xlu0 %v6572, 64
        %v6654 = vpop.permute.xlu0 %6653
        %6655 = vrot.lane.b32.xlu0 %v6584, 64
        %v6656 = vpop.permute.xlu0 %6655
        %6657 = vrot.lane.b32.xlu0 %v6596, 64
        %v6658 = vpop.permute.xlu0 %6657
        %6659 = vrot.lane.b32.xlu0 %v6608, 64
        %v6660 = vpop.permute.xlu0 %6659
        %6661 = vrot.lane.b32.xlu0 %v6620, 64
        %v6662 = vpop.permute.xlu0 %6661
        %6663 = vrot.lane.b32.xlu0 %v6632, 64
        %v6664 = vpop.permute.xlu0 %6663
        %v6665 = vrot.slane %v6377, 1
        %v6666 = vrot.slane %v6425, 1
        %v6667 = vsel %vm3253, %v6665, %v6666
        %v6668 = vrot.slane %v6378, 1
        %v6669 = vrot.slane %v6426, 1
        %v6670 = vsel %vm3253, %v6668, %v6669
        %v6671 = vrot.slane %v6379, 1
        %v6672 = vrot.slane %v6427, 1
        %v6673 = vsel %vm3253, %v6671, %v6672
        %v6674 = vrot.slane %v6380, 1
        %v6675 = vrot.slane %v6428, 1
        %v6676 = vsel %vm3253, %v6674, %v6675
        %v6677 = vrot.slane %v6381, 1
        %v6678 = vrot.slane %v6429, 1
        %v6679 = vsel %vm3253, %v6677, %v6678
        %v6680 = vrot.slane %v6382, 1
        %v6681 = vrot.slane %v6430, 1
        %v6682 = vsel %vm3253, %v6680, %v6681
        %v6683 = vrot.slane %v6383, 1
        %v6684 = vrot.slane %v6431, 1
        %v6685 = vsel %vm3253, %v6683, %v6684
        %v6686 = vrot.slane %v6384, 1
        %v6687 = vrot.slane %v6432, 1
        %v6688 = vsel %vm3253, %v6686, %v6687
        %v6689 = vrot.slane %v6385, 1
        %v6690 = vrot.slane %v6433, 1
        %v6691 = vsel %vm3253, %v6689, %v6690
        %v6692 = vrot.slane %v6386, 1
        %v6693 = vrot.slane %v6434, 1
        %v6694 = vsel %vm3253, %v6692, %v6693
        %v6695 = vrot.slane %v6387, 1
        %v6696 = vrot.slane %v6435, 1
        %v6697 = vsel %vm3253, %v6695, %v6696
        %v6698 = vrot.slane %v6388, 1
        %v6699 = vrot.slane %v6436, 1
        %v6700 = vsel %vm3253, %v6698, %v6699
        %v6701 = vrot.slane %v6389, 1
        %v6702 = vrot.slane %v6437, 1
        %v6703 = vsel %vm3253, %v6701, %v6702
        %v6704 = vrot.slane %v6390, 1
        %v6705 = vrot.slane %v6438, 1
        %v6706 = vsel %vm3253, %v6704, %v6705
        %v6707 = vrot.slane %v6391, 1
        %v6708 = vrot.slane %v6439, 1
        %v6709 = vsel %vm3253, %v6707, %v6708
        %v6710 = vrot.slane %v6392, 1
        %v6711 = vrot.slane %v6440, 1
        %v6712 = vsel %vm3253, %v6710, %v6711
        %vm6713 = vsmask.f32 6400
        %v6714 = vrot.slane %v6442, 1
        %v6715 = vrot.slane %v6444, 2
        %v6716 = vor.u32 %v6714, %v6715
        %v6717 = vshrl.u32 %v6425, 16
        %v6719 = vrot.slane %v6717, 1
        %v6720 = vrot.slane %v6449, 2
        %v6721 = vor.u32 %v6719, %v6720
        %v6722 = vsel %vm6713, %v6716, %v6721
        %v6723 = vrot.slane %v6454, 1
        %v6724 = vrot.slane %v6456, 2
        %v6725 = vor.u32 %v6723, %v6724
        %v6726 = vshrl.u32 %v6426, 16
        %v6728 = vrot.slane %v6726, 1
        %v6729 = vrot.slane %v6461, 2
        %v6730 = vor.u32 %v6728, %v6729
        %v6731 = vsel %vm6713, %v6725, %v6730
        %v6732 = vrot.slane %v6466, 1
        %v6733 = vrot.slane %v6468, 2
        %v6734 = vor.u32 %v6732, %v6733
        %v6735 = vshrl.u32 %v6427, 16
        %v6737 = vrot.slane %v6735, 1
        %v6738 = vrot.slane %v6473, 2
        %v6739 = vor.u32 %v6737, %v6738
        %v6740 = vsel %vm6713, %v6734, %v6739
        %v6741 = vrot.slane %v6478, 1
        %v6742 = vrot.slane %v6480, 2
        %v6743 = vor.u32 %v6741, %v6742
        %v6744 = vshrl.u32 %v6428, 16
        %v6746 = vrot.slane %v6744, 1
        %v6747 = vrot.slane %v6485, 2
        %v6748 = vor.u32 %v6746, %v6747
        %v6749 = vsel %vm6713, %v6743, %v6748
        %v6750 = vrot.slane %v6490, 1
        %v6751 = vrot.slane %v6492, 2
        %v6752 = vor.u32 %v6750, %v6751
        %v6753 = vshrl.u32 %v6429, 16
        %v6755 = vrot.slane %v6753, 1
        %v6756 = vrot.slane %v6497, 2
        %v6757 = vor.u32 %v6755, %v6756
        %v6758 = vsel %vm6713, %v6752, %v6757
        %v6759 = vrot.slane %v6502, 1
        %v6760 = vrot.slane %v6504, 2
        %v6761 = vor.u32 %v6759, %v6760
        %v6762 = vshrl.u32 %v6430, 16
        %v6764 = vrot.slane %v6762, 1
        %v6765 = vrot.slane %v6509, 2
        %v6766 = vor.u32 %v6764, %v6765
        %v6767 = vsel %vm6713, %v6761, %v6766
        %v6768 = vrot.slane %v6514, 1
        %v6769 = vrot.slane %v6516, 2
        %v6770 = vor.u32 %v6768, %v6769
        %v6771 = vshrl.u32 %v6431, 16
        %v6773 = vrot.slane %v6771, 1
        %v6774 = vrot.slane %v6521, 2
        %v6775 = vor.u32 %v6773, %v6774
        %v6776 = vsel %vm6713, %v6770, %v6775
        %v6777 = vrot.slane %v6526, 1
        %v6778 = vrot.slane %v6528, 2
        %v6779 = vor.u32 %v6777, %v6778
        %v6780 = vshrl.u32 %v6432, 16
        %v6782 = vrot.slane %v6780, 1
        %v6783 = vrot.slane %v6533, 2
        %v6784 = vor.u32 %v6782, %v6783
        %v6785 = vsel %vm6713, %v6779, %v6784
        %v6786 = vrot.slane %v6538, 1
        %v6787 = vrot.slane %v6540, 2
        %v6788 = vor.u32 %v6786, %v6787
        %v6789 = vshrl.u32 %v6433, 16
        %v6791 = vrot.slane %v6789, 1
        %v6792 = vrot.slane %v6545, 2
        %v6793 = vor.u32 %v6791, %v6792
        %v6794 = vsel %vm6713, %v6788, %v6793
        %v6795 = vrot.slane %v6550, 1
        %v6796 = vrot.slane %v6552, 2
        %v6797 = vor.u32 %v6795, %v6796
        %v6798 = vshrl.u32 %v6434, 16
        %v6800 = vrot.slane %v6798, 1
        %v6801 = vrot.slane %v6557, 2
        %v6802 = vor.u32 %v6800, %v6801
        %v6803 = vsel %vm6713, %v6797, %v6802
        %v6804 = vrot.slane %v6562, 1
        %v6805 = vrot.slane %v6564, 2
        %v6806 = vor.u32 %v6804, %v6805
        %v6807 = vshrl.u32 %v6435, 16
        %v6809 = vrot.slane %v6807, 1
        %v6810 = vrot.slane %v6569, 2
        %v6811 = vor.u32 %v6809, %v6810
        %v6812 = vsel %vm6713, %v6806, %v6811
        %v6813 = vrot.slane %v6574, 1
        %v6814 = vrot.slane %v6576, 2
        %v6815 = vor.u32 %v6813, %v6814
        %v6816 = vshrl.u32 %v6436, 16
        %v6818 = vrot.slane %v6816, 1
        %v6819 = vrot.slane %v6581, 2
        %v6820 = vor.u32 %v6818, %v6819
        %v6821 = vsel %vm6713, %v6815, %v6820
        %v6822 = vrot.slane %v6586, 1
        %v6823 = vrot.slane %v6588, 2
        %v6824 = vor.u32 %v6822, %v6823
        %v6825 = vshrl.u32 %v6437, 16
        %v6827 = vrot.slane %v6825, 1
        %v6828 = vrot.slane %v6593, 2
        %v6829 = vor.u32 %v6827, %v6828
        %v6830 = vsel %vm6713, %v6824, %v6829
        %v6831 = vrot.slane %v6598, 1
        %v6832 = vrot.slane %v6600, 2
        %v6833 = vor.u32 %v6831, %v6832
        %v6834 = vshrl.u32 %v6438, 16
        %v6836 = vrot.slane %v6834, 1
        %v6837 = vrot.slane %v6605, 2
        %v6838 = vor.u32 %v6836, %v6837
        %v6839 = vsel %vm6713, %v6833, %v6838
        %v6840 = vrot.slane %v6610, 1
        %v6841 = vrot.slane %v6612, 2
        %v6842 = vor.u32 %v6840, %v6841
        %v6843 = vshrl.u32 %v6439, 16
        %v6845 = vrot.slane %v6843, 1
        %v6846 = vrot.slane %v6617, 2
        %v6847 = vor.u32 %v6845, %v6846
        %v6848 = vsel %vm6713, %v6842, %v6847
        %v6849 = vrot.slane %v6622, 1
        %v6850 = vrot.slane %v6624, 2
        %v6851 = vor.u32 %v6849, %v6850
        %v6852 = vshrl.u32 %v6440, 16
        %v6854 = vrot.slane %v6852, 1
        %v6855 = vrot.slane %v6629, 2
        %v6856 = vor.u32 %v6854, %v6855
        %v6857 = vsel %vm6713, %v6851, %v6856
        %6858 = vrot.lane.b32.xlu0 %v6722, 64
        %v6859 = vpop.permute.xlu0 %6858
        %6860 = vrot.lane.b32.xlu0 %v6731, 64
        %v6861 = vpop.permute.xlu0 %6860
        %6862 = vrot.lane.b32.xlu0 %v6740, 64
        %v6863 = vpop.permute.xlu0 %6862
        %6864 = vrot.lane.b32.xlu0 %v6749, 64
        %v6865 = vpop.permute.xlu0 %6864
        %6866 = vrot.lane.b32.xlu0 %v6758, 64
        %v6867 = vpop.permute.xlu0 %6866
        %6868 = vrot.lane.b32.xlu0 %v6767, 64
        %v6869 = vpop.permute.xlu0 %6868
        %6870 = vrot.lane.b32.xlu0 %v6776, 64
        %v6871 = vpop.permute.xlu0 %6870
        %6872 = vrot.lane.b32.xlu0 %v6785, 64
        %v6873 = vpop.permute.xlu0 %6872
        %6874 = vrot.lane.b32.xlu0 %v6794, 64
        %v6875 = vpop.permute.xlu0 %6874
        %6876 = vrot.lane.b32.xlu0 %v6803, 64
        %v6877 = vpop.permute.xlu0 %6876
        %6878 = vrot.lane.b32.xlu0 %v6812, 64
        %v6879 = vpop.permute.xlu0 %6878
        %6880 = vrot.lane.b32.xlu0 %v6821, 64
        %v6881 = vpop.permute.xlu0 %6880
        %6882 = vrot.lane.b32.xlu0 %v6830, 64
        %v6883 = vpop.permute.xlu0 %6882
        %6884 = vrot.lane.b32.xlu0 %v6839, 64
        %v6885 = vpop.permute.xlu0 %6884
        %6886 = vrot.lane.b32.xlu0 %v6848, 64
        %v6887 = vpop.permute.xlu0 %6886
        %6888 = vrot.lane.b32.xlu0 %v6857, 64
        %v6889 = vpop.permute.xlu0 %6888
        %vm6890 = vcmask 1045504
        %v6891 = vrot.slane %v6377, 2
        %v6892 = vrot.slane %v6425, 2
        %v6893 = vsel %vm6890, %v6891, %v6892
        %v6894 = vrot.slane %v6378, 2
        %v6895 = vrot.slane %v6426, 2
        %v6896 = vsel %vm6890, %v6894, %v6895
        %v6897 = vrot.slane %v6379, 2
        %v6898 = vrot.slane %v6427, 2
        %v6899 = vsel %vm6890, %v6897, %v6898
        %v6900 = vrot.slane %v6380, 2
        %v6901 = vrot.slane %v6428, 2
        %v6902 = vsel %vm6890, %v6900, %v6901
        %v6903 = vrot.slane %v6381, 2
        %v6904 = vrot.slane %v6429, 2
        %v6905 = vsel %vm6890, %v6903, %v6904
        %v6906 = vrot.slane %v6382, 2
        %v6907 = vrot.slane %v6430, 2
        %v6908 = vsel %vm6890, %v6906, %v6907
        %v6909 = vrot.slane %v6383, 2
        %v6910 = vrot.slane %v6431, 2
        %v6911 = vsel %vm6890, %v6909, %v6910
        %v6912 = vrot.slane %v6384, 2
        %v6913 = vrot.slane %v6432, 2
        %v6914 = vsel %vm6890, %v6912, %v6913
        %v6915 = vrot.slane %v6385, 2
        %v6916 = vrot.slane %v6433, 2
        %v6917 = vsel %vm6890, %v6915, %v6916
        %v6918 = vrot.slane %v6386, 2
        %v6919 = vrot.slane %v6434, 2
        %v6920 = vsel %vm6890, %v6918, %v6919
        %v6921 = vrot.slane %v6387, 2
        %v6922 = vrot.slane %v6435, 2
        %v6923 = vsel %vm6890, %v6921, %v6922
        %v6924 = vrot.slane %v6388, 2
        %v6925 = vrot.slane %v6436, 2
        %v6926 = vsel %vm6890, %v6924, %v6925
        %v6927 = vrot.slane %v6389, 2
        %v6928 = vrot.slane %v6437, 2
        %v6929 = vsel %vm6890, %v6927, %v6928
        %v6930 = vrot.slane %v6390, 2
        %v6931 = vrot.slane %v6438, 2
        %v6932 = vsel %vm6890, %v6930, %v6931
        %v6933 = vrot.slane %v6391, 2
        %v6934 = vrot.slane %v6439, 2
        %v6935 = vsel %vm6890, %v6933, %v6934
        %v6936 = vrot.slane %v6392, 2
        %v6937 = vrot.slane %v6440, 2
        %v6938 = vsel %vm6890, %v6936, %v6937
        %v6940 = vsel %vm3302, %v6377, %v6634
        %v6943 = vsel %vm3302, %v6378, %v6636
        %v6946 = vsel %vm3302, %v6379, %v6638
        %v6949 = vsel %vm3302, %v6380, %v6640
        %v6952 = vsel %vm3302, %v6381, %v6642
        %v6955 = vsel %vm3302, %v6382, %v6644
        %v6958 = vsel %vm3302, %v6383, %v6646
        %v6961 = vsel %vm3302, %v6384, %v6648
        %v6964 = vsel %vm3302, %v6385, %v6650
        %v6967 = vsel %vm3302, %v6386, %v6652
        %v6970 = vsel %vm3302, %v6387, %v6654
        %v6973 = vsel %vm3302, %v6388, %v6656
        %v6976 = vsel %vm3302, %v6389, %v6658
        %v6979 = vsel %vm3302, %v6390, %v6660
        %v6982 = vsel %vm3302, %v6391, %v6662
        %v6985 = vsel %vm3302, %v6392, %v6664
        %v6989 = vsel %vm3302, %v6667, %v6859
        %v6993 = vsel %vm3302, %v6670, %v6861
        %v6997 = vsel %vm3302, %v6673, %v6863
        %v7001 = vsel %vm3302, %v6676, %v6865
        %v7005 = vsel %vm3302, %v6679, %v6867
        %v7009 = vsel %vm3302, %v6682, %v6869
        %v7013 = vsel %vm3302, %v6685, %v6871
        %v7017 = vsel %vm3302, %v6688, %v6873
        %v7021 = vsel %vm3302, %v6691, %v6875
        %v7025 = vsel %vm3302, %v6694, %v6877
        %v7029 = vsel %vm3302, %v6697, %v6879
        %v7033 = vsel %vm3302, %v6700, %v6881
        %v7037 = vsel %vm3302, %v6703, %v6883
        %v7041 = vsel %vm3302, %v6706, %v6885
        %v7045 = vsel %vm3302, %v6709, %v6887
        %v7049 = vsel %vm3302, %v6712, %v6889
        %v7051 = vld [vmem:[%s3] sm:$0xf]
        %v7052 = vld [vmem:[%s3 + $0x4] sm:$0xf]
        %v7053 = vld [vmem:[%s3 + $0x8] sm:$0xf]
        %v7054 = vld [vmem:[%s3 + $0xc] sm:$0xf]
        %v7055 = vld [vmem:[%s3 + $0x10] sm:$0xf]
        %v7056 = vld [vmem:[%s3 + $0x14] sm:$0xf]
        %v7057 = vld [vmem:[%s3 + $0x18] sm:$0xf]
        %v7058 = vld [vmem:[%s3 + $0x1c] sm:$0xf]
        %v7059 = vld [vmem:[%s3 + $0x20] sm:$0xf]
        %v7060 = vld [vmem:[%s3 + $0x24] sm:$0xf]
        %v7061 = vld [vmem:[%s3 + $0x28] sm:$0xf]
        %v7062 = vld [vmem:[%s3 + $0x2c] sm:$0xf]
        %v7063 = vld [vmem:[%s3 + $0x30] sm:$0xf]
        %v7064 = vld [vmem:[%s3 + $0x34] sm:$0xf]
        %v7065 = vld [vmem:[%s3 + $0x38] sm:$0xf]
        %v7066 = vld [vmem:[%s3 + $0x3c] sm:$0xf]
        %v7067 = vld [vmem:[%s3 + $0x40] sm:$0xf]
        %v7068 = vld [vmem:[%s3 + $0x44] sm:$0xf]
        %v7069 = vld [vmem:[%s3 + $0x48] sm:$0xf]
        %v7070 = vld [vmem:[%s3 + $0x4c] sm:$0xf]
        %v7071 = vld [vmem:[%s3 + $0x50] sm:$0xf]
        %v7072 = vld [vmem:[%s3 + $0x54] sm:$0xf]
        %v7073 = vld [vmem:[%s3 + $0x58] sm:$0xf]
        %v7074 = vld [vmem:[%s3 + $0x5c] sm:$0xf]
        %v7075 = vld [vmem:[%s3 + $0x60] sm:$0xf]
        %v7076 = vld [vmem:[%s3 + $0x64] sm:$0xf]
        %v7077 = vld [vmem:[%s3 + $0x68] sm:$0xf]
        %v7078 = vld [vmem:[%s3 + $0x6c] sm:$0xf]
        %v7079 = vld [vmem:[%s3 + $0x70] sm:$0xf]
        %v7080 = vld [vmem:[%s3 + $0x74] sm:$0xf]
        %v7081 = vld [vmem:[%s3 + $0x78] sm:$0xf]
        %v7082 = vld [vmem:[%s3 + $0x7c] sm:$0xf]
        %v7083 = vld [vmem:[%s3 + $0x80] sm:$0xf]
        %v7084 = vld [vmem:[%s3 + $0x84] sm:$0xf]
        %v7085 = vld [vmem:[%s3 + $0x88] sm:$0xf]
        %v7086 = vld [vmem:[%s3 + $0x8c] sm:$0xf]
        %v7087 = vld [vmem:[%s3 + $0x90] sm:$0xf]
        %v7088 = vld [vmem:[%s3 + $0x94] sm:$0xf]
        %v7089 = vld [vmem:[%s3 + $0x98] sm:$0xf]
        %v7090 = vld [vmem:[%s3 + $0x9c] sm:$0xf]
        %s7091 = scalar_lea.vmem [#allocation3], 12
        %v7092 = vld [vmem:[%s7091] sm:$0xf]
        %v7093 = vld [vmem:[%s7091 + $0x4] sm:$0xf]
        %v7094 = vld [vmem:[%s7091 + $0x8] sm:$0x3]
        %v7095 = vld [vmem:[%s7091 + $0xc] sm:$0xf]
        %v7096 = vld [vmem:[%s7091 + $0x10] sm:$0xf]
        %v7097 = vld [vmem:[%s7091 + $0x14] sm:$0x3]
        %v7098 = vld [vmem:[%s7091 + $0x18] sm:$0xf]
        %v7099 = vld [vmem:[%s7091 + $0x1c] sm:$0xf]
        %v7100 = vld [vmem:[%s7091 + $0x20] sm:$0x3]
        %v7101 = vld [vmem:[%s7091 + $0x24] sm:$0xf]
        %v7102 = vld [vmem:[%s7091 + $0x28] sm:$0xf]
        %v7103 = vld [vmem:[%s7091 + $0x2c] sm:$0x3]
        %v7104 = vld [vmem:[%s7091 + $0x30] sm:$0xf]
        %v7105 = vld [vmem:[%s7091 + $0x34] sm:$0xf]
        %v7106 = vld [vmem:[%s7091 + $0x38] sm:$0x3]
        %v7107 = vld [vmem:[%s7091 + $0x3c] sm:$0xf]
        %v7108 = vld [vmem:[%s7091 + $0x40] sm:$0xf]
        %v7109 = vld [vmem:[%s7091 + $0x44] sm:$0x3]
        %v7110 = vld [vmem:[%s7091 + $0x48] sm:$0xf]
        %v7111 = vld [vmem:[%s7091 + $0x4c] sm:$0xf]
        %v7112 = vld [vmem:[%s7091 + $0x50] sm:$0x3]
        %v7113 = vld [vmem:[%s7091 + $0x54] sm:$0xf]
        %v7114 = vld [vmem:[%s7091 + $0x58] sm:$0xf]
        %v7115 = vld [vmem:[%s7091 + $0x5c] sm:$0x3]
        %v7116 = vld [vmem:[%s7091 + $0x60] sm:$0xf]
        %v7117 = vld [vmem:[%s7091 + $0x64] sm:$0xf]
        %v7118 = vld [vmem:[%s7091 + $0x68] sm:$0x3]
        %v7119 = vld [vmem:[%s7091 + $0x6c] sm:$0xf]
        %v7120 = vld [vmem:[%s7091 + $0x70] sm:$0xf]
        %v7121 = vld [vmem:[%s7091 + $0x74] sm:$0x3]
        %v7122 = vld [vmem:[%s7091 + $0x78] sm:$0xf]
        %v7123 = vld [vmem:[%s7091 + $0x7c] sm:$0xf]
        %v7124 = vld [vmem:[%s7091 + $0x80] sm:$0x3]
        %v7125 = vld [vmem:[%s7091 + $0x84] sm:$0xf]
        %v7126 = vld [vmem:[%s7091 + $0x88] sm:$0xf]
        %v7127 = vld [vmem:[%s7091 + $0x8c] sm:$0x3]
        %v7128 = vld [vmem:[%s7091 + $0x90] sm:$0xf]
        %v7129 = vld [vmem:[%s7091 + $0x94] sm:$0xf]
        %v7130 = vld [vmem:[%s7091 + $0x98] sm:$0x3]
        %v7131 = vld [vmem:[%s7091 + $0x9c] sm:$0xf]
        %v7132 = vld [vmem:[%s7091 + $0xa0] sm:$0xf]
        %v7133 = vld [vmem:[%s7091 + $0xa4] sm:$0x3]
        %v7134 = vld [vmem:[%s7091 + $0xa8] sm:$0xf]
        %v7135 = vld [vmem:[%s7091 + $0xac] sm:$0xf]
        %v7136 = vld [vmem:[%s7091 + $0xb0] sm:$0x3]
        %v7137 = vld [vmem:[%s7091 + $0xb4] sm:$0xf]
        %v7138 = vld [vmem:[%s7091 + $0xb8] sm:$0xf]
        %v7139 = vld [vmem:[%s7091 + $0xbc] sm:$0x3]
        %v7172 = vunpack.c.l.b16 %v7092
        %v7173 = vunpack.c.l.b16 %v7093
        %v7174 = vunpack.c.l.b16 %v7095
        %v7175 = vunpack.c.l.b16 %v7096
        %v7176 = vunpack.c.l.b16 %v7098
        %v7177 = vunpack.c.l.b16 %v7099
        %v7178 = vunpack.c.l.b16 %v7101
        %v7179 = vunpack.c.l.b16 %v7102
        %v7180 = vunpack.c.l.b16 %v7104
        %v7181 = vunpack.c.l.b16 %v7105
        %v7182 = vunpack.c.l.b16 %v7107
        %v7183 = vunpack.c.l.b16 %v7108
        %v7184 = vunpack.c.l.b16 %v7110
        %v7185 = vunpack.c.l.b16 %v7111
        %v7186 = vunpack.c.l.b16 %v7113
        %v7187 = vunpack.c.l.b16 %v7114
        %v7188 = vunpack.c.l.b16 %v7116
        %v7189 = vunpack.c.l.b16 %v7117
        %v7190 = vunpack.c.l.b16 %v7119
        %v7191 = vunpack.c.l.b16 %v7120
        %v7192 = vunpack.c.l.b16 %v7122
        %v7193 = vunpack.c.l.b16 %v7123
        %v7194 = vunpack.c.l.b16 %v7125
        %v7195 = vunpack.c.l.b16 %v7126
        %v7196 = vunpack.c.l.b16 %v7128
        %v7197 = vunpack.c.l.b16 %v7129
        %v7198 = vunpack.c.l.b16 %v7131
        %v7199 = vunpack.c.l.b16 %v7132
        %v7200 = vunpack.c.l.b16 %v7134
        %v7201 = vunpack.c.l.b16 %v7135
        %v7202 = vunpack.c.l.b16 %v7137
        %v7203 = vunpack.c.l.b16 %v7138
        %v7204 = vpack.c.b16 %v7173, %v7172
        %v7205 = vpack.c.b16 %v7175, %v7174
        %v7206 = vpack.c.b16 %v7177, %v7176
        %v7207 = vpack.c.b16 %v7179, %v7178
        %v7208 = vpack.c.b16 %v7181, %v7180
        %v7209 = vpack.c.b16 %v7183, %v7182
        %v7210 = vpack.c.b16 %v7185, %v7184
        %v7211 = vpack.c.b16 %v7187, %v7186
        %v7212 = vpack.c.b16 %v7189, %v7188
        %v7213 = vpack.c.b16 %v7191, %v7190
        %v7214 = vpack.c.b16 %v7193, %v7192
        %v7215 = vpack.c.b16 %v7195, %v7194
        %v7216 = vpack.c.b16 %v7197, %v7196
        %v7217 = vpack.c.b16 %v7199, %v7198
        %v7218 = vpack.c.b16 %v7201, %v7200
        %v7219 = vpack.c.b16 %v7203, %v7202
        %v7236 = vunpack.c.l.b16 %v7094
        %v7237 = vunpack.c.l.b16 %v7097
        %v7238 = vunpack.c.l.b16 %v7100
        %v7239 = vunpack.c.l.b16 %v7103
        %v7240 = vunpack.c.l.b16 %v7106
        %v7241 = vunpack.c.l.b16 %v7109
        %v7242 = vunpack.c.l.b16 %v7112
        %v7243 = vunpack.c.l.b16 %v7115
        %v7244 = vunpack.c.l.b16 %v7118
        %v7245 = vunpack.c.l.b16 %v7121
        %v7246 = vunpack.c.l.b16 %v7124
        %v7247 = vunpack.c.l.b16 %v7127
        %v7248 = vunpack.c.l.b16 %v7130
        %v7249 = vunpack.c.l.b16 %v7133
        %v7250 = vunpack.c.l.b16 %v7136
        %v7251 = vunpack.c.l.b16 %v7139
        %v7252 = vpack.c.b16 %v7236, %v7236
        %v7253 = vpack.c.b16 %v7237, %v7237
        %v7254 = vpack.c.b16 %v7238, %v7238
        %v7255 = vpack.c.b16 %v7239, %v7239
        %v7256 = vpack.c.b16 %v7240, %v7240
        %v7257 = vpack.c.b16 %v7241, %v7241
        %v7258 = vpack.c.b16 %v7242, %v7242
        %v7259 = vpack.c.b16 %v7243, %v7243
        %v7260 = vpack.c.b16 %v7244, %v7244
        %v7261 = vpack.c.b16 %v7245, %v7245
        %v7262 = vpack.c.b16 %v7246, %v7246
        %v7263 = vpack.c.b16 %v7247, %v7247
        %v7264 = vpack.c.b16 %v7248, %v7248
        %v7265 = vpack.c.b16 %v7249, %v7249
        %v7266 = vpack.c.b16 %v7250, %v7250
        %v7267 = vpack.c.b16 %v7251, %v7251
        %v7269 = vshrl.u32 %v7204, 16
        %v7271 = vshll.u32 %v7204, 16
        %v7273 = vrot.slane %v7271, 1
        %v7274 = vor.u32 %v7269, %v7273
        %v7276 = vshll.u32 %v7252, 16
        %v7278 = vrot.slane %v7276, 1
        %v7279 = vsel %vm3028, %v7274, %v7278
        %v7281 = vshrl.u32 %v7205, 16
        %v7283 = vshll.u32 %v7205, 16
        %v7285 = vrot.slane %v7283, 1
        %v7286 = vor.u32 %v7281, %v7285
        %v7288 = vshll.u32 %v7253, 16
        %v7290 = vrot.slane %v7288, 1
        %v7291 = vsel %vm3028, %v7286, %v7290
        %v7293 = vshrl.u32 %v7206, 16
        %v7295 = vshll.u32 %v7206, 16
        %v7297 = vrot.slane %v7295, 1
        %v7298 = vor.u32 %v7293, %v7297
        %v7300 = vshll.u32 %v7254, 16
        %v7302 = vrot.slane %v7300, 1
        %v7303 = vsel %vm3028, %v7298, %v7302
        %v7305 = vshrl.u32 %v7207, 16
        %v7307 = vshll.u32 %v7207, 16
        %v7309 = vrot.slane %v7307, 1
        %v7310 = vor.u32 %v7305, %v7309
        %v7312 = vshll.u32 %v7255, 16
        %v7314 = vrot.slane %v7312, 1
        %v7315 = vsel %vm3028, %v7310, %v7314
        %v7317 = vshrl.u32 %v7208, 16
        %v7319 = vshll.u32 %v7208, 16
        %v7321 = vrot.slane %v7319, 1
        %v7322 = vor.u32 %v7317, %v7321
        %v7324 = vshll.u32 %v7256, 16
        %v7326 = vrot.slane %v7324, 1
        %v7327 = vsel %vm3028, %v7322, %v7326
        %v7329 = vshrl.u32 %v7209, 16
        %v7331 = vshll.u32 %v7209, 16
        %v7333 = vrot.slane %v7331, 1
        %v7334 = vor.u32 %v7329, %v7333
        %v7336 = vshll.u32 %v7257, 16
        %v7338 = vrot.slane %v7336, 1
        %v7339 = vsel %vm3028, %v7334, %v7338
        %v7341 = vshrl.u32 %v7210, 16
        %v7343 = vshll.u32 %v7210, 16
        %v7345 = vrot.slane %v7343, 1
        %v7346 = vor.u32 %v7341, %v7345
        %v7348 = vshll.u32 %v7258, 16
        %v7350 = vrot.slane %v7348, 1
        %v7351 = vsel %vm3028, %v7346, %v7350
        %v7353 = vshrl.u32 %v7211, 16
        %v7355 = vshll.u32 %v7211, 16
        %v7357 = vrot.slane %v7355, 1
        %v7358 = vor.u32 %v7353, %v7357
        %v7360 = vshll.u32 %v7259, 16
        %v7362 = vrot.slane %v7360, 1
        %v7363 = vsel %vm3028, %v7358, %v7362
        %v7365 = vshrl.u32 %v7212, 16
        %v7367 = vshll.u32 %v7212, 16
        %v7369 = vrot.slane %v7367, 1
        %v7370 = vor.u32 %v7365, %v7369
        %v7372 = vshll.u32 %v7260, 16
        %v7374 = vrot.slane %v7372, 1
        %v7375 = vsel %vm3028, %v7370, %v7374
        %v7377 = vshrl.u32 %v7213, 16
        %v7379 = vshll.u32 %v7213, 16
        %v7381 = vrot.slane %v7379, 1
        %v7382 = vor.u32 %v7377, %v7381
        %v7384 = vshll.u32 %v7261, 16
        %v7386 = vrot.slane %v7384, 1
        %v7387 = vsel %vm3028, %v7382, %v7386
        %v7389 = vshrl.u32 %v7214, 16
        %v7391 = vshll.u32 %v7214, 16
        %v7393 = vrot.slane %v7391, 1
        %v7394 = vor.u32 %v7389, %v7393
        %v7396 = vshll.u32 %v7262, 16
        %v7398 = vrot.slane %v7396, 1
        %v7399 = vsel %vm3028, %v7394, %v7398
        %v7401 = vshrl.u32 %v7215, 16
        %v7403 = vshll.u32 %v7215, 16
        %v7405 = vrot.slane %v7403, 1
        %v7406 = vor.u32 %v7401, %v7405
        %v7408 = vshll.u32 %v7263, 16
        %v7410 = vrot.slane %v7408, 1
        %v7411 = vsel %vm3028, %v7406, %v7410
        %v7413 = vshrl.u32 %v7216, 16
        %v7415 = vshll.u32 %v7216, 16
        %v7417 = vrot.slane %v7415, 1
        %v7418 = vor.u32 %v7413, %v7417
        %v7420 = vshll.u32 %v7264, 16
        %v7422 = vrot.slane %v7420, 1
        %v7423 = vsel %vm3028, %v7418, %v7422
        %v7425 = vshrl.u32 %v7217, 16
        %v7427 = vshll.u32 %v7217, 16
        %v7429 = vrot.slane %v7427, 1
        %v7430 = vor.u32 %v7425, %v7429
        %v7432 = vshll.u32 %v7265, 16
        %v7434 = vrot.slane %v7432, 1
        %v7435 = vsel %vm3028, %v7430, %v7434
        %v7437 = vshrl.u32 %v7218, 16
        %v7439 = vshll.u32 %v7218, 16
        %v7441 = vrot.slane %v7439, 1
        %v7442 = vor.u32 %v7437, %v7441
        %v7444 = vshll.u32 %v7266, 16
        %v7446 = vrot.slane %v7444, 1
        %v7447 = vsel %vm3028, %v7442, %v7446
        %v7449 = vshrl.u32 %v7219, 16
        %v7451 = vshll.u32 %v7219, 16
        %v7453 = vrot.slane %v7451, 1
        %v7454 = vor.u32 %v7449, %v7453
        %v7456 = vshll.u32 %v7267, 16
        %v7458 = vrot.slane %v7456, 1
        %v7459 = vsel %vm3028, %v7454, %v7458
        %7460 = vrot.lane.b32.xlu0 %v7279, 64
        %v7461 = vpop.permute.xlu0 %7460
        %7462 = vrot.lane.b32.xlu0 %v7291, 64
        %v7463 = vpop.permute.xlu0 %7462
        %7464 = vrot.lane.b32.xlu0 %v7303, 64
        %v7465 = vpop.permute.xlu0 %7464
        %7466 = vrot.lane.b32.xlu0 %v7315, 64
        %v7467 = vpop.permute.xlu0 %7466
        %7468 = vrot.lane.b32.xlu0 %v7327, 64
        %v7469 = vpop.permute.xlu0 %7468
        %7470 = vrot.lane.b32.xlu0 %v7339, 64
        %v7471 = vpop.permute.xlu0 %7470
        %7472 = vrot.lane.b32.xlu0 %v7351, 64
        %v7473 = vpop.permute.xlu0 %7472
        %7474 = vrot.lane.b32.xlu0 %v7363, 64
        %v7475 = vpop.permute.xlu0 %7474
        %7476 = vrot.lane.b32.xlu0 %v7375, 64
        %v7477 = vpop.permute.xlu0 %7476
        %7478 = vrot.lane.b32.xlu0 %v7387, 64
        %v7479 = vpop.permute.xlu0 %7478
        %7480 = vrot.lane.b32.xlu0 %v7399, 64
        %v7481 = vpop.permute.xlu0 %7480
        %7482 = vrot.lane.b32.xlu0 %v7411, 64
        %v7483 = vpop.permute.xlu0 %7482
        %7484 = vrot.lane.b32.xlu0 %v7423, 64
        %v7485 = vpop.permute.xlu0 %7484
        %7486 = vrot.lane.b32.xlu0 %v7435, 64
        %v7487 = vpop.permute.xlu0 %7486
        %7488 = vrot.lane.b32.xlu0 %v7447, 64
        %v7489 = vpop.permute.xlu0 %7488
        %7490 = vrot.lane.b32.xlu0 %v7459, 64
        %v7491 = vpop.permute.xlu0 %7490
        %v7492 = vrot.slane %v7204, 1
        %v7493 = vrot.slane %v7252, 1
        %v7494 = vsel %vm3253, %v7492, %v7493
        %v7495 = vrot.slane %v7205, 1
        %v7496 = vrot.slane %v7253, 1
        %v7497 = vsel %vm3253, %v7495, %v7496
        %v7498 = vrot.slane %v7206, 1
        %v7499 = vrot.slane %v7254, 1
        %v7500 = vsel %vm3253, %v7498, %v7499
        %v7501 = vrot.slane %v7207, 1
        %v7502 = vrot.slane %v7255, 1
        %v7503 = vsel %vm3253, %v7501, %v7502
        %v7504 = vrot.slane %v7208, 1
        %v7505 = vrot.slane %v7256, 1
        %v7506 = vsel %vm3253, %v7504, %v7505
        %v7507 = vrot.slane %v7209, 1
        %v7508 = vrot.slane %v7257, 1
        %v7509 = vsel %vm3253, %v7507, %v7508
        %v7510 = vrot.slane %v7210, 1
        %v7511 = vrot.slane %v7258, 1
        %v7512 = vsel %vm3253, %v7510, %v7511
        %v7513 = vrot.slane %v7211, 1
        %v7514 = vrot.slane %v7259, 1
        %v7515 = vsel %vm3253, %v7513, %v7514
        %v7516 = vrot.slane %v7212, 1
        %v7517 = vrot.slane %v7260, 1
        %v7518 = vsel %vm3253, %v7516, %v7517
        %v7519 = vrot.slane %v7213, 1
        %v7520 = vrot.slane %v7261, 1
        %v7521 = vsel %vm3253, %v7519, %v7520
        %v7522 = vrot.slane %v7214, 1
        %v7523 = vrot.slane %v7262, 1
        %v7524 = vsel %vm3253, %v7522, %v7523
        %v7525 = vrot.slane %v7215, 1
        %v7526 = vrot.slane %v7263, 1
        %v7527 = vsel %vm3253, %v7525, %v7526
        %v7528 = vrot.slane %v7216, 1
        %v7529 = vrot.slane %v7264, 1
        %v7530 = vsel %vm3253, %v7528, %v7529
        %v7531 = vrot.slane %v7217, 1
        %v7532 = vrot.slane %v7265, 1
        %v7533 = vsel %vm3253, %v7531, %v7532
        %v7534 = vrot.slane %v7218, 1
        %v7535 = vrot.slane %v7266, 1
        %v7536 = vsel %vm3253, %v7534, %v7535
        %v7537 = vrot.slane %v7219, 1
        %v7538 = vrot.slane %v7267, 1
        %v7539 = vsel %vm3253, %v7537, %v7538
        %v7540 = vrot.slane %v7269, 1
        %v7541 = vrot.slane %v7271, 2
        %v7542 = vor.u32 %v7540, %v7541
        %v7543 = vshrl.u32 %v7252, 16
        %v7545 = vrot.slane %v7543, 1
        %v7546 = vrot.slane %v7276, 2
        %v7547 = vor.u32 %v7545, %v7546
        %v7548 = vsel %vm6713, %v7542, %v7547
        %v7549 = vrot.slane %v7281, 1
        %v7550 = vrot.slane %v7283, 2
        %v7551 = vor.u32 %v7549, %v7550
        %v7552 = vshrl.u32 %v7253, 16
        %v7554 = vrot.slane %v7552, 1
        %v7555 = vrot.slane %v7288, 2
        %v7556 = vor.u32 %v7554, %v7555
        %v7557 = vsel %vm6713, %v7551, %v7556
        %v7558 = vrot.slane %v7293, 1
        %v7559 = vrot.slane %v7295, 2
        %v7560 = vor.u32 %v7558, %v7559
        %v7561 = vshrl.u32 %v7254, 16
        %v7563 = vrot.slane %v7561, 1
        %v7564 = vrot.slane %v7300, 2
        %v7565 = vor.u32 %v7563, %v7564
        %v7566 = vsel %vm6713, %v7560, %v7565
        %v7567 = vrot.slane %v7305, 1
        %v7568 = vrot.slane %v7307, 2
        %v7569 = vor.u32 %v7567, %v7568
        %v7570 = vshrl.u32 %v7255, 16
        %v7572 = vrot.slane %v7570, 1
        %v7573 = vrot.slane %v7312, 2
        %v7574 = vor.u32 %v7572, %v7573
        %v7575 = vsel %vm6713, %v7569, %v7574
        %v7576 = vrot.slane %v7317, 1
        %v7577 = vrot.slane %v7319, 2
        %v7578 = vor.u32 %v7576, %v7577
        %v7579 = vshrl.u32 %v7256, 16
        %v7581 = vrot.slane %v7579, 1
        %v7582 = vrot.slane %v7324, 2
        %v7583 = vor.u32 %v7581, %v7582
        %v7584 = vsel %vm6713, %v7578, %v7583
        %v7585 = vrot.slane %v7329, 1
        %v7586 = vrot.slane %v7331, 2
        %v7587 = vor.u32 %v7585, %v7586
        %v7588 = vshrl.u32 %v7257, 16
        %v7590 = vrot.slane %v7588, 1
        %v7591 = vrot.slane %v7336, 2
        %v7592 = vor.u32 %v7590, %v7591
        %v7593 = vsel %vm6713, %v7587, %v7592
        %v7594 = vrot.slane %v7341, 1
        %v7595 = vrot.slane %v7343, 2
        %v7596 = vor.u32 %v7594, %v7595
        %v7597 = vshrl.u32 %v7258, 16
        %v7599 = vrot.slane %v7597, 1
        %v7600 = vrot.slane %v7348, 2
        %v7601 = vor.u32 %v7599, %v7600
        %v7602 = vsel %vm6713, %v7596, %v7601
        %v7603 = vrot.slane %v7353, 1
        %v7604 = vrot.slane %v7355, 2
        %v7605 = vor.u32 %v7603, %v7604
        %v7606 = vshrl.u32 %v7259, 16
        %v7608 = vrot.slane %v7606, 1
        %v7609 = vrot.slane %v7360, 2
        %v7610 = vor.u32 %v7608, %v7609
        %v7611 = vsel %vm6713, %v7605, %v7610
        %v7612 = vrot.slane %v7365, 1
        %v7613 = vrot.slane %v7367, 2
        %v7614 = vor.u32 %v7612, %v7613
        %v7615 = vshrl.u32 %v7260, 16
        %v7617 = vrot.slane %v7615, 1
        %v7618 = vrot.slane %v7372, 2
        %v7619 = vor.u32 %v7617, %v7618
        %v7620 = vsel %vm6713, %v7614, %v7619
        %v7621 = vrot.slane %v7377, 1
        %v7622 = vrot.slane %v7379, 2
        %v7623 = vor.u32 %v7621, %v7622
        %v7624 = vshrl.u32 %v7261, 16
        %v7626 = vrot.slane %v7624, 1
        %v7627 = vrot.slane %v7384, 2
        %v7628 = vor.u32 %v7626, %v7627
        %v7629 = vsel %vm6713, %v7623, %v7628
        %v7630 = vrot.slane %v7389, 1
        %v7631 = vrot.slane %v7391, 2
        %v7632 = vor.u32 %v7630, %v7631
        %v7633 = vshrl.u32 %v7262, 16
        %v7635 = vrot.slane %v7633, 1
        %v7636 = vrot.slane %v7396, 2
        %v7637 = vor.u32 %v7635, %v7636
        %v7638 = vsel %vm6713, %v7632, %v7637
        %v7639 = vrot.slane %v7401, 1
        %v7640 = vrot.slane %v7403, 2
        %v7641 = vor.u32 %v7639, %v7640
        %v7642 = vshrl.u32 %v7263, 16
        %v7644 = vrot.slane %v7642, 1
        %v7645 = vrot.slane %v7408, 2
        %v7646 = vor.u32 %v7644, %v7645
        %v7647 = vsel %vm6713, %v7641, %v7646
        %v7648 = vrot.slane %v7413, 1
        %v7649 = vrot.slane %v7415, 2
        %v7650 = vor.u32 %v7648, %v7649
        %v7651 = vshrl.u32 %v7264, 16
        %v7653 = vrot.slane %v7651, 1
        %v7654 = vrot.slane %v7420, 2
        %v7655 = vor.u32 %v7653, %v7654
        %v7656 = vsel %vm6713, %v7650, %v7655
        %v7657 = vrot.slane %v7425, 1
        %v7658 = vrot.slane %v7427, 2
        %v7659 = vor.u32 %v7657, %v7658
        %v7660 = vshrl.u32 %v7265, 16
        %v7662 = vrot.slane %v7660, 1
        %v7663 = vrot.slane %v7432, 2
        %v7664 = vor.u32 %v7662, %v7663
        %v7665 = vsel %vm6713, %v7659, %v7664
        %v7666 = vrot.slane %v7437, 1
        %v7667 = vrot.slane %v7439, 2
        %v7668 = vor.u32 %v7666, %v7667
        %v7669 = vshrl.u32 %v7266, 16
        %v7671 = vrot.slane %v7669, 1
        %v7672 = vrot.slane %v7444, 2
        %v7673 = vor.u32 %v7671, %v7672
        %v7674 = vsel %vm6713, %v7668, %v7673
        %v7675 = vrot.slane %v7449, 1
        %v7676 = vrot.slane %v7451, 2
        %v7677 = vor.u32 %v7675, %v7676
        %v7678 = vshrl.u32 %v7267, 16
        %v7680 = vrot.slane %v7678, 1
        %v7681 = vrot.slane %v7456, 2
        %v7682 = vor.u32 %v7680, %v7681
        %v7683 = vsel %vm6713, %v7677, %v7682
        %7684 = vrot.lane.b32.xlu0 %v7548, 64
        %v7685 = vpop.permute.xlu0 %7684
        %7686 = vrot.lane.b32.xlu0 %v7557, 64
        %v7687 = vpop.permute.xlu0 %7686
        %7688 = vrot.lane.b32.xlu0 %v7566, 64
        %v7689 = vpop.permute.xlu0 %7688
        %7690 = vrot.lane.b32.xlu0 %v7575, 64
        %v7691 = vpop.permute.xlu0 %7690
        %7692 = vrot.lane.b32.xlu0 %v7584, 64
        %v7693 = vpop.permute.xlu0 %7692
        %7694 = vrot.lane.b32.xlu0 %v7593, 64
        %v7695 = vpop.permute.xlu0 %7694
        %7696 = vrot.lane.b32.xlu0 %v7602, 64
        %v7697 = vpop.permute.xlu0 %7696
        %7698 = vrot.lane.b32.xlu0 %v7611, 64
        %v7699 = vpop.permute.xlu0 %7698
        %7700 = vrot.lane.b32.xlu0 %v7620, 64
        %v7701 = vpop.permute.xlu0 %7700
        %7702 = vrot.lane.b32.xlu0 %v7629, 64
        %v7703 = vpop.permute.xlu0 %7702
        %7704 = vrot.lane.b32.xlu0 %v7638, 64
        %v7705 = vpop.permute.xlu0 %7704
        %7706 = vrot.lane.b32.xlu0 %v7647, 64
        %v7707 = vpop.permute.xlu0 %7706
        %7708 = vrot.lane.b32.xlu0 %v7656, 64
        %v7709 = vpop.permute.xlu0 %7708
        %7710 = vrot.lane.b32.xlu0 %v7665, 64
        %v7711 = vpop.permute.xlu0 %7710
        %7712 = vrot.lane.b32.xlu0 %v7674, 64
        %v7713 = vpop.permute.xlu0 %7712
        %7714 = vrot.lane.b32.xlu0 %v7683, 64
        %v7715 = vpop.permute.xlu0 %7714
        %v7716 = vrot.slane %v7204, 2
        %v7717 = vrot.slane %v7252, 2
        %v7718 = vsel %vm6890, %v7716, %v7717
        %v7719 = vrot.slane %v7205, 2
        %v7720 = vrot.slane %v7253, 2
        %v7721 = vsel %vm6890, %v7719, %v7720
        %v7722 = vrot.slane %v7206, 2
        %v7723 = vrot.slane %v7254, 2
        %v7724 = vsel %vm6890, %v7722, %v7723
        %v7725 = vrot.slane %v7207, 2
        %v7726 = vrot.slane %v7255, 2
        %v7727 = vsel %vm6890, %v7725, %v7726
        %v7728 = vrot.slane %v7208, 2
        %v7729 = vrot.slane %v7256, 2
        %v7730 = vsel %vm6890, %v7728, %v7729
        %v7731 = vrot.slane %v7209, 2
        %v7732 = vrot.slane %v7257, 2
        %v7733 = vsel %vm6890, %v7731, %v7732
        %v7734 = vrot.slane %v7210, 2
        %v7735 = vrot.slane %v7258, 2
        %v7736 = vsel %vm6890, %v7734, %v7735
        %v7737 = vrot.slane %v7211, 2
        %v7738 = vrot.slane %v7259, 2
        %v7739 = vsel %vm6890, %v7737, %v7738
        %v7740 = vrot.slane %v7212, 2
        %v7741 = vrot.slane %v7260, 2
        %v7742 = vsel %vm6890, %v7740, %v7741
        %v7743 = vrot.slane %v7213, 2
        %v7744 = vrot.slane %v7261, 2
        %v7745 = vsel %vm6890, %v7743, %v7744
        %v7746 = vrot.slane %v7214, 2
        %v7747 = vrot.slane %v7262, 2
        %v7748 = vsel %vm6890, %v7746, %v7747
        %v7749 = vrot.slane %v7215, 2
        %v7750 = vrot.slane %v7263, 2
        %v7751 = vsel %vm6890, %v7749, %v7750
        %v7752 = vrot.slane %v7216, 2
        %v7753 = vrot.slane %v7264, 2
        %v7754 = vsel %vm6890, %v7752, %v7753
        %v7755 = vrot.slane %v7217, 2
        %v7756 = vrot.slane %v7265, 2
        %v7757 = vsel %vm6890, %v7755, %v7756
        %v7758 = vrot.slane %v7218, 2
        %v7759 = vrot.slane %v7266, 2
        %v7760 = vsel %vm6890, %v7758, %v7759
        %v7761 = vrot.slane %v7219, 2
        %v7762 = vrot.slane %v7267, 2
        %v7763 = vsel %vm6890, %v7761, %v7762
        %v7765 = vsel %vm3302, %v7204, %v7461
        %v7768 = vsel %vm3302, %v7205, %v7463
        %v7771 = vsel %vm3302, %v7206, %v7465
        %v7774 = vsel %vm3302, %v7207, %v7467
        %v7777 = vsel %vm3302, %v7208, %v7469
        %v7780 = vsel %vm3302, %v7209, %v7471
        %v7783 = vsel %vm3302, %v7210, %v7473
        %v7786 = vsel %vm3302, %v7211, %v7475
        %v7789 = vsel %vm3302, %v7212, %v7477
        %v7792 = vsel %vm3302, %v7213, %v7479
        %v7795 = vsel %vm3302, %v7214, %v7481
        %v7798 = vsel %vm3302, %v7215, %v7483
        %v7801 = vsel %vm3302, %v7216, %v7485
        %v7804 = vsel %vm3302, %v7217, %v7487
        %v7807 = vsel %vm3302, %v7218, %v7489
        %v7810 = vsel %vm3302, %v7219, %v7491
        %v7814 = vsel %vm3302, %v7494, %v7685
        %v7818 = vsel %vm3302, %v7497, %v7687
        %v7822 = vsel %vm3302, %v7500, %v7689
        %v7826 = vsel %vm3302, %v7503, %v7691
        %v7830 = vsel %vm3302, %v7506, %v7693
        %v7834 = vsel %vm3302, %v7509, %v7695
        %v7838 = vsel %vm3302, %v7512, %v7697
        %v7842 = vsel %vm3302, %v7515, %v7699
        %v7846 = vsel %vm3302, %v7518, %v7701
        %v7850 = vsel %vm3302, %v7521, %v7703
        %v7854 = vsel %vm3302, %v7524, %v7705
        %v7858 = vsel %vm3302, %v7527, %v7707
        %v7862 = vsel %vm3302, %v7530, %v7709
        %v7866 = vsel %vm3302, %v7533, %v7711
        %v7870 = vsel %vm3302, %v7536, %v7713
        %v7874 = vsel %vm3302, %v7539, %v7715
        %s7876 = scalar_lea.vmem %s3, 160
        %v7877 = vld [vmem:[%s7876] sm:$0xf]
        %v7878 = vld [vmem:[%s7876 + $0x4] sm:$0xf]
        %v7879 = vld [vmem:[%s7876 + $0x8] sm:$0xf]
        %v7880 = vld [vmem:[%s7876 + $0xc] sm:$0xf]
        %v7881 = vld [vmem:[%s7876 + $0x10] sm:$0xf]
        %v7882 = vld [vmem:[%s7876 + $0x14] sm:$0xf]
        %v7883 = vld [vmem:[%s7876 + $0x18] sm:$0xf]
        %v7884 = vld [vmem:[%s7876 + $0x1c] sm:$0xf]
        %v7885 = vld [vmem:[%s7876 + $0x20] sm:$0xf]
        %v7886 = vld [vmem:[%s7876 + $0x24] sm:$0xf]
        %v7887 = vld [vmem:[%s7876 + $0x28] sm:$0xf]
        %v7888 = vld [vmem:[%s7876 + $0x2c] sm:$0xf]
        %v7889 = vld [vmem:[%s7876 + $0x30] sm:$0xf]
        %v7890 = vld [vmem:[%s7876 + $0x34] sm:$0xf]
        %v7891 = vld [vmem:[%s7876 + $0x38] sm:$0xf]
        %v7892 = vld [vmem:[%s7876 + $0x3c] sm:$0xf]
        %v7893 = vld [vmem:[%s7876 + $0x40] sm:$0xf]
        %v7894 = vld [vmem:[%s7876 + $0x44] sm:$0xf]
        %v7895 = vld [vmem:[%s7876 + $0x48] sm:$0xf]
        %v7896 = vld [vmem:[%s7876 + $0x4c] sm:$0xf]
        %v7897 = vld [vmem:[%s7876 + $0x50] sm:$0xf]
        %v7898 = vld [vmem:[%s7876 + $0x54] sm:$0xf]
        %v7899 = vld [vmem:[%s7876 + $0x58] sm:$0xf]
        %v7900 = vld [vmem:[%s7876 + $0x5c] sm:$0xf]
        %v7901 = vld [vmem:[%s7876 + $0x60] sm:$0xf]
        %v7902 = vld [vmem:[%s7876 + $0x64] sm:$0xf]
        %v7903 = vld [vmem:[%s7876 + $0x68] sm:$0xf]
        %v7904 = vld [vmem:[%s7876 + $0x6c] sm:$0xf]
        %v7905 = vld [vmem:[%s7876 + $0x70] sm:$0xf]
        %v7906 = vld [vmem:[%s7876 + $0x74] sm:$0xf]
        %v7907 = vld [vmem:[%s7876 + $0x78] sm:$0xf]
        %v7908 = vld [vmem:[%s7876 + $0x7c] sm:$0xf]
        %v7909 = vld [vmem:[%s7876 + $0x80] sm:$0xf]
        %v7910 = vld [vmem:[%s7876 + $0x84] sm:$0xf]
        %v7911 = vld [vmem:[%s7876 + $0x88] sm:$0xf]
        %v7912 = vld [vmem:[%s7876 + $0x8c] sm:$0xf]
        %v7913 = vld [vmem:[%s7876 + $0x90] sm:$0xf]
        %v7914 = vld [vmem:[%s7876 + $0x94] sm:$0xf]
        %v7915 = vld [vmem:[%s7876 + $0x98] sm:$0xf]
        %v7916 = vld [vmem:[%s7876 + $0x9c] sm:$0xf]
        %v7957 = vunpack.c.l.b16 %v7877
        %v7958 = vunpack.c.l.b16 %v7878
        %v7959 = vunpack.c.l.b16 %v7879
        %v7960 = vunpack.c.l.b16 %v7880
        %v7961 = vunpack.c.l.b16 %v7881
        %v7962 = vunpack.c.l.b16 %v7882
        %v7963 = vunpack.c.l.b16 %v7883
        %v7964 = vunpack.c.l.b16 %v7884
        %v7965 = vunpack.c.l.b16 %v7885
        %v7966 = vunpack.c.l.b16 %v7886
        %v7967 = vunpack.c.l.b16 %v7887
        %v7968 = vunpack.c.l.b16 %v7888
        %v7969 = vunpack.c.l.b16 %v7889
        %v7970 = vunpack.c.l.b16 %v7890
        %v7971 = vunpack.c.l.b16 %v7891
        %v7972 = vunpack.c.l.b16 %v7892
        %v7973 = vunpack.c.l.b16 %v7893
        %v7974 = vunpack.c.l.b16 %v7894
        %v7975 = vunpack.c.l.b16 %v7895
        %v7976 = vunpack.c.l.b16 %v7896
        %v7977 = vunpack.c.l.b16 %v7897
        %v7978 = vunpack.c.l.b16 %v7898
        %v7979 = vunpack.c.l.b16 %v7899
        %v7980 = vunpack.c.l.b16 %v7900
        %v7981 = vunpack.c.l.b16 %v7901
        %v7982 = vunpack.c.l.b16 %v7902
        %v7983 = vunpack.c.l.b16 %v7903
        %v7984 = vunpack.c.l.b16 %v7904
        %v7985 = vunpack.c.l.b16 %v7905
        %v7986 = vunpack.c.l.b16 %v7906
        %v7987 = vunpack.c.l.b16 %v7907
        %v7988 = vunpack.c.l.b16 %v7908
        %v7989 = vunpack.c.l.b16 %v7909
        %v7990 = vunpack.c.l.b16 %v7910
        %v7991 = vunpack.c.l.b16 %v7911
        %v7992 = vunpack.c.l.b16 %v7912
        %v7993 = vunpack.c.l.b16 %v7913
        %v7994 = vunpack.c.l.b16 %v7914
        %v7995 = vunpack.c.l.b16 %v7915
        %v7996 = vunpack.c.l.b16 %v7916
        %v7997 = vpack.c.b16 %v7958, %v7957
        %v7998 = vpack.c.b16 %v7960, %v7959
        %v7999 = vpack.c.b16 %v7962, %v7961
        %v8000 = vpack.c.b16 %v7964, %v7963
        %v8001 = vpack.c.b16 %v7966, %v7965
        %v8002 = vpack.c.b16 %v7968, %v7967
        %v8003 = vpack.c.b16 %v7970, %v7969
        %v8004 = vpack.c.b16 %v7972, %v7971
        %v8005 = vpack.c.b16 %v7974, %v7973
        %v8006 = vpack.c.b16 %v7976, %v7975
        %v8007 = vpack.c.b16 %v7978, %v7977
        %v8008 = vpack.c.b16 %v7980, %v7979
        %v8009 = vpack.c.b16 %v7982, %v7981
        %v8010 = vpack.c.b16 %v7984, %v7983
        %v8011 = vpack.c.b16 %v7986, %v7985
        %v8012 = vpack.c.b16 %v7988, %v7987
        %v8013 = vpack.c.b16 %v7990, %v7989
        %v8014 = vpack.c.b16 %v7992, %v7991
        %v8015 = vpack.c.b16 %v7994, %v7993
        %v8016 = vpack.c.b16 %v7996, %v7995
        %v8038 = vsel %vm3302, %v7718, 0
        %v8041 = vsel %vm3302, %v7721, 0
        %v8044 = vsel %vm3302, %v7724, 0
        %v8047 = vsel %vm3302, %v7727, 0
        %v8050 = vsel %vm3302, %v7730, 0
        %v8053 = vsel %vm3302, %v7733, 0
        %v8056 = vsel %vm3302, %v7736, 0
        %v8059 = vsel %vm3302, %v7739, 0
        %v8062 = vsel %vm3302, %v7742, 0
        %v8065 = vsel %vm3302, %v7745, 0
        %v8068 = vsel %vm3302, %v7748, 0
        %v8071 = vsel %vm3302, %v7751, 0
        %v8074 = vsel %vm3302, %v7754, 0
        %v8077 = vsel %vm3302, %v7757, 0
        %v8080 = vsel %vm3302, %v7760, 0
        %v8083 = vsel %vm3302, %v7763, 0
        %8085 = vmatpush.bf16.msra.mxu0 %v8004
        %8086 = vmatpush.bf16.msra.mxu0 %v8003
        %8087 = vmatpush.bf16.msra.mxu0 %v8002
        %8088 = vmatpush.bf16.msra.mxu0 %v8001
        %8089 = vmatpush.bf16.msra.mxu0 %v8000
        %8090 = vmatpush.bf16.msra.mxu0 %v7999
        %8091 = vmatpush.bf16.msra.mxu0 %v7998
        %8092 = vmatpush.bf16.msra.mxu0 %v7997
        %8093 = vmatmul.bf16.gmra.mxu0 %v7765
        %v8094 = vpop.f32.mrf.mxu0
        %v8095 = vadd.f32 0.0, %v8094
        %v8096 = vpop.f32.mrf.mxu0
        %v8097 = vadd.f32 0.0, %v8096
        %8098 = vmatmul.bf16.gmra.mxu0 %v7768
        %v8099 = vpop.f32.mrf.mxu0
        %v8100 = vadd.f32 0.0, %v8099
        %v8101 = vpop.f32.mrf.mxu0
        %v8102 = vadd.f32 0.0, %v8101
        %8103 = vmatmul.bf16.gmra.mxu0 %v7771
        %v8104 = vpop.f32.mrf.mxu0
        %v8105 = vadd.f32 0.0, %v8104
        %v8106 = vpop.f32.mrf.mxu0
        %v8107 = vadd.f32 0.0, %v8106
        %8108 = vmatmul.bf16.gmra.mxu0 %v7774
        %v8109 = vpop.f32.mrf.mxu0
        %v8110 = vadd.f32 0.0, %v8109
        %v8111 = vpop.f32.mrf.mxu0
        %v8112 = vadd.f32 0.0, %v8111
        %8113 = vmatmul.bf16.gmra.mxu0 %v7777
        %v8114 = vpop.f32.mrf.mxu0
        %v8115 = vadd.f32 0.0, %v8114
        %v8116 = vpop.f32.mrf.mxu0
        %v8117 = vadd.f32 0.0, %v8116
        %8118 = vmatmul.bf16.gmra.mxu0 %v7780
        %v8119 = vpop.f32.mrf.mxu0
        %v8120 = vadd.f32 0.0, %v8119
        %v8121 = vpop.f32.mrf.mxu0
        %v8122 = vadd.f32 0.0, %v8121
        %8123 = vmatmul.bf16.gmra.mxu0 %v7783
        %v8124 = vpop.f32.mrf.mxu0
        %v8125 = vadd.f32 0.0, %v8124
        %v8126 = vpop.f32.mrf.mxu0
        %v8127 = vadd.f32 0.0, %v8126
        %8128 = vmatmul.bf16.gmra.mxu0 %v7786
        %v8129 = vpop.f32.mrf.mxu0
        %v8130 = vadd.f32 0.0, %v8129
        %v8131 = vpop.f32.mrf.mxu0
        %v8132 = vadd.f32 0.0, %v8131
        %8133 = vmatmul.bf16.gmra.mxu0 %v7789
        %v8134 = vpop.f32.mrf.mxu0
        %v8135 = vadd.f32 0.0, %v8134
        %v8136 = vpop.f32.mrf.mxu0
        %v8137 = vadd.f32 0.0, %v8136
        %8138 = vmatmul.bf16.gmra.mxu0 %v7792
        %v8139 = vpop.f32.mrf.mxu0
        %v8140 = vadd.f32 0.0, %v8139
        %v8141 = vpop.f32.mrf.mxu0
        %v8142 = vadd.f32 0.0, %v8141
        %8143 = vmatmul.bf16.gmra.mxu0 %v7795
        %v8144 = vpop.f32.mrf.mxu0
        %v8145 = vadd.f32 0.0, %v8144
        %v8146 = vpop.f32.mrf.mxu0
        %v8147 = vadd.f32 0.0, %v8146
        %8148 = vmatmul.bf16.gmra.mxu0 %v7798
        %v8149 = vpop.f32.mrf.mxu0
        %v8150 = vadd.f32 0.0, %v8149
        %v8151 = vpop.f32.mrf.mxu0
        %v8152 = vadd.f32 0.0, %v8151
        %8153 = vmatmul.bf16.gmra.mxu0 %v7801
        %v8154 = vpop.f32.mrf.mxu0
        %v8155 = vadd.f32 0.0, %v8154
        %v8156 = vpop.f32.mrf.mxu0
        %v8157 = vadd.f32 0.0, %v8156
        %8158 = vmatmul.bf16.gmra.mxu0 %v7804
        %v8159 = vpop.f32.mrf.mxu0
        %v8160 = vadd.f32 0.0, %v8159
        %v8161 = vpop.f32.mrf.mxu0
        %v8162 = vadd.f32 0.0, %v8161
        %8163 = vmatmul.bf16.gmra.mxu0 %v7807
        %v8164 = vpop.f32.mrf.mxu0
        %v8165 = vadd.f32 0.0, %v8164
        %v8166 = vpop.f32.mrf.mxu0
        %v8167 = vadd.f32 0.0, %v8166
        %8168 = vmatmul.bf16.gmra.mxu0 %v7810
        %v8169 = vpop.f32.mrf.mxu0
        %v8170 = vadd.f32 0.0, %v8169
        %v8171 = vpop.f32.mrf.mxu0
        %v8172 = vadd.f32 0.0, %v8171
        %8173 = vdwg.mxu0
        %8174 = vmatpush.bf16.msra.mxu0 %v8012
        %8175 = vmatpush.bf16.msra.mxu0 %v8011
        %8176 = vmatpush.bf16.msra.mxu0 %v8010
        %8177 = vmatpush.bf16.msra.mxu0 %v8009
        %8178 = vmatpush.bf16.msra.mxu0 %v8008
        %8179 = vmatpush.bf16.msra.mxu0 %v8007
        %8180 = vmatpush.bf16.msra.mxu0 %v8006
        %8181 = vmatpush.bf16.msra.mxu0 %v8005
        %8182 = vmatmul.bf16.gmra.mxu0 %v7814
        %v8183 = vpop.f32.mrf.mxu0
        %v8184 = vadd.f32 %v8095, %v8183
        %v8185 = vpop.f32.mrf.mxu0
        %v8186 = vadd.f32 %v8097, %v8185
        %8187 = vmatmul.bf16.gmra.mxu0 %v7818
        %v8188 = vpop.f32.mrf.mxu0
        %v8189 = vadd.f32 %v8100, %v8188
        %v8190 = vpop.f32.mrf.mxu0
        %v8191 = vadd.f32 %v8102, %v8190
        %8192 = vmatmul.bf16.gmra.mxu0 %v7822
        %v8193 = vpop.f32.mrf.mxu0
        %v8194 = vadd.f32 %v8105, %v8193
        %v8195 = vpop.f32.mrf.mxu0
        %v8196 = vadd.f32 %v8107, %v8195
        %8197 = vmatmul.bf16.gmra.mxu0 %v7826
        %v8198 = vpop.f32.mrf.mxu0
        %v8199 = vadd.f32 %v8110, %v8198
        %v8200 = vpop.f32.mrf.mxu0
        %v8201 = vadd.f32 %v8112, %v8200
        %8202 = vmatmul.bf16.gmra.mxu0 %v7830
        %v8203 = vpop.f32.mrf.mxu0
        %v8204 = vadd.f32 %v8115, %v8203
        %v8205 = vpop.f32.mrf.mxu0
        %v8206 = vadd.f32 %v8117, %v8205
        %8207 = vmatmul.bf16.gmra.mxu0 %v7834
        %v8208 = vpop.f32.mrf.mxu0
        %v8209 = vadd.f32 %v8120, %v8208
        %v8210 = vpop.f32.mrf.mxu0
        %v8211 = vadd.f32 %v8122, %v8210
        %8212 = vmatmul.bf16.gmra.mxu0 %v7838
        %v8213 = vpop.f32.mrf.mxu0
        %v8214 = vadd.f32 %v8125, %v8213
        %v8215 = vpop.f32.mrf.mxu0
        %v8216 = vadd.f32 %v8127, %v8215
        %8217 = vmatmul.bf16.gmra.mxu0 %v7842
        %v8218 = vpop.f32.mrf.mxu0
        %v8219 = vadd.f32 %v8130, %v8218
        %v8220 = vpop.f32.mrf.mxu0
        %v8221 = vadd.f32 %v8132, %v8220
        %8222 = vmatmul.bf16.gmra.mxu0 %v7846
        %v8223 = vpop.f32.mrf.mxu0
        %v8224 = vadd.f32 %v8135, %v8223
        %v8225 = vpop.f32.mrf.mxu0
        %v8226 = vadd.f32 %v8137, %v8225
        %8227 = vmatmul.bf16.gmra.mxu0 %v7850
        %v8228 = vpop.f32.mrf.mxu0
        %v8229 = vadd.f32 %v8140, %v8228
        %v8230 = vpop.f32.mrf.mxu0
        %v8231 = vadd.f32 %v8142, %v8230
        %8232 = vmatmul.bf16.gmra.mxu0 %v7854
        %v8233 = vpop.f32.mrf.mxu0
        %v8234 = vadd.f32 %v8145, %v8233
        %v8235 = vpop.f32.mrf.mxu0
        %v8236 = vadd.f32 %v8147, %v8235
        %8237 = vmatmul.bf16.gmra.mxu0 %v7858
        %v8238 = vpop.f32.mrf.mxu0
        %v8239 = vadd.f32 %v8150, %v8238
        %v8240 = vpop.f32.mrf.mxu0
        %v8241 = vadd.f32 %v8152, %v8240
        %8242 = vmatmul.bf16.gmra.mxu0 %v7862
        %v8243 = vpop.f32.mrf.mxu0
        %v8244 = vadd.f32 %v8155, %v8243
        %v8245 = vpop.f32.mrf.mxu0
        %v8246 = vadd.f32 %v8157, %v8245
        %8247 = vmatmul.bf16.gmra.mxu0 %v7866
        %v8248 = vpop.f32.mrf.mxu0
        %v8249 = vadd.f32 %v8160, %v8248
        %v8250 = vpop.f32.mrf.mxu0
        %v8251 = vadd.f32 %v8162, %v8250
        %8252 = vmatmul.bf16.gmra.mxu0 %v7870
        %v8253 = vpop.f32.mrf.mxu0
        %v8254 = vadd.f32 %v8165, %v8253
        %v8255 = vpop.f32.mrf.mxu0
        %v8256 = vadd.f32 %v8167, %v8255
        %8257 = vmatmul.bf16.gmra.mxu0 %v7874
        %v8258 = vpop.f32.mrf.mxu0
        %v8259 = vadd.f32 %v8170, %v8258
        %v8260 = vpop.f32.mrf.mxu0
        %v8261 = vadd.f32 %v8172, %v8260
        %8262 = vdwg.mxu0
        %8263 = vmatpush.bf16.msra.mxu0 0
        %8264 = vmatpush.bf16.msra.mxu0 0
        %8265 = vmatpush.bf16.msra.mxu0 0
        %8266 = vmatpush.bf16.msra.mxu0 0
        %8267 = vmatpush.bf16.msra.mxu0 %v8016
        %8268 = vmatpush.bf16.msra.mxu0 %v8015
        %8269 = vmatpush.bf16.msra.mxu0 %v8014
        %8270 = vmatpush.bf16.msra.mxu0 %v8013
        %8271 = vmatmul.bf16.gmra.mxu0 %v8038
        %v8272 = vpop.f32.mrf.mxu0
        %v8273 = vadd.f32 %v8184, %v8272
        %v8274 = vpop.f32.mrf.mxu0
        %v8275 = vadd.f32 %v8186, %v8274
        %8276 = vmatmul.bf16.gmra.mxu0 %v8041
        %v8277 = vpop.f32.mrf.mxu0
        %v8278 = vadd.f32 %v8189, %v8277
        %v8279 = vpop.f32.mrf.mxu0
        %v8280 = vadd.f32 %v8191, %v8279
        %8281 = vmatmul.bf16.gmra.mxu0 %v8044
        %v8282 = vpop.f32.mrf.mxu0
        %v8283 = vadd.f32 %v8194, %v8282
        %v8284 = vpop.f32.mrf.mxu0
        %v8285 = vadd.f32 %v8196, %v8284
        %8286 = vmatmul.bf16.gmra.mxu0 %v8047
        %v8287 = vpop.f32.mrf.mxu0
        %v8288 = vadd.f32 %v8199, %v8287
        %v8289 = vpop.f32.mrf.mxu0
        %v8290 = vadd.f32 %v8201, %v8289
        %8291 = vmatmul.bf16.gmra.mxu0 %v8050
        %v8292 = vpop.f32.mrf.mxu0
        %v8293 = vadd.f32 %v8204, %v8292
        %v8294 = vpop.f32.mrf.mxu0
        %v8295 = vadd.f32 %v8206, %v8294
        %8296 = vmatmul.bf16.gmra.mxu0 %v8053
        %v8297 = vpop.f32.mrf.mxu0
        %v8298 = vadd.f32 %v8209, %v8297
        %v8299 = vpop.f32.mrf.mxu0
        %v8300 = vadd.f32 %v8211, %v8299
        %8301 = vmatmul.bf16.gmra.mxu0 %v8056
        %v8302 = vpop.f32.mrf.mxu0
        %v8303 = vadd.f32 %v8214, %v8302
        %v8304 = vpop.f32.mrf.mxu0
        %v8305 = vadd.f32 %v8216, %v8304
        %8306 = vmatmul.bf16.gmra.mxu0 %v8059
        %v8307 = vpop.f32.mrf.mxu0
        %v8308 = vadd.f32 %v8219, %v8307
        %v8309 = vpop.f32.mrf.mxu0
        %v8310 = vadd.f32 %v8221, %v8309
        %8311 = vmatmul.bf16.gmra.mxu0 %v8062
        %v8312 = vpop.f32.mrf.mxu0
        %v8313 = vadd.f32 %v8224, %v8312
        %v8314 = vpop.f32.mrf.mxu0
        %v8315 = vadd.f32 %v8226, %v8314
        %8316 = vmatmul.bf16.gmra.mxu0 %v8065
        %v8317 = vpop.f32.mrf.mxu0
        %v8318 = vadd.f32 %v8229, %v8317
        %v8319 = vpop.f32.mrf.mxu0
        %v8320 = vadd.f32 %v8231, %v8319
        %8321 = vmatmul.bf16.gmra.mxu0 %v8068
        %v8322 = vpop.f32.mrf.mxu0
        %v8323 = vadd.f32 %v8234, %v8322
        %v8324 = vpop.f32.mrf.mxu0
        %v8325 = vadd.f32 %v8236, %v8324
        %8326 = vmatmul.bf16.gmra.mxu0 %v8071
        %v8327 = vpop.f32.mrf.mxu0
        %v8328 = vadd.f32 %v8239, %v8327
        %v8329 = vpop.f32.mrf.mxu0
        %v8330 = vadd.f32 %v8241, %v8329
        %8331 = vmatmul.bf16.gmra.mxu0 %v8074
        %v8332 = vpop.f32.mrf.mxu0
        %v8333 = vadd.f32 %v8244, %v8332
        %v8334 = vpop.f32.mrf.mxu0
        %v8335 = vadd.f32 %v8246, %v8334
        %8336 = vmatmul.bf16.gmra.mxu0 %v8077
        %v8337 = vpop.f32.mrf.mxu0
        %v8338 = vadd.f32 %v8249, %v8337
        %v8339 = vpop.f32.mrf.mxu0
        %v8340 = vadd.f32 %v8251, %v8339
        %8341 = vmatmul.bf16.gmra.mxu0 %v8080
        %v8342 = vpop.f32.mrf.mxu0
        %v8343 = vadd.f32 %v8254, %v8342
        %v8344 = vpop.f32.mrf.mxu0
        %v8345 = vadd.f32 %v8256, %v8344
        %8346 = vmatmul.bf16.gmra.mxu0 %v8083
        %v8347 = vpop.f32.mrf.mxu0
        %v8348 = vadd.f32 %v8259, %v8347
        %v8349 = vpop.f32.mrf.mxu0
        %v8350 = vadd.f32 %v8261, %v8349
        %8351 = vdwg.mxu0
        %v8392 = vunpack.c.l.b16 %v7051
        %v8393 = vunpack.c.l.b16 %v7052
        %v8394 = vunpack.c.l.b16 %v7053
        %v8395 = vunpack.c.l.b16 %v7054
        %v8396 = vunpack.c.l.b16 %v7055
        %v8397 = vunpack.c.l.b16 %v7056
        %v8398 = vunpack.c.l.b16 %v7057
        %v8399 = vunpack.c.l.b16 %v7058
        %v8400 = vunpack.c.l.b16 %v7059
        %v8401 = vunpack.c.l.b16 %v7060
        %v8402 = vunpack.c.l.b16 %v7061
        %v8403 = vunpack.c.l.b16 %v7062
        %v8404 = vunpack.c.l.b16 %v7063
        %v8405 = vunpack.c.l.b16 %v7064
        %v8406 = vunpack.c.l.b16 %v7065
        %v8407 = vunpack.c.l.b16 %v7066
        %v8408 = vunpack.c.l.b16 %v7067
        %v8409 = vunpack.c.l.b16 %v7068
        %v8410 = vunpack.c.l.b16 %v7069
        %v8411 = vunpack.c.l.b16 %v7070
        %v8412 = vunpack.c.l.b16 %v7071
        %v8413 = vunpack.c.l.b16 %v7072
        %v8414 = vunpack.c.l.b16 %v7073
        %v8415 = vunpack.c.l.b16 %v7074
        %v8416 = vunpack.c.l.b16 %v7075
        %v8417 = vunpack.c.l.b16 %v7076
        %v8418 = vunpack.c.l.b16 %v7077
        %v8419 = vunpack.c.l.b16 %v7078
        %v8420 = vunpack.c.l.b16 %v7079
        %v8421 = vunpack.c.l.b16 %v7080
        %v8422 = vunpack.c.l.b16 %v7081
        %v8423 = vunpack.c.l.b16 %v7082
        %v8424 = vunpack.c.l.b16 %v7083
        %v8425 = vunpack.c.l.b16 %v7084
        %v8426 = vunpack.c.l.b16 %v7085
        %v8427 = vunpack.c.l.b16 %v7086
        %v8428 = vunpack.c.l.b16 %v7087
        %v8429 = vunpack.c.l.b16 %v7088
        %v8430 = vunpack.c.l.b16 %v7089
        %v8431 = vunpack.c.l.b16 %v7090
        %v8432 = vpack.c.b16 %v8393, %v8392
        %v8433 = vpack.c.b16 %v8395, %v8394
        %v8434 = vpack.c.b16 %v8397, %v8396
        %v8435 = vpack.c.b16 %v8399, %v8398
        %v8436 = vpack.c.b16 %v8401, %v8400
        %v8437 = vpack.c.b16 %v8403, %v8402
        %v8438 = vpack.c.b16 %v8405, %v8404
        %v8439 = vpack.c.b16 %v8407, %v8406
        %v8440 = vpack.c.b16 %v8409, %v8408
        %v8441 = vpack.c.b16 %v8411, %v8410
        %v8442 = vpack.c.b16 %v8413, %v8412
        %v8443 = vpack.c.b16 %v8415, %v8414
        %v8444 = vpack.c.b16 %v8417, %v8416
        %v8445 = vpack.c.b16 %v8419, %v8418
        %v8446 = vpack.c.b16 %v8421, %v8420
        %v8447 = vpack.c.b16 %v8423, %v8422
        %v8448 = vpack.c.b16 %v8425, %v8424
        %v8449 = vpack.c.b16 %v8427, %v8426
        %v8450 = vpack.c.b16 %v8429, %v8428
        %v8451 = vpack.c.b16 %v8431, %v8430
        %v8473 = vsel %vm3302, %v6893, 0
        %v8476 = vsel %vm3302, %v6896, 0
        %v8479 = vsel %vm3302, %v6899, 0
        %v8482 = vsel %vm3302, %v6902, 0
        %v8485 = vsel %vm3302, %v6905, 0
        %v8488 = vsel %vm3302, %v6908, 0
        %v8491 = vsel %vm3302, %v6911, 0
        %v8494 = vsel %vm3302, %v6914, 0
        %v8497 = vsel %vm3302, %v6917, 0
        %v8500 = vsel %vm3302, %v6920, 0
        %v8503 = vsel %vm3302, %v6923, 0
        %v8506 = vsel %vm3302, %v6926, 0
        %v8509 = vsel %vm3302, %v6929, 0
        %v8512 = vsel %vm3302, %v6932, 0
        %v8515 = vsel %vm3302, %v6935, 0
        %v8518 = vsel %vm3302, %v6938, 0
        %8520 = vmatpush.bf16.msra.mxu0 %v8439
        %8521 = vmatpush.bf16.msra.mxu0 %v8438
        %8522 = vmatpush.bf16.msra.mxu0 %v8437
        %8523 = vmatpush.bf16.msra.mxu0 %v8436
        %8524 = vmatpush.bf16.msra.mxu0 %v8435
        %8525 = vmatpush.bf16.msra.mxu0 %v8434
        %8526 = vmatpush.bf16.msra.mxu0 %v8433
        %8527 = vmatpush.bf16.msra.mxu0 %v8432
        %8528 = vmatmul.bf16.gmra.mxu0 %v6940
        %v8529 = vpop.f32.mrf.mxu0
        %v8530 = vadd.f32 %v8273, %v8529
        %v8531 = vpop.f32.mrf.mxu0
        %v8532 = vadd.f32 %v8275, %v8531
        %8533 = vmatmul.bf16.gmra.mxu0 %v6943
        %v8534 = vpop.f32.mrf.mxu0
        %v8535 = vadd.f32 %v8278, %v8534
        %v8536 = vpop.f32.mrf.mxu0
        %v8537 = vadd.f32 %v8280, %v8536
        %8538 = vmatmul.bf16.gmra.mxu0 %v6946
        %v8539 = vpop.f32.mrf.mxu0
        %v8540 = vadd.f32 %v8283, %v8539
        %v8541 = vpop.f32.mrf.mxu0
        %v8542 = vadd.f32 %v8285, %v8541
        %8543 = vmatmul.bf16.gmra.mxu0 %v6949
        %v8544 = vpop.f32.mrf.mxu0
        %v8545 = vadd.f32 %v8288, %v8544
        %v8546 = vpop.f32.mrf.mxu0
        %v8547 = vadd.f32 %v8290, %v8546
        %8548 = vmatmul.bf16.gmra.mxu0 %v6952
        %v8549 = vpop.f32.mrf.mxu0
        %v8550 = vadd.f32 %v8293, %v8549
        %v8551 = vpop.f32.mrf.mxu0
        %v8552 = vadd.f32 %v8295, %v8551
        %8553 = vmatmul.bf16.gmra.mxu0 %v6955
        %v8554 = vpop.f32.mrf.mxu0
        %v8555 = vadd.f32 %v8298, %v8554
        %v8556 = vpop.f32.mrf.mxu0
        %v8557 = vadd.f32 %v8300, %v8556
        %8558 = vmatmul.bf16.gmra.mxu0 %v6958
        %v8559 = vpop.f32.mrf.mxu0
        %v8560 = vadd.f32 %v8303, %v8559
        %v8561 = vpop.f32.mrf.mxu0
        %v8562 = vadd.f32 %v8305, %v8561
        %8563 = vmatmul.bf16.gmra.mxu0 %v6961
        %v8564 = vpop.f32.mrf.mxu0
        %v8565 = vadd.f32 %v8308, %v8564
        %v8566 = vpop.f32.mrf.mxu0
        %v8567 = vadd.f32 %v8310, %v8566
        %8568 = vmatmul.bf16.gmra.mxu0 %v6964
        %v8569 = vpop.f32.mrf.mxu0
        %v8570 = vadd.f32 %v8313, %v8569
        %v8571 = vpop.f32.mrf.mxu0
        %v8572 = vadd.f32 %v8315, %v8571
        %8573 = vmatmul.bf16.gmra.mxu0 %v6967
        %v8574 = vpop.f32.mrf.mxu0
        %v8575 = vadd.f32 %v8318, %v8574
        %v8576 = vpop.f32.mrf.mxu0
        %v8577 = vadd.f32 %v8320, %v8576
        %8578 = vmatmul.bf16.gmra.mxu0 %v6970
        %v8579 = vpop.f32.mrf.mxu0
        %v8580 = vadd.f32 %v8323, %v8579
        %v8581 = vpop.f32.mrf.mxu0
        %v8582 = vadd.f32 %v8325, %v8581
        %8583 = vmatmul.bf16.gmra.mxu0 %v6973
        %v8584 = vpop.f32.mrf.mxu0
        %v8585 = vadd.f32 %v8328, %v8584
        %v8586 = vpop.f32.mrf.mxu0
        %v8587 = vadd.f32 %v8330, %v8586
        %8588 = vmatmul.bf16.gmra.mxu0 %v6976
        %v8589 = vpop.f32.mrf.mxu0
        %v8590 = vadd.f32 %v8333, %v8589
        %v8591 = vpop.f32.mrf.mxu0
        %v8592 = vadd.f32 %v8335, %v8591
        %8593 = vmatmul.bf16.gmra.mxu0 %v6979
        %v8594 = vpop.f32.mrf.mxu0
        %v8595 = vadd.f32 %v8338, %v8594
        %v8596 = vpop.f32.mrf.mxu0
        %v8597 = vadd.f32 %v8340, %v8596
        %8598 = vmatmul.bf16.gmra.mxu0 %v6982
        %v8599 = vpop.f32.mrf.mxu0
        %v8600 = vadd.f32 %v8343, %v8599
        %v8601 = vpop.f32.mrf.mxu0
        %v8602 = vadd.f32 %v8345, %v8601
        %8603 = vmatmul.bf16.gmra.mxu0 %v6985
        %v8604 = vpop.f32.mrf.mxu0
        %v8605 = vadd.f32 %v8348, %v8604
        %v8606 = vpop.f32.mrf.mxu0
        %v8607 = vadd.f32 %v8350, %v8606
        %8608 = vdwg.mxu0
        %8609 = vmatpush.bf16.msra.mxu0 %v8447
        %8610 = vmatpush.bf16.msra.mxu0 %v8446
        %8611 = vmatpush.bf16.msra.mxu0 %v8445
        %8612 = vmatpush.bf16.msra.mxu0 %v8444
        %8613 = vmatpush.bf16.msra.mxu0 %v8443
        %8614 = vmatpush.bf16.msra.mxu0 %v8442
        %8615 = vmatpush.bf16.msra.mxu0 %v8441
        %8616 = vmatpush.bf16.msra.mxu0 %v8440
        %8617 = vmatmul.bf16.gmra.mxu0 %v6989
        %v8618 = vpop.f32.mrf.mxu0
        %v8619 = vadd.f32 %v8530, %v8618
        %v8620 = vpop.f32.mrf.mxu0
        %v8621 = vadd.f32 %v8532, %v8620
        %8622 = vmatmul.bf16.gmra.mxu0 %v6993
        %v8623 = vpop.f32.mrf.mxu0
        %v8624 = vadd.f32 %v8535, %v8623
        %v8625 = vpop.f32.mrf.mxu0
        %v8626 = vadd.f32 %v8537, %v8625
        %8627 = vmatmul.bf16.gmra.mxu0 %v6997
        %v8628 = vpop.f32.mrf.mxu0
        %v8629 = vadd.f32 %v8540, %v8628
        %v8630 = vpop.f32.mrf.mxu0
        %v8631 = vadd.f32 %v8542, %v8630
        %8632 = vmatmul.bf16.gmra.mxu0 %v7001
        %v8633 = vpop.f32.mrf.mxu0
        %v8634 = vadd.f32 %v8545, %v8633
        %v8635 = vpop.f32.mrf.mxu0
        %v8636 = vadd.f32 %v8547, %v8635
        %8637 = vmatmul.bf16.gmra.mxu0 %v7005
        %v8638 = vpop.f32.mrf.mxu0
        %v8639 = vadd.f32 %v8550, %v8638
        %v8640 = vpop.f32.mrf.mxu0
        %v8641 = vadd.f32 %v8552, %v8640
        %8642 = vmatmul.bf16.gmra.mxu0 %v7009
        %v8643 = vpop.f32.mrf.mxu0
        %v8644 = vadd.f32 %v8555, %v8643
        %v8645 = vpop.f32.mrf.mxu0
        %v8646 = vadd.f32 %v8557, %v8645
        %8647 = vmatmul.bf16.gmra.mxu0 %v7013
        %v8648 = vpop.f32.mrf.mxu0
        %v8649 = vadd.f32 %v8560, %v8648
        %v8650 = vpop.f32.mrf.mxu0
        %v8651 = vadd.f32 %v8562, %v8650
        %8652 = vmatmul.bf16.gmra.mxu0 %v7017
        %v8653 = vpop.f32.mrf.mxu0
        %v8654 = vadd.f32 %v8565, %v8653
        %v8655 = vpop.f32.mrf.mxu0
        %v8656 = vadd.f32 %v8567, %v8655
        %8657 = vmatmul.bf16.gmra.mxu0 %v7021
        %v8658 = vpop.f32.mrf.mxu0
        %v8659 = vadd.f32 %v8570, %v8658
        %v8660 = vpop.f32.mrf.mxu0
        %v8661 = vadd.f32 %v8572, %v8660
        %8662 = vmatmul.bf16.gmra.mxu0 %v7025
        %v8663 = vpop.f32.mrf.mxu0
        %v8664 = vadd.f32 %v8575, %v8663
        %v8665 = vpop.f32.mrf.mxu0
        %v8666 = vadd.f32 %v8577, %v8665
        %8667 = vmatmul.bf16.gmra.mxu0 %v7029
        %v8668 = vpop.f32.mrf.mxu0
        %v8669 = vadd.f32 %v8580, %v8668
        %v8670 = vpop.f32.mrf.mxu0
        %v8671 = vadd.f32 %v8582, %v8670
        %8672 = vmatmul.bf16.gmra.mxu0 %v7033
        %v8673 = vpop.f32.mrf.mxu0
        %v8674 = vadd.f32 %v8585, %v8673
        %v8675 = vpop.f32.mrf.mxu0
        %v8676 = vadd.f32 %v8587, %v8675
        %8677 = vmatmul.bf16.gmra.mxu0 %v7037
        %v8678 = vpop.f32.mrf.mxu0
        %v8679 = vadd.f32 %v8590, %v8678
        %v8680 = vpop.f32.mrf.mxu0
        %v8681 = vadd.f32 %v8592, %v8680
        %8682 = vmatmul.bf16.gmra.mxu0 %v7041
        %v8683 = vpop.f32.mrf.mxu0
        %v8684 = vadd.f32 %v8595, %v8683
        %v8685 = vpop.f32.mrf.mxu0
        %v8686 = vadd.f32 %v8597, %v8685
        %8687 = vmatmul.bf16.gmra.mxu0 %v7045
        %v8688 = vpop.f32.mrf.mxu0
        %v8689 = vadd.f32 %v8600, %v8688
        %v8690 = vpop.f32.mrf.mxu0
        %v8691 = vadd.f32 %v8602, %v8690
        %8692 = vmatmul.bf16.gmra.mxu0 %v7049
        %v8693 = vpop.f32.mrf.mxu0
        %v8694 = vadd.f32 %v8605, %v8693
        %v8695 = vpop.f32.mrf.mxu0
        %v8696 = vadd.f32 %v8607, %v8695
        %8697 = vdwg.mxu0
        %8698 = vmatpush.bf16.msra.mxu0 0
        %8699 = vmatpush.bf16.msra.mxu0 0
        %8700 = vmatpush.bf16.msra.mxu0 0
        %8701 = vmatpush.bf16.msra.mxu0 0
        %8702 = vmatpush.bf16.msra.mxu0 %v8451
        %8703 = vmatpush.bf16.msra.mxu0 %v8450
        %8704 = vmatpush.bf16.msra.mxu0 %v8449
        %8705 = vmatpush.bf16.msra.mxu0 %v8448
        %8706 = vmatmul.bf16.gmra.mxu0 %v8473
        %v8707 = vpop.f32.mrf.mxu0
        %v8708 = vadd.f32 %v8619, %v8707
        %v8709 = vpop.f32.mrf.mxu0
        %v8710 = vadd.f32 %v8621, %v8709
        %8711 = vmatmul.bf16.gmra.mxu0 %v8476
        %v8712 = vpop.f32.mrf.mxu0
        %v8713 = vadd.f32 %v8624, %v8712
        %v8714 = vpop.f32.mrf.mxu0
        %v8715 = vadd.f32 %v8626, %v8714
        %8716 = vmatmul.bf16.gmra.mxu0 %v8479
        %v8717 = vpop.f32.mrf.mxu0
        %v8718 = vadd.f32 %v8629, %v8717
        %v8719 = vpop.f32.mrf.mxu0
        %v8720 = vadd.f32 %v8631, %v8719
        %8721 = vmatmul.bf16.gmra.mxu0 %v8482
        %v8722 = vpop.f32.mrf.mxu0
        %v8723 = vadd.f32 %v8634, %v8722
        %v8724 = vpop.f32.mrf.mxu0
        %v8725 = vadd.f32 %v8636, %v8724
        %8726 = vmatmul.bf16.gmra.mxu0 %v8485
        %v8727 = vpop.f32.mrf.mxu0
        %v8728 = vadd.f32 %v8639, %v8727
        %v8729 = vpop.f32.mrf.mxu0
        %v8730 = vadd.f32 %v8641, %v8729
        %8731 = vmatmul.bf16.gmra.mxu0 %v8488
        %v8732 = vpop.f32.mrf.mxu0
        %v8733 = vadd.f32 %v8644, %v8732
        %v8734 = vpop.f32.mrf.mxu0
        %v8735 = vadd.f32 %v8646, %v8734
        %8736 = vmatmul.bf16.gmra.mxu0 %v8491
        %v8737 = vpop.f32.mrf.mxu0
        %v8738 = vadd.f32 %v8649, %v8737
        %v8739 = vpop.f32.mrf.mxu0
        %v8740 = vadd.f32 %v8651, %v8739
        %8741 = vmatmul.bf16.gmra.mxu0 %v8494
        %v8742 = vpop.f32.mrf.mxu0
        %v8743 = vadd.f32 %v8654, %v8742
        %v8744 = vpop.f32.mrf.mxu0
        %v8745 = vadd.f32 %v8656, %v8744
        %8746 = vmatmul.bf16.gmra.mxu0 %v8497
        %v8747 = vpop.f32.mrf.mxu0
        %v8748 = vadd.f32 %v8659, %v8747
        %v8749 = vpop.f32.mrf.mxu0
        %v8750 = vadd.f32 %v8661, %v8749
        %8751 = vmatmul.bf16.gmra.mxu0 %v8500
        %v8752 = vpop.f32.mrf.mxu0
        %v8753 = vadd.f32 %v8664, %v8752
        %v8754 = vpop.f32.mrf.mxu0
        %v8755 = vadd.f32 %v8666, %v8754
        %8756 = vmatmul.bf16.gmra.mxu0 %v8503
        %v8757 = vpop.f32.mrf.mxu0
        %v8758 = vadd.f32 %v8669, %v8757
        %v8759 = vpop.f32.mrf.mxu0
        %v8760 = vadd.f32 %v8671, %v8759
        %8761 = vmatmul.bf16.gmra.mxu0 %v8506
        %v8762 = vpop.f32.mrf.mxu0
        %v8763 = vadd.f32 %v8674, %v8762
        %v8764 = vpop.f32.mrf.mxu0
        %v8765 = vadd.f32 %v8676, %v8764
        %8766 = vmatmul.bf16.gmra.mxu0 %v8509
        %v8767 = vpop.f32.mrf.mxu0
        %v8768 = vadd.f32 %v8679, %v8767
        %v8769 = vpop.f32.mrf.mxu0
        %v8770 = vadd.f32 %v8681, %v8769
        %8771 = vmatmul.bf16.gmra.mxu0 %v8512
        %v8772 = vpop.f32.mrf.mxu0
        %v8773 = vadd.f32 %v8684, %v8772
        %v8774 = vpop.f32.mrf.mxu0
        %v8775 = vadd.f32 %v8686, %v8774
        %8776 = vmatmul.bf16.gmra.mxu0 %v8515
        %v8777 = vpop.f32.mrf.mxu0
        %v8778 = vadd.f32 %v8689, %v8777
        %v8779 = vpop.f32.mrf.mxu0
        %v8780 = vadd.f32 %v8691, %v8779
        %8781 = vmatmul.bf16.gmra.mxu0 %v8518
        %v8782 = vpop.f32.mrf.mxu0
        %v8783 = vadd.f32 %v8694, %v8782
        %v8784 = vpop.f32.mrf.mxu0
        %v8785 = vadd.f32 %v8696, %v8784
        %8786 = vdwg.mxu0
        %v8787 = vld [vmem:[%s6215] sm:$0xf]
        %v8788 = vld [vmem:[%s6215 + $0x4] sm:$0xf]
        %v8789 = vld [vmem:[%s6215 + $0x8] sm:$0x3]
        %v8790 = vld [vmem:[%s6215 + $0xc] sm:$0xf]
        %v8791 = vld [vmem:[%s6215 + $0x10] sm:$0xf]
        %v8792 = vld [vmem:[%s6215 + $0x14] sm:$0x3]
        %v8793 = vld [vmem:[%s6215 + $0x18] sm:$0xf]
        %v8794 = vld [vmem:[%s6215 + $0x1c] sm:$0xf]
        %v8795 = vld [vmem:[%s6215 + $0x20] sm:$0x3]
        %v8796 = vld [vmem:[%s6215 + $0x24] sm:$0xf]
        %v8797 = vld [vmem:[%s6215 + $0x28] sm:$0xf]
        %v8798 = vld [vmem:[%s6215 + $0x2c] sm:$0x3]
        %v8799 = vld [vmem:[%s6215 + $0x30] sm:$0xf]
        %v8800 = vld [vmem:[%s6215 + $0x34] sm:$0xf]
        %v8801 = vld [vmem:[%s6215 + $0x38] sm:$0x3]
        %v8802 = vld [vmem:[%s6215 + $0x3c] sm:$0xf]
        %v8803 = vld [vmem:[%s6215 + $0x40] sm:$0xf]
        %v8804 = vld [vmem:[%s6215 + $0x44] sm:$0x3]
        %v8805 = vld [vmem:[%s6215 + $0x48] sm:$0xf]
        %v8806 = vld [vmem:[%s6215 + $0x4c] sm:$0xf]
        %v8807 = vld [vmem:[%s6215 + $0x50] sm:$0x3]
        %v8808 = vld [vmem:[%s6215 + $0x54] sm:$0xf]
        %v8809 = vld [vmem:[%s6215 + $0x58] sm:$0xf]
        %v8810 = vld [vmem:[%s6215 + $0x5c] sm:$0x3]
        %v8811 = vld [vmem:[%s6215 + $0x60] sm:$0xf]
        %v8812 = vld [vmem:[%s6215 + $0x64] sm:$0xf]
        %v8813 = vld [vmem:[%s6215 + $0x68] sm:$0x3]
        %v8814 = vld [vmem:[%s6215 + $0x6c] sm:$0xf]
        %v8815 = vld [vmem:[%s6215 + $0x70] sm:$0xf]
        %v8816 = vld [vmem:[%s6215 + $0x74] sm:$0x3]
        %v8817 = vld [vmem:[%s6215 + $0x78] sm:$0xf]
        %v8818 = vld [vmem:[%s6215 + $0x7c] sm:$0xf]
        %v8819 = vld [vmem:[%s6215 + $0x80] sm:$0x3]
        %v8820 = vld [vmem:[%s6215 + $0x84] sm:$0xf]
        %v8821 = vld [vmem:[%s6215 + $0x88] sm:$0xf]
        %v8822 = vld [vmem:[%s6215 + $0x8c] sm:$0x3]
        %v8823 = vld [vmem:[%s6215 + $0x90] sm:$0xf]
        %v8824 = vld [vmem:[%s6215 + $0x94] sm:$0xf]
        %v8825 = vld [vmem:[%s6215 + $0x98] sm:$0x3]
        %v8826 = vld [vmem:[%s6215 + $0x9c] sm:$0xf]
        %v8827 = vld [vmem:[%s6215 + $0xa0] sm:$0xf]
        %v8828 = vld [vmem:[%s6215 + $0xa4] sm:$0x3]
        %v8829 = vld [vmem:[%s6215 + $0xa8] sm:$0xf]
        %v8830 = vld [vmem:[%s6215 + $0xac] sm:$0xf]
        %v8831 = vld [vmem:[%s6215 + $0xb0] sm:$0x3]
        %v8832 = vld [vmem:[%s6215 + $0xb4] sm:$0xf]
        %v8833 = vld [vmem:[%s6215 + $0xb8] sm:$0xf]
        %v8834 = vld [vmem:[%s6215 + $0xbc] sm:$0x3]
        %v8867 = vunpack.c.l.b16 %v8787
        %v8868 = vunpack.c.l.b16 %v8788
        %v8869 = vunpack.c.l.b16 %v8790
        %v8870 = vunpack.c.l.b16 %v8791
        %v8871 = vunpack.c.l.b16 %v8793
        %v8872 = vunpack.c.l.b16 %v8794
        %v8873 = vunpack.c.l.b16 %v8796
        %v8874 = vunpack.c.l.b16 %v8797
        %v8875 = vunpack.c.l.b16 %v8799
        %v8876 = vunpack.c.l.b16 %v8800
        %v8877 = vunpack.c.l.b16 %v8802
        %v8878 = vunpack.c.l.b16 %v8803
        %v8879 = vunpack.c.l.b16 %v8805
        %v8880 = vunpack.c.l.b16 %v8806
        %v8881 = vunpack.c.l.b16 %v8808
        %v8882 = vunpack.c.l.b16 %v8809
        %v8883 = vunpack.c.l.b16 %v8811
        %v8884 = vunpack.c.l.b16 %v8812
        %v8885 = vunpack.c.l.b16 %v8814
        %v8886 = vunpack.c.l.b16 %v8815
        %v8887 = vunpack.c.l.b16 %v8817
        %v8888 = vunpack.c.l.b16 %v8818
        %v8889 = vunpack.c.l.b16 %v8820
        %v8890 = vunpack.c.l.b16 %v8821
        %v8891 = vunpack.c.l.b16 %v8823
        %v8892 = vunpack.c.l.b16 %v8824
        %v8893 = vunpack.c.l.b16 %v8826
        %v8894 = vunpack.c.l.b16 %v8827
        %v8895 = vunpack.c.l.b16 %v8829
        %v8896 = vunpack.c.l.b16 %v8830
        %v8897 = vunpack.c.l.b16 %v8832
        %v8898 = vunpack.c.l.b16 %v8833
        %v8899 = vpack.c.b16 %v8868, %v8867
        %v8900 = vpack.c.b16 %v8870, %v8869
        %v8901 = vpack.c.b16 %v8872, %v8871
        %v8902 = vpack.c.b16 %v8874, %v8873
        %v8903 = vpack.c.b16 %v8876, %v8875
        %v8904 = vpack.c.b16 %v8878, %v8877
        %v8905 = vpack.c.b16 %v8880, %v8879
        %v8906 = vpack.c.b16 %v8882, %v8881
        %v8907 = vpack.c.b16 %v8884, %v8883
        %v8908 = vpack.c.b16 %v8886, %v8885
        %v8909 = vpack.c.b16 %v8888, %v8887
        %v8910 = vpack.c.b16 %v8890, %v8889
        %v8911 = vpack.c.b16 %v8892, %v8891
        %v8912 = vpack.c.b16 %v8894, %v8893
        %v8913 = vpack.c.b16 %v8896, %v8895
        %v8914 = vpack.c.b16 %v8898, %v8897
        %v8931 = vunpack.c.l.b16 %v8789
        %v8932 = vunpack.c.l.b16 %v8792
        %v8933 = vunpack.c.l.b16 %v8795
        %v8934 = vunpack.c.l.b16 %v8798
        %v8935 = vunpack.c.l.b16 %v8801
        %v8936 = vunpack.c.l.b16 %v8804
        %v8937 = vunpack.c.l.b16 %v8807
        %v8938 = vunpack.c.l.b16 %v8810
        %v8939 = vunpack.c.l.b16 %v8813
        %v8940 = vunpack.c.l.b16 %v8816
        %v8941 = vunpack.c.l.b16 %v8819
        %v8942 = vunpack.c.l.b16 %v8822
        %v8943 = vunpack.c.l.b16 %v8825
        %v8944 = vunpack.c.l.b16 %v8828
        %v8945 = vunpack.c.l.b16 %v8831
        %v8946 = vunpack.c.l.b16 %v8834
        %v8947 = vpack.c.b16 %v8931, %v8931
        %v8948 = vpack.c.b16 %v8932, %v8932
        %v8949 = vpack.c.b16 %v8933, %v8933
        %v8950 = vpack.c.b16 %v8934, %v8934
        %v8951 = vpack.c.b16 %v8935, %v8935
        %v8952 = vpack.c.b16 %v8936, %v8936
        %v8953 = vpack.c.b16 %v8937, %v8937
        %v8954 = vpack.c.b16 %v8938, %v8938
        %v8955 = vpack.c.b16 %v8939, %v8939
        %v8956 = vpack.c.b16 %v8940, %v8940
        %v8957 = vpack.c.b16 %v8941, %v8941
        %v8958 = vpack.c.b16 %v8942, %v8942
        %v8959 = vpack.c.b16 %v8943, %v8943
        %v8960 = vpack.c.b16 %v8944, %v8944
        %v8961 = vpack.c.b16 %v8945, %v8945
        %v8962 = vpack.c.b16 %v8946, %v8946
        %v8964 = vshrl.u32 %v8899, 16
        %v8966 = vshll.u32 %v8899, 16
        %v8968 = vrot.slane %v8966, 1
        %v8969 = vor.u32 %v8964, %v8968
        %v8971 = vshll.u32 %v8947, 16
        %v8973 = vrot.slane %v8971, 1
        %v8974 = vsel %vm3028, %v8969, %v8973
        %v8976 = vshrl.u32 %v8900, 16
        %v8978 = vshll.u32 %v8900, 16
        %v8980 = vrot.slane %v8978, 1
        %v8981 = vor.u32 %v8976, %v8980
        %v8983 = vshll.u32 %v8948, 16
        %v8985 = vrot.slane %v8983, 1
        %v8986 = vsel %vm3028, %v8981, %v8985
        %v8988 = vshrl.u32 %v8901, 16
        %v8990 = vshll.u32 %v8901, 16
        %v8992 = vrot.slane %v8990, 1
        %v8993 = vor.u32 %v8988, %v8992
        %v8995 = vshll.u32 %v8949, 16
        %v8997 = vrot.slane %v8995, 1
        %v8998 = vsel %vm3028, %v8993, %v8997
        %v9000 = vshrl.u32 %v8902, 16
        %v9002 = vshll.u32 %v8902, 16
        %v9004 = vrot.slane %v9002, 1
        %v9005 = vor.u32 %v9000, %v9004
        %v9007 = vshll.u32 %v8950, 16
        %v9009 = vrot.slane %v9007, 1
        %v9010 = vsel %vm3028, %v9005, %v9009
        %v9012 = vshrl.u32 %v8903, 16
        %v9014 = vshll.u32 %v8903, 16
        %v9016 = vrot.slane %v9014, 1
        %v9017 = vor.u32 %v9012, %v9016
        %v9019 = vshll.u32 %v8951, 16
        %v9021 = vrot.slane %v9019, 1
        %v9022 = vsel %vm3028, %v9017, %v9021
        %v9024 = vshrl.u32 %v8904, 16
        %v9026 = vshll.u32 %v8904, 16
        %v9028 = vrot.slane %v9026, 1
        %v9029 = vor.u32 %v9024, %v9028
        %v9031 = vshll.u32 %v8952, 16
        %v9033 = vrot.slane %v9031, 1
        %v9034 = vsel %vm3028, %v9029, %v9033
        %v9036 = vshrl.u32 %v8905, 16
        %v9038 = vshll.u32 %v8905, 16
        %v9040 = vrot.slane %v9038, 1
        %v9041 = vor.u32 %v9036, %v9040
        %v9043 = vshll.u32 %v8953, 16
        %v9045 = vrot.slane %v9043, 1
        %v9046 = vsel %vm3028, %v9041, %v9045
        %v9048 = vshrl.u32 %v8906, 16
        %v9050 = vshll.u32 %v8906, 16
        %v9052 = vrot.slane %v9050, 1
        %v9053 = vor.u32 %v9048, %v9052
        %v9055 = vshll.u32 %v8954, 16
        %v9057 = vrot.slane %v9055, 1
        %v9058 = vsel %vm3028, %v9053, %v9057
        %v9060 = vshrl.u32 %v8907, 16
        %v9062 = vshll.u32 %v8907, 16
        %v9064 = vrot.slane %v9062, 1
        %v9065 = vor.u32 %v9060, %v9064
        %v9067 = vshll.u32 %v8955, 16
        %v9069 = vrot.slane %v9067, 1
        %v9070 = vsel %vm3028, %v9065, %v9069
        %v9072 = vshrl.u32 %v8908, 16
        %v9074 = vshll.u32 %v8908, 16
        %v9076 = vrot.slane %v9074, 1
        %v9077 = vor.u32 %v9072, %v9076
        %v9079 = vshll.u32 %v8956, 16
        %v9081 = vrot.slane %v9079, 1
        %v9082 = vsel %vm3028, %v9077, %v9081
        %v9084 = vshrl.u32 %v8909, 16
        %v9086 = vshll.u32 %v8909, 16
        %v9088 = vrot.slane %v9086, 1
        %v9089 = vor.u32 %v9084, %v9088
        %v9091 = vshll.u32 %v8957, 16
        %v9093 = vrot.slane %v9091, 1
        %v9094 = vsel %vm3028, %v9089, %v9093
        %v9096 = vshrl.u32 %v8910, 16
        %v9098 = vshll.u32 %v8910, 16
        %v9100 = vrot.slane %v9098, 1
        %v9101 = vor.u32 %v9096, %v9100
        %v9103 = vshll.u32 %v8958, 16
        %v9105 = vrot.slane %v9103, 1
        %v9106 = vsel %vm3028, %v9101, %v9105
        %v9108 = vshrl.u32 %v8911, 16
        %v9110 = vshll.u32 %v8911, 16
        %v9112 = vrot.slane %v9110, 1
        %v9113 = vor.u32 %v9108, %v9112
        %v9115 = vshll.u32 %v8959, 16
        %v9117 = vrot.slane %v9115, 1
        %v9118 = vsel %vm3028, %v9113, %v9117
        %v9120 = vshrl.u32 %v8912, 16
        %v9122 = vshll.u32 %v8912, 16
        %v9124 = vrot.slane %v9122, 1
        %v9125 = vor.u32 %v9120, %v9124
        %v9127 = vshll.u32 %v8960, 16
        %v9129 = vrot.slane %v9127, 1
        %v9130 = vsel %vm3028, %v9125, %v9129
        %v9132 = vshrl.u32 %v8913, 16
        %v9134 = vshll.u32 %v8913, 16
        %v9136 = vrot.slane %v9134, 1
        %v9137 = vor.u32 %v9132, %v9136
        %v9139 = vshll.u32 %v8961, 16
        %v9141 = vrot.slane %v9139, 1
        %v9142 = vsel %vm3028, %v9137, %v9141
        %v9144 = vshrl.u32 %v8914, 16
        %v9146 = vshll.u32 %v8914, 16
        %v9148 = vrot.slane %v9146, 1
        %v9149 = vor.u32 %v9144, %v9148
        %v9151 = vshll.u32 %v8962, 16
        %v9153 = vrot.slane %v9151, 1
        %v9154 = vsel %vm3028, %v9149, %v9153
        %9155 = vrot.lane.b32.xlu0 %v8974, 64
        %v9156 = vpop.permute.xlu0 %9155
        %9157 = vrot.lane.b32.xlu0 %v8986, 64
        %v9158 = vpop.permute.xlu0 %9157
        %9159 = vrot.lane.b32.xlu0 %v8998, 64
        %v9160 = vpop.permute.xlu0 %9159
        %9161 = vrot.lane.b32.xlu0 %v9010, 64
        %v9162 = vpop.permute.xlu0 %9161
        %9163 = vrot.lane.b32.xlu0 %v9022, 64
        %v9164 = vpop.permute.xlu0 %9163
        %9165 = vrot.lane.b32.xlu0 %v9034, 64
        %v9166 = vpop.permute.xlu0 %9165
        %9167 = vrot.lane.b32.xlu0 %v9046, 64
        %v9168 = vpop.permute.xlu0 %9167
        %9169 = vrot.lane.b32.xlu0 %v9058, 64
        %v9170 = vpop.permute.xlu0 %9169
        %9171 = vrot.lane.b32.xlu0 %v9070, 64
        %v9172 = vpop.permute.xlu0 %9171
        %9173 = vrot.lane.b32.xlu0 %v9082, 64
        %v9174 = vpop.permute.xlu0 %9173
        %9175 = vrot.lane.b32.xlu0 %v9094, 64
        %v9176 = vpop.permute.xlu0 %9175
        %9177 = vrot.lane.b32.xlu0 %v9106, 64
        %v9178 = vpop.permute.xlu0 %9177
        %9179 = vrot.lane.b32.xlu0 %v9118, 64
        %v9180 = vpop.permute.xlu0 %9179
        %9181 = vrot.lane.b32.xlu0 %v9130, 64
        %v9182 = vpop.permute.xlu0 %9181
        %9183 = vrot.lane.b32.xlu0 %v9142, 64
        %v9184 = vpop.permute.xlu0 %9183
        %9185 = vrot.lane.b32.xlu0 %v9154, 64
        %v9186 = vpop.permute.xlu0 %9185
        %v9187 = vrot.slane %v8899, 1
        %v9188 = vrot.slane %v8947, 1
        %v9189 = vsel %vm3253, %v9187, %v9188
        %v9190 = vrot.slane %v8900, 1
        %v9191 = vrot.slane %v8948, 1
        %v9192 = vsel %vm3253, %v9190, %v9191
        %v9193 = vrot.slane %v8901, 1
        %v9194 = vrot.slane %v8949, 1
        %v9195 = vsel %vm3253, %v9193, %v9194
        %v9196 = vrot.slane %v8902, 1
        %v9197 = vrot.slane %v8950, 1
        %v9198 = vsel %vm3253, %v9196, %v9197
        %v9199 = vrot.slane %v8903, 1
        %v9200 = vrot.slane %v8951, 1
        %v9201 = vsel %vm3253, %v9199, %v9200
        %v9202 = vrot.slane %v8904, 1
        %v9203 = vrot.slane %v8952, 1
        %v9204 = vsel %vm3253, %v9202, %v9203
        %v9205 = vrot.slane %v8905, 1
        %v9206 = vrot.slane %v8953, 1
        %v9207 = vsel %vm3253, %v9205, %v9206
        %v9208 = vrot.slane %v8906, 1
        %v9209 = vrot.slane %v8954, 1
        %v9210 = vsel %vm3253, %v9208, %v9209
        %v9211 = vrot.slane %v8907, 1
        %v9212 = vrot.slane %v8955, 1
        %v9213 = vsel %vm3253, %v9211, %v9212
        %v9214 = vrot.slane %v8908, 1
        %v9215 = vrot.slane %v8956, 1
        %v9216 = vsel %vm3253, %v9214, %v9215
        %v9217 = vrot.slane %v8909, 1
        %v9218 = vrot.slane %v8957, 1
        %v9219 = vsel %vm3253, %v9217, %v9218
        %v9220 = vrot.slane %v8910, 1
        %v9221 = vrot.slane %v8958, 1
        %v9222 = vsel %vm3253, %v9220, %v9221
        %v9223 = vrot.slane %v8911, 1
        %v9224 = vrot.slane %v8959, 1
        %v9225 = vsel %vm3253, %v9223, %v9224
        %v9226 = vrot.slane %v8912, 1
        %v9227 = vrot.slane %v8960, 1
        %v9228 = vsel %vm3253, %v9226, %v9227
        %v9229 = vrot.slane %v8913, 1
        %v9230 = vrot.slane %v8961, 1
        %v9231 = vsel %vm3253, %v9229, %v9230
        %v9232 = vrot.slane %v8914, 1
        %v9233 = vrot.slane %v8962, 1
        %v9234 = vsel %vm3253, %v9232, %v9233
        %v9235 = vrot.slane %v8964, 1
        %v9236 = vrot.slane %v8966, 2
        %v9237 = vor.u32 %v9235, %v9236
        %v9238 = vshrl.u32 %v8947, 16
        %v9240 = vrot.slane %v9238, 1
        %v9241 = vrot.slane %v8971, 2
        %v9242 = vor.u32 %v9240, %v9241
        %v9243 = vsel %vm6713, %v9237, %v9242
        %v9244 = vrot.slane %v8976, 1
        %v9245 = vrot.slane %v8978, 2
        %v9246 = vor.u32 %v9244, %v9245
        %v9247 = vshrl.u32 %v8948, 16
        %v9249 = vrot.slane %v9247, 1
        %v9250 = vrot.slane %v8983, 2
        %v9251 = vor.u32 %v9249, %v9250
        %v9252 = vsel %vm6713, %v9246, %v9251
        %v9253 = vrot.slane %v8988, 1
        %v9254 = vrot.slane %v8990, 2
        %v9255 = vor.u32 %v9253, %v9254
        %v9256 = vshrl.u32 %v8949, 16
        %v9258 = vrot.slane %v9256, 1
        %v9259 = vrot.slane %v8995, 2
        %v9260 = vor.u32 %v9258, %v9259
        %v9261 = vsel %vm6713, %v9255, %v9260
        %v9262 = vrot.slane %v9000, 1
        %v9263 = vrot.slane %v9002, 2
        %v9264 = vor.u32 %v9262, %v9263
        %v9265 = vshrl.u32 %v8950, 16
        %v9267 = vrot.slane %v9265, 1
        %v9268 = vrot.slane %v9007, 2
        %v9269 = vor.u32 %v9267, %v9268
        %v9270 = vsel %vm6713, %v9264, %v9269
        %v9271 = vrot.slane %v9012, 1
        %v9272 = vrot.slane %v9014, 2
        %v9273 = vor.u32 %v9271, %v9272
        %v9274 = vshrl.u32 %v8951, 16
        %v9276 = vrot.slane %v9274, 1
        %v9277 = vrot.slane %v9019, 2
        %v9278 = vor.u32 %v9276, %v9277
        %v9279 = vsel %vm6713, %v9273, %v9278
        %v9280 = vrot.slane %v9024, 1
        %v9281 = vrot.slane %v9026, 2
        %v9282 = vor.u32 %v9280, %v9281
        %v9283 = vshrl.u32 %v8952, 16
        %v9285 = vrot.slane %v9283, 1
        %v9286 = vrot.slane %v9031, 2
        %v9287 = vor.u32 %v9285, %v9286
        %v9288 = vsel %vm6713, %v9282, %v9287
        %v9289 = vrot.slane %v9036, 1
        %v9290 = vrot.slane %v9038, 2
        %v9291 = vor.u32 %v9289, %v9290
        %v9292 = vshrl.u32 %v8953, 16
        %v9294 = vrot.slane %v9292, 1
        %v9295 = vrot.slane %v9043, 2
        %v9296 = vor.u32 %v9294, %v9295
        %v9297 = vsel %vm6713, %v9291, %v9296
        %v9298 = vrot.slane %v9048, 1
        %v9299 = vrot.slane %v9050, 2
        %v9300 = vor.u32 %v9298, %v9299
        %v9301 = vshrl.u32 %v8954, 16
        %v9303 = vrot.slane %v9301, 1
        %v9304 = vrot.slane %v9055, 2
        %v9305 = vor.u32 %v9303, %v9304
        %v9306 = vsel %vm6713, %v9300, %v9305
        %v9307 = vrot.slane %v9060, 1
        %v9308 = vrot.slane %v9062, 2
        %v9309 = vor.u32 %v9307, %v9308
        %v9310 = vshrl.u32 %v8955, 16
        %v9312 = vrot.slane %v9310, 1
        %v9313 = vrot.slane %v9067, 2
        %v9314 = vor.u32 %v9312, %v9313
        %v9315 = vsel %vm6713, %v9309, %v9314
        %v9316 = vrot.slane %v9072, 1
        %v9317 = vrot.slane %v9074, 2
        %v9318 = vor.u32 %v9316, %v9317
        %v9319 = vshrl.u32 %v8956, 16
        %v9321 = vrot.slane %v9319, 1
        %v9322 = vrot.slane %v9079, 2
        %v9323 = vor.u32 %v9321, %v9322
        %v9324 = vsel %vm6713, %v9318, %v9323
        %v9325 = vrot.slane %v9084, 1
        %v9326 = vrot.slane %v9086, 2
        %v9327 = vor.u32 %v9325, %v9326
        %v9328 = vshrl.u32 %v8957, 16
        %v9330 = vrot.slane %v9328, 1
        %v9331 = vrot.slane %v9091, 2
        %v9332 = vor.u32 %v9330, %v9331
        %v9333 = vsel %vm6713, %v9327, %v9332
        %v9334 = vrot.slane %v9096, 1
        %v9335 = vrot.slane %v9098, 2
        %v9336 = vor.u32 %v9334, %v9335
        %v9337 = vshrl.u32 %v8958, 16
        %v9339 = vrot.slane %v9337, 1
        %v9340 = vrot.slane %v9103, 2
        %v9341 = vor.u32 %v9339, %v9340
        %v9342 = vsel %vm6713, %v9336, %v9341
        %v9343 = vrot.slane %v9108, 1
        %v9344 = vrot.slane %v9110, 2
        %v9345 = vor.u32 %v9343, %v9344
        %v9346 = vshrl.u32 %v8959, 16
        %v9348 = vrot.slane %v9346, 1
        %v9349 = vrot.slane %v9115, 2
        %v9350 = vor.u32 %v9348, %v9349
        %v9351 = vsel %vm6713, %v9345, %v9350
        %v9352 = vrot.slane %v9120, 1
        %v9353 = vrot.slane %v9122, 2
        %v9354 = vor.u32 %v9352, %v9353
        %v9355 = vshrl.u32 %v8960, 16
        %v9357 = vrot.slane %v9355, 1
        %v9358 = vrot.slane %v9127, 2
        %v9359 = vor.u32 %v9357, %v9358
        %v9360 = vsel %vm6713, %v9354, %v9359
        %v9361 = vrot.slane %v9132, 1
        %v9362 = vrot.slane %v9134, 2
        %v9363 = vor.u32 %v9361, %v9362
        %v9364 = vshrl.u32 %v8961, 16
        %v9366 = vrot.slane %v9364, 1
        %v9367 = vrot.slane %v9139, 2
        %v9368 = vor.u32 %v9366, %v9367
        %v9369 = vsel %vm6713, %v9363, %v9368
        %v9370 = vrot.slane %v9144, 1
        %v9371 = vrot.slane %v9146, 2
        %v9372 = vor.u32 %v9370, %v9371
        %v9373 = vshrl.u32 %v8962, 16
        %v9375 = vrot.slane %v9373, 1
        %v9376 = vrot.slane %v9151, 2
        %v9377 = vor.u32 %v9375, %v9376
        %v9378 = vsel %vm6713, %v9372, %v9377
        %9379 = vrot.lane.b32.xlu0 %v9243, 64
        %v9380 = vpop.permute.xlu0 %9379
        %9381 = vrot.lane.b32.xlu0 %v9252, 64
        %v9382 = vpop.permute.xlu0 %9381
        %9383 = vrot.lane.b32.xlu0 %v9261, 64
        %v9384 = vpop.permute.xlu0 %9383
        %9385 = vrot.lane.b32.xlu0 %v9270, 64
        %v9386 = vpop.permute.xlu0 %9385
        %9387 = vrot.lane.b32.xlu0 %v9279, 64
        %v9388 = vpop.permute.xlu0 %9387
        %9389 = vrot.lane.b32.xlu0 %v9288, 64
        %v9390 = vpop.permute.xlu0 %9389
        %9391 = vrot.lane.b32.xlu0 %v9297, 64
        %v9392 = vpop.permute.xlu0 %9391
        %9393 = vrot.lane.b32.xlu0 %v9306, 64
        %v9394 = vpop.permute.xlu0 %9393
        %9395 = vrot.lane.b32.xlu0 %v9315, 64
        %v9396 = vpop.permute.xlu0 %9395
        %9397 = vrot.lane.b32.xlu0 %v9324, 64
        %v9398 = vpop.permute.xlu0 %9397
        %9399 = vrot.lane.b32.xlu0 %v9333, 64
        %v9400 = vpop.permute.xlu0 %9399
        %9401 = vrot.lane.b32.xlu0 %v9342, 64
        %v9402 = vpop.permute.xlu0 %9401
        %9403 = vrot.lane.b32.xlu0 %v9351, 64
        %v9404 = vpop.permute.xlu0 %9403
        %9405 = vrot.lane.b32.xlu0 %v9360, 64
        %v9406 = vpop.permute.xlu0 %9405
        %9407 = vrot.lane.b32.xlu0 %v9369, 64
        %v9408 = vpop.permute.xlu0 %9407
        %9409 = vrot.lane.b32.xlu0 %v9378, 64
        %v9410 = vpop.permute.xlu0 %9409
        %v9411 = vrot.slane %v8899, 2
        %v9412 = vrot.slane %v8947, 2
        %v9413 = vsel %vm6890, %v9411, %v9412
        %v9414 = vrot.slane %v8900, 2
        %v9415 = vrot.slane %v8948, 2
        %v9416 = vsel %vm6890, %v9414, %v9415
        %v9417 = vrot.slane %v8901, 2
        %v9418 = vrot.slane %v8949, 2
        %v9419 = vsel %vm6890, %v9417, %v9418
        %v9420 = vrot.slane %v8902, 2
        %v9421 = vrot.slane %v8950, 2
        %v9422 = vsel %vm6890, %v9420, %v9421
        %v9423 = vrot.slane %v8903, 2
        %v9424 = vrot.slane %v8951, 2
        %v9425 = vsel %vm6890, %v9423, %v9424
        %v9426 = vrot.slane %v8904, 2
        %v9427 = vrot.slane %v8952, 2
        %v9428 = vsel %vm6890, %v9426, %v9427
        %v9429 = vrot.slane %v8905, 2
        %v9430 = vrot.slane %v8953, 2
        %v9431 = vsel %vm6890, %v9429, %v9430
        %v9432 = vrot.slane %v8906, 2
        %v9433 = vrot.slane %v8954, 2
        %v9434 = vsel %vm6890, %v9432, %v9433
        %v9435 = vrot.slane %v8907, 2
        %v9436 = vrot.slane %v8955, 2
        %v9437 = vsel %vm6890, %v9435, %v9436
        %v9438 = vrot.slane %v8908, 2
        %v9439 = vrot.slane %v8956, 2
        %v9440 = vsel %vm6890, %v9438, %v9439
        %v9441 = vrot.slane %v8909, 2
        %v9442 = vrot.slane %v8957, 2
        %v9443 = vsel %vm6890, %v9441, %v9442
        %v9444 = vrot.slane %v8910, 2
        %v9445 = vrot.slane %v8958, 2
        %v9446 = vsel %vm6890, %v9444, %v9445
        %v9447 = vrot.slane %v8911, 2
        %v9448 = vrot.slane %v8959, 2
        %v9449 = vsel %vm6890, %v9447, %v9448
        %v9450 = vrot.slane %v8912, 2
        %v9451 = vrot.slane %v8960, 2
        %v9452 = vsel %vm6890, %v9450, %v9451
        %v9453 = vrot.slane %v8913, 2
        %v9454 = vrot.slane %v8961, 2
        %v9455 = vsel %vm6890, %v9453, %v9454
        %v9456 = vrot.slane %v8914, 2
        %v9457 = vrot.slane %v8962, 2
        %v9458 = vsel %vm6890, %v9456, %v9457
        %v9460 = vsel %vm3302, %v8899, %v9156
        %v9463 = vsel %vm3302, %v8900, %v9158
        %v9466 = vsel %vm3302, %v8901, %v9160
        %v9469 = vsel %vm3302, %v8902, %v9162
        %v9472 = vsel %vm3302, %v8903, %v9164
        %v9475 = vsel %vm3302, %v8904, %v9166
        %v9478 = vsel %vm3302, %v8905, %v9168
        %v9481 = vsel %vm3302, %v8906, %v9170
        %v9484 = vsel %vm3302, %v8907, %v9172
        %v9487 = vsel %vm3302, %v8908, %v9174
        %v9490 = vsel %vm3302, %v8909, %v9176
        %v9493 = vsel %vm3302, %v8910, %v9178
        %v9496 = vsel %vm3302, %v8911, %v9180
        %v9499 = vsel %vm3302, %v8912, %v9182
        %v9502 = vsel %vm3302, %v8913, %v9184
        %v9505 = vsel %vm3302, %v8914, %v9186
        %v9509 = vsel %vm3302, %v9189, %v9380
        %v9513 = vsel %vm3302, %v9192, %v9382
        %v9517 = vsel %vm3302, %v9195, %v9384
        %v9521 = vsel %vm3302, %v9198, %v9386
        %v9525 = vsel %vm3302, %v9201, %v9388
        %v9529 = vsel %vm3302, %v9204, %v9390
        %v9533 = vsel %vm3302, %v9207, %v9392
        %v9537 = vsel %vm3302, %v9210, %v9394
        %v9541 = vsel %vm3302, %v9213, %v9396
        %v9545 = vsel %vm3302, %v9216, %v9398
        %v9549 = vsel %vm3302, %v9219, %v9400
        %v9553 = vsel %vm3302, %v9222, %v9402
        %v9557 = vsel %vm3302, %v9225, %v9404
        %v9561 = vsel %vm3302, %v9228, %v9406
        %v9565 = vsel %vm3302, %v9231, %v9408
        %v9569 = vsel %vm3302, %v9234, %v9410
        %s9571 = scalar_lea.vmem %s3, 320
        %v9572 = vld [vmem:[%s9571] sm:$0xf]
        %v9573 = vld [vmem:[%s9571 + $0x4] sm:$0xf]
        %v9574 = vld [vmem:[%s9571 + $0x8] sm:$0xf]
        %v9575 = vld [vmem:[%s9571 + $0xc] sm:$0xf]
        %v9576 = vld [vmem:[%s9571 + $0x10] sm:$0xf]
        %v9577 = vld [vmem:[%s9571 + $0x14] sm:$0xf]
        %v9578 = vld [vmem:[%s9571 + $0x18] sm:$0xf]
        %v9579 = vld [vmem:[%s9571 + $0x1c] sm:$0xf]
        %v9580 = vld [vmem:[%s9571 + $0x20] sm:$0xf]
        %v9581 = vld [vmem:[%s9571 + $0x24] sm:$0xf]
        %v9582 = vld [vmem:[%s9571 + $0x28] sm:$0xf]
        %v9583 = vld [vmem:[%s9571 + $0x2c] sm:$0xf]
        %v9584 = vld [vmem:[%s9571 + $0x30] sm:$0xf]
        %v9585 = vld [vmem:[%s9571 + $0x34] sm:$0xf]
        %v9586 = vld [vmem:[%s9571 + $0x38] sm:$0xf]
        %v9587 = vld [vmem:[%s9571 + $0x3c] sm:$0xf]
        %v9588 = vld [vmem:[%s9571 + $0x40] sm:$0xf]
        %v9589 = vld [vmem:[%s9571 + $0x44] sm:$0xf]
        %v9590 = vld [vmem:[%s9571 + $0x48] sm:$0xf]
        %v9591 = vld [vmem:[%s9571 + $0x4c] sm:$0xf]
        %v9592 = vld [vmem:[%s9571 + $0x50] sm:$0xf]
        %v9593 = vld [vmem:[%s9571 + $0x54] sm:$0xf]
        %v9594 = vld [vmem:[%s9571 + $0x58] sm:$0xf]
        %v9595 = vld [vmem:[%s9571 + $0x5c] sm:$0xf]
        %v9596 = vld [vmem:[%s9571 + $0x60] sm:$0xf]
        %v9597 = vld [vmem:[%s9571 + $0x64] sm:$0xf]
        %v9598 = vld [vmem:[%s9571 + $0x68] sm:$0xf]
        %v9599 = vld [vmem:[%s9571 + $0x6c] sm:$0xf]
        %v9600 = vld [vmem:[%s9571 + $0x70] sm:$0xf]
        %v9601 = vld [vmem:[%s9571 + $0x74] sm:$0xf]
        %v9602 = vld [vmem:[%s9571 + $0x78] sm:$0xf]
        %v9603 = vld [vmem:[%s9571 + $0x7c] sm:$0xf]
        %v9604 = vld [vmem:[%s9571 + $0x80] sm:$0xf]
        %v9605 = vld [vmem:[%s9571 + $0x84] sm:$0xf]
        %v9606 = vld [vmem:[%s9571 + $0x88] sm:$0xf]
        %v9607 = vld [vmem:[%s9571 + $0x8c] sm:$0xf]
        %v9608 = vld [vmem:[%s9571 + $0x90] sm:$0xf]
        %v9609 = vld [vmem:[%s9571 + $0x94] sm:$0xf]
        %v9610 = vld [vmem:[%s9571 + $0x98] sm:$0xf]
        %v9611 = vld [vmem:[%s9571 + $0x9c] sm:$0xf]
        %v9652 = vunpack.c.l.b16 %v9572
        %v9653 = vunpack.c.l.b16 %v9573
        %v9654 = vunpack.c.l.b16 %v9574
        %v9655 = vunpack.c.l.b16 %v9575
        %v9656 = vunpack.c.l.b16 %v9576
        %v9657 = vunpack.c.l.b16 %v9577
        %v9658 = vunpack.c.l.b16 %v9578
        %v9659 = vunpack.c.l.b16 %v9579
        %v9660 = vunpack.c.l.b16 %v9580
        %v9661 = vunpack.c.l.b16 %v9581
        %v9662 = vunpack.c.l.b16 %v9582
        %v9663 = vunpack.c.l.b16 %v9583
        %v9664 = vunpack.c.l.b16 %v9584
        %v9665 = vunpack.c.l.b16 %v9585
        %v9666 = vunpack.c.l.b16 %v9586
        %v9667 = vunpack.c.l.b16 %v9587
        %v9668 = vunpack.c.l.b16 %v9588
        %v9669 = vunpack.c.l.b16 %v9589
        %v9670 = vunpack.c.l.b16 %v9590
        %v9671 = vunpack.c.l.b16 %v9591
        %v9672 = vunpack.c.l.b16 %v9592
        %v9673 = vunpack.c.l.b16 %v9593
        %v9674 = vunpack.c.l.b16 %v9594
        %v9675 = vunpack.c.l.b16 %v9595
        %v9676 = vunpack.c.l.b16 %v9596
        %v9677 = vunpack.c.l.b16 %v9597
        %v9678 = vunpack.c.l.b16 %v9598
        %v9679 = vunpack.c.l.b16 %v9599
        %v9680 = vunpack.c.l.b16 %v9600
        %v9681 = vunpack.c.l.b16 %v9601
        %v9682 = vunpack.c.l.b16 %v9602
        %v9683 = vunpack.c.l.b16 %v9603
        %v9684 = vunpack.c.l.b16 %v9604
        %v9685 = vunpack.c.l.b16 %v9605
        %v9686 = vunpack.c.l.b16 %v9606
        %v9687 = vunpack.c.l.b16 %v9607
        %v9688 = vunpack.c.l.b16 %v9608
        %v9689 = vunpack.c.l.b16 %v9609
        %v9690 = vunpack.c.l.b16 %v9610
        %v9691 = vunpack.c.l.b16 %v9611
        %v9692 = vpack.c.b16 %v9653, %v9652
        %v9693 = vpack.c.b16 %v9655, %v9654
        %v9694 = vpack.c.b16 %v9657, %v9656
        %v9695 = vpack.c.b16 %v9659, %v9658
        %v9696 = vpack.c.b16 %v9661, %v9660
        %v9697 = vpack.c.b16 %v9663, %v9662
        %v9698 = vpack.c.b16 %v9665, %v9664
        %v9699 = vpack.c.b16 %v9667, %v9666
        %v9700 = vpack.c.b16 %v9669, %v9668
        %v9701 = vpack.c.b16 %v9671, %v9670
        %v9702 = vpack.c.b16 %v9673, %v9672
        %v9703 = vpack.c.b16 %v9675, %v9674
        %v9704 = vpack.c.b16 %v9677, %v9676
        %v9705 = vpack.c.b16 %v9679, %v9678
        %v9706 = vpack.c.b16 %v9681, %v9680
        %v9707 = vpack.c.b16 %v9683, %v9682
        %v9708 = vpack.c.b16 %v9685, %v9684
        %v9709 = vpack.c.b16 %v9687, %v9686
        %v9710 = vpack.c.b16 %v9689, %v9688
        %v9711 = vpack.c.b16 %v9691, %v9690
        %v9733 = vsel %vm3302, %v9413, 0
        %v9736 = vsel %vm3302, %v9416, 0
        %v9739 = vsel %vm3302, %v9419, 0
        %v9742 = vsel %vm3302, %v9422, 0
        %v9745 = vsel %vm3302, %v9425, 0
        %v9748 = vsel %vm3302, %v9428, 0
        %v9751 = vsel %vm3302, %v9431, 0
        %v9754 = vsel %vm3302, %v9434, 0
        %v9757 = vsel %vm3302, %v9437, 0
        %v9760 = vsel %vm3302, %v9440, 0
        %v9763 = vsel %vm3302, %v9443, 0
        %v9766 = vsel %vm3302, %v9446, 0
        %v9769 = vsel %vm3302, %v9449, 0
        %v9772 = vsel %vm3302, %v9452, 0
        %v9775 = vsel %vm3302, %v9455, 0
        %v9778 = vsel %vm3302, %v9458, 0
        %9780 = vmatpush.bf16.msra.mxu0 %v9699
        %9781 = vmatpush.bf16.msra.mxu0 %v9698
        %9782 = vmatpush.bf16.msra.mxu0 %v9697
        %9783 = vmatpush.bf16.msra.mxu0 %v9696
        %9784 = vmatpush.bf16.msra.mxu0 %v9695
        %9785 = vmatpush.bf16.msra.mxu0 %v9694
        %9786 = vmatpush.bf16.msra.mxu0 %v9693
        %9787 = vmatpush.bf16.msra.mxu0 %v9692
        %9788 = vmatmul.bf16.gmra.mxu0 %v9460
        %v9789 = vpop.f32.mrf.mxu0
        %v9790 = vadd.f32 0.0, %v9789
        %v9791 = vpop.f32.mrf.mxu0
        %v9792 = vadd.f32 0.0, %v9791
        %9793 = vmatmul.bf16.gmra.mxu0 %v9463
        %v9794 = vpop.f32.mrf.mxu0
        %v9795 = vadd.f32 0.0, %v9794
        %v9796 = vpop.f32.mrf.mxu0
        %v9797 = vadd.f32 0.0, %v9796
        %9798 = vmatmul.bf16.gmra.mxu0 %v9466
        %v9799 = vpop.f32.mrf.mxu0
        %v9800 = vadd.f32 0.0, %v9799
        %v9801 = vpop.f32.mrf.mxu0
        %v9802 = vadd.f32 0.0, %v9801
        %9803 = vmatmul.bf16.gmra.mxu0 %v9469
        %v9804 = vpop.f32.mrf.mxu0
        %v9805 = vadd.f32 0.0, %v9804
        %v9806 = vpop.f32.mrf.mxu0
        %v9807 = vadd.f32 0.0, %v9806
        %9808 = vmatmul.bf16.gmra.mxu0 %v9472
        %v9809 = vpop.f32.mrf.mxu0
        %v9810 = vadd.f32 0.0, %v9809
        %v9811 = vpop.f32.mrf.mxu0
        %v9812 = vadd.f32 0.0, %v9811
        %9813 = vmatmul.bf16.gmra.mxu0 %v9475
        %v9814 = vpop.f32.mrf.mxu0
        %v9815 = vadd.f32 0.0, %v9814
        %v9816 = vpop.f32.mrf.mxu0
        %v9817 = vadd.f32 0.0, %v9816
        %9818 = vmatmul.bf16.gmra.mxu0 %v9478
        %v9819 = vpop.f32.mrf.mxu0
        %v9820 = vadd.f32 0.0, %v9819
        %v9821 = vpop.f32.mrf.mxu0
        %v9822 = vadd.f32 0.0, %v9821
        %9823 = vmatmul.bf16.gmra.mxu0 %v9481
        %v9824 = vpop.f32.mrf.mxu0
        %v9825 = vadd.f32 0.0, %v9824
        %v9826 = vpop.f32.mrf.mxu0
        %v9827 = vadd.f32 0.0, %v9826
        %9828 = vmatmul.bf16.gmra.mxu0 %v9484
        %v9829 = vpop.f32.mrf.mxu0
        %v9830 = vadd.f32 0.0, %v9829
        %v9831 = vpop.f32.mrf.mxu0
        %v9832 = vadd.f32 0.0, %v9831
        %9833 = vmatmul.bf16.gmra.mxu0 %v9487
        %v9834 = vpop.f32.mrf.mxu0
        %v9835 = vadd.f32 0.0, %v9834
        %v9836 = vpop.f32.mrf.mxu0
        %v9837 = vadd.f32 0.0, %v9836
        %9838 = vmatmul.bf16.gmra.mxu0 %v9490
        %v9839 = vpop.f32.mrf.mxu0
        %v9840 = vadd.f32 0.0, %v9839
        %v9841 = vpop.f32.mrf.mxu0
        %v9842 = vadd.f32 0.0, %v9841
        %9843 = vmatmul.bf16.gmra.mxu0 %v9493
        %v9844 = vpop.f32.mrf.mxu0
        %v9845 = vadd.f32 0.0, %v9844
        %v9846 = vpop.f32.mrf.mxu0
        %v9847 = vadd.f32 0.0, %v9846
        %9848 = vmatmul.bf16.gmra.mxu0 %v9496
        %v9849 = vpop.f32.mrf.mxu0
        %v9850 = vadd.f32 0.0, %v9849
        %v9851 = vpop.f32.mrf.mxu0
        %v9852 = vadd.f32 0.0, %v9851
        %9853 = vmatmul.bf16.gmra.mxu0 %v9499
        %v9854 = vpop.f32.mrf.mxu0
        %v9855 = vadd.f32 0.0, %v9854
        %v9856 = vpop.f32.mrf.mxu0
        %v9857 = vadd.f32 0.0, %v9856
        %9858 = vmatmul.bf16.gmra.mxu0 %v9502
        %v9859 = vpop.f32.mrf.mxu0
        %v9860 = vadd.f32 0.0, %v9859
        %v9861 = vpop.f32.mrf.mxu0
        %v9862 = vadd.f32 0.0, %v9861
        %9863 = vmatmul.bf16.gmra.mxu0 %v9505
        %v9864 = vpop.f32.mrf.mxu0
        %v9865 = vadd.f32 0.0, %v9864
        %v9866 = vpop.f32.mrf.mxu0
        %v9867 = vadd.f32 0.0, %v9866
        %9868 = vdwg.mxu0
        %9869 = vmatpush.bf16.msra.mxu0 %v9707
        %9870 = vmatpush.bf16.msra.mxu0 %v9706
        %9871 = vmatpush.bf16.msra.mxu0 %v9705
        %9872 = vmatpush.bf16.msra.mxu0 %v9704
        %9873 = vmatpush.bf16.msra.mxu0 %v9703
        %9874 = vmatpush.bf16.msra.mxu0 %v9702
        %9875 = vmatpush.bf16.msra.mxu0 %v9701
        %9876 = vmatpush.bf16.msra.mxu0 %v9700
        %9877 = vmatmul.bf16.gmra.mxu0 %v9509
        %v9878 = vpop.f32.mrf.mxu0
        %v9879 = vadd.f32 %v9790, %v9878
        %v9880 = vpop.f32.mrf.mxu0
        %v9881 = vadd.f32 %v9792, %v9880
        %9882 = vmatmul.bf16.gmra.mxu0 %v9513
        %v9883 = vpop.f32.mrf.mxu0
        %v9884 = vadd.f32 %v9795, %v9883
        %v9885 = vpop.f32.mrf.mxu0
        %v9886 = vadd.f32 %v9797, %v9885
        %9887 = vmatmul.bf16.gmra.mxu0 %v9517
        %v9888 = vpop.f32.mrf.mxu0
        %v9889 = vadd.f32 %v9800, %v9888
        %v9890 = vpop.f32.mrf.mxu0
        %v9891 = vadd.f32 %v9802, %v9890
        %9892 = vmatmul.bf16.gmra.mxu0 %v9521
        %v9893 = vpop.f32.mrf.mxu0
        %v9894 = vadd.f32 %v9805, %v9893
        %v9895 = vpop.f32.mrf.mxu0
        %v9896 = vadd.f32 %v9807, %v9895
        %9897 = vmatmul.bf16.gmra.mxu0 %v9525
        %v9898 = vpop.f32.mrf.mxu0
        %v9899 = vadd.f32 %v9810, %v9898
        %v9900 = vpop.f32.mrf.mxu0
        %v9901 = vadd.f32 %v9812, %v9900
        %9902 = vmatmul.bf16.gmra.mxu0 %v9529
        %v9903 = vpop.f32.mrf.mxu0
        %v9904 = vadd.f32 %v9815, %v9903
        %v9905 = vpop.f32.mrf.mxu0
        %v9906 = vadd.f32 %v9817, %v9905
        %9907 = vmatmul.bf16.gmra.mxu0 %v9533
        %v9908 = vpop.f32.mrf.mxu0
        %v9909 = vadd.f32 %v9820, %v9908
        %v9910 = vpop.f32.mrf.mxu0
        %v9911 = vadd.f32 %v9822, %v9910
        %9912 = vmatmul.bf16.gmra.mxu0 %v9537
        %v9913 = vpop.f32.mrf.mxu0
        %v9914 = vadd.f32 %v9825, %v9913
        %v9915 = vpop.f32.mrf.mxu0
        %v9916 = vadd.f32 %v9827, %v9915
        %9917 = vmatmul.bf16.gmra.mxu0 %v9541
        %v9918 = vpop.f32.mrf.mxu0
        %v9919 = vadd.f32 %v9830, %v9918
        %v9920 = vpop.f32.mrf.mxu0
        %v9921 = vadd.f32 %v9832, %v9920
        %9922 = vmatmul.bf16.gmra.mxu0 %v9545
        %v9923 = vpop.f32.mrf.mxu0
        %v9924 = vadd.f32 %v9835, %v9923
        %v9925 = vpop.f32.mrf.mxu0
        %v9926 = vadd.f32 %v9837, %v9925
        %9927 = vmatmul.bf16.gmra.mxu0 %v9549
        %v9928 = vpop.f32.mrf.mxu0
        %v9929 = vadd.f32 %v9840, %v9928
        %v9930 = vpop.f32.mrf.mxu0
        %v9931 = vadd.f32 %v9842, %v9930
        %9932 = vmatmul.bf16.gmra.mxu0 %v9553
        %v9933 = vpop.f32.mrf.mxu0
        %v9934 = vadd.f32 %v9845, %v9933
        %v9935 = vpop.f32.mrf.mxu0
        %v9936 = vadd.f32 %v9847, %v9935
        %9937 = vmatmul.bf16.gmra.mxu0 %v9557
        %v9938 = vpop.f32.mrf.mxu0
        %v9939 = vadd.f32 %v9850, %v9938
        %v9940 = vpop.f32.mrf.mxu0
        %v9941 = vadd.f32 %v9852, %v9940
        %9942 = vmatmul.bf16.gmra.mxu0 %v9561
        %v9943 = vpop.f32.mrf.mxu0
        %v9944 = vadd.f32 %v9855, %v9943
        %v9945 = vpop.f32.mrf.mxu0
        %v9946 = vadd.f32 %v9857, %v9945
        %9947 = vmatmul.bf16.gmra.mxu0 %v9565
        %v9948 = vpop.f32.mrf.mxu0
        %v9949 = vadd.f32 %v9860, %v9948
        %v9950 = vpop.f32.mrf.mxu0
        %v9951 = vadd.f32 %v9862, %v9950
        %9952 = vmatmul.bf16.gmra.mxu0 %v9569
        %v9953 = vpop.f32.mrf.mxu0
        %v9954 = vadd.f32 %v9865, %v9953
        %v9955 = vpop.f32.mrf.mxu0
        %v9956 = vadd.f32 %v9867, %v9955
        %9957 = vdwg.mxu0
        %9958 = vmatpush.bf16.msra.mxu0 0
        %9959 = vmatpush.bf16.msra.mxu0 0
        %9960 = vmatpush.bf16.msra.mxu0 0
        %9961 = vmatpush.bf16.msra.mxu0 0
        %9962 = vmatpush.bf16.msra.mxu0 %v9711
        %9963 = vmatpush.bf16.msra.mxu0 %v9710
        %9964 = vmatpush.bf16.msra.mxu0 %v9709
        %9965 = vmatpush.bf16.msra.mxu0 %v9708
        %9966 = vmatmul.bf16.gmra.mxu0 %v9733
        %v9967 = vpop.f32.mrf.mxu0
        %v9968 = vadd.f32 %v9879, %v9967
        %v9969 = vpop.f32.mrf.mxu0
        %v9970 = vadd.f32 %v9881, %v9969
        %9971 = vmatmul.bf16.gmra.mxu0 %v9736
        %v9972 = vpop.f32.mrf.mxu0
        %v9973 = vadd.f32 %v9884, %v9972
        %v9974 = vpop.f32.mrf.mxu0
        %v9975 = vadd.f32 %v9886, %v9974
        %9976 = vmatmul.bf16.gmra.mxu0 %v9739
        %v9977 = vpop.f32.mrf.mxu0
        %v9978 = vadd.f32 %v9889, %v9977
        %v9979 = vpop.f32.mrf.mxu0
        %v9980 = vadd.f32 %v9891, %v9979
        %9981 = vmatmul.bf16.gmra.mxu0 %v9742
        %v9982 = vpop.f32.mrf.mxu0
        %v9983 = vadd.f32 %v9894, %v9982
        %v9984 = vpop.f32.mrf.mxu0
        %v9985 = vadd.f32 %v9896, %v9984
        %9986 = vmatmul.bf16.gmra.mxu0 %v9745
        %v9987 = vpop.f32.mrf.mxu0
        %v9988 = vadd.f32 %v9899, %v9987
        %v9989 = vpop.f32.mrf.mxu0
        %v9990 = vadd.f32 %v9901, %v9989
        %9991 = vmatmul.bf16.gmra.mxu0 %v9748
        %v9992 = vpop.f32.mrf.mxu0
        %v9993 = vadd.f32 %v9904, %v9992
        %v9994 = vpop.f32.mrf.mxu0
        %v9995 = vadd.f32 %v9906, %v9994
        %9996 = vmatmul.bf16.gmra.mxu0 %v9751
        %v9997 = vpop.f32.mrf.mxu0
        %v9998 = vadd.f32 %v9909, %v9997
        %v9999 = vpop.f32.mrf.mxu0
        %v10000 = vadd.f32 %v9911, %v9999
        %10001 = vmatmul.bf16.gmra.mxu0 %v9754
        %v10002 = vpop.f32.mrf.mxu0
        %v10003 = vadd.f32 %v9914, %v10002
        %v10004 = vpop.f32.mrf.mxu0
        %v10005 = vadd.f32 %v9916, %v10004
        %10006 = vmatmul.bf16.gmra.mxu0 %v9757
        %v10007 = vpop.f32.mrf.mxu0
        %v10008 = vadd.f32 %v9919, %v10007
        %v10009 = vpop.f32.mrf.mxu0
        %v10010 = vadd.f32 %v9921, %v10009
        %10011 = vmatmul.bf16.gmra.mxu0 %v9760
        %v10012 = vpop.f32.mrf.mxu0
        %v10013 = vadd.f32 %v9924, %v10012
        %v10014 = vpop.f32.mrf.mxu0
        %v10015 = vadd.f32 %v9926, %v10014
        %10016 = vmatmul.bf16.gmra.mxu0 %v9763
        %v10017 = vpop.f32.mrf.mxu0
        %v10018 = vadd.f32 %v9929, %v10017
        %v10019 = vpop.f32.mrf.mxu0
        %v10020 = vadd.f32 %v9931, %v10019
        %10021 = vmatmul.bf16.gmra.mxu0 %v9766
        %v10022 = vpop.f32.mrf.mxu0
        %v10023 = vadd.f32 %v9934, %v10022
        %v10024 = vpop.f32.mrf.mxu0
        %v10025 = vadd.f32 %v9936, %v10024
        %10026 = vmatmul.bf16.gmra.mxu0 %v9769
        %v10027 = vpop.f32.mrf.mxu0
        %v10028 = vadd.f32 %v9939, %v10027
        %v10029 = vpop.f32.mrf.mxu0
        %v10030 = vadd.f32 %v9941, %v10029
        %10031 = vmatmul.bf16.gmra.mxu0 %v9772
        %v10032 = vpop.f32.mrf.mxu0
        %v10033 = vadd.f32 %v9944, %v10032
        %v10034 = vpop.f32.mrf.mxu0
        %v10035 = vadd.f32 %v9946, %v10034
        %10036 = vmatmul.bf16.gmra.mxu0 %v9775
        %v10037 = vpop.f32.mrf.mxu0
        %v10038 = vadd.f32 %v9949, %v10037
        %v10039 = vpop.f32.mrf.mxu0
        %v10040 = vadd.f32 %v9951, %v10039
        %10041 = vmatmul.bf16.gmra.mxu0 %v9778
        %v10042 = vpop.f32.mrf.mxu0
        %v10043 = vadd.f32 %v9954, %v10042
        %v10044 = vpop.f32.mrf.mxu0
        %v10045 = vadd.f32 %v9956, %v10044
        %10046 = vdwg.mxu0
        %v10047 = vadd.f32 %v8708, %v9968
        %v10048 = vadd.f32 %v8710, %v9970
        %v10049 = vadd.f32 %v8713, %v9973
        %v10050 = vadd.f32 %v8715, %v9975
        %v10051 = vadd.f32 %v8718, %v9978
        %v10052 = vadd.f32 %v8720, %v9980
        %v10053 = vadd.f32 %v8723, %v9983
        %v10054 = vadd.f32 %v8725, %v9985
        %v10055 = vadd.f32 %v8728, %v9988
        %v10056 = vadd.f32 %v8730, %v9990
        %v10057 = vadd.f32 %v8733, %v9993
        %v10058 = vadd.f32 %v8735, %v9995
        %v10059 = vadd.f32 %v8738, %v9998
        %v10060 = vadd.f32 %v8740, %v10000
        %v10061 = vadd.f32 %v8743, %v10003
        %v10062 = vadd.f32 %v8745, %v10005
        %v10063 = vadd.f32 %v8748, %v10008
        %v10064 = vadd.f32 %v8750, %v10010
        %v10065 = vadd.f32 %v8753, %v10013
        %v10066 = vadd.f32 %v8755, %v10015
        %v10067 = vadd.f32 %v8758, %v10018
        %v10068 = vadd.f32 %v8760, %v10020
        %v10069 = vadd.f32 %v8763, %v10023
        %v10070 = vadd.f32 %v8765, %v10025
        %v10071 = vadd.f32 %v8768, %v10028
        %v10072 = vadd.f32 %v8770, %v10030
        %v10073 = vadd.f32 %v8773, %v10033
        %v10074 = vadd.f32 %v8775, %v10035
        %v10075 = vadd.f32 %v8778, %v10038
        %v10076 = vadd.f32 %v8780, %v10040
        %v10077 = vadd.f32 %v8783, %v10043
        %v10078 = vadd.f32 %v8785, %v10045
        %s10079 = scalar_lea.vmem [#allocation3], 36
        %v10080 = vld [vmem:[%s10079] sm:$0xf]
        %v10081 = vld [vmem:[%s10079 + $0x4] sm:$0xf]
        %v10082 = vld [vmem:[%s10079 + $0x8] sm:$0x3]
        %v10083 = vld [vmem:[%s10079 + $0xc] sm:$0xf]
        %v10084 = vld [vmem:[%s10079 + $0x10] sm:$0xf]
        %v10085 = vld [vmem:[%s10079 + $0x14] sm:$0x3]
        %v10086 = vld [vmem:[%s10079 + $0x18] sm:$0xf]
        %v10087 = vld [vmem:[%s10079 + $0x1c] sm:$0xf]
        %v10088 = vld [vmem:[%s10079 + $0x20] sm:$0x3]
        %v10089 = vld [vmem:[%s10079 + $0x24] sm:$0xf]
        %v10090 = vld [vmem:[%s10079 + $0x28] sm:$0xf]
        %v10091 = vld [vmem:[%s10079 + $0x2c] sm:$0x3]
        %v10092 = vld [vmem:[%s10079 + $0x30] sm:$0xf]
        %v10093 = vld [vmem:[%s10079 + $0x34] sm:$0xf]
        %v10094 = vld [vmem:[%s10079 + $0x38] sm:$0x3]
        %v10095 = vld [vmem:[%s10079 + $0x3c] sm:$0xf]
        %v10096 = vld [vmem:[%s10079 + $0x40] sm:$0xf]
        %v10097 = vld [vmem:[%s10079 + $0x44] sm:$0x3]
        %v10098 = vld [vmem:[%s10079 + $0x48] sm:$0xf]
        %v10099 = vld [vmem:[%s10079 + $0x4c] sm:$0xf]
        %v10100 = vld [vmem:[%s10079 + $0x50] sm:$0x3]
        %v10101 = vld [vmem:[%s10079 + $0x54] sm:$0xf]
        %v10102 = vld [vmem:[%s10079 + $0x58] sm:$0xf]
        %v10103 = vld [vmem:[%s10079 + $0x5c] sm:$0x3]
        %v10104 = vld [vmem:[%s10079 + $0x60] sm:$0xf]
        %v10105 = vld [vmem:[%s10079 + $0x64] sm:$0xf]
        %v10106 = vld [vmem:[%s10079 + $0x68] sm:$0x3]
        %v10107 = vld [vmem:[%s10079 + $0x6c] sm:$0xf]
        %v10108 = vld [vmem:[%s10079 + $0x70] sm:$0xf]
        %v10109 = vld [vmem:[%s10079 + $0x74] sm:$0x3]
        %v10110 = vld [vmem:[%s10079 + $0x78] sm:$0xf]
        %v10111 = vld [vmem:[%s10079 + $0x7c] sm:$0xf]
        %v10112 = vld [vmem:[%s10079 + $0x80] sm:$0x3]
        %v10113 = vld [vmem:[%s10079 + $0x84] sm:$0xf]
        %v10114 = vld [vmem:[%s10079 + $0x88] sm:$0xf]
        %v10115 = vld [vmem:[%s10079 + $0x8c] sm:$0x3]
        %v10116 = vld [vmem:[%s10079 + $0x90] sm:$0xf]
        %v10117 = vld [vmem:[%s10079 + $0x94] sm:$0xf]
        %v10118 = vld [vmem:[%s10079 + $0x98] sm:$0x3]
        %v10119 = vld [vmem:[%s10079 + $0x9c] sm:$0xf]
        %v10120 = vld [vmem:[%s10079 + $0xa0] sm:$0xf]
        %v10121 = vld [vmem:[%s10079 + $0xa4] sm:$0x3]
        %v10122 = vld [vmem:[%s10079 + $0xa8] sm:$0xf]
        %v10123 = vld [vmem:[%s10079 + $0xac] sm:$0xf]
        %v10124 = vld [vmem:[%s10079 + $0xb0] sm:$0x3]
        %v10125 = vld [vmem:[%s10079 + $0xb4] sm:$0xf]
        %v10126 = vld [vmem:[%s10079 + $0xb8] sm:$0xf]
        %v10127 = vld [vmem:[%s10079 + $0xbc] sm:$0x3]
        %v10160 = vunpack.c.l.b16 %v10080
        %v10161 = vunpack.c.l.b16 %v10081
        %v10162 = vunpack.c.l.b16 %v10083
        %v10163 = vunpack.c.l.b16 %v10084
        %v10164 = vunpack.c.l.b16 %v10086
        %v10165 = vunpack.c.l.b16 %v10087
        %v10166 = vunpack.c.l.b16 %v10089
        %v10167 = vunpack.c.l.b16 %v10090
        %v10168 = vunpack.c.l.b16 %v10092
        %v10169 = vunpack.c.l.b16 %v10093
        %v10170 = vunpack.c.l.b16 %v10095
        %v10171 = vunpack.c.l.b16 %v10096
        %v10172 = vunpack.c.l.b16 %v10098
        %v10173 = vunpack.c.l.b16 %v10099
        %v10174 = vunpack.c.l.b16 %v10101
        %v10175 = vunpack.c.l.b16 %v10102
        %v10176 = vunpack.c.l.b16 %v10104
        %v10177 = vunpack.c.l.b16 %v10105
        %v10178 = vunpack.c.l.b16 %v10107
        %v10179 = vunpack.c.l.b16 %v10108
        %v10180 = vunpack.c.l.b16 %v10110
        %v10181 = vunpack.c.l.b16 %v10111
        %v10182 = vunpack.c.l.b16 %v10113
        %v10183 = vunpack.c.l.b16 %v10114
        %v10184 = vunpack.c.l.b16 %v10116
        %v10185 = vunpack.c.l.b16 %v10117
        %v10186 = vunpack.c.l.b16 %v10119
        %v10187 = vunpack.c.l.b16 %v10120
        %v10188 = vunpack.c.l.b16 %v10122
        %v10189 = vunpack.c.l.b16 %v10123
        %v10190 = vunpack.c.l.b16 %v10125
        %v10191 = vunpack.c.l.b16 %v10126
        %v10192 = vpack.c.b16 %v10161, %v10160
        %v10193 = vpack.c.b16 %v10163, %v10162
        %v10194 = vpack.c.b16 %v10165, %v10164
        %v10195 = vpack.c.b16 %v10167, %v10166
        %v10196 = vpack.c.b16 %v10169, %v10168
        %v10197 = vpack.c.b16 %v10171, %v10170
        %v10198 = vpack.c.b16 %v10173, %v10172
        %v10199 = vpack.c.b16 %v10175, %v10174
        %v10200 = vpack.c.b16 %v10177, %v10176
        %v10201 = vpack.c.b16 %v10179, %v10178
        %v10202 = vpack.c.b16 %v10181, %v10180
        %v10203 = vpack.c.b16 %v10183, %v10182
        %v10204 = vpack.c.b16 %v10185, %v10184
        %v10205 = vpack.c.b16 %v10187, %v10186
        %v10206 = vpack.c.b16 %v10189, %v10188
        %v10207 = vpack.c.b16 %v10191, %v10190
        %v10224 = vunpack.c.l.b16 %v10082
        %v10225 = vunpack.c.l.b16 %v10085
        %v10226 = vunpack.c.l.b16 %v10088
        %v10227 = vunpack.c.l.b16 %v10091
        %v10228 = vunpack.c.l.b16 %v10094
        %v10229 = vunpack.c.l.b16 %v10097
        %v10230 = vunpack.c.l.b16 %v10100
        %v10231 = vunpack.c.l.b16 %v10103
        %v10232 = vunpack.c.l.b16 %v10106
        %v10233 = vunpack.c.l.b16 %v10109
        %v10234 = vunpack.c.l.b16 %v10112
        %v10235 = vunpack.c.l.b16 %v10115
        %v10236 = vunpack.c.l.b16 %v10118
        %v10237 = vunpack.c.l.b16 %v10121
        %v10238 = vunpack.c.l.b16 %v10124
        %v10239 = vunpack.c.l.b16 %v10127
        %v10240 = vpack.c.b16 %v10224, %v10224
        %v10241 = vpack.c.b16 %v10225, %v10225
        %v10242 = vpack.c.b16 %v10226, %v10226
        %v10243 = vpack.c.b16 %v10227, %v10227
        %v10244 = vpack.c.b16 %v10228, %v10228
        %v10245 = vpack.c.b16 %v10229, %v10229
        %v10246 = vpack.c.b16 %v10230, %v10230
        %v10247 = vpack.c.b16 %v10231, %v10231
        %v10248 = vpack.c.b16 %v10232, %v10232
        %v10249 = vpack.c.b16 %v10233, %v10233
        %v10250 = vpack.c.b16 %v10234, %v10234
        %v10251 = vpack.c.b16 %v10235, %v10235
        %v10252 = vpack.c.b16 %v10236, %v10236
        %v10253 = vpack.c.b16 %v10237, %v10237
        %v10254 = vpack.c.b16 %v10238, %v10238
        %v10255 = vpack.c.b16 %v10239, %v10239
        %v10257 = vshrl.u32 %v10192, 16
        %v10259 = vshll.u32 %v10192, 16
        %v10261 = vrot.slane %v10259, 1
        %v10262 = vor.u32 %v10257, %v10261
        %v10264 = vshll.u32 %v10240, 16
        %v10266 = vrot.slane %v10264, 1
        %v10267 = vsel %vm3028, %v10262, %v10266
        %v10269 = vshrl.u32 %v10193, 16
        %v10271 = vshll.u32 %v10193, 16
        %v10273 = vrot.slane %v10271, 1
        %v10274 = vor.u32 %v10269, %v10273
        %v10276 = vshll.u32 %v10241, 16
        %v10278 = vrot.slane %v10276, 1
        %v10279 = vsel %vm3028, %v10274, %v10278
        %v10281 = vshrl.u32 %v10194, 16
        %v10283 = vshll.u32 %v10194, 16
        %v10285 = vrot.slane %v10283, 1
        %v10286 = vor.u32 %v10281, %v10285
        %v10288 = vshll.u32 %v10242, 16
        %v10290 = vrot.slane %v10288, 1
        %v10291 = vsel %vm3028, %v10286, %v10290
        %v10293 = vshrl.u32 %v10195, 16
        %v10295 = vshll.u32 %v10195, 16
        %v10297 = vrot.slane %v10295, 1
        %v10298 = vor.u32 %v10293, %v10297
        %v10300 = vshll.u32 %v10243, 16
        %v10302 = vrot.slane %v10300, 1
        %v10303 = vsel %vm3028, %v10298, %v10302
        %v10305 = vshrl.u32 %v10196, 16
        %v10307 = vshll.u32 %v10196, 16
        %v10309 = vrot.slane %v10307, 1
        %v10310 = vor.u32 %v10305, %v10309
        %v10312 = vshll.u32 %v10244, 16
        %v10314 = vrot.slane %v10312, 1
        %v10315 = vsel %vm3028, %v10310, %v10314
        %v10317 = vshrl.u32 %v10197, 16
        %v10319 = vshll.u32 %v10197, 16
        %v10321 = vrot.slane %v10319, 1
        %v10322 = vor.u32 %v10317, %v10321
        %v10324 = vshll.u32 %v10245, 16
        %v10326 = vrot.slane %v10324, 1
        %v10327 = vsel %vm3028, %v10322, %v10326
        %v10329 = vshrl.u32 %v10198, 16
        %v10331 = vshll.u32 %v10198, 16
        %v10333 = vrot.slane %v10331, 1
        %v10334 = vor.u32 %v10329, %v10333
        %v10336 = vshll.u32 %v10246, 16
        %v10338 = vrot.slane %v10336, 1
        %v10339 = vsel %vm3028, %v10334, %v10338
        %v10341 = vshrl.u32 %v10199, 16
        %v10343 = vshll.u32 %v10199, 16
        %v10345 = vrot.slane %v10343, 1
        %v10346 = vor.u32 %v10341, %v10345
        %v10348 = vshll.u32 %v10247, 16
        %v10350 = vrot.slane %v10348, 1
        %v10351 = vsel %vm3028, %v10346, %v10350
        %v10353 = vshrl.u32 %v10200, 16
        %v10355 = vshll.u32 %v10200, 16
        %v10357 = vrot.slane %v10355, 1
        %v10358 = vor.u32 %v10353, %v10357
        %v10360 = vshll.u32 %v10248, 16
        %v10362 = vrot.slane %v10360, 1
        %v10363 = vsel %vm3028, %v10358, %v10362
        %v10365 = vshrl.u32 %v10201, 16
        %v10367 = vshll.u32 %v10201, 16
        %v10369 = vrot.slane %v10367, 1
        %v10370 = vor.u32 %v10365, %v10369
        %v10372 = vshll.u32 %v10249, 16
        %v10374 = vrot.slane %v10372, 1
        %v10375 = vsel %vm3028, %v10370, %v10374
        %v10377 = vshrl.u32 %v10202, 16
        %v10379 = vshll.u32 %v10202, 16
        %v10381 = vrot.slane %v10379, 1
        %v10382 = vor.u32 %v10377, %v10381
        %v10384 = vshll.u32 %v10250, 16
        %v10386 = vrot.slane %v10384, 1
        %v10387 = vsel %vm3028, %v10382, %v10386
        %v10389 = vshrl.u32 %v10203, 16
        %v10391 = vshll.u32 %v10203, 16
        %v10393 = vrot.slane %v10391, 1
        %v10394 = vor.u32 %v10389, %v10393
        %v10396 = vshll.u32 %v10251, 16
        %v10398 = vrot.slane %v10396, 1
        %v10399 = vsel %vm3028, %v10394, %v10398
        %v10401 = vshrl.u32 %v10204, 16
        %v10403 = vshll.u32 %v10204, 16
        %v10405 = vrot.slane %v10403, 1
        %v10406 = vor.u32 %v10401, %v10405
        %v10408 = vshll.u32 %v10252, 16
        %v10410 = vrot.slane %v10408, 1
        %v10411 = vsel %vm3028, %v10406, %v10410
        %v10413 = vshrl.u32 %v10205, 16
        %v10415 = vshll.u32 %v10205, 16
        %v10417 = vrot.slane %v10415, 1
        %v10418 = vor.u32 %v10413, %v10417
        %v10420 = vshll.u32 %v10253, 16
        %v10422 = vrot.slane %v10420, 1
        %v10423 = vsel %vm3028, %v10418, %v10422
        %v10425 = vshrl.u32 %v10206, 16
        %v10427 = vshll.u32 %v10206, 16
        %v10429 = vrot.slane %v10427, 1
        %v10430 = vor.u32 %v10425, %v10429
        %v10432 = vshll.u32 %v10254, 16
        %v10434 = vrot.slane %v10432, 1
        %v10435 = vsel %vm3028, %v10430, %v10434
        %v10437 = vshrl.u32 %v10207, 16
        %v10439 = vshll.u32 %v10207, 16
        %v10441 = vrot.slane %v10439, 1
        %v10442 = vor.u32 %v10437, %v10441
        %v10444 = vshll.u32 %v10255, 16
        %v10446 = vrot.slane %v10444, 1
        %v10447 = vsel %vm3028, %v10442, %v10446
        %10448 = vrot.lane.b32.xlu0 %v10267, 64
        %v10449 = vpop.permute.xlu0 %10448
        %10450 = vrot.lane.b32.xlu0 %v10279, 64
        %v10451 = vpop.permute.xlu0 %10450
        %10452 = vrot.lane.b32.xlu0 %v10291, 64
        %v10453 = vpop.permute.xlu0 %10452
        %10454 = vrot.lane.b32.xlu0 %v10303, 64
        %v10455 = vpop.permute.xlu0 %10454
        %10456 = vrot.lane.b32.xlu0 %v10315, 64
        %v10457 = vpop.permute.xlu0 %10456
        %10458 = vrot.lane.b32.xlu0 %v10327, 64
        %v10459 = vpop.permute.xlu0 %10458
        %10460 = vrot.lane.b32.xlu0 %v10339, 64
        %v10461 = vpop.permute.xlu0 %10460
        %10462 = vrot.lane.b32.xlu0 %v10351, 64
        %v10463 = vpop.permute.xlu0 %10462
        %10464 = vrot.lane.b32.xlu0 %v10363, 64
        %v10465 = vpop.permute.xlu0 %10464
        %10466 = vrot.lane.b32.xlu0 %v10375, 64
        %v10467 = vpop.permute.xlu0 %10466
        %10468 = vrot.lane.b32.xlu0 %v10387, 64
        %v10469 = vpop.permute.xlu0 %10468
        %10470 = vrot.lane.b32.xlu0 %v10399, 64
        %v10471 = vpop.permute.xlu0 %10470
        %10472 = vrot.lane.b32.xlu0 %v10411, 64
        %v10473 = vpop.permute.xlu0 %10472
        %10474 = vrot.lane.b32.xlu0 %v10423, 64
        %v10475 = vpop.permute.xlu0 %10474
        %10476 = vrot.lane.b32.xlu0 %v10435, 64
        %v10477 = vpop.permute.xlu0 %10476
        %10478 = vrot.lane.b32.xlu0 %v10447, 64
        %v10479 = vpop.permute.xlu0 %10478
        %v10480 = vrot.slane %v10192, 1
        %v10481 = vrot.slane %v10240, 1
        %v10482 = vsel %vm3253, %v10480, %v10481
        %v10483 = vrot.slane %v10193, 1
        %v10484 = vrot.slane %v10241, 1
        %v10485 = vsel %vm3253, %v10483, %v10484
        %v10486 = vrot.slane %v10194, 1
        %v10487 = vrot.slane %v10242, 1
        %v10488 = vsel %vm3253, %v10486, %v10487
        %v10489 = vrot.slane %v10195, 1
        %v10490 = vrot.slane %v10243, 1
        %v10491 = vsel %vm3253, %v10489, %v10490
        %v10492 = vrot.slane %v10196, 1
        %v10493 = vrot.slane %v10244, 1
        %v10494 = vsel %vm3253, %v10492, %v10493
        %v10495 = vrot.slane %v10197, 1
        %v10496 = vrot.slane %v10245, 1
        %v10497 = vsel %vm3253, %v10495, %v10496
        %v10498 = vrot.slane %v10198, 1
        %v10499 = vrot.slane %v10246, 1
        %v10500 = vsel %vm3253, %v10498, %v10499
        %v10501 = vrot.slane %v10199, 1
        %v10502 = vrot.slane %v10247, 1
        %v10503 = vsel %vm3253, %v10501, %v10502
        %v10504 = vrot.slane %v10200, 1
        %v10505 = vrot.slane %v10248, 1
        %v10506 = vsel %vm3253, %v10504, %v10505
        %v10507 = vrot.slane %v10201, 1
        %v10508 = vrot.slane %v10249, 1
        %v10509 = vsel %vm3253, %v10507, %v10508
        %v10510 = vrot.slane %v10202, 1
        %v10511 = vrot.slane %v10250, 1
        %v10512 = vsel %vm3253, %v10510, %v10511
        %v10513 = vrot.slane %v10203, 1
        %v10514 = vrot.slane %v10251, 1
        %v10515 = vsel %vm3253, %v10513, %v10514
        %v10516 = vrot.slane %v10204, 1
        %v10517 = vrot.slane %v10252, 1
        %v10518 = vsel %vm3253, %v10516, %v10517
        %v10519 = vrot.slane %v10205, 1
        %v10520 = vrot.slane %v10253, 1
        %v10521 = vsel %vm3253, %v10519, %v10520
        %v10522 = vrot.slane %v10206, 1
        %v10523 = vrot.slane %v10254, 1
        %v10524 = vsel %vm3253, %v10522, %v10523
        %v10525 = vrot.slane %v10207, 1
        %v10526 = vrot.slane %v10255, 1
        %v10527 = vsel %vm3253, %v10525, %v10526
        %v10528 = vrot.slane %v10257, 1
        %v10529 = vrot.slane %v10259, 2
        %v10530 = vor.u32 %v10528, %v10529
        %v10531 = vshrl.u32 %v10240, 16
        %v10533 = vrot.slane %v10531, 1
        %v10534 = vrot.slane %v10264, 2
        %v10535 = vor.u32 %v10533, %v10534
        %v10536 = vsel %vm6713, %v10530, %v10535
        %v10537 = vrot.slane %v10269, 1
        %v10538 = vrot.slane %v10271, 2
        %v10539 = vor.u32 %v10537, %v10538
        %v10540 = vshrl.u32 %v10241, 16
        %v10542 = vrot.slane %v10540, 1
        %v10543 = vrot.slane %v10276, 2
        %v10544 = vor.u32 %v10542, %v10543
        %v10545 = vsel %vm6713, %v10539, %v10544
        %v10546 = vrot.slane %v10281, 1
        %v10547 = vrot.slane %v10283, 2
        %v10548 = vor.u32 %v10546, %v10547
        %v10549 = vshrl.u32 %v10242, 16
        %v10551 = vrot.slane %v10549, 1
        %v10552 = vrot.slane %v10288, 2
        %v10553 = vor.u32 %v10551, %v10552
        %v10554 = vsel %vm6713, %v10548, %v10553
        %v10555 = vrot.slane %v10293, 1
        %v10556 = vrot.slane %v10295, 2
        %v10557 = vor.u32 %v10555, %v10556
        %v10558 = vshrl.u32 %v10243, 16
        %v10560 = vrot.slane %v10558, 1
        %v10561 = vrot.slane %v10300, 2
        %v10562 = vor.u32 %v10560, %v10561
        %v10563 = vsel %vm6713, %v10557, %v10562
        %v10564 = vrot.slane %v10305, 1
        %v10565 = vrot.slane %v10307, 2
        %v10566 = vor.u32 %v10564, %v10565
        %v10567 = vshrl.u32 %v10244, 16
        %v10569 = vrot.slane %v10567, 1
        %v10570 = vrot.slane %v10312, 2
        %v10571 = vor.u32 %v10569, %v10570
        %v10572 = vsel %vm6713, %v10566, %v10571
        %v10573 = vrot.slane %v10317, 1
        %v10574 = vrot.slane %v10319, 2
        %v10575 = vor.u32 %v10573, %v10574
        %v10576 = vshrl.u32 %v10245, 16
        %v10578 = vrot.slane %v10576, 1
        %v10579 = vrot.slane %v10324, 2
        %v10580 = vor.u32 %v10578, %v10579
        %v10581 = vsel %vm6713, %v10575, %v10580
        %v10582 = vrot.slane %v10329, 1
        %v10583 = vrot.slane %v10331, 2
        %v10584 = vor.u32 %v10582, %v10583
        %v10585 = vshrl.u32 %v10246, 16
        %v10587 = vrot.slane %v10585, 1
        %v10588 = vrot.slane %v10336, 2
        %v10589 = vor.u32 %v10587, %v10588
        %v10590 = vsel %vm6713, %v10584, %v10589
        %v10591 = vrot.slane %v10341, 1
        %v10592 = vrot.slane %v10343, 2
        %v10593 = vor.u32 %v10591, %v10592
        %v10594 = vshrl.u32 %v10247, 16
        %v10596 = vrot.slane %v10594, 1
        %v10597 = vrot.slane %v10348, 2
        %v10598 = vor.u32 %v10596, %v10597
        %v10599 = vsel %vm6713, %v10593, %v10598
        %v10600 = vrot.slane %v10353, 1
        %v10601 = vrot.slane %v10355, 2
        %v10602 = vor.u32 %v10600, %v10601
        %v10603 = vshrl.u32 %v10248, 16
        %v10605 = vrot.slane %v10603, 1
        %v10606 = vrot.slane %v10360, 2
        %v10607 = vor.u32 %v10605, %v10606
        %v10608 = vsel %vm6713, %v10602, %v10607
        %v10609 = vrot.slane %v10365, 1
        %v10610 = vrot.slane %v10367, 2
        %v10611 = vor.u32 %v10609, %v10610
        %v10612 = vshrl.u32 %v10249, 16
        %v10614 = vrot.slane %v10612, 1
        %v10615 = vrot.slane %v10372, 2
        %v10616 = vor.u32 %v10614, %v10615
        %v10617 = vsel %vm6713, %v10611, %v10616
        %v10618 = vrot.slane %v10377, 1
        %v10619 = vrot.slane %v10379, 2
        %v10620 = vor.u32 %v10618, %v10619
        %v10621 = vshrl.u32 %v10250, 16
        %v10623 = vrot.slane %v10621, 1
        %v10624 = vrot.slane %v10384, 2
        %v10625 = vor.u32 %v10623, %v10624
        %v10626 = vsel %vm6713, %v10620, %v10625
        %v10627 = vrot.slane %v10389, 1
        %v10628 = vrot.slane %v10391, 2
        %v10629 = vor.u32 %v10627, %v10628
        %v10630 = vshrl.u32 %v10251, 16
        %v10632 = vrot.slane %v10630, 1
        %v10633 = vrot.slane %v10396, 2
        %v10634 = vor.u32 %v10632, %v10633
        %v10635 = vsel %vm6713, %v10629, %v10634
        %v10636 = vrot.slane %v10401, 1
        %v10637 = vrot.slane %v10403, 2
        %v10638 = vor.u32 %v10636, %v10637
        %v10639 = vshrl.u32 %v10252, 16
        %v10641 = vrot.slane %v10639, 1
        %v10642 = vrot.slane %v10408, 2
        %v10643 = vor.u32 %v10641, %v10642
        %v10644 = vsel %vm6713, %v10638, %v10643
        %v10645 = vrot.slane %v10413, 1
        %v10646 = vrot.slane %v10415, 2
        %v10647 = vor.u32 %v10645, %v10646
        %v10648 = vshrl.u32 %v10253, 16
        %v10650 = vrot.slane %v10648, 1
        %v10651 = vrot.slane %v10420, 2
        %v10652 = vor.u32 %v10650, %v10651
        %v10653 = vsel %vm6713, %v10647, %v10652
        %v10654 = vrot.slane %v10425, 1
        %v10655 = vrot.slane %v10427, 2
        %v10656 = vor.u32 %v10654, %v10655
        %v10657 = vshrl.u32 %v10254, 16
        %v10659 = vrot.slane %v10657, 1
        %v10660 = vrot.slane %v10432, 2
        %v10661 = vor.u32 %v10659, %v10660
        %v10662 = vsel %vm6713, %v10656, %v10661
        %v10663 = vrot.slane %v10437, 1
        %v10664 = vrot.slane %v10439, 2
        %v10665 = vor.u32 %v10663, %v10664
        %v10666 = vshrl.u32 %v10255, 16
        %v10668 = vrot.slane %v10666, 1
        %v10669 = vrot.slane %v10444, 2
        %v10670 = vor.u32 %v10668, %v10669
        %v10671 = vsel %vm6713, %v10665, %v10670
        %10672 = vrot.lane.b32.xlu0 %v10536, 64
        %v10673 = vpop.permute.xlu0 %10672
        %10674 = vrot.lane.b32.xlu0 %v10545, 64
        %v10675 = vpop.permute.xlu0 %10674
        %10676 = vrot.lane.b32.xlu0 %v10554, 64
        %v10677 = vpop.permute.xlu0 %10676
        %10678 = vrot.lane.b32.xlu0 %v10563, 64
        %v10679 = vpop.permute.xlu0 %10678
        %10680 = vrot.lane.b32.xlu0 %v10572, 64
        %v10681 = vpop.permute.xlu0 %10680
        %10682 = vrot.lane.b32.xlu0 %v10581, 64
        %v10683 = vpop.permute.xlu0 %10682
        %10684 = vrot.lane.b32.xlu0 %v10590, 64
        %v10685 = vpop.permute.xlu0 %10684
        %10686 = vrot.lane.b32.xlu0 %v10599, 64
        %v10687 = vpop.permute.xlu0 %10686
        %10688 = vrot.lane.b32.xlu0 %v10608, 64
        %v10689 = vpop.permute.xlu0 %10688
        %10690 = vrot.lane.b32.xlu0 %v10617, 64
        %v10691 = vpop.permute.xlu0 %10690
        %10692 = vrot.lane.b32.xlu0 %v10626, 64
        %v10693 = vpop.permute.xlu0 %10692
        %10694 = vrot.lane.b32.xlu0 %v10635, 64
        %v10695 = vpop.permute.xlu0 %10694
        %10696 = vrot.lane.b32.xlu0 %v10644, 64
        %v10697 = vpop.permute.xlu0 %10696
        %10698 = vrot.lane.b32.xlu0 %v10653, 64
        %v10699 = vpop.permute.xlu0 %10698
        %10700 = vrot.lane.b32.xlu0 %v10662, 64
        %v10701 = vpop.permute.xlu0 %10700
        %10702 = vrot.lane.b32.xlu0 %v10671, 64
        %v10703 = vpop.permute.xlu0 %10702
        %v10704 = vrot.slane %v10192, 2
        %v10705 = vrot.slane %v10240, 2
        %v10706 = vsel %vm6890, %v10704, %v10705
        %v10707 = vrot.slane %v10193, 2
        %v10708 = vrot.slane %v10241, 2
        %v10709 = vsel %vm6890, %v10707, %v10708
        %v10710 = vrot.slane %v10194, 2
        %v10711 = vrot.slane %v10242, 2
        %v10712 = vsel %vm6890, %v10710, %v10711
        %v10713 = vrot.slane %v10195, 2
        %v10714 = vrot.slane %v10243, 2
        %v10715 = vsel %vm6890, %v10713, %v10714
        %v10716 = vrot.slane %v10196, 2
        %v10717 = vrot.slane %v10244, 2
        %v10718 = vsel %vm6890, %v10716, %v10717
        %v10719 = vrot.slane %v10197, 2
        %v10720 = vrot.slane %v10245, 2
        %v10721 = vsel %vm6890, %v10719, %v10720
        %v10722 = vrot.slane %v10198, 2
        %v10723 = vrot.slane %v10246, 2
        %v10724 = vsel %vm6890, %v10722, %v10723
        %v10725 = vrot.slane %v10199, 2
        %v10726 = vrot.slane %v10247, 2
        %v10727 = vsel %vm6890, %v10725, %v10726
        %v10728 = vrot.slane %v10200, 2
        %v10729 = vrot.slane %v10248, 2
        %v10730 = vsel %vm6890, %v10728, %v10729
        %v10731 = vrot.slane %v10201, 2
        %v10732 = vrot.slane %v10249, 2
        %v10733 = vsel %vm6890, %v10731, %v10732
        %v10734 = vrot.slane %v10202, 2
        %v10735 = vrot.slane %v10250, 2
        %v10736 = vsel %vm6890, %v10734, %v10735
        %v10737 = vrot.slane %v10203, 2
        %v10738 = vrot.slane %v10251, 2
        %v10739 = vsel %vm6890, %v10737, %v10738
        %v10740 = vrot.slane %v10204, 2
        %v10741 = vrot.slane %v10252, 2
        %v10742 = vsel %vm6890, %v10740, %v10741
        %v10743 = vrot.slane %v10205, 2
        %v10744 = vrot.slane %v10253, 2
        %v10745 = vsel %vm6890, %v10743, %v10744
        %v10746 = vrot.slane %v10206, 2
        %v10747 = vrot.slane %v10254, 2
        %v10748 = vsel %vm6890, %v10746, %v10747
        %v10749 = vrot.slane %v10207, 2
        %v10750 = vrot.slane %v10255, 2
        %v10751 = vsel %vm6890, %v10749, %v10750
        %v10753 = vsel %vm3302, %v10192, %v10449
        %v10756 = vsel %vm3302, %v10193, %v10451
        %v10759 = vsel %vm3302, %v10194, %v10453
        %v10762 = vsel %vm3302, %v10195, %v10455
        %v10765 = vsel %vm3302, %v10196, %v10457
        %v10768 = vsel %vm3302, %v10197, %v10459
        %v10771 = vsel %vm3302, %v10198, %v10461
        %v10774 = vsel %vm3302, %v10199, %v10463
        %v10777 = vsel %vm3302, %v10200, %v10465
        %v10780 = vsel %vm3302, %v10201, %v10467
        %v10783 = vsel %vm3302, %v10202, %v10469
        %v10786 = vsel %vm3302, %v10203, %v10471
        %v10789 = vsel %vm3302, %v10204, %v10473
        %v10792 = vsel %vm3302, %v10205, %v10475
        %v10795 = vsel %vm3302, %v10206, %v10477
        %v10798 = vsel %vm3302, %v10207, %v10479
        %v10802 = vsel %vm3302, %v10482, %v10673
        %v10806 = vsel %vm3302, %v10485, %v10675
        %v10810 = vsel %vm3302, %v10488, %v10677
        %v10814 = vsel %vm3302, %v10491, %v10679
        %v10818 = vsel %vm3302, %v10494, %v10681
        %v10822 = vsel %vm3302, %v10497, %v10683
        %v10826 = vsel %vm3302, %v10500, %v10685
        %v10830 = vsel %vm3302, %v10503, %v10687
        %v10834 = vsel %vm3302, %v10506, %v10689
        %v10838 = vsel %vm3302, %v10509, %v10691
        %v10842 = vsel %vm3302, %v10512, %v10693
        %v10846 = vsel %vm3302, %v10515, %v10695
        %v10850 = vsel %vm3302, %v10518, %v10697
        %v10854 = vsel %vm3302, %v10521, %v10699
        %v10858 = vsel %vm3302, %v10524, %v10701
        %v10862 = vsel %vm3302, %v10527, %v10703
        %s10864 = scalar_lea.vmem %s3, 480
        %v10865 = vld [vmem:[%s10864] sm:$0xf]
        %v10866 = vld [vmem:[%s10864 + $0x4] sm:$0xf]
        %v10867 = vld [vmem:[%s10864 + $0x8] sm:$0xf]
        %v10868 = vld [vmem:[%s10864 + $0xc] sm:$0xf]
        %v10869 = vld [vmem:[%s10864 + $0x10] sm:$0xf]
        %v10870 = vld [vmem:[%s10864 + $0x14] sm:$0xf]
        %v10871 = vld [vmem:[%s10864 + $0x18] sm:$0xf]
        %v10872 = vld [vmem:[%s10864 + $0x1c] sm:$0xf]
        %v10873 = vld [vmem:[%s10864 + $0x20] sm:$0xf]
        %v10874 = vld [vmem:[%s10864 + $0x24] sm:$0xf]
        %v10875 = vld [vmem:[%s10864 + $0x28] sm:$0xf]
        %v10876 = vld [vmem:[%s10864 + $0x2c] sm:$0xf]
        %v10877 = vld [vmem:[%s10864 + $0x30] sm:$0xf]
        %v10878 = vld [vmem:[%s10864 + $0x34] sm:$0xf]
        %v10879 = vld [vmem:[%s10864 + $0x38] sm:$0xf]
        %v10880 = vld [vmem:[%s10864 + $0x3c] sm:$0xf]
        %v10881 = vld [vmem:[%s10864 + $0x40] sm:$0xf]
        %v10882 = vld [vmem:[%s10864 + $0x44] sm:$0xf]
        %v10883 = vld [vmem:[%s10864 + $0x48] sm:$0xf]
        %v10884 = vld [vmem:[%s10864 + $0x4c] sm:$0xf]
        %v10885 = vld [vmem:[%s10864 + $0x50] sm:$0xf]
        %v10886 = vld [vmem:[%s10864 + $0x54] sm:$0xf]
        %v10887 = vld [vmem:[%s10864 + $0x58] sm:$0xf]
        %v10888 = vld [vmem:[%s10864 + $0x5c] sm:$0xf]
        %v10889 = vld [vmem:[%s10864 + $0x60] sm:$0xf]
        %v10890 = vld [vmem:[%s10864 + $0x64] sm:$0xf]
        %v10891 = vld [vmem:[%s10864 + $0x68] sm:$0xf]
        %v10892 = vld [vmem:[%s10864 + $0x6c] sm:$0xf]
        %v10893 = vld [vmem:[%s10864 + $0x70] sm:$0xf]
        %v10894 = vld [vmem:[%s10864 + $0x74] sm:$0xf]
        %v10895 = vld [vmem:[%s10864 + $0x78] sm:$0xf]
        %v10896 = vld [vmem:[%s10864 + $0x7c] sm:$0xf]
        %v10897 = vld [vmem:[%s10864 + $0x80] sm:$0xf]
        %v10898 = vld [vmem:[%s10864 + $0x84] sm:$0xf]
        %v10899 = vld [vmem:[%s10864 + $0x88] sm:$0xf]
        %v10900 = vld [vmem:[%s10864 + $0x8c] sm:$0xf]
        %v10901 = vld [vmem:[%s10864 + $0x90] sm:$0xf]
        %v10902 = vld [vmem:[%s10864 + $0x94] sm:$0xf]
        %v10903 = vld [vmem:[%s10864 + $0x98] sm:$0xf]
        %v10904 = vld [vmem:[%s10864 + $0x9c] sm:$0xf]
        %v10945 = vunpack.c.l.b16 %v10865
        %v10946 = vunpack.c.l.b16 %v10866
        %v10947 = vunpack.c.l.b16 %v10867
        %v10948 = vunpack.c.l.b16 %v10868
        %v10949 = vunpack.c.l.b16 %v10869
        %v10950 = vunpack.c.l.b16 %v10870
        %v10951 = vunpack.c.l.b16 %v10871
        %v10952 = vunpack.c.l.b16 %v10872
        %v10953 = vunpack.c.l.b16 %v10873
        %v10954 = vunpack.c.l.b16 %v10874
        %v10955 = vunpack.c.l.b16 %v10875
        %v10956 = vunpack.c.l.b16 %v10876
        %v10957 = vunpack.c.l.b16 %v10877
        %v10958 = vunpack.c.l.b16 %v10878
        %v10959 = vunpack.c.l.b16 %v10879
        %v10960 = vunpack.c.l.b16 %v10880
        %v10961 = vunpack.c.l.b16 %v10881
        %v10962 = vunpack.c.l.b16 %v10882
        %v10963 = vunpack.c.l.b16 %v10883
        %v10964 = vunpack.c.l.b16 %v10884
        %v10965 = vunpack.c.l.b16 %v10885
        %v10966 = vunpack.c.l.b16 %v10886
        %v10967 = vunpack.c.l.b16 %v10887
        %v10968 = vunpack.c.l.b16 %v10888
        %v10969 = vunpack.c.l.b16 %v10889
        %v10970 = vunpack.c.l.b16 %v10890
        %v10971 = vunpack.c.l.b16 %v10891
        %v10972 = vunpack.c.l.b16 %v10892
        %v10973 = vunpack.c.l.b16 %v10893
        %v10974 = vunpack.c.l.b16 %v10894
        %v10975 = vunpack.c.l.b16 %v10895
        %v10976 = vunpack.c.l.b16 %v10896
        %v10977 = vunpack.c.l.b16 %v10897
        %v10978 = vunpack.c.l.b16 %v10898
        %v10979 = vunpack.c.l.b16 %v10899
        %v10980 = vunpack.c.l.b16 %v10900
        %v10981 = vunpack.c.l.b16 %v10901
        %v10982 = vunpack.c.l.b16 %v10902
        %v10983 = vunpack.c.l.b16 %v10903
        %v10984 = vunpack.c.l.b16 %v10904
        %v10985 = vpack.c.b16 %v10946, %v10945
        %v10986 = vpack.c.b16 %v10948, %v10947
        %v10987 = vpack.c.b16 %v10950, %v10949
        %v10988 = vpack.c.b16 %v10952, %v10951
        %v10989 = vpack.c.b16 %v10954, %v10953
        %v10990 = vpack.c.b16 %v10956, %v10955
        %v10991 = vpack.c.b16 %v10958, %v10957
        %v10992 = vpack.c.b16 %v10960, %v10959
        %v10993 = vpack.c.b16 %v10962, %v10961
        %v10994 = vpack.c.b16 %v10964, %v10963
        %v10995 = vpack.c.b16 %v10966, %v10965
        %v10996 = vpack.c.b16 %v10968, %v10967
        %v10997 = vpack.c.b16 %v10970, %v10969
        %v10998 = vpack.c.b16 %v10972, %v10971
        %v10999 = vpack.c.b16 %v10974, %v10973
        %v11000 = vpack.c.b16 %v10976, %v10975
        %v11001 = vpack.c.b16 %v10978, %v10977
        %v11002 = vpack.c.b16 %v10980, %v10979
        %v11003 = vpack.c.b16 %v10982, %v10981
        %v11004 = vpack.c.b16 %v10984, %v10983
        %v11026 = vsel %vm3302, %v10706, 0
        %v11029 = vsel %vm3302, %v10709, 0
        %v11032 = vsel %vm3302, %v10712, 0
        %v11035 = vsel %vm3302, %v10715, 0
        %v11038 = vsel %vm3302, %v10718, 0
        %v11041 = vsel %vm3302, %v10721, 0
        %v11044 = vsel %vm3302, %v10724, 0
        %v11047 = vsel %vm3302, %v10727, 0
        %v11050 = vsel %vm3302, %v10730, 0
        %v11053 = vsel %vm3302, %v10733, 0
        %v11056 = vsel %vm3302, %v10736, 0
        %v11059 = vsel %vm3302, %v10739, 0
        %v11062 = vsel %vm3302, %v10742, 0
        %v11065 = vsel %vm3302, %v10745, 0
        %v11068 = vsel %vm3302, %v10748, 0
        %v11071 = vsel %vm3302, %v10751, 0
        %11073 = vmatpush.bf16.msra.mxu0 %v10992
        %11074 = vmatpush.bf16.msra.mxu0 %v10991
        %11075 = vmatpush.bf16.msra.mxu0 %v10990
        %11076 = vmatpush.bf16.msra.mxu0 %v10989
        %11077 = vmatpush.bf16.msra.mxu0 %v10988
        %11078 = vmatpush.bf16.msra.mxu0 %v10987
        %11079 = vmatpush.bf16.msra.mxu0 %v10986
        %11080 = vmatpush.bf16.msra.mxu0 %v10985
        %11081 = vmatmul.bf16.gmra.mxu0 %v10753
        %v11082 = vpop.f32.mrf.mxu0
        %v11083 = vadd.f32 0.0, %v11082
        %v11084 = vpop.f32.mrf.mxu0
        %v11085 = vadd.f32 0.0, %v11084
        %11086 = vmatmul.bf16.gmra.mxu0 %v10756
        %v11087 = vpop.f32.mrf.mxu0
        %v11088 = vadd.f32 0.0, %v11087
        %v11089 = vpop.f32.mrf.mxu0
        %v11090 = vadd.f32 0.0, %v11089
        %11091 = vmatmul.bf16.gmra.mxu0 %v10759
        %v11092 = vpop.f32.mrf.mxu0
        %v11093 = vadd.f32 0.0, %v11092
        %v11094 = vpop.f32.mrf.mxu0
        %v11095 = vadd.f32 0.0, %v11094
        %11096 = vmatmul.bf16.gmra.mxu0 %v10762
        %v11097 = vpop.f32.mrf.mxu0
        %v11098 = vadd.f32 0.0, %v11097
        %v11099 = vpop.f32.mrf.mxu0
        %v11100 = vadd.f32 0.0, %v11099
        %11101 = vmatmul.bf16.gmra.mxu0 %v10765
        %v11102 = vpop.f32.mrf.mxu0
        %v11103 = vadd.f32 0.0, %v11102
        %v11104 = vpop.f32.mrf.mxu0
        %v11105 = vadd.f32 0.0, %v11104
        %11106 = vmatmul.bf16.gmra.mxu0 %v10768
        %v11107 = vpop.f32.mrf.mxu0
        %v11108 = vadd.f32 0.0, %v11107
        %v11109 = vpop.f32.mrf.mxu0
        %v11110 = vadd.f32 0.0, %v11109
        %11111 = vmatmul.bf16.gmra.mxu0 %v10771
        %v11112 = vpop.f32.mrf.mxu0
        %v11113 = vadd.f32 0.0, %v11112
        %v11114 = vpop.f32.mrf.mxu0
        %v11115 = vadd.f32 0.0, %v11114
        %11116 = vmatmul.bf16.gmra.mxu0 %v10774
        %v11117 = vpop.f32.mrf.mxu0
        %v11118 = vadd.f32 0.0, %v11117
        %v11119 = vpop.f32.mrf.mxu0
        %v11120 = vadd.f32 0.0, %v11119
        %11121 = vmatmul.bf16.gmra.mxu0 %v10777
        %v11122 = vpop.f32.mrf.mxu0
        %v11123 = vadd.f32 0.0, %v11122
        %v11124 = vpop.f32.mrf.mxu0
        %v11125 = vadd.f32 0.0, %v11124
        %11126 = vmatmul.bf16.gmra.mxu0 %v10780
        %v11127 = vpop.f32.mrf.mxu0
        %v11128 = vadd.f32 0.0, %v11127
        %v11129 = vpop.f32.mrf.mxu0
        %v11130 = vadd.f32 0.0, %v11129
        %11131 = vmatmul.bf16.gmra.mxu0 %v10783
        %v11132 = vpop.f32.mrf.mxu0
        %v11133 = vadd.f32 0.0, %v11132
        %v11134 = vpop.f32.mrf.mxu0
        %v11135 = vadd.f32 0.0, %v11134
        %11136 = vmatmul.bf16.gmra.mxu0 %v10786
        %v11137 = vpop.f32.mrf.mxu0
        %v11138 = vadd.f32 0.0, %v11137
        %v11139 = vpop.f32.mrf.mxu0
        %v11140 = vadd.f32 0.0, %v11139
        %11141 = vmatmul.bf16.gmra.mxu0 %v10789
        %v11142 = vpop.f32.mrf.mxu0
        %v11143 = vadd.f32 0.0, %v11142
        %v11144 = vpop.f32.mrf.mxu0
        %v11145 = vadd.f32 0.0, %v11144
        %11146 = vmatmul.bf16.gmra.mxu0 %v10792
        %v11147 = vpop.f32.mrf.mxu0
        %v11148 = vadd.f32 0.0, %v11147
        %v11149 = vpop.f32.mrf.mxu0
        %v11150 = vadd.f32 0.0, %v11149
        %11151 = vmatmul.bf16.gmra.mxu0 %v10795
        %v11152 = vpop.f32.mrf.mxu0
        %v11153 = vadd.f32 0.0, %v11152
        %v11154 = vpop.f32.mrf.mxu0
        %v11155 = vadd.f32 0.0, %v11154
        %11156 = vmatmul.bf16.gmra.mxu0 %v10798
        %v11157 = vpop.f32.mrf.mxu0
        %v11158 = vadd.f32 0.0, %v11157
        %v11159 = vpop.f32.mrf.mxu0
        %v11160 = vadd.f32 0.0, %v11159
        %11161 = vdwg.mxu0
        %11162 = vmatpush.bf16.msra.mxu0 %v11000
        %11163 = vmatpush.bf16.msra.mxu0 %v10999
        %11164 = vmatpush.bf16.msra.mxu0 %v10998
        %11165 = vmatpush.bf16.msra.mxu0 %v10997
        %11166 = vmatpush.bf16.msra.mxu0 %v10996
        %11167 = vmatpush.bf16.msra.mxu0 %v10995
        %11168 = vmatpush.bf16.msra.mxu0 %v10994
        %11169 = vmatpush.bf16.msra.mxu0 %v10993
        %11170 = vmatmul.bf16.gmra.mxu0 %v10802
        %v11171 = vpop.f32.mrf.mxu0
        %v11172 = vadd.f32 %v11083, %v11171
        %v11173 = vpop.f32.mrf.mxu0
        %v11174 = vadd.f32 %v11085, %v11173
        %11175 = vmatmul.bf16.gmra.mxu0 %v10806
        %v11176 = vpop.f32.mrf.mxu0
        %v11177 = vadd.f32 %v11088, %v11176
        %v11178 = vpop.f32.mrf.mxu0
        %v11179 = vadd.f32 %v11090, %v11178
        %11180 = vmatmul.bf16.gmra.mxu0 %v10810
        %v11181 = vpop.f32.mrf.mxu0
        %v11182 = vadd.f32 %v11093, %v11181
        %v11183 = vpop.f32.mrf.mxu0
        %v11184 = vadd.f32 %v11095, %v11183
        %11185 = vmatmul.bf16.gmra.mxu0 %v10814
        %v11186 = vpop.f32.mrf.mxu0
        %v11187 = vadd.f32 %v11098, %v11186
        %v11188 = vpop.f32.mrf.mxu0
        %v11189 = vadd.f32 %v11100, %v11188
        %11190 = vmatmul.bf16.gmra.mxu0 %v10818
        %v11191 = vpop.f32.mrf.mxu0
        %v11192 = vadd.f32 %v11103, %v11191
        %v11193 = vpop.f32.mrf.mxu0
        %v11194 = vadd.f32 %v11105, %v11193
        %11195 = vmatmul.bf16.gmra.mxu0 %v10822
        %v11196 = vpop.f32.mrf.mxu0
        %v11197 = vadd.f32 %v11108, %v11196
        %v11198 = vpop.f32.mrf.mxu0
        %v11199 = vadd.f32 %v11110, %v11198
        %11200 = vmatmul.bf16.gmra.mxu0 %v10826
        %v11201 = vpop.f32.mrf.mxu0
        %v11202 = vadd.f32 %v11113, %v11201
        %v11203 = vpop.f32.mrf.mxu0
        %v11204 = vadd.f32 %v11115, %v11203
        %11205 = vmatmul.bf16.gmra.mxu0 %v10830
        %v11206 = vpop.f32.mrf.mxu0
        %v11207 = vadd.f32 %v11118, %v11206
        %v11208 = vpop.f32.mrf.mxu0
        %v11209 = vadd.f32 %v11120, %v11208
        %11210 = vmatmul.bf16.gmra.mxu0 %v10834
        %v11211 = vpop.f32.mrf.mxu0
        %v11212 = vadd.f32 %v11123, %v11211
        %v11213 = vpop.f32.mrf.mxu0
        %v11214 = vadd.f32 %v11125, %v11213
        %11215 = vmatmul.bf16.gmra.mxu0 %v10838
        %v11216 = vpop.f32.mrf.mxu0
        %v11217 = vadd.f32 %v11128, %v11216
        %v11218 = vpop.f32.mrf.mxu0
        %v11219 = vadd.f32 %v11130, %v11218
        %11220 = vmatmul.bf16.gmra.mxu0 %v10842
        %v11221 = vpop.f32.mrf.mxu0
        %v11222 = vadd.f32 %v11133, %v11221
        %v11223 = vpop.f32.mrf.mxu0
        %v11224 = vadd.f32 %v11135, %v11223
        %11225 = vmatmul.bf16.gmra.mxu0 %v10846
        %v11226 = vpop.f32.mrf.mxu0
        %v11227 = vadd.f32 %v11138, %v11226
        %v11228 = vpop.f32.mrf.mxu0
        %v11229 = vadd.f32 %v11140, %v11228
        %11230 = vmatmul.bf16.gmra.mxu0 %v10850
        %v11231 = vpop.f32.mrf.mxu0
        %v11232 = vadd.f32 %v11143, %v11231
        %v11233 = vpop.f32.mrf.mxu0
        %v11234 = vadd.f32 %v11145, %v11233
        %11235 = vmatmul.bf16.gmra.mxu0 %v10854
        %v11236 = vpop.f32.mrf.mxu0
        %v11237 = vadd.f32 %v11148, %v11236
        %v11238 = vpop.f32.mrf.mxu0
        %v11239 = vadd.f32 %v11150, %v11238
        %11240 = vmatmul.bf16.gmra.mxu0 %v10858
        %v11241 = vpop.f32.mrf.mxu0
        %v11242 = vadd.f32 %v11153, %v11241
        %v11243 = vpop.f32.mrf.mxu0
        %v11244 = vadd.f32 %v11155, %v11243
        %11245 = vmatmul.bf16.gmra.mxu0 %v10862
        %v11246 = vpop.f32.mrf.mxu0
        %v11247 = vadd.f32 %v11158, %v11246
        %v11248 = vpop.f32.mrf.mxu0
        %v11249 = vadd.f32 %v11160, %v11248
        %11250 = vdwg.mxu0
        %11251 = vmatpush.bf16.msra.mxu0 0
        %11252 = vmatpush.bf16.msra.mxu0 0
        %11253 = vmatpush.bf16.msra.mxu0 0
        %11254 = vmatpush.bf16.msra.mxu0 0
        %11255 = vmatpush.bf16.msra.mxu0 %v11004
        %11256 = vmatpush.bf16.msra.mxu0 %v11003
        %11257 = vmatpush.bf16.msra.mxu0 %v11002
        %11258 = vmatpush.bf16.msra.mxu0 %v11001
        %11259 = vmatmul.bf16.gmra.mxu0 %v11026
        %v11260 = vpop.f32.mrf.mxu0
        %v11261 = vadd.f32 %v11172, %v11260
        %v11262 = vpop.f32.mrf.mxu0
        %v11263 = vadd.f32 %v11174, %v11262
        %11264 = vmatmul.bf16.gmra.mxu0 %v11029
        %v11265 = vpop.f32.mrf.mxu0
        %v11266 = vadd.f32 %v11177, %v11265
        %v11267 = vpop.f32.mrf.mxu0
        %v11268 = vadd.f32 %v11179, %v11267
        %11269 = vmatmul.bf16.gmra.mxu0 %v11032
        %v11270 = vpop.f32.mrf.mxu0
        %v11271 = vadd.f32 %v11182, %v11270
        %v11272 = vpop.f32.mrf.mxu0
        %v11273 = vadd.f32 %v11184, %v11272
        %11274 = vmatmul.bf16.gmra.mxu0 %v11035
        %v11275 = vpop.f32.mrf.mxu0
        %v11276 = vadd.f32 %v11187, %v11275
        %v11277 = vpop.f32.mrf.mxu0
        %v11278 = vadd.f32 %v11189, %v11277
        %11279 = vmatmul.bf16.gmra.mxu0 %v11038
        %v11280 = vpop.f32.mrf.mxu0
        %v11281 = vadd.f32 %v11192, %v11280
        %v11282 = vpop.f32.mrf.mxu0
        %v11283 = vadd.f32 %v11194, %v11282
        %11284 = vmatmul.bf16.gmra.mxu0 %v11041
        %v11285 = vpop.f32.mrf.mxu0
        %v11286 = vadd.f32 %v11197, %v11285
        %v11287 = vpop.f32.mrf.mxu0
        %v11288 = vadd.f32 %v11199, %v11287
        %11289 = vmatmul.bf16.gmra.mxu0 %v11044
        %v11290 = vpop.f32.mrf.mxu0
        %v11291 = vadd.f32 %v11202, %v11290
        %v11292 = vpop.f32.mrf.mxu0
        %v11293 = vadd.f32 %v11204, %v11292
        %11294 = vmatmul.bf16.gmra.mxu0 %v11047
        %v11295 = vpop.f32.mrf.mxu0
        %v11296 = vadd.f32 %v11207, %v11295
        %v11297 = vpop.f32.mrf.mxu0
        %v11298 = vadd.f32 %v11209, %v11297
        %11299 = vmatmul.bf16.gmra.mxu0 %v11050
        %v11300 = vpop.f32.mrf.mxu0
        %v11301 = vadd.f32 %v11212, %v11300
        %v11302 = vpop.f32.mrf.mxu0
        %v11303 = vadd.f32 %v11214, %v11302
        %11304 = vmatmul.bf16.gmra.mxu0 %v11053
        %v11305 = vpop.f32.mrf.mxu0
        %v11306 = vadd.f32 %v11217, %v11305
        %v11307 = vpop.f32.mrf.mxu0
        %v11308 = vadd.f32 %v11219, %v11307
        %11309 = vmatmul.bf16.gmra.mxu0 %v11056
        %v11310 = vpop.f32.mrf.mxu0
        %v11311 = vadd.f32 %v11222, %v11310
        %v11312 = vpop.f32.mrf.mxu0
        %v11313 = vadd.f32 %v11224, %v11312
        %11314 = vmatmul.bf16.gmra.mxu0 %v11059
        %v11315 = vpop.f32.mrf.mxu0
        %v11316 = vadd.f32 %v11227, %v11315
        %v11317 = vpop.f32.mrf.mxu0
        %v11318 = vadd.f32 %v11229, %v11317
        %11319 = vmatmul.bf16.gmra.mxu0 %v11062
        %v11320 = vpop.f32.mrf.mxu0
        %v11321 = vadd.f32 %v11232, %v11320
        %v11322 = vpop.f32.mrf.mxu0
        %v11323 = vadd.f32 %v11234, %v11322
        %11324 = vmatmul.bf16.gmra.mxu0 %v11065
        %v11325 = vpop.f32.mrf.mxu0
        %v11326 = vadd.f32 %v11237, %v11325
        %v11327 = vpop.f32.mrf.mxu0
        %v11328 = vadd.f32 %v11239, %v11327
        %11329 = vmatmul.bf16.gmra.mxu0 %v11068
        %v11330 = vpop.f32.mrf.mxu0
        %v11331 = vadd.f32 %v11242, %v11330
        %v11332 = vpop.f32.mrf.mxu0
        %v11333 = vadd.f32 %v11244, %v11332
        %11334 = vmatmul.bf16.gmra.mxu0 %v11071
        %v11335 = vpop.f32.mrf.mxu0
        %v11336 = vadd.f32 %v11247, %v11335
        %v11337 = vpop.f32.mrf.mxu0
        %v11338 = vadd.f32 %v11249, %v11337
        %11339 = vdwg.mxu0
        %v11340 = vadd.f32 %v10047, %v11261
        %v11341 = vadd.f32 %v10048, %v11263
        %v11342 = vadd.f32 %v10049, %v11266
        %v11343 = vadd.f32 %v10050, %v11268
        %v11344 = vadd.f32 %v10051, %v11271
        %v11345 = vadd.f32 %v10052, %v11273
        %v11346 = vadd.f32 %v10053, %v11276
        %v11347 = vadd.f32 %v10054, %v11278
        %v11348 = vadd.f32 %v10055, %v11281
        %v11349 = vadd.f32 %v10056, %v11283
        %v11350 = vadd.f32 %v10057, %v11286
        %v11351 = vadd.f32 %v10058, %v11288
        %v11352 = vadd.f32 %v10059, %v11291
        %v11353 = vadd.f32 %v10060, %v11293
        %v11354 = vadd.f32 %v10061, %v11296
        %v11355 = vadd.f32 %v10062, %v11298
        %v11356 = vadd.f32 %v10063, %v11301
        %v11357 = vadd.f32 %v10064, %v11303
        %v11358 = vadd.f32 %v10065, %v11306
        %v11359 = vadd.f32 %v10066, %v11308
        %v11360 = vadd.f32 %v10067, %v11311
        %v11361 = vadd.f32 %v10068, %v11313
        %v11362 = vadd.f32 %v10069, %v11316
        %v11363 = vadd.f32 %v10070, %v11318
        %v11364 = vadd.f32 %v10071, %v11321
        %v11365 = vadd.f32 %v10072, %v11323
        %v11366 = vadd.f32 %v10073, %v11326
        %v11367 = vadd.f32 %v10074, %v11328
        %v11368 = vadd.f32 %v10075, %v11331
        %v11369 = vadd.f32 %v10076, %v11333
        %v11370 = vadd.f32 %v10077, %v11336
        %v11371 = vadd.f32 %v10078, %v11338
        %s11372 = scalar_lea.vmem [#allocation3], 48
        %v11373 = vld [vmem:[%s11372] sm:$0xf]
        %v11374 = vld [vmem:[%s11372 + $0x4] sm:$0xf]
        %v11375 = vld [vmem:[%s11372 + $0x8] sm:$0x3]
        %v11376 = vld [vmem:[%s11372 + $0xc] sm:$0xf]
        %v11377 = vld [vmem:[%s11372 + $0x10] sm:$0xf]
        %v11378 = vld [vmem:[%s11372 + $0x14] sm:$0x3]
        %v11379 = vld [vmem:[%s11372 + $0x18] sm:$0xf]
        %v11380 = vld [vmem:[%s11372 + $0x1c] sm:$0xf]
        %v11381 = vld [vmem:[%s11372 + $0x20] sm:$0x3]
        %v11382 = vld [vmem:[%s11372 + $0x24] sm:$0xf]
        %v11383 = vld [vmem:[%s11372 + $0x28] sm:$0xf]
        %v11384 = vld [vmem:[%s11372 + $0x2c] sm:$0x3]
        %v11385 = vld [vmem:[%s11372 + $0x30] sm:$0xf]
        %v11386 = vld [vmem:[%s11372 + $0x34] sm:$0xf]
        %v11387 = vld [vmem:[%s11372 + $0x38] sm:$0x3]
        %v11388 = vld [vmem:[%s11372 + $0x3c] sm:$0xf]
        %v11389 = vld [vmem:[%s11372 + $0x40] sm:$0xf]
        %v11390 = vld [vmem:[%s11372 + $0x44] sm:$0x3]
        %v11391 = vld [vmem:[%s11372 + $0x48] sm:$0xf]
        %v11392 = vld [vmem:[%s11372 + $0x4c] sm:$0xf]
        %v11393 = vld [vmem:[%s11372 + $0x50] sm:$0x3]
        %v11394 = vld [vmem:[%s11372 + $0x54] sm:$0xf]
        %v11395 = vld [vmem:[%s11372 + $0x58] sm:$0xf]
        %v11396 = vld [vmem:[%s11372 + $0x5c] sm:$0x3]
        %v11397 = vld [vmem:[%s11372 + $0x60] sm:$0xf]
        %v11398 = vld [vmem:[%s11372 + $0x64] sm:$0xf]
        %v11399 = vld [vmem:[%s11372 + $0x68] sm:$0x3]
        %v11400 = vld [vmem:[%s11372 + $0x6c] sm:$0xf]
        %v11401 = vld [vmem:[%s11372 + $0x70] sm:$0xf]
        %v11402 = vld [vmem:[%s11372 + $0x74] sm:$0x3]
        %v11403 = vld [vmem:[%s11372 + $0x78] sm:$0xf]
        %v11404 = vld [vmem:[%s11372 + $0x7c] sm:$0xf]
        %v11405 = vld [vmem:[%s11372 + $0x80] sm:$0x3]
        %v11406 = vld [vmem:[%s11372 + $0x84] sm:$0xf]
        %v11407 = vld [vmem:[%s11372 + $0x88] sm:$0xf]
        %v11408 = vld [vmem:[%s11372 + $0x8c] sm:$0x3]
        %v11409 = vld [vmem:[%s11372 + $0x90] sm:$0xf]
        %v11410 = vld [vmem:[%s11372 + $0x94] sm:$0xf]
        %v11411 = vld [vmem:[%s11372 + $0x98] sm:$0x3]
        %v11412 = vld [vmem:[%s11372 + $0x9c] sm:$0xf]
        %v11413 = vld [vmem:[%s11372 + $0xa0] sm:$0xf]
        %v11414 = vld [vmem:[%s11372 + $0xa4] sm:$0x3]
        %v11415 = vld [vmem:[%s11372 + $0xa8] sm:$0xf]
        %v11416 = vld [vmem:[%s11372 + $0xac] sm:$0xf]
        %v11417 = vld [vmem:[%s11372 + $0xb0] sm:$0x3]
        %v11418 = vld [vmem:[%s11372 + $0xb4] sm:$0xf]
        %v11419 = vld [vmem:[%s11372 + $0xb8] sm:$0xf]
        %v11420 = vld [vmem:[%s11372 + $0xbc] sm:$0x3]
        %v11453 = vunpack.c.l.b16 %v11373
        %v11454 = vunpack.c.l.b16 %v11374
        %v11455 = vunpack.c.l.b16 %v11376
        %v11456 = vunpack.c.l.b16 %v11377
        %v11457 = vunpack.c.l.b16 %v11379
        %v11458 = vunpack.c.l.b16 %v11380
        %v11459 = vunpack.c.l.b16 %v11382
        %v11460 = vunpack.c.l.b16 %v11383
        %v11461 = vunpack.c.l.b16 %v11385
        %v11462 = vunpack.c.l.b16 %v11386
        %v11463 = vunpack.c.l.b16 %v11388
        %v11464 = vunpack.c.l.b16 %v11389
        %v11465 = vunpack.c.l.b16 %v11391
        %v11466 = vunpack.c.l.b16 %v11392
        %v11467 = vunpack.c.l.b16 %v11394
        %v11468 = vunpack.c.l.b16 %v11395
        %v11469 = vunpack.c.l.b16 %v11397
        %v11470 = vunpack.c.l.b16 %v11398
        %v11471 = vunpack.c.l.b16 %v11400
        %v11472 = vunpack.c.l.b16 %v11401
        %v11473 = vunpack.c.l.b16 %v11403
        %v11474 = vunpack.c.l.b16 %v11404
        %v11475 = vunpack.c.l.b16 %v11406
        %v11476 = vunpack.c.l.b16 %v11407
        %v11477 = vunpack.c.l.b16 %v11409
        %v11478 = vunpack.c.l.b16 %v11410
        %v11479 = vunpack.c.l.b16 %v11412
        %v11480 = vunpack.c.l.b16 %v11413
        %v11481 = vunpack.c.l.b16 %v11415
        %v11482 = vunpack.c.l.b16 %v11416
        %v11483 = vunpack.c.l.b16 %v11418
        %v11484 = vunpack.c.l.b16 %v11419
        %v11485 = vpack.c.b16 %v11454, %v11453
        %v11486 = vpack.c.b16 %v11456, %v11455
        %v11487 = vpack.c.b16 %v11458, %v11457
        %v11488 = vpack.c.b16 %v11460, %v11459
        %v11489 = vpack.c.b16 %v11462, %v11461
        %v11490 = vpack.c.b16 %v11464, %v11463
        %v11491 = vpack.c.b16 %v11466, %v11465
        %v11492 = vpack.c.b16 %v11468, %v11467
        %v11493 = vpack.c.b16 %v11470, %v11469
        %v11494 = vpack.c.b16 %v11472, %v11471
        %v11495 = vpack.c.b16 %v11474, %v11473
        %v11496 = vpack.c.b16 %v11476, %v11475
        %v11497 = vpack.c.b16 %v11478, %v11477
        %v11498 = vpack.c.b16 %v11480, %v11479
        %v11499 = vpack.c.b16 %v11482, %v11481
        %v11500 = vpack.c.b16 %v11484, %v11483
        %v11517 = vunpack.c.l.b16 %v11375
        %v11518 = vunpack.c.l.b16 %v11378
        %v11519 = vunpack.c.l.b16 %v11381
        %v11520 = vunpack.c.l.b16 %v11384
        %v11521 = vunpack.c.l.b16 %v11387
        %v11522 = vunpack.c.l.b16 %v11390
        %v11523 = vunpack.c.l.b16 %v11393
        %v11524 = vunpack.c.l.b16 %v11396
        %v11525 = vunpack.c.l.b16 %v11399
        %v11526 = vunpack.c.l.b16 %v11402
        %v11527 = vunpack.c.l.b16 %v11405
        %v11528 = vunpack.c.l.b16 %v11408
        %v11529 = vunpack.c.l.b16 %v11411
        %v11530 = vunpack.c.l.b16 %v11414
        %v11531 = vunpack.c.l.b16 %v11417
        %v11532 = vunpack.c.l.b16 %v11420
        %v11533 = vpack.c.b16 %v11517, %v11517
        %v11534 = vpack.c.b16 %v11518, %v11518
        %v11535 = vpack.c.b16 %v11519, %v11519
        %v11536 = vpack.c.b16 %v11520, %v11520
        %v11537 = vpack.c.b16 %v11521, %v11521
        %v11538 = vpack.c.b16 %v11522, %v11522
        %v11539 = vpack.c.b16 %v11523, %v11523
        %v11540 = vpack.c.b16 %v11524, %v11524
        %v11541 = vpack.c.b16 %v11525, %v11525
        %v11542 = vpack.c.b16 %v11526, %v11526
        %v11543 = vpack.c.b16 %v11527, %v11527
        %v11544 = vpack.c.b16 %v11528, %v11528
        %v11545 = vpack.c.b16 %v11529, %v11529
        %v11546 = vpack.c.b16 %v11530, %v11530
        %v11547 = vpack.c.b16 %v11531, %v11531
        %v11548 = vpack.c.b16 %v11532, %v11532
        %v11550 = vshrl.u32 %v11485, 16
        %v11552 = vshll.u32 %v11485, 16
        %v11554 = vrot.slane %v11552, 1
        %v11555 = vor.u32 %v11550, %v11554
        %v11557 = vshll.u32 %v11533, 16
        %v11559 = vrot.slane %v11557, 1
        %v11560 = vsel %vm3028, %v11555, %v11559
        %v11562 = vshrl.u32 %v11486, 16
        %v11564 = vshll.u32 %v11486, 16
        %v11566 = vrot.slane %v11564, 1
        %v11567 = vor.u32 %v11562, %v11566
        %v11569 = vshll.u32 %v11534, 16
        %v11571 = vrot.slane %v11569, 1
        %v11572 = vsel %vm3028, %v11567, %v11571
        %v11574 = vshrl.u32 %v11487, 16
        %v11576 = vshll.u32 %v11487, 16
        %v11578 = vrot.slane %v11576, 1
        %v11579 = vor.u32 %v11574, %v11578
        %v11581 = vshll.u32 %v11535, 16
        %v11583 = vrot.slane %v11581, 1
        %v11584 = vsel %vm3028, %v11579, %v11583
        %v11586 = vshrl.u32 %v11488, 16
        %v11588 = vshll.u32 %v11488, 16
        %v11590 = vrot.slane %v11588, 1
        %v11591 = vor.u32 %v11586, %v11590
        %v11593 = vshll.u32 %v11536, 16
        %v11595 = vrot.slane %v11593, 1
        %v11596 = vsel %vm3028, %v11591, %v11595
        %v11598 = vshrl.u32 %v11489, 16
        %v11600 = vshll.u32 %v11489, 16
        %v11602 = vrot.slane %v11600, 1
        %v11603 = vor.u32 %v11598, %v11602
        %v11605 = vshll.u32 %v11537, 16
        %v11607 = vrot.slane %v11605, 1
        %v11608 = vsel %vm3028, %v11603, %v11607
        %v11610 = vshrl.u32 %v11490, 16
        %v11612 = vshll.u32 %v11490, 16
        %v11614 = vrot.slane %v11612, 1
        %v11615 = vor.u32 %v11610, %v11614
        %v11617 = vshll.u32 %v11538, 16
        %v11619 = vrot.slane %v11617, 1
        %v11620 = vsel %vm3028, %v11615, %v11619
        %v11622 = vshrl.u32 %v11491, 16
        %v11624 = vshll.u32 %v11491, 16
        %v11626 = vrot.slane %v11624, 1
        %v11627 = vor.u32 %v11622, %v11626
        %v11629 = vshll.u32 %v11539, 16
        %v11631 = vrot.slane %v11629, 1
        %v11632 = vsel %vm3028, %v11627, %v11631
        %v11634 = vshrl.u32 %v11492, 16
        %v11636 = vshll.u32 %v11492, 16
        %v11638 = vrot.slane %v11636, 1
        %v11639 = vor.u32 %v11634, %v11638
        %v11641 = vshll.u32 %v11540, 16
        %v11643 = vrot.slane %v11641, 1
        %v11644 = vsel %vm3028, %v11639, %v11643
        %v11646 = vshrl.u32 %v11493, 16
        %v11648 = vshll.u32 %v11493, 16
        %v11650 = vrot.slane %v11648, 1
        %v11651 = vor.u32 %v11646, %v11650
        %v11653 = vshll.u32 %v11541, 16
        %v11655 = vrot.slane %v11653, 1
        %v11656 = vsel %vm3028, %v11651, %v11655
        %v11658 = vshrl.u32 %v11494, 16
        %v11660 = vshll.u32 %v11494, 16
        %v11662 = vrot.slane %v11660, 1
        %v11663 = vor.u32 %v11658, %v11662
        %v11665 = vshll.u32 %v11542, 16
        %v11667 = vrot.slane %v11665, 1
        %v11668 = vsel %vm3028, %v11663, %v11667
        %v11670 = vshrl.u32 %v11495, 16
        %v11672 = vshll.u32 %v11495, 16
        %v11674 = vrot.slane %v11672, 1
        %v11675 = vor.u32 %v11670, %v11674
        %v11677 = vshll.u32 %v11543, 16
        %v11679 = vrot.slane %v11677, 1
        %v11680 = vsel %vm3028, %v11675, %v11679
        %v11682 = vshrl.u32 %v11496, 16
        %v11684 = vshll.u32 %v11496, 16
        %v11686 = vrot.slane %v11684, 1
        %v11687 = vor.u32 %v11682, %v11686
        %v11689 = vshll.u32 %v11544, 16
        %v11691 = vrot.slane %v11689, 1
        %v11692 = vsel %vm3028, %v11687, %v11691
        %v11694 = vshrl.u32 %v11497, 16
        %v11696 = vshll.u32 %v11497, 16
        %v11698 = vrot.slane %v11696, 1
        %v11699 = vor.u32 %v11694, %v11698
        %v11701 = vshll.u32 %v11545, 16
        %v11703 = vrot.slane %v11701, 1
        %v11704 = vsel %vm3028, %v11699, %v11703
        %v11706 = vshrl.u32 %v11498, 16
        %v11708 = vshll.u32 %v11498, 16
        %v11710 = vrot.slane %v11708, 1
        %v11711 = vor.u32 %v11706, %v11710
        %v11713 = vshll.u32 %v11546, 16
        %v11715 = vrot.slane %v11713, 1
        %v11716 = vsel %vm3028, %v11711, %v11715
        %v11718 = vshrl.u32 %v11499, 16
        %v11720 = vshll.u32 %v11499, 16
        %v11722 = vrot.slane %v11720, 1
        %v11723 = vor.u32 %v11718, %v11722
        %v11725 = vshll.u32 %v11547, 16
        %v11727 = vrot.slane %v11725, 1
        %v11728 = vsel %vm3028, %v11723, %v11727
        %v11730 = vshrl.u32 %v11500, 16
        %v11732 = vshll.u32 %v11500, 16
        %v11734 = vrot.slane %v11732, 1
        %v11735 = vor.u32 %v11730, %v11734
        %v11737 = vshll.u32 %v11548, 16
        %v11739 = vrot.slane %v11737, 1
        %v11740 = vsel %vm3028, %v11735, %v11739
        %11741 = vrot.lane.b32.xlu0 %v11560, 64
        %v11742 = vpop.permute.xlu0 %11741
        %11743 = vrot.lane.b32.xlu0 %v11572, 64
        %v11744 = vpop.permute.xlu0 %11743
        %11745 = vrot.lane.b32.xlu0 %v11584, 64
        %v11746 = vpop.permute.xlu0 %11745
        %11747 = vrot.lane.b32.xlu0 %v11596, 64
        %v11748 = vpop.permute.xlu0 %11747
        %11749 = vrot.lane.b32.xlu0 %v11608, 64
        %v11750 = vpop.permute.xlu0 %11749
        %11751 = vrot.lane.b32.xlu0 %v11620, 64
        %v11752 = vpop.permute.xlu0 %11751
        %11753 = vrot.lane.b32.xlu0 %v11632, 64
        %v11754 = vpop.permute.xlu0 %11753
        %11755 = vrot.lane.b32.xlu0 %v11644, 64
        %v11756 = vpop.permute.xlu0 %11755
        %11757 = vrot.lane.b32.xlu0 %v11656, 64
        %v11758 = vpop.permute.xlu0 %11757
        %11759 = vrot.lane.b32.xlu0 %v11668, 64
        %v11760 = vpop.permute.xlu0 %11759
        %11761 = vrot.lane.b32.xlu0 %v11680, 64
        %v11762 = vpop.permute.xlu0 %11761
        %11763 = vrot.lane.b32.xlu0 %v11692, 64
        %v11764 = vpop.permute.xlu0 %11763
        %11765 = vrot.lane.b32.xlu0 %v11704, 64
        %v11766 = vpop.permute.xlu0 %11765
        %11767 = vrot.lane.b32.xlu0 %v11716, 64
        %v11768 = vpop.permute.xlu0 %11767
        %11769 = vrot.lane.b32.xlu0 %v11728, 64
        %v11770 = vpop.permute.xlu0 %11769
        %11771 = vrot.lane.b32.xlu0 %v11740, 64
        %v11772 = vpop.permute.xlu0 %11771
        %v11773 = vrot.slane %v11485, 1
        %v11774 = vrot.slane %v11533, 1
        %v11775 = vsel %vm3253, %v11773, %v11774
        %v11776 = vrot.slane %v11486, 1
        %v11777 = vrot.slane %v11534, 1
        %v11778 = vsel %vm3253, %v11776, %v11777
        %v11779 = vrot.slane %v11487, 1
        %v11780 = vrot.slane %v11535, 1
        %v11781 = vsel %vm3253, %v11779, %v11780
        %v11782 = vrot.slane %v11488, 1
        %v11783 = vrot.slane %v11536, 1
        %v11784 = vsel %vm3253, %v11782, %v11783
        %v11785 = vrot.slane %v11489, 1
        %v11786 = vrot.slane %v11537, 1
        %v11787 = vsel %vm3253, %v11785, %v11786
        %v11788 = vrot.slane %v11490, 1
        %v11789 = vrot.slane %v11538, 1
        %v11790 = vsel %vm3253, %v11788, %v11789
        %v11791 = vrot.slane %v11491, 1
        %v11792 = vrot.slane %v11539, 1
        %v11793 = vsel %vm3253, %v11791, %v11792
        %v11794 = vrot.slane %v11492, 1
        %v11795 = vrot.slane %v11540, 1
        %v11796 = vsel %vm3253, %v11794, %v11795
        %v11797 = vrot.slane %v11493, 1
        %v11798 = vrot.slane %v11541, 1
        %v11799 = vsel %vm3253, %v11797, %v11798
        %v11800 = vrot.slane %v11494, 1
        %v11801 = vrot.slane %v11542, 1
        %v11802 = vsel %vm3253, %v11800, %v11801
        %v11803 = vrot.slane %v11495, 1
        %v11804 = vrot.slane %v11543, 1
        %v11805 = vsel %vm3253, %v11803, %v11804
        %v11806 = vrot.slane %v11496, 1
        %v11807 = vrot.slane %v11544, 1
        %v11808 = vsel %vm3253, %v11806, %v11807
        %v11809 = vrot.slane %v11497, 1
        %v11810 = vrot.slane %v11545, 1
        %v11811 = vsel %vm3253, %v11809, %v11810
        %v11812 = vrot.slane %v11498, 1
        %v11813 = vrot.slane %v11546, 1
        %v11814 = vsel %vm3253, %v11812, %v11813
        %v11815 = vrot.slane %v11499, 1
        %v11816 = vrot.slane %v11547, 1
        %v11817 = vsel %vm3253, %v11815, %v11816
        %v11818 = vrot.slane %v11500, 1
        %v11819 = vrot.slane %v11548, 1
        %v11820 = vsel %vm3253, %v11818, %v11819
        %v11821 = vrot.slane %v11550, 1
        %v11822 = vrot.slane %v11552, 2
        %v11823 = vor.u32 %v11821, %v11822
        %v11824 = vshrl.u32 %v11533, 16
        %v11826 = vrot.slane %v11824, 1
        %v11827 = vrot.slane %v11557, 2
        %v11828 = vor.u32 %v11826, %v11827
        %v11829 = vsel %vm6713, %v11823, %v11828
        %v11830 = vrot.slane %v11562, 1
        %v11831 = vrot.slane %v11564, 2
        %v11832 = vor.u32 %v11830, %v11831
        %v11833 = vshrl.u32 %v11534, 16
        %v11835 = vrot.slane %v11833, 1
        %v11836 = vrot.slane %v11569, 2
        %v11837 = vor.u32 %v11835, %v11836
        %v11838 = vsel %vm6713, %v11832, %v11837
        %v11839 = vrot.slane %v11574, 1
        %v11840 = vrot.slane %v11576, 2
        %v11841 = vor.u32 %v11839, %v11840
        %v11842 = vshrl.u32 %v11535, 16
        %v11844 = vrot.slane %v11842, 1
        %v11845 = vrot.slane %v11581, 2
        %v11846 = vor.u32 %v11844, %v11845
        %v11847 = vsel %vm6713, %v11841, %v11846
        %v11848 = vrot.slane %v11586, 1
        %v11849 = vrot.slane %v11588, 2
        %v11850 = vor.u32 %v11848, %v11849
        %v11851 = vshrl.u32 %v11536, 16
        %v11853 = vrot.slane %v11851, 1
        %v11854 = vrot.slane %v11593, 2
        %v11855 = vor.u32 %v11853, %v11854
        %v11856 = vsel %vm6713, %v11850, %v11855
        %v11857 = vrot.slane %v11598, 1
        %v11858 = vrot.slane %v11600, 2
        %v11859 = vor.u32 %v11857, %v11858
        %v11860 = vshrl.u32 %v11537, 16
        %v11862 = vrot.slane %v11860, 1
        %v11863 = vrot.slane %v11605, 2
        %v11864 = vor.u32 %v11862, %v11863
        %v11865 = vsel %vm6713, %v11859, %v11864
        %v11866 = vrot.slane %v11610, 1
        %v11867 = vrot.slane %v11612, 2
        %v11868 = vor.u32 %v11866, %v11867
        %v11869 = vshrl.u32 %v11538, 16
        %v11871 = vrot.slane %v11869, 1
        %v11872 = vrot.slane %v11617, 2
        %v11873 = vor.u32 %v11871, %v11872
        %v11874 = vsel %vm6713, %v11868, %v11873
        %v11875 = vrot.slane %v11622, 1
        %v11876 = vrot.slane %v11624, 2
        %v11877 = vor.u32 %v11875, %v11876
        %v11878 = vshrl.u32 %v11539, 16
        %v11880 = vrot.slane %v11878, 1
        %v11881 = vrot.slane %v11629, 2
        %v11882 = vor.u32 %v11880, %v11881
        %v11883 = vsel %vm6713, %v11877, %v11882
        %v11884 = vrot.slane %v11634, 1
        %v11885 = vrot.slane %v11636, 2
        %v11886 = vor.u32 %v11884, %v11885
        %v11887 = vshrl.u32 %v11540, 16
        %v11889 = vrot.slane %v11887, 1
        %v11890 = vrot.slane %v11641, 2
        %v11891 = vor.u32 %v11889, %v11890
        %v11892 = vsel %vm6713, %v11886, %v11891
        %v11893 = vrot.slane %v11646, 1
        %v11894 = vrot.slane %v11648, 2
        %v11895 = vor.u32 %v11893, %v11894
        %v11896 = vshrl.u32 %v11541, 16
        %v11898 = vrot.slane %v11896, 1
        %v11899 = vrot.slane %v11653, 2
        %v11900 = vor.u32 %v11898, %v11899
        %v11901 = vsel %vm6713, %v11895, %v11900
        %v11902 = vrot.slane %v11658, 1
        %v11903 = vrot.slane %v11660, 2
        %v11904 = vor.u32 %v11902, %v11903
        %v11905 = vshrl.u32 %v11542, 16
        %v11907 = vrot.slane %v11905, 1
        %v11908 = vrot.slane %v11665, 2
        %v11909 = vor.u32 %v11907, %v11908
        %v11910 = vsel %vm6713, %v11904, %v11909
        %v11911 = vrot.slane %v11670, 1
        %v11912 = vrot.slane %v11672, 2
        %v11913 = vor.u32 %v11911, %v11912
        %v11914 = vshrl.u32 %v11543, 16
        %v11916 = vrot.slane %v11914, 1
        %v11917 = vrot.slane %v11677, 2
        %v11918 = vor.u32 %v11916, %v11917
        %v11919 = vsel %vm6713, %v11913, %v11918
        %v11920 = vrot.slane %v11682, 1
        %v11921 = vrot.slane %v11684, 2
        %v11922 = vor.u32 %v11920, %v11921
        %v11923 = vshrl.u32 %v11544, 16
        %v11925 = vrot.slane %v11923, 1
        %v11926 = vrot.slane %v11689, 2
        %v11927 = vor.u32 %v11925, %v11926
        %v11928 = vsel %vm6713, %v11922, %v11927
        %v11929 = vrot.slane %v11694, 1
        %v11930 = vrot.slane %v11696, 2
        %v11931 = vor.u32 %v11929, %v11930
        %v11932 = vshrl.u32 %v11545, 16
        %v11934 = vrot.slane %v11932, 1
        %v11935 = vrot.slane %v11701, 2
        %v11936 = vor.u32 %v11934, %v11935
        %v11937 = vsel %vm6713, %v11931, %v11936
        %v11938 = vrot.slane %v11706, 1
        %v11939 = vrot.slane %v11708, 2
        %v11940 = vor.u32 %v11938, %v11939
        %v11941 = vshrl.u32 %v11546, 16
        %v11943 = vrot.slane %v11941, 1
        %v11944 = vrot.slane %v11713, 2
        %v11945 = vor.u32 %v11943, %v11944
        %v11946 = vsel %vm6713, %v11940, %v11945
        %v11947 = vrot.slane %v11718, 1
        %v11948 = vrot.slane %v11720, 2
        %v11949 = vor.u32 %v11947, %v11948
        %v11950 = vshrl.u32 %v11547, 16
        %v11952 = vrot.slane %v11950, 1
        %v11953 = vrot.slane %v11725, 2
        %v11954 = vor.u32 %v11952, %v11953
        %v11955 = vsel %vm6713, %v11949, %v11954
        %v11956 = vrot.slane %v11730, 1
        %v11957 = vrot.slane %v11732, 2
        %v11958 = vor.u32 %v11956, %v11957
        %v11959 = vshrl.u32 %v11548, 16
        %v11961 = vrot.slane %v11959, 1
        %v11962 = vrot.slane %v11737, 2
        %v11963 = vor.u32 %v11961, %v11962
        %v11964 = vsel %vm6713, %v11958, %v11963
        %11965 = vrot.lane.b32.xlu0 %v11829, 64
        %v11966 = vpop.permute.xlu0 %11965
        %11967 = vrot.lane.b32.xlu0 %v11838, 64
        %v11968 = vpop.permute.xlu0 %11967
        %11969 = vrot.lane.b32.xlu0 %v11847, 64
        %v11970 = vpop.permute.xlu0 %11969
        %11971 = vrot.lane.b32.xlu0 %v11856, 64
        %v11972 = vpop.permute.xlu0 %11971
        %11973 = vrot.lane.b32.xlu0 %v11865, 64
        %v11974 = vpop.permute.xlu0 %11973
        %11975 = vrot.lane.b32.xlu0 %v11874, 64
        %v11976 = vpop.permute.xlu0 %11975
        %11977 = vrot.lane.b32.xlu0 %v11883, 64
        %v11978 = vpop.permute.xlu0 %11977
        %11979 = vrot.lane.b32.xlu0 %v11892, 64
        %v11980 = vpop.permute.xlu0 %11979
        %11981 = vrot.lane.b32.xlu0 %v11901, 64
        %v11982 = vpop.permute.xlu0 %11981
        %11983 = vrot.lane.b32.xlu0 %v11910, 64
        %v11984 = vpop.permute.xlu0 %11983
        %11985 = vrot.lane.b32.xlu0 %v11919, 64
        %v11986 = vpop.permute.xlu0 %11985
        %11987 = vrot.lane.b32.xlu0 %v11928, 64
        %v11988 = vpop.permute.xlu0 %11987
        %11989 = vrot.lane.b32.xlu0 %v11937, 64
        %v11990 = vpop.permute.xlu0 %11989
        %11991 = vrot.lane.b32.xlu0 %v11946, 64
        %v11992 = vpop.permute.xlu0 %11991
        %11993 = vrot.lane.b32.xlu0 %v11955, 64
        %v11994 = vpop.permute.xlu0 %11993
        %11995 = vrot.lane.b32.xlu0 %v11964, 64
        %v11996 = vpop.permute.xlu0 %11995
        %v11997 = vrot.slane %v11485, 2
        %v11998 = vrot.slane %v11533, 2
        %v11999 = vsel %vm6890, %v11997, %v11998
        %v12000 = vrot.slane %v11486, 2
        %v12001 = vrot.slane %v11534, 2
        %v12002 = vsel %vm6890, %v12000, %v12001
        %v12003 = vrot.slane %v11487, 2
        %v12004 = vrot.slane %v11535, 2
        %v12005 = vsel %vm6890, %v12003, %v12004
        %v12006 = vrot.slane %v11488, 2
        %v12007 = vrot.slane %v11536, 2
        %v12008 = vsel %vm6890, %v12006, %v12007
        %v12009 = vrot.slane %v11489, 2
        %v12010 = vrot.slane %v11537, 2
        %v12011 = vsel %vm6890, %v12009, %v12010
        %v12012 = vrot.slane %v11490, 2
        %v12013 = vrot.slane %v11538, 2
        %v12014 = vsel %vm6890, %v12012, %v12013
        %v12015 = vrot.slane %v11491, 2
        %v12016 = vrot.slane %v11539, 2
        %v12017 = vsel %vm6890, %v12015, %v12016
        %v12018 = vrot.slane %v11492, 2
        %v12019 = vrot.slane %v11540, 2
        %v12020 = vsel %vm6890, %v12018, %v12019
        %v12021 = vrot.slane %v11493, 2
        %v12022 = vrot.slane %v11541, 2
        %v12023 = vsel %vm6890, %v12021, %v12022
        %v12024 = vrot.slane %v11494, 2
        %v12025 = vrot.slane %v11542, 2
        %v12026 = vsel %vm6890, %v12024, %v12025
        %v12027 = vrot.slane %v11495, 2
        %v12028 = vrot.slane %v11543, 2
        %v12029 = vsel %vm6890, %v12027, %v12028
        %v12030 = vrot.slane %v11496, 2
        %v12031 = vrot.slane %v11544, 2
        %v12032 = vsel %vm6890, %v12030, %v12031
        %v12033 = vrot.slane %v11497, 2
        %v12034 = vrot.slane %v11545, 2
        %v12035 = vsel %vm6890, %v12033, %v12034
        %v12036 = vrot.slane %v11498, 2
        %v12037 = vrot.slane %v11546, 2
        %v12038 = vsel %vm6890, %v12036, %v12037
        %v12039 = vrot.slane %v11499, 2
        %v12040 = vrot.slane %v11547, 2
        %v12041 = vsel %vm6890, %v12039, %v12040
        %v12042 = vrot.slane %v11500, 2
        %v12043 = vrot.slane %v11548, 2
        %v12044 = vsel %vm6890, %v12042, %v12043
        %v12046 = vsel %vm3302, %v11485, %v11742
        %v12049 = vsel %vm3302, %v11486, %v11744
        %v12052 = vsel %vm3302, %v11487, %v11746
        %v12055 = vsel %vm3302, %v11488, %v11748
        %v12058 = vsel %vm3302, %v11489, %v11750
        %v12061 = vsel %vm3302, %v11490, %v11752
        %v12064 = vsel %vm3302, %v11491, %v11754
        %v12067 = vsel %vm3302, %v11492, %v11756
        %v12070 = vsel %vm3302, %v11493, %v11758
        %v12073 = vsel %vm3302, %v11494, %v11760
        %v12076 = vsel %vm3302, %v11495, %v11762
        %v12079 = vsel %vm3302, %v11496, %v11764
        %v12082 = vsel %vm3302, %v11497, %v11766
        %v12085 = vsel %vm3302, %v11498, %v11768
        %v12088 = vsel %vm3302, %v11499, %v11770
        %v12091 = vsel %vm3302, %v11500, %v11772
        %v12095 = vsel %vm3302, %v11775, %v11966
        %v12099 = vsel %vm3302, %v11778, %v11968
        %v12103 = vsel %vm3302, %v11781, %v11970
        %v12107 = vsel %vm3302, %v11784, %v11972
        %v12111 = vsel %vm3302, %v11787, %v11974
        %v12115 = vsel %vm3302, %v11790, %v11976
        %v12119 = vsel %vm3302, %v11793, %v11978
        %v12123 = vsel %vm3302, %v11796, %v11980
        %v12127 = vsel %vm3302, %v11799, %v11982
        %v12131 = vsel %vm3302, %v11802, %v11984
        %v12135 = vsel %vm3302, %v11805, %v11986
        %v12139 = vsel %vm3302, %v11808, %v11988
        %v12143 = vsel %vm3302, %v11811, %v11990
        %v12147 = vsel %vm3302, %v11814, %v11992
        %v12151 = vsel %vm3302, %v11817, %v11994
        %v12155 = vsel %vm3302, %v11820, %v11996
        %s12157 = scalar_lea.vmem %s3, 640
        %v12158 = vld [vmem:[%s12157] sm:$0xf]
        %v12159 = vld [vmem:[%s12157 + $0x4] sm:$0xf]
        %v12160 = vld [vmem:[%s12157 + $0x8] sm:$0xf]
        %v12161 = vld [vmem:[%s12157 + $0xc] sm:$0xf]
        %v12162 = vld [vmem:[%s12157 + $0x10] sm:$0xf]
        %v12163 = vld [vmem:[%s12157 + $0x14] sm:$0xf]
        %v12164 = vld [vmem:[%s12157 + $0x18] sm:$0xf]
        %v12165 = vld [vmem:[%s12157 + $0x1c] sm:$0xf]
        %v12166 = vld [vmem:[%s12157 + $0x20] sm:$0xf]
        %v12167 = vld [vmem:[%s12157 + $0x24] sm:$0xf]
        %v12168 = vld [vmem:[%s12157 + $0x28] sm:$0xf]
        %v12169 = vld [vmem:[%s12157 + $0x2c] sm:$0xf]
        %v12170 = vld [vmem:[%s12157 + $0x30] sm:$0xf]
        %v12171 = vld [vmem:[%s12157 + $0x34] sm:$0xf]
        %v12172 = vld [vmem:[%s12157 + $0x38] sm:$0xf]
        %v12173 = vld [vmem:[%s12157 + $0x3c] sm:$0xf]
        %v12174 = vld [vmem:[%s12157 + $0x40] sm:$0xf]
        %v12175 = vld [vmem:[%s12157 + $0x44] sm:$0xf]
        %v12176 = vld [vmem:[%s12157 + $0x48] sm:$0xf]
        %v12177 = vld [vmem:[%s12157 + $0x4c] sm:$0xf]
        %v12178 = vld [vmem:[%s12157 + $0x50] sm:$0xf]
        %v12179 = vld [vmem:[%s12157 + $0x54] sm:$0xf]
        %v12180 = vld [vmem:[%s12157 + $0x58] sm:$0xf]
        %v12181 = vld [vmem:[%s12157 + $0x5c] sm:$0xf]
        %v12182 = vld [vmem:[%s12157 + $0x60] sm:$0xf]
        %v12183 = vld [vmem:[%s12157 + $0x64] sm:$0xf]
        %v12184 = vld [vmem:[%s12157 + $0x68] sm:$0xf]
        %v12185 = vld [vmem:[%s12157 + $0x6c] sm:$0xf]
        %v12186 = vld [vmem:[%s12157 + $0x70] sm:$0xf]
        %v12187 = vld [vmem:[%s12157 + $0x74] sm:$0xf]
        %v12188 = vld [vmem:[%s12157 + $0x78] sm:$0xf]
        %v12189 = vld [vmem:[%s12157 + $0x7c] sm:$0xf]
        %v12190 = vld [vmem:[%s12157 + $0x80] sm:$0xf]
        %v12191 = vld [vmem:[%s12157 + $0x84] sm:$0xf]
        %v12192 = vld [vmem:[%s12157 + $0x88] sm:$0xf]
        %v12193 = vld [vmem:[%s12157 + $0x8c] sm:$0xf]
        %v12194 = vld [vmem:[%s12157 + $0x90] sm:$0xf]
        %v12195 = vld [vmem:[%s12157 + $0x94] sm:$0xf]
        %v12196 = vld [vmem:[%s12157 + $0x98] sm:$0xf]
        %v12197 = vld [vmem:[%s12157 + $0x9c] sm:$0xf]
        %v12238 = vunpack.c.l.b16 %v12158
        %v12239 = vunpack.c.l.b16 %v12159
        %v12240 = vunpack.c.l.b16 %v12160
        %v12241 = vunpack.c.l.b16 %v12161
        %v12242 = vunpack.c.l.b16 %v12162
        %v12243 = vunpack.c.l.b16 %v12163
        %v12244 = vunpack.c.l.b16 %v12164
        %v12245 = vunpack.c.l.b16 %v12165
        %v12246 = vunpack.c.l.b16 %v12166
        %v12247 = vunpack.c.l.b16 %v12167
        %v12248 = vunpack.c.l.b16 %v12168
        %v12249 = vunpack.c.l.b16 %v12169
        %v12250 = vunpack.c.l.b16 %v12170
        %v12251 = vunpack.c.l.b16 %v12171
        %v12252 = vunpack.c.l.b16 %v12172
        %v12253 = vunpack.c.l.b16 %v12173
        %v12254 = vunpack.c.l.b16 %v12174
        %v12255 = vunpack.c.l.b16 %v12175
        %v12256 = vunpack.c.l.b16 %v12176
        %v12257 = vunpack.c.l.b16 %v12177
        %v12258 = vunpack.c.l.b16 %v12178
        %v12259 = vunpack.c.l.b16 %v12179
        %v12260 = vunpack.c.l.b16 %v12180
        %v12261 = vunpack.c.l.b16 %v12181
        %v12262 = vunpack.c.l.b16 %v12182
        %v12263 = vunpack.c.l.b16 %v12183
        %v12264 = vunpack.c.l.b16 %v12184
        %v12265 = vunpack.c.l.b16 %v12185
        %v12266 = vunpack.c.l.b16 %v12186
        %v12267 = vunpack.c.l.b16 %v12187
        %v12268 = vunpack.c.l.b16 %v12188
        %v12269 = vunpack.c.l.b16 %v12189
        %v12270 = vunpack.c.l.b16 %v12190
        %v12271 = vunpack.c.l.b16 %v12191
        %v12272 = vunpack.c.l.b16 %v12192
        %v12273 = vunpack.c.l.b16 %v12193
        %v12274 = vunpack.c.l.b16 %v12194
        %v12275 = vunpack.c.l.b16 %v12195
        %v12276 = vunpack.c.l.b16 %v12196
        %v12277 = vunpack.c.l.b16 %v12197
        %v12278 = vpack.c.b16 %v12239, %v12238
        %v12279 = vpack.c.b16 %v12241, %v12240
        %v12280 = vpack.c.b16 %v12243, %v12242
        %v12281 = vpack.c.b16 %v12245, %v12244
        %v12282 = vpack.c.b16 %v12247, %v12246
        %v12283 = vpack.c.b16 %v12249, %v12248
        %v12284 = vpack.c.b16 %v12251, %v12250
        %v12285 = vpack.c.b16 %v12253, %v12252
        %v12286 = vpack.c.b16 %v12255, %v12254
        %v12287 = vpack.c.b16 %v12257, %v12256
        %v12288 = vpack.c.b16 %v12259, %v12258
        %v12289 = vpack.c.b16 %v12261, %v12260
        %v12290 = vpack.c.b16 %v12263, %v12262
        %v12291 = vpack.c.b16 %v12265, %v12264
        %v12292 = vpack.c.b16 %v12267, %v12266
        %v12293 = vpack.c.b16 %v12269, %v12268
        %v12294 = vpack.c.b16 %v12271, %v12270
        %v12295 = vpack.c.b16 %v12273, %v12272
        %v12296 = vpack.c.b16 %v12275, %v12274
        %v12297 = vpack.c.b16 %v12277, %v12276
        %v12319 = vsel %vm3302, %v11999, 0
        %v12322 = vsel %vm3302, %v12002, 0
        %v12325 = vsel %vm3302, %v12005, 0
        %v12328 = vsel %vm3302, %v12008, 0
        %v12331 = vsel %vm3302, %v12011, 0
        %v12334 = vsel %vm3302, %v12014, 0
        %v12337 = vsel %vm3302, %v12017, 0
        %v12340 = vsel %vm3302, %v12020, 0
        %v12343 = vsel %vm3302, %v12023, 0
        %v12346 = vsel %vm3302, %v12026, 0
        %v12349 = vsel %vm3302, %v12029, 0
        %v12352 = vsel %vm3302, %v12032, 0
        %v12355 = vsel %vm3302, %v12035, 0
        %v12358 = vsel %vm3302, %v12038, 0
        %v12361 = vsel %vm3302, %v12041, 0
        %v12364 = vsel %vm3302, %v12044, 0
        %12366 = vmatpush.bf16.msra.mxu0 %v12285
        %12367 = vmatpush.bf16.msra.mxu0 %v12284
        %12368 = vmatpush.bf16.msra.mxu0 %v12283
        %12369 = vmatpush.bf16.msra.mxu0 %v12282
        %12370 = vmatpush.bf16.msra.mxu0 %v12281
        %12371 = vmatpush.bf16.msra.mxu0 %v12280
        %12372 = vmatpush.bf16.msra.mxu0 %v12279
        %12373 = vmatpush.bf16.msra.mxu0 %v12278
        %12374 = vmatmul.bf16.gmra.mxu0 %v12046
        %v12375 = vpop.f32.mrf.mxu0
        %v12376 = vadd.f32 0.0, %v12375
        %v12377 = vpop.f32.mrf.mxu0
        %v12378 = vadd.f32 0.0, %v12377
        %12379 = vmatmul.bf16.gmra.mxu0 %v12049
        %v12380 = vpop.f32.mrf.mxu0
        %v12381 = vadd.f32 0.0, %v12380
        %v12382 = vpop.f32.mrf.mxu0
        %v12383 = vadd.f32 0.0, %v12382
        %12384 = vmatmul.bf16.gmra.mxu0 %v12052
        %v12385 = vpop.f32.mrf.mxu0
        %v12386 = vadd.f32 0.0, %v12385
        %v12387 = vpop.f32.mrf.mxu0
        %v12388 = vadd.f32 0.0, %v12387
        %12389 = vmatmul.bf16.gmra.mxu0 %v12055
        %v12390 = vpop.f32.mrf.mxu0
        %v12391 = vadd.f32 0.0, %v12390
        %v12392 = vpop.f32.mrf.mxu0
        %v12393 = vadd.f32 0.0, %v12392
        %12394 = vmatmul.bf16.gmra.mxu0 %v12058
        %v12395 = vpop.f32.mrf.mxu0
        %v12396 = vadd.f32 0.0, %v12395
        %v12397 = vpop.f32.mrf.mxu0
        %v12398 = vadd.f32 0.0, %v12397
        %12399 = vmatmul.bf16.gmra.mxu0 %v12061
        %v12400 = vpop.f32.mrf.mxu0
        %v12401 = vadd.f32 0.0, %v12400
        %v12402 = vpop.f32.mrf.mxu0
        %v12403 = vadd.f32 0.0, %v12402
        %12404 = vmatmul.bf16.gmra.mxu0 %v12064
        %v12405 = vpop.f32.mrf.mxu0
        %v12406 = vadd.f32 0.0, %v12405
        %v12407 = vpop.f32.mrf.mxu0
        %v12408 = vadd.f32 0.0, %v12407
        %12409 = vmatmul.bf16.gmra.mxu0 %v12067
        %v12410 = vpop.f32.mrf.mxu0
        %v12411 = vadd.f32 0.0, %v12410
        %v12412 = vpop.f32.mrf.mxu0
        %v12413 = vadd.f32 0.0, %v12412
        %12414 = vmatmul.bf16.gmra.mxu0 %v12070
        %v12415 = vpop.f32.mrf.mxu0
        %v12416 = vadd.f32 0.0, %v12415
        %v12417 = vpop.f32.mrf.mxu0
        %v12418 = vadd.f32 0.0, %v12417
        %12419 = vmatmul.bf16.gmra.mxu0 %v12073
        %v12420 = vpop.f32.mrf.mxu0
        %v12421 = vadd.f32 0.0, %v12420
        %v12422 = vpop.f32.mrf.mxu0
        %v12423 = vadd.f32 0.0, %v12422
        %12424 = vmatmul.bf16.gmra.mxu0 %v12076
        %v12425 = vpop.f32.mrf.mxu0
        %v12426 = vadd.f32 0.0, %v12425
        %v12427 = vpop.f32.mrf.mxu0
        %v12428 = vadd.f32 0.0, %v12427
        %12429 = vmatmul.bf16.gmra.mxu0 %v12079
        %v12430 = vpop.f32.mrf.mxu0
        %v12431 = vadd.f32 0.0, %v12430
        %v12432 = vpop.f32.mrf.mxu0
        %v12433 = vadd.f32 0.0, %v12432
        %12434 = vmatmul.bf16.gmra.mxu0 %v12082
        %v12435 = vpop.f32.mrf.mxu0
        %v12436 = vadd.f32 0.0, %v12435
        %v12437 = vpop.f32.mrf.mxu0
        %v12438 = vadd.f32 0.0, %v12437
        %12439 = vmatmul.bf16.gmra.mxu0 %v12085
        %v12440 = vpop.f32.mrf.mxu0
        %v12441 = vadd.f32 0.0, %v12440
        %v12442 = vpop.f32.mrf.mxu0
        %v12443 = vadd.f32 0.0, %v12442
        %12444 = vmatmul.bf16.gmra.mxu0 %v12088
        %v12445 = vpop.f32.mrf.mxu0
        %v12446 = vadd.f32 0.0, %v12445
        %v12447 = vpop.f32.mrf.mxu0
        %v12448 = vadd.f32 0.0, %v12447
        %12449 = vmatmul.bf16.gmra.mxu0 %v12091
        %v12450 = vpop.f32.mrf.mxu0
        %v12451 = vadd.f32 0.0, %v12450
        %v12452 = vpop.f32.mrf.mxu0
        %v12453 = vadd.f32 0.0, %v12452
        %12454 = vdwg.mxu0
        %12455 = vmatpush.bf16.msra.mxu0 %v12293
        %12456 = vmatpush.bf16.msra.mxu0 %v12292
        %12457 = vmatpush.bf16.msra.mxu0 %v12291
        %12458 = vmatpush.bf16.msra.mxu0 %v12290
        %12459 = vmatpush.bf16.msra.mxu0 %v12289
        %12460 = vmatpush.bf16.msra.mxu0 %v12288
        %12461 = vmatpush.bf16.msra.mxu0 %v12287
        %12462 = vmatpush.bf16.msra.mxu0 %v12286
        %12463 = vmatmul.bf16.gmra.mxu0 %v12095
        %v12464 = vpop.f32.mrf.mxu0
        %v12465 = vadd.f32 %v12376, %v12464
        %v12466 = vpop.f32.mrf.mxu0
        %v12467 = vadd.f32 %v12378, %v12466
        %12468 = vmatmul.bf16.gmra.mxu0 %v12099
        %v12469 = vpop.f32.mrf.mxu0
        %v12470 = vadd.f32 %v12381, %v12469
        %v12471 = vpop.f32.mrf.mxu0
        %v12472 = vadd.f32 %v12383, %v12471
        %12473 = vmatmul.bf16.gmra.mxu0 %v12103
        %v12474 = vpop.f32.mrf.mxu0
        %v12475 = vadd.f32 %v12386, %v12474
        %v12476 = vpop.f32.mrf.mxu0
        %v12477 = vadd.f32 %v12388, %v12476
        %12478 = vmatmul.bf16.gmra.mxu0 %v12107
        %v12479 = vpop.f32.mrf.mxu0
        %v12480 = vadd.f32 %v12391, %v12479
        %v12481 = vpop.f32.mrf.mxu0
        %v12482 = vadd.f32 %v12393, %v12481
        %12483 = vmatmul.bf16.gmra.mxu0 %v12111
        %v12484 = vpop.f32.mrf.mxu0
        %v12485 = vadd.f32 %v12396, %v12484
        %v12486 = vpop.f32.mrf.mxu0
        %v12487 = vadd.f32 %v12398, %v12486
        %12488 = vmatmul.bf16.gmra.mxu0 %v12115
        %v12489 = vpop.f32.mrf.mxu0
        %v12490 = vadd.f32 %v12401, %v12489
        %v12491 = vpop.f32.mrf.mxu0
        %v12492 = vadd.f32 %v12403, %v12491
        %12493 = vmatmul.bf16.gmra.mxu0 %v12119
        %v12494 = vpop.f32.mrf.mxu0
        %v12495 = vadd.f32 %v12406, %v12494
        %v12496 = vpop.f32.mrf.mxu0
        %v12497 = vadd.f32 %v12408, %v12496
        %12498 = vmatmul.bf16.gmra.mxu0 %v12123
        %v12499 = vpop.f32.mrf.mxu0
        %v12500 = vadd.f32 %v12411, %v12499
        %v12501 = vpop.f32.mrf.mxu0
        %v12502 = vadd.f32 %v12413, %v12501
        %12503 = vmatmul.bf16.gmra.mxu0 %v12127
        %v12504 = vpop.f32.mrf.mxu0
        %v12505 = vadd.f32 %v12416, %v12504
        %v12506 = vpop.f32.mrf.mxu0
        %v12507 = vadd.f32 %v12418, %v12506
        %12508 = vmatmul.bf16.gmra.mxu0 %v12131
        %v12509 = vpop.f32.mrf.mxu0
        %v12510 = vadd.f32 %v12421, %v12509
        %v12511 = vpop.f32.mrf.mxu0
        %v12512 = vadd.f32 %v12423, %v12511
        %12513 = vmatmul.bf16.gmra.mxu0 %v12135
        %v12514 = vpop.f32.mrf.mxu0
        %v12515 = vadd.f32 %v12426, %v12514
        %v12516 = vpop.f32.mrf.mxu0
        %v12517 = vadd.f32 %v12428, %v12516
        %12518 = vmatmul.bf16.gmra.mxu0 %v12139
        %v12519 = vpop.f32.mrf.mxu0
        %v12520 = vadd.f32 %v12431, %v12519
        %v12521 = vpop.f32.mrf.mxu0
        %v12522 = vadd.f32 %v12433, %v12521
        %12523 = vmatmul.bf16.gmra.mxu0 %v12143
        %v12524 = vpop.f32.mrf.mxu0
        %v12525 = vadd.f32 %v12436, %v12524
        %v12526 = vpop.f32.mrf.mxu0
        %v12527 = vadd.f32 %v12438, %v12526
        %12528 = vmatmul.bf16.gmra.mxu0 %v12147
        %v12529 = vpop.f32.mrf.mxu0
        %v12530 = vadd.f32 %v12441, %v12529
        %v12531 = vpop.f32.mrf.mxu0
        %v12532 = vadd.f32 %v12443, %v12531
        %12533 = vmatmul.bf16.gmra.mxu0 %v12151
        %v12534 = vpop.f32.mrf.mxu0
        %v12535 = vadd.f32 %v12446, %v12534
        %v12536 = vpop.f32.mrf.mxu0
        %v12537 = vadd.f32 %v12448, %v12536
        %12538 = vmatmul.bf16.gmra.mxu0 %v12155
        %v12539 = vpop.f32.mrf.mxu0
        %v12540 = vadd.f32 %v12451, %v12539
        %v12541 = vpop.f32.mrf.mxu0
        %v12542 = vadd.f32 %v12453, %v12541
        %12543 = vdwg.mxu0
        %12544 = vmatpush.bf16.msra.mxu0 0
        %12545 = vmatpush.bf16.msra.mxu0 0
        %12546 = vmatpush.bf16.msra.mxu0 0
        %12547 = vmatpush.bf16.msra.mxu0 0
        %12548 = vmatpush.bf16.msra.mxu0 %v12297
        %12549 = vmatpush.bf16.msra.mxu0 %v12296
        %12550 = vmatpush.bf16.msra.mxu0 %v12295
        %12551 = vmatpush.bf16.msra.mxu0 %v12294
        %12552 = vmatmul.bf16.gmra.mxu0 %v12319
        %v12553 = vpop.f32.mrf.mxu0
        %v12554 = vadd.f32 %v12465, %v12553
        %v12555 = vpop.f32.mrf.mxu0
        %v12556 = vadd.f32 %v12467, %v12555
        %12557 = vmatmul.bf16.gmra.mxu0 %v12322
        %v12558 = vpop.f32.mrf.mxu0
        %v12559 = vadd.f32 %v12470, %v12558
        %v12560 = vpop.f32.mrf.mxu0
        %v12561 = vadd.f32 %v12472, %v12560
        %12562 = vmatmul.bf16.gmra.mxu0 %v12325
        %v12563 = vpop.f32.mrf.mxu0
        %v12564 = vadd.f32 %v12475, %v12563
        %v12565 = vpop.f32.mrf.mxu0
        %v12566 = vadd.f32 %v12477, %v12565
        %12567 = vmatmul.bf16.gmra.mxu0 %v12328
        %v12568 = vpop.f32.mrf.mxu0
        %v12569 = vadd.f32 %v12480, %v12568
        %v12570 = vpop.f32.mrf.mxu0
        %v12571 = vadd.f32 %v12482, %v12570
        %12572 = vmatmul.bf16.gmra.mxu0 %v12331
        %v12573 = vpop.f32.mrf.mxu0
        %v12574 = vadd.f32 %v12485, %v12573
        %v12575 = vpop.f32.mrf.mxu0
        %v12576 = vadd.f32 %v12487, %v12575
        %12577 = vmatmul.bf16.gmra.mxu0 %v12334
        %v12578 = vpop.f32.mrf.mxu0
        %v12579 = vadd.f32 %v12490, %v12578
        %v12580 = vpop.f32.mrf.mxu0
        %v12581 = vadd.f32 %v12492, %v12580
        %12582 = vmatmul.bf16.gmra.mxu0 %v12337
        %v12583 = vpop.f32.mrf.mxu0
        %v12584 = vadd.f32 %v12495, %v12583
        %v12585 = vpop.f32.mrf.mxu0
        %v12586 = vadd.f32 %v12497, %v12585
        %12587 = vmatmul.bf16.gmra.mxu0 %v12340
        %v12588 = vpop.f32.mrf.mxu0
        %v12589 = vadd.f32 %v12500, %v12588
        %v12590 = vpop.f32.mrf.mxu0
        %v12591 = vadd.f32 %v12502, %v12590
        %12592 = vmatmul.bf16.gmra.mxu0 %v12343
        %v12593 = vpop.f32.mrf.mxu0
        %v12594 = vadd.f32 %v12505, %v12593
        %v12595 = vpop.f32.mrf.mxu0
        %v12596 = vadd.f32 %v12507, %v12595
        %12597 = vmatmul.bf16.gmra.mxu0 %v12346
        %v12598 = vpop.f32.mrf.mxu0
        %v12599 = vadd.f32 %v12510, %v12598
        %v12600 = vpop.f32.mrf.mxu0
        %v12601 = vadd.f32 %v12512, %v12600
        %12602 = vmatmul.bf16.gmra.mxu0 %v12349
        %v12603 = vpop.f32.mrf.mxu0
        %v12604 = vadd.f32 %v12515, %v12603
        %v12605 = vpop.f32.mrf.mxu0
        %v12606 = vadd.f32 %v12517, %v12605
        %12607 = vmatmul.bf16.gmra.mxu0 %v12352
        %v12608 = vpop.f32.mrf.mxu0
        %v12609 = vadd.f32 %v12520, %v12608
        %v12610 = vpop.f32.mrf.mxu0
        %v12611 = vadd.f32 %v12522, %v12610
        %12612 = vmatmul.bf16.gmra.mxu0 %v12355
        %v12613 = vpop.f32.mrf.mxu0
        %v12614 = vadd.f32 %v12525, %v12613
        %v12615 = vpop.f32.mrf.mxu0
        %v12616 = vadd.f32 %v12527, %v12615
        %12617 = vmatmul.bf16.gmra.mxu0 %v12358
        %v12618 = vpop.f32.mrf.mxu0
        %v12619 = vadd.f32 %v12530, %v12618
        %v12620 = vpop.f32.mrf.mxu0
        %v12621 = vadd.f32 %v12532, %v12620
        %12622 = vmatmul.bf16.gmra.mxu0 %v12361
        %v12623 = vpop.f32.mrf.mxu0
        %v12624 = vadd.f32 %v12535, %v12623
        %v12625 = vpop.f32.mrf.mxu0
        %v12626 = vadd.f32 %v12537, %v12625
        %12627 = vmatmul.bf16.gmra.mxu0 %v12364
        %v12628 = vpop.f32.mrf.mxu0
        %v12629 = vadd.f32 %v12540, %v12628
        %v12630 = vpop.f32.mrf.mxu0
        %v12631 = vadd.f32 %v12542, %v12630
        %12632 = vdwg.mxu0
        %v12633 = vadd.f32 %v11340, %v12554
        %v12634 = vadd.f32 %v11341, %v12556
        %v12635 = vadd.f32 %v11342, %v12559
        %v12636 = vadd.f32 %v11343, %v12561
        %v12637 = vadd.f32 %v11344, %v12564
        %v12638 = vadd.f32 %v11345, %v12566
        %v12639 = vadd.f32 %v11346, %v12569
        %v12640 = vadd.f32 %v11347, %v12571
        %v12641 = vadd.f32 %v11348, %v12574
        %v12642 = vadd.f32 %v11349, %v12576
        %v12643 = vadd.f32 %v11350, %v12579
        %v12644 = vadd.f32 %v11351, %v12581
        %v12645 = vadd.f32 %v11352, %v12584
        %v12646 = vadd.f32 %v11353, %v12586
        %v12647 = vadd.f32 %v11354, %v12589
        %v12648 = vadd.f32 %v11355, %v12591
        %v12649 = vadd.f32 %v11356, %v12594
        %v12650 = vadd.f32 %v11357, %v12596
        %v12651 = vadd.f32 %v11358, %v12599
        %v12652 = vadd.f32 %v11359, %v12601
        %v12653 = vadd.f32 %v11360, %v12604
        %v12654 = vadd.f32 %v11361, %v12606
        %v12655 = vadd.f32 %v11362, %v12609
        %v12656 = vadd.f32 %v11363, %v12611
        %v12657 = vadd.f32 %v11364, %v12614
        %v12658 = vadd.f32 %v11365, %v12616
        %v12659 = vadd.f32 %v11366, %v12619
        %v12660 = vadd.f32 %v11367, %v12621
        %v12661 = vadd.f32 %v11368, %v12624
        %v12662 = vadd.f32 %v11369, %v12626
        %v12663 = vadd.f32 %v11370, %v12629
        %v12664 = vadd.f32 %v11371, %v12631
        %s12665 = scalar_lea.vmem %s4, 3
        %v12666 = vld [vmem:[%s12665] sm:$0x1]
        %v12668 = vperm.slane %v12666, 0
        %v12670 = vadd.f32 %v12633, %v12668
        %v12671 = vadd.f32 %v12634, %v12668
        %v12672 = vadd.f32 %v12635, %v12668
        %v12673 = vadd.f32 %v12636, %v12668
        %v12674 = vadd.f32 %v12637, %v12668
        %v12675 = vadd.f32 %v12638, %v12668
        %v12676 = vadd.f32 %v12639, %v12668
        %v12677 = vadd.f32 %v12640, %v12668
        %v12678 = vadd.f32 %v12641, %v12668
        %v12679 = vadd.f32 %v12642, %v12668
        %v12680 = vadd.f32 %v12643, %v12668
        %v12681 = vadd.f32 %v12644, %v12668
        %v12682 = vadd.f32 %v12645, %v12668
        %v12683 = vadd.f32 %v12646, %v12668
        %v12684 = vadd.f32 %v12647, %v12668
        %v12685 = vadd.f32 %v12648, %v12668
        %v12686 = vadd.f32 %v12649, %v12668
        %v12687 = vadd.f32 %v12650, %v12668
        %v12688 = vadd.f32 %v12651, %v12668
        %v12689 = vadd.f32 %v12652, %v12668
        %v12690 = vadd.f32 %v12653, %v12668
        %v12691 = vadd.f32 %v12654, %v12668
        %v12692 = vadd.f32 %v12655, %v12668
        %v12693 = vadd.f32 %v12656, %v12668
        %v12694 = vadd.f32 %v12657, %v12668
        %v12695 = vadd.f32 %v12658, %v12668
        %v12696 = vadd.f32 %v12659, %v12668
        %v12697 = vadd.f32 %v12660, %v12668
        %v12698 = vadd.f32 %v12661, %v12668
        %v12699 = vadd.f32 %v12662, %v12668
        %v12700 = vadd.f32 %v12663, %v12668
        %v12701 = vadd.f32 %v12664, %v12668
        %v12702 = vmax.f32 %v12670, 0.0
        %v12703 = vmax.f32 %v12671, 0.0
        %v12704 = vmax.f32 %v12672, 0.0
        %v12705 = vmax.f32 %v12673, 0.0
        %v12706 = vmax.f32 %v12674, 0.0
        %v12707 = vmax.f32 %v12675, 0.0
        %v12708 = vmax.f32 %v12676, 0.0
        %v12709 = vmax.f32 %v12677, 0.0
        %v12710 = vmax.f32 %v12678, 0.0
        %v12711 = vmax.f32 %v12679, 0.0
        %v12712 = vmax.f32 %v12680, 0.0
        %v12713 = vmax.f32 %v12681, 0.0
        %v12714 = vmax.f32 %v12682, 0.0
        %v12715 = vmax.f32 %v12683, 0.0
        %v12716 = vmax.f32 %v12684, 0.0
        %v12717 = vmax.f32 %v12685, 0.0
        %v12718 = vmax.f32 %v12686, 0.0
        %v12719 = vmax.f32 %v12687, 0.0
        %v12720 = vmax.f32 %v12688, 0.0
        %v12721 = vmax.f32 %v12689, 0.0
        %v12722 = vmax.f32 %v12690, 0.0
        %v12723 = vmax.f32 %v12691, 0.0
        %v12724 = vmax.f32 %v12692, 0.0
        %v12725 = vmax.f32 %v12693, 0.0
        %v12726 = vmax.f32 %v12694, 0.0
        %v12727 = vmax.f32 %v12695, 0.0
        %v12728 = vmax.f32 %v12696, 0.0
        %v12729 = vmax.f32 %v12697, 0.0
        %v12730 = vmax.f32 %v12698, 0.0
        %v12731 = vmax.f32 %v12699, 0.0
        %v12732 = vmax.f32 %v12700, 0.0
        %v12733 = vmax.f32 %v12701, 0.0
        %12734 = vst.msk [vmem:[%s217] sm:$0xff] %vm3302, %v12702
        %12735 = vst.msk [vmem:[%s217 + $0x8] sm:$0xff] %vm3302, %v12703
        %12736 = vst.msk [vmem:[%s217 + $0x10] sm:$0xff] %vm3302, %v12704
        %12737 = vst.msk [vmem:[%s217 + $0x18] sm:$0xff] %vm3302, %v12705
        %12738 = vst.msk [vmem:[%s217 + $0x20] sm:$0xff] %vm3302, %v12706
        %12739 = vst.msk [vmem:[%s217 + $0x28] sm:$0xff] %vm3302, %v12707
        %12740 = vst.msk [vmem:[%s217 + $0x30] sm:$0xff] %vm3302, %v12708
        %12741 = vst.msk [vmem:[%s217 + $0x38] sm:$0xff] %vm3302, %v12709
        %12742 = vst.msk [vmem:[%s217 + $0x40] sm:$0xff] %vm3302, %v12710
        %12743 = vst.msk [vmem:[%s217 + $0x48] sm:$0xff] %vm3302, %v12711
        %12744 = vst.msk [vmem:[%s217 + $0x50] sm:$0xff] %vm3302, %v12712
        %12745 = vst.msk [vmem:[%s217 + $0x58] sm:$0xff] %vm3302, %v12713
        %12746 = vst.msk [vmem:[%s217 + $0x60] sm:$0xff] %vm3302, %v12714
        %12747 = vst.msk [vmem:[%s217 + $0x68] sm:$0xff] %vm3302, %v12715
        %12748 = vst.msk [vmem:[%s217 + $0x70] sm:$0xff] %vm3302, %v12716
        %12749 = vst.msk [vmem:[%s217 + $0x78] sm:$0xff] %vm3302, %v12717
        %12750 = vst.msk [vmem:[%s217 + $0x80] sm:$0xff] %vm3302, %v12718
        %12751 = vst.msk [vmem:[%s217 + $0x88] sm:$0xff] %vm3302, %v12719
        %12752 = vst.msk [vmem:[%s217 + $0x90] sm:$0xff] %vm3302, %v12720
        %12753 = vst.msk [vmem:[%s217 + $0x98] sm:$0xff] %vm3302, %v12721
        %12754 = vst.msk [vmem:[%s217 + $0xa0] sm:$0xff] %vm3302, %v12722
        %12755 = vst.msk [vmem:[%s217 + $0xa8] sm:$0xff] %vm3302, %v12723
        %12756 = vst.msk [vmem:[%s217 + $0xb0] sm:$0xff] %vm3302, %v12724
        %12757 = vst.msk [vmem:[%s217 + $0xb8] sm:$0xff] %vm3302, %v12725
        %12758 = vst.msk [vmem:[%s217 + $0xc0] sm:$0xff] %vm3302, %v12726
        %12759 = vst.msk [vmem:[%s217 + $0xc8] sm:$0xff] %vm3302, %v12727
        %12760 = vst.msk [vmem:[%s217 + $0xd0] sm:$0xff] %vm3302, %v12728
        %12761 = vst.msk [vmem:[%s217 + $0xd8] sm:$0xff] %vm3302, %v12729
        %12762 = vst.msk [vmem:[%s217 + $0xe0] sm:$0xff] %vm3302, %v12730
        %12763 = vst.msk [vmem:[%s217 + $0xe8] sm:$0xff] %vm3302, %v12731
        %12764 = vst.msk [vmem:[%s217 + $0xf0] sm:$0xff] %vm3302, %v12732
        %12765 = vst.msk [vmem:[%s217 + $0xf8] sm:$0xff] %vm3302, %v12733
        %s12766 = sand.u32 %s137, 1
        %s12767 = scalar_lea.sflag [#allocation5], %s12766
        %s12768 = sand.u32 %s137, 1
        %s12769 = smul.addr %s12768, 256
        %s12770 = scalar_lea.vmem [#allocation4], %s12769
        // Predicated region
        $region41: #{mff_forward.1} parent=39 // pred_check
          %p12771 = pneg %p147
        $region42: #{mff_forward.1} parent=39 // pred_check_branch
          %12773 = sbr.rel (%p12771) target = $region44
        $region43: #{mff_forward.1} parent=39 // pred_region
          %12775 = vsyncadd %s12767, 0
          %s12776 = smul.addr %s19, 32
          %s12777 = smul.addr %s12776, 8
          %s12778 = scalar_lea.hbm %s5, %s12777
          %s12779 = sshll.u32 %s12770, 4
          %s12780 = int_to_ptr.vmem [resolvable:$true] %s12779
          %s12781 = sshll.u32 %s12778, 4
          %s12782 = int_to_ptr.hbm [resolvable:$true] %s12781
          %12787 = dma.vmem_to_hbm [thread:$0]  %s12780, 4096, %s12782, %s12767, 128, 128, 8
        $region44: #{mff_forward.1} parent=39 // pred_fallthru
          _
      $region40: #{mff_forward.1} parent=5 // pred_fallthru
        _
      %p12788 = scmp.le.s32.totalorder 2, %s14
      // Predicated region
      $region45: #{mff_forward.1} parent=5 // pred_check
        %p12789 = pneg %p12788
      $region46: #{mff_forward.1} parent=5 // pred_check_branch
        %12791 = sbr.rel (%p12789) target = $region48
      $region47: #{mff_forward.1} parent=5 // pred_region
        %s12792 = ssub.s32 %s14, 2
        // Predicated region
        $region49: #{mff_forward.1} parent=47 // pred_check
          %p12793 = pneg %p153
        $region50: #{mff_forward.1} parent=47 // pred_check_branch
          %12795 = sbr.rel (%p12793) target = $region52
        $region51: #{mff_forward.1} parent=47 // pred_region
          %s12796 = sand.u32 %s138, 1
          %s12797 = scalar_lea.sflag [#allocation5], %s12796
          %s12798 = sand.u32 %s138, 1
          %s12799 = smul.addr %s12798, 256
          %s12800 = scalar_lea.vmem [#allocation4], %s12799
          %12802 = dma.done %s12797, 4096
        $region52: #{mff_forward.1} parent=47 // pred_fallthru
          _
      $region48: #{mff_forward.1} parent=5 // pred_fallthru
        _
    $region6: #{mff_forward.1} parent=1 // loop_footer
      %s18 = sadd.s32 1, %s14
    $region7: #{mff_forward.1} parent=1 // loop_footer_branch
      %13 = sbr.rel target = $region3
    $region8: #{mff_forward.1} parent=1 // loop_exit
      _
    %12803 = vsyncpa [#allocation5], 1
    %s12804 = scalar_lea.sflag [#allocation5], 1
    %12805 = vsyncpa %s12804, 1

</llo_original>
